<compile_context>
chip_gen: v5e
topology: v5e:2x2
jax: 0.10.0
libtpu: 0.0.40
codegen_flags: <defaults>
</compile_context>

<pallas_src>
import jax
import jax.numpy as jnp
from jax.experimental import pallas as pl
from jax.experimental.pallas import tpu as pltpu

_EPS = 1e-5  # PyTorch InstanceNorm3d default eps
_VMEM_LIMIT = 32 * 1024 * 1024


def _round_up(x, m):
    return ((x + m - 1) // m) * m


def _cparams():
    return pltpu.CompilerParams(dimension_semantics=("parallel",),
                                vmem_limit_bytes=_VMEM_LIMIT)


# ---------------------------------------------------------------------------
# Kernel 1: ConvTranspose3d(k=2, s=2) == one matmul; bias + PReLU fused epilogue
# ---------------------------------------------------------------------------
def _upconv_kernel(x_ref, w_ref, b_ref, a_ref, o_ref):
    # x: (1, C1, S1) bf16, w: (8*C2, C1) bf16, b: (8*C2, 1) f32, a: (1, 1) f32
    y = jnp.dot(w_ref[...], x_ref[0], preferred_element_type=jnp.float32)
    y = y + b_ref[...]
    a = a_ref[0]
    o_ref[0] = jnp.where(y >= 0.0, y, a * y)


def upconv_prelu(x1_flat, w_rows, b_rows, alpha):
    N, C1, S1 = x1_flat.shape
    R = w_rows.shape[0]
    return pl.pallas_call(
        _upconv_kernel,
        grid=(N,),
        in_specs=[
            pl.BlockSpec((1, C1, S1), lambda n: (n, 0, 0)),
            pl.BlockSpec((R, C1), lambda n: (0, 0)),
            pl.BlockSpec((R, 1), lambda n: (0, 0)),
            pl.BlockSpec((1, 1), lambda n: (0, 0)),
        ],
        out_specs=pl.BlockSpec((1, R, S1), lambda n: (n, 0, 0)),
        out_shape=jax.ShapeDtypeStruct((N, R, S1), jnp.float32),
        compiler_params=_cparams(),
    )(x1_flat, w_rows, b_rows, alpha.reshape(1, 1).astype(jnp.float32))


# ---------------------------------------------------------------------------
# Kernel 2: 'same' 3-D conv(s) via in-VMEM tap accumulation (no HBM im2col),
#           bias + PReLU fused.  Several convs can share one input read.
# ---------------------------------------------------------------------------
def conv3d_taps_prelu(x_flat, weight_sets, bias_sets, alphas, offset_sets, q_out):
    """x_flat: (N, Cin, Q_in) bf16 zero-halo-padded flattened volume.
    weight_sets[j]: (T_j, Cout_j, Cin) bf16; bias_sets[j]: (Cout_j, 1) f32;
    alphas: (n_sets, 1) f32; offset_sets[j]: static flat tap offsets.
    Returns tuple of (N, Cout_j, q_out) f32 post-bias/PReLU 'extended' outputs."""
    N, Cin, Qin = x_flat.shape
    n_sets = len(weight_sets)
    couts = [int(w.shape[1]) for w in weight_sets]

    def kernel(*refs):
        x_ref = refs[0]
        w_refs = refs[1:1 + n_sets]
        b_refs = refs[1 + n_sets:1 + 2 * n_sets]
        a_ref = refs[1 + 2 * n_sets]
        o_refs = refs[2 + 2 * n_sets:]
        for j in range(n_sets):
            acc = jnp.zeros((couts[j], q_out), jnp.float32)
            for t, off in enumerate(offset_sets[j]):
                xs = x_ref[0, :, off:off + q_out]                # (Cin, q_out) bf16
                acc = acc + jnp.dot(w_refs[j][t], xs,
                                    preferred_element_type=jnp.float32)
            y = acc + b_refs[j][...]                             # fused bias
            a = a_ref[j]
            o_refs[j][0] = jnp.where(y >= 0.0, y, a * y)         # fused PReLU

    in_specs = [pl.BlockSpec((1, Cin, Qin), lambda n: (n, 0, 0))]
    for w in weight_sets:
        in_specs.append(pl.BlockSpec(tuple(w.shape), lambda n: (0, 0, 0)))
    for b in bias_sets:
        in_specs.append(pl.BlockSpec(tuple(b.shape), lambda n: (0, 0)))
    in_specs.append(pl.BlockSpec((n_sets, 1), lambda n: (0, 0)))

    out_specs = tuple(pl.BlockSpec((1, c, q_out), lambda n: (n, 0, 0)) for c in couts)
    out_shape = tuple(jax.ShapeDtypeStruct((N, c, q_out), jnp.float32) for c in couts)

    return pl.pallas_call(
        kernel,
        grid=(N,),
        in_specs=in_specs,
        out_specs=out_specs,
        out_shape=out_shape,
        compiler_params=_cparams(),
    )(x_flat, *weight_sets, *bias_sets, alphas.astype(jnp.float32))


# ---------------------------------------------------------------------------
# Kernel 3: InstanceNorm3d (no affine), per-row stats, S on the lane axis.
# ---------------------------------------------------------------------------
def _in_kernel(x_ref, o_ref):
    x = x_ref[...]
    mean = jnp.mean(x, axis=1, keepdims=True)
    c = x - mean
    var = jnp.mean(c * c, axis=1, keepdims=True)
    o_ref[...] = c * jax.lax.rsqrt(var + _EPS)


def _in_res_kernel(x_ref, r_ref, o_ref):
    x = x_ref[...]
    mean = jnp.mean(x, axis=1, keepdims=True)
    c = x - mean
    var = jnp.mean(c * c, axis=1, keepdims=True)
    o_ref[...] = c * jax.lax.rsqrt(var + _EPS) + r_ref[...]


def instance_norm_rows(x, res=None, row_tile=8):
    R, S = x.shape
    row_tile = min(row_tile, R)
    spec = pl.BlockSpec((row_tile, S), lambda i: (i, 0))
    if res is None:
        kern, ops, specs = _in_kernel, (x,), [spec]
    else:
        kern, ops, specs = _in_res_kernel, (x, res), [spec, spec]
    return pl.pallas_call(
        kern,
        grid=(pl.cdiv(R, row_tile),),
        in_specs=specs,
        out_specs=spec,
        out_shape=jax.ShapeDtypeStruct((R, S), jnp.float32),
        compiler_params=_cparams(),
    )(*ops)


# ---------------------------------------------------------------------------
# JAX-side layout plumbing (zero-halo padding, flattening, valid extraction)
# ---------------------------------------------------------------------------
def _pad_flatten_bf16(x, q_alloc):
    # x: (N, C, D, H, W) -> (N, C, q_alloc) bf16, zero halo + flat tail padding.
    xp = jnp.pad(x, ((0, 0), (0, 0), (1, 1), (1, 1), (1, 1)))
    N, C = x.shape[:2]
    xf = xp.reshape(N, C, -1)
    xf = jnp.pad(xf, ((0, 0), (0, 0), (0, q_alloc - xf.shape[-1])))
    return xf.astype(jnp.bfloat16)


def _extract_valid(ye, D2, H2, W2):
    # ye: (N, C, q_out) extended conv output -> (N*C, D2*H2*W2) valid voxels.
    N, C, _ = ye.shape
    Hp, Wp = H2 + 2, W2 + 2
    v = ye[:, :, :D2 * Hp * Wp].reshape(N, C, D2, Hp, Wp)[:, :, :, :H2, :W2]
    return v.reshape(N * C, D2 * H2 * W2)


# ---------------------------------------------------------------------------
# Forward pass of Up (NCDHW in / NCDHW out)
# ---------------------------------------------------------------------------
def up_forward(params, x1, x2):
    N, C1, D, H, W = x1.shape
    C2 = x2.shape[1]
    D2, H2, W2 = 2 * D, 2 * H, 2 * W
    S1 = D * H * W
    S = D2 * H2 * W2
    Cout = params["c1_w"].shape[0]
    Ccat = 2 * C2

    # --- up: ConvTranspose3d(k=2, s=2) -> PReLU (fused) -> InstanceNorm -------
    x1f = x1.reshape(N, C1, S1).astype(jnp.bfloat16)
    w_up = jnp.transpose(params["up_w"], (1, 2, 3, 4, 0)).reshape(8 * C2, C1)
    b_up = jnp.repeat(params["up_b"], 8).reshape(8 * C2, 1).astype(jnp.float32)
    y = upconv_prelu(x1f, w_up.astype(jnp.bfloat16), b_up, params["up_a"])
    # IN stats are order-independent -> normalize on the tap-major layout, then
    # pixel-shuffle the 2x2x2 taps into the upsampled grid.
    y = instance_norm_rows(y.reshape(N * C2, 8 * S1))
    y = y.reshape(N, C2, 2, 2, 2, D, H, W)
    y = jnp.transpose(y, (0, 1, 5, 2, 6, 3, 7, 4)).reshape(N, C2, D2, H2, W2)

    # --- concat + zero halo, materialized once and shared by conv1 & match ----
    xcat = jnp.concatenate([y, x2.astype(jnp.float32)], axis=1)
    Dp, Hp, Wp = D2 + 2, H2 + 2, W2 + 2
    q_out = _round_up(D2 * Hp * Wp, 128)                  # lane-dense output width
    max_off = 2 * Hp * Wp + 2 * Wp + 2
    q_in = _round_up(max(Dp * Hp * Wp, q_out + max_off), 128)
    xcat_f = _pad_flatten_bf16(xcat, q_in)

    offs_3x3 = [kd * Hp * Wp + kh * Wp + kw
                for kd in range(3) for kh in range(3) for kw in range(3)]
    off_c = [Hp * Wp + Wp + 1]                             # center tap (1x1 conv)

    w1 = jnp.transpose(params["c1_w"], (2, 3, 4, 0, 1)).reshape(27, Cout, Ccat)
    b1 = params["c1_b"].reshape(Cout, 1).astype(jnp.float32)

    if "m_w" in params:
        wm = params["m_w"].reshape(1, Cout, Ccat)
        bm = params["m_b"].reshape(Cout, 1).astype(jnp.float32)
        alphas1 = jnp.concatenate([params["c1_a"], params["m_a"]]).reshape(2, 1)
        ye1, yem = conv3d_taps_prelu(
            xcat_f,
            [w1.astype(jnp.bfloat16), wm.astype(jnp.bfloat16)],
            [b1, bm], alphas1, [offs_3x3, off_c], q_out)
        ident = instance_norm_rows(_extract_valid(yem, D2, H2, W2))
    else:
        (ye1,) = conv3d_taps_prelu(
            xcat_f, [w1.astype(jnp.bfloat16)], [b1],
            params["c1_a"].reshape(1, 1), [offs_3x3], q_out)
        ident = xcat.reshape(N * Ccat, S)                  # Ccat == Cout here

    h1 = instance_norm_rows(_extract_valid(ye1, D2, H2, W2))      # (N*Cout, S)

    # --- second 3x3x3 conv of DoubleConv -> PReLU (fused) -> IN + residual ----
    h1f = _pad_flatten_bf16(h1.reshape(N, Cout, D2, H2, W2), q_in)
    w2 = jnp.transpose(params["c2_w"], (2, 3, 4, 0, 1)).reshape(27, Cout, Cout)
    b2 = params["c2_b"].reshape(Cout, 1).astype(jnp.float32)
    (ye2,) = conv3d_taps_prelu(
        h1f, [w2.astype(jnp.bfloat16)], [b2],
        params["c2_a"].reshape(1, 1), [offs_3x3], q_out)

    out = instance_norm_rows(_extract_valid(ye2, D2, H2, W2), res=ident)
    return out.reshape(N, Cout, D2, H2, W2)                # NCDHW


# ---------------------------------------------------------------------------
# Deterministic parameter init (shapes follow the PyTorch __init__)
# ---------------------------------------------------------------------------
def init_params(key, in_channels1, in_channels2, out_channels):
    ks = jax.random.split(key, 8)
    f32 = jnp.float32
    scale = 0.1
    cat = 2 * in_channels2
    return {
        "up_w": scale * jax.random.normal(ks[0], (in_channels1, in_channels2, 2, 2, 2), f32),
        "up_b": scale * jax.random.normal(ks[1], (in_channels2,), f32),
        "up_a": jnp.array([0.25], f32),
        "m_w": scale * jax.random.normal(ks[2], (out_channels, cat, 1, 1, 1), f32),
        "m_b": scale * jax.random.normal(ks[3], (out_channels,), f32),
        "m_a": jnp.array([0.25], f32),
        "c1_w": scale * jax.random.normal(ks[4], (out_channels, cat, 3, 3, 3), f32),
        "c1_b": scale * jax.random.normal(ks[5], (out_channels,), f32),
        "c1_a": jnp.array([0.25], f32),
        "c2_w": scale * jax.random.normal(ks[6], (out_channels, out_channels, 3, 3, 3), f32),
        "c2_b": scale * jax.random.normal(ks[7], (out_channels,), f32),
        "c2_a": jnp.array([0.25], f32),
    }


if __name__ == "__main__":
    key = jax.random.PRNGKey(0)
    k_x1, k_x2, k_p = jax.random.split(key, 3)

    in_channels1, in_channels2, out_channels = 8, 4, 4
    N, D, H, W = 2, 4, 4, 4

    x1 = jax.random.normal(k_x1, (N, in_channels1, D, H, W), jnp.float32)
    x2 = jax.random.normal(k_x2, (N, in_channels2, 2 * D, 2 * H, 2 * W), jnp.float32)

    params = init_params(k_p, in_channels1, in_channels2, out_channels)

    fwd = jax.jit(up_forward)
    out = fwd(params, x1, x2)
    jax.block_until_ready(out)

    assert out.shape == (N, out_channels, 2 * D, 2 * H, 2 * W), out.shape
    assert jnp.all(jnp.isfinite(out))
    print("KERNEL_OK")
</pallas_src>

<mosaic_0001>
module attributes {stable_mosaic.version = 11 : i64} {
  func.func @_upconv_kernel(%arg0: i32, %arg1: memref<1x8x64xbf16, #tpu.memory_space<vmem>>, %arg2: memref<32x8xbf16, #tpu.memory_space<vmem>>, %arg3: memref<32x1xf32, #tpu.memory_space<vmem>>, %arg4: memref<1x1xf32, #tpu.memory_space<vmem>>, %arg5: memref<1x32x64xf32, #tpu.memory_space<vmem>>) attributes {dimension_semantics = [#tpu.dimension_semantics<parallel>], iteration_bounds = array<i64: 2>, scalar_prefetch = 0 : i64, scratch_operands = 0 : i64, tpu.core_type = #tpu.core_type<tc>, window_params = [{transform_indices = @transform_0, window_bounds = array<i64: 1, 8, 64>}, {pipeline_mode = #tpu.pipeline_mode<synchronous>, transform_indices = @transform_1, window_bounds = array<i64: 32, 8>}, {pipeline_mode = #tpu.pipeline_mode<synchronous>, transform_indices = @transform_2, window_bounds = array<i64: 32, 1>}, {pipeline_mode = #tpu.pipeline_mode<synchronous>, transform_indices = @transform_3, window_bounds = array<i64: 1, 1>}, {transform_indices = @transform_4, window_bounds = array<i64: 1, 32, 64>}]} {
    %c0 = arith.constant 0 : index
    %c0_0 = arith.constant 0 : index
    %0 = vector.load %arg2[%c0, %c0_0] : memref<32x8xbf16, #tpu.memory_space<vmem>>, vector<32x8xbf16>
    %c0_1 = arith.constant 0 : index
    %c0_2 = arith.constant 0 : index
    %c0_3 = arith.constant 0 : index
    %1 = vector.load %arg1[%c0_1, %c0_2, %c0_3] : memref<1x8x64xbf16, #tpu.memory_space<vmem>>, vector<1x8x64xbf16>
    %2 = vector.shape_cast %1 : vector<1x8x64xbf16> to vector<8x64xbf16>
    %cst = arith.constant dense<0.000000e+00> : vector<32x64xf32>
    %3 = tpu.matmul %0, %2, %cst {dimension_numbers = #tpu.dot_dimension_numbers<[1], [0], [0], [1], [0, 0, 1, 1], [], []>} : vector<32x8xbf16>, vector<8x64xbf16>, vector<32x64xf32> -> vector<32x64xf32>
    %c0_4 = arith.constant 0 : index
    %c0_5 = arith.constant 0 : index
    %4 = vector.load %arg3[%c0_4, %c0_5] : memref<32x1xf32, #tpu.memory_space<vmem>>, vector<32x1xf32>
    %5 = vector.broadcast %4 : vector<32x1xf32> to vector<32x64xf32>
    %6 = arith.addf %3, %5 : vector<32x64xf32>
    %c0_6 = arith.constant 0 : index
    %c0_7 = arith.constant 0 : index
    %7 = vector.load %arg4[%c0_6, %c0_7] : memref<1x1xf32, #tpu.memory_space<vmem>>, vector<1x1xf32>
    %8 = vector.shape_cast %7 : vector<1x1xf32> to vector<1xf32>
    %cst_8 = arith.constant 0.000000e+00 : f32
    %9 = vector.broadcast %cst_8 : f32 to vector<32x64xf32>
    %10 = arith.cmpf oge, %6, %9 : vector<32x64xf32>
    %11 = vector.shape_cast %8 : vector<1xf32> to vector<1x1xf32>
    %12 = vector.broadcast %11 : vector<1x1xf32> to vector<32x64xf32>
    %13 = arith.mulf %12, %6 : vector<32x64xf32>
    %14 = arith.select %10, %6, %13 : vector<32x64xi1>, vector<32x64xf32>
    %c0_9 = arith.constant 0 : index
    %c0_10 = arith.constant 0 : index
    %c0_11 = arith.constant 0 : index
    %15 = vector.load %arg5[%c0_9, %c0_10, %c0_11] : memref<1x32x64xf32, #tpu.memory_space<vmem>>, vector<1x32x64xf32>
    %16 = vector.shape_cast %15 : vector<1x32x64xf32> to vector<32x64xf32>
    %17 = vector.shape_cast %14 : vector<32x64xf32> to vector<1x32x64xf32>
    tpu.vector_store %arg5[%c0_9, %c0_10, %c0_11], %17 {strides = array<i32>} : memref<1x32x64xf32, #tpu.memory_space<vmem>>, vector<1x32x64xf32>,
    return
  }
  func.func @transform_0(%arg0: i32) -> (i32, i32, i32) {
    %c0_i32 = arith.constant 0 : i32
    %c0_i32_0 = arith.constant 0 : i32
    %c0_i32_1 = arith.constant 0 : i32
    return %arg0, %c0_i32, %c0_i32_0 : i32, i32, i32
  }
  func.func @transform_1(%arg0: i32) -> (i32, i32) {
    %c0_i32 = arith.constant 0 : i32
    %c0_i32_0 = arith.constant 0 : i32
    %c0_i32_1 = arith.constant 0 : i32
    return %c0_i32, %c0_i32_0 : i32, i32
  }
  func.func @transform_2(%arg0: i32) -> (i32, i32) {
    %c0_i32 = arith.constant 0 : i32
    %c0_i32_0 = arith.constant 0 : i32
    %c0_i32_1 = arith.constant 0 : i32
    return %c0_i32, %c0_i32_0 : i32, i32
  }
  func.func @transform_3(%arg0: i32) -> (i32, i32) {
    %c0_i32 = arith.constant 0 : i32
    %c0_i32_0 = arith.constant 0 : i32
    %c0_i32_1 = arith.constant 0 : i32
    return %c0_i32, %c0_i32_0 : i32, i32
  }
  func.func @transform_4(%arg0: i32) -> (i32, i32, i32) {
    %c0_i32 = arith.constant 0 : i32
    %c0_i32_0 = arith.constant 0 : i32
    %c0_i32_1 = arith.constant 0 : i32
    return %arg0, %c0_i32, %c0_i32_0 : i32, i32, i32
  }
}

module attributes {stable_mosaic.version = 11 : i64} {
  func.func @_in_kernel(%arg0: i32, %arg1: memref<8x512xf32, #tpu.memory_space<vmem>>, %arg2: memref<8x512xf32, #tpu.memory_space<vmem>>) attributes {dimension_semantics = [#tpu.dimension_semantics<parallel>], iteration_bounds = array<i64: 1>, scalar_prefetch = 0 : i64, scratch_operands = 0 : i64, tpu.core_type = #tpu.core_type<tc>, window_params = [{transform_indices = @transform_0, window_bounds = array<i64: 8, 512>}, {transform_indices = @transform_1, window_bounds = array<i64: 8, 512>}]} {
    %c0 = arith.constant 0 : index
    %c0_0 = arith.constant 0 : index
    %0 = vector.load %arg1[%c0, %c0_0] : memref<8x512xf32, #tpu.memory_space<vmem>>, vector<8x512xf32>
    %cst = arith.constant dense<0.000000e+00> : vector<8xf32>
    %1 = vector.multi_reduction <add>, %0, %cst [1] : vector<8x512xf32> to vector<8xf32>
    %2 = vector.shape_cast %1 : vector<8xf32> to vector<8x1xf32>
    %cst_1 = arith.constant 5.120000e+02 : f32
    %3 = vector.broadcast %cst_1 : f32 to vector<8x1xf32>
    %4 = arith.divf %2, %3 : vector<8x1xf32>
    %5 = vector.broadcast %4 : vector<8x1xf32> to vector<8x512xf32>
    %6 = arith.subf %0, %5 : vector<8x512xf32>
    %7 = arith.mulf %6, %6 : vector<8x512xf32>
    %cst_2 = arith.constant dense<0.000000e+00> : vector<8xf32>
    %8 = vector.multi_reduction <add>, %7, %cst_2 [1] : vector<8x512xf32> to vector<8xf32>
    %9 = vector.shape_cast %8 : vector<8xf32> to vector<8x1xf32>
    %cst_3 = arith.constant 5.120000e+02 : f32
    %10 = vector.broadcast %cst_3 : f32 to vector<8x1xf32>
    %11 = arith.divf %9, %10 : vector<8x1xf32>
    %cst_4 = arith.constant 9.99999974E-6 : f32
    %12 = vector.broadcast %cst_4 : f32 to vector<8x1xf32>
    %13 = arith.addf %11, %12 : vector<8x1xf32>
    %14 = math.rsqrt %13 : vector<8x1xf32>
    %15 = vector.broadcast %14 : vector<8x1xf32> to vector<8x512xf32>
    %16 = arith.mulf %6, %15 : vector<8x512xf32>
    %c0_5 = arith.constant 0 : index
    %c0_6 = arith.constant 0 : index
    %17 = vector.load %arg2[%c0_5, %c0_6] : memref<8x512xf32, #tpu.memory_space<vmem>>, vector<8x512xf32>
    tpu.vector_store %arg2[%c0_5, %c0_6], %16 {strides = array<i32>} : memref<8x512xf32, #tpu.memory_space<vmem>>, vector<8x512xf32>,
    return
  }
  func.func @transform_0(%arg0: i32) -> (i32, i32) {
    %c0_i32 = arith.constant 0 : i32
    %c0_i32_0 = arith.constant 0 : i32
    return %arg0, %c0_i32 : i32, i32
  }
  func.func @transform_1(%arg0: i32) -> (i32, i32) {
    %c0_i32 = arith.constant 0 : i32
    %c0_i32_0 = arith.constant 0 : i32
    return %arg0, %c0_i32 : i32, i32
  }
}

module attributes {stable_mosaic.version = 11 : i64} {
  func.func @kernel(%arg0: i32, %arg1: memref<1x8x1152xbf16, #tpu.memory_space<vmem>>, %arg2: memref<27x4x8xbf16, #tpu.memory_space<vmem>>, %arg3: memref<1x4x8xbf16, #tpu.memory_space<vmem>>, %arg4: memref<4x1xf32, #tpu.memory_space<vmem>>, %arg5: memref<4x1xf32, #tpu.memory_space<vmem>>, %arg6: memref<2x1xf32, #tpu.memory_space<vmem>>, %arg7: memref<1x4x896xf32, #tpu.memory_space<vmem>>, %arg8: memref<1x4x896xf32, #tpu.memory_space<vmem>>) attributes {dimension_semantics = [#tpu.dimension_semantics<parallel>], iteration_bounds = array<i64: 2>, scalar_prefetch = 0 : i64, scratch_operands = 0 : i64, tpu.core_type = #tpu.core_type<tc>, window_params = [{transform_indices = @transform_0, window_bounds = array<i64: 1, 8, 1152>}, {pipeline_mode = #tpu.pipeline_mode<synchronous>, transform_indices = @transform_1, window_bounds = array<i64: 27, 4, 8>}, {pipeline_mode = #tpu.pipeline_mode<synchronous>, transform_indices = @transform_2, window_bounds = array<i64: 1, 4, 8>}, {pipeline_mode = #tpu.pipeline_mode<synchronous>, transform_indices = @transform_3, window_bounds = array<i64: 4, 1>}, {pipeline_mode = #tpu.pipeline_mode<synchronous>, transform_indices = @transform_4, window_bounds = array<i64: 4, 1>}, {pipeline_mode = #tpu.pipeline_mode<synchronous>, transform_indices = @transform_5, window_bounds = array<i64: 2, 1>}, {transform_indices = @transform_6, window_bounds = array<i64: 1, 4, 896>}, {transform_indices = @transform_7, window_bounds = array<i64: 1, 4, 896>}]} {
    %cst = arith.constant 0.000000e+00 : f32
    %0 = vector.broadcast %cst : f32 to vector<4x896xf32>
    %c0 = arith.constant 0 : index
    %c0_0 = arith.constant 0 : index
    %c0_1 = arith.constant 0 : index
    %1 = vector.load %arg1[%c0, %c0_0, %c0_1] : memref<1x8x1152xbf16, #tpu.memory_space<vmem>>, vector<1x8x896xbf16>
    %2 = vector.shape_cast %1 : vector<1x8x896xbf16> to vector<8x896xbf16>
    %c0_2 = arith.constant 0 : index
    %c0_3 = arith.constant 0 : index
    %c0_4 = arith.constant 0 : index
    %3 = vector.load %arg2[%c0_2, %c0_3, %c0_4] : memref<27x4x8xbf16, #tpu.memory_space<vmem>>, vector<1x4x8xbf16>
    %4 = vector.shape_cast %3 : vector<1x4x8xbf16> to vector<4x8xbf16>
    %cst_5 = arith.constant dense<0.000000e+00> : vector<4x896xf32>
    %5 = tpu.matmul %4, %2, %cst_5 {dimension_numbers = #tpu.dot_dimension_numbers<[1], [0], [0], [1], [0, 0, 1, 1], [], []>} : vector<4x8xbf16>, vector<8x896xbf16>, vector<4x896xf32> -> vector<4x896xf32>
    %6 = arith.addf %0, %5 : vector<4x896xf32>
    %c0_6 = arith.constant 0 : index
    %c0_7 = arith.constant 0 : index
    %c1 = arith.constant 1 : index
    %7 = vector.load %arg1[%c0_6, %c0_7, %c1] : memref<1x8x1152xbf16, #tpu.memory_space<vmem>>, vector<1x8x896xbf16>
    %8 = vector.shape_cast %7 : vector<1x8x896xbf16> to vector<8x896xbf16>
    %c1_8 = arith.constant 1 : index
    %c0_9 = arith.constant 0 : index
    %c0_10 = arith.constant 0 : index
    %9 = vector.load %arg2[%c1_8, %c0_9, %c0_10] : memref<27x4x8xbf16, #tpu.memory_space<vmem>>, vector<1x4x8xbf16>
    %10 = vector.shape_cast %9 : vector<1x4x8xbf16> to vector<4x8xbf16>
    %cst_11 = arith.constant dense<0.000000e+00> : vector<4x896xf32>
    %11 = tpu.matmul %10, %8, %cst_11 {dimension_numbers = #tpu.dot_dimension_numbers<[1], [0], [0], [1], [0, 0, 1, 1], [], []>} : vector<4x8xbf16>, vector<8x896xbf16>, vector<4x896xf32> -> vector<4x896xf32>
    %12 = arith.addf %6, %11 : vector<4x896xf32>
    %c0_12 = arith.constant 0 : index
    %c0_13 = arith.constant 0 : index
    %c2 = arith.constant 2 : index
    %13 = vector.load %arg1[%c0_12, %c0_13, %c2] : memref<1x8x1152xbf16, #tpu.memory_space<vmem>>, vector<1x8x896xbf16>
    %14 = vector.shape_cast %13 : vector<1x8x896xbf16> to vector<8x896xbf16>
    %c2_14 = arith.constant 2 : index
    %c0_15 = arith.constant 0 : index
    %c0_16 = arith.constant 0 : index
    %15 = vector.load %arg2[%c2_14, %c0_15, %c0_16] : memref<27x4x8xbf16, #tpu.memory_space<vmem>>, vector<1x4x8xbf16>
    %16 = vector.shape_cast %15 : vector<1x4x8xbf16> to vector<4x8xbf16>
    %cst_17 = arith.constant dense<0.000000e+00> : vector<4x896xf32>
    %17 = tpu.matmul %16, %14, %cst_17 {dimension_numbers = #tpu.dot_dimension_numbers<[1], [0], [0], [1], [0, 0, 1, 1], [], []>} : vector<4x8xbf16>, vector<8x896xbf16>, vector<4x896xf32> -> vector<4x896xf32>
    %18 = arith.addf %12, %17 : vector<4x896xf32>
    %c0_18 = arith.constant 0 : index
    %c0_19 = arith.constant 0 : index
    %c10 = arith.constant 10 : index
    %19 = vector.load %arg1[%c0_18, %c0_19, %c10] : memref<1x8x1152xbf16, #tpu.memory_space<vmem>>, vector<1x8x896xbf16>
    %20 = vector.shape_cast %19 : vector<1x8x896xbf16> to vector<8x896xbf16>
    %c3 = arith.constant 3 : index
    %c0_20 = arith.constant 0 : index
    %c0_21 = arith.constant 0 : index
    %21 = vector.load %arg2[%c3, %c0_20, %c0_21] : memref<27x4x8xbf16, #tpu.memory_space<vmem>>, vector<1x4x8xbf16>
    %22 = vector.shape_cast %21 : vector<1x4x8xbf16> to vector<4x8xbf16>
    %cst_22 = arith.constant dense<0.000000e+00> : vector<4x896xf32>
    %23 = tpu.matmul %22, %20, %cst_22 {dimension_numbers = #tpu.dot_dimension_numbers<[1], [0], [0], [1], [0, 0, 1, 1], [], []>} : vector<4x8xbf16>, vector<8x896xbf16>, vector<4x896xf32> -> vector<4x896xf32>
    %24 = arith.addf %18, %23 : vector<4x896xf32>
    %c0_23 = arith.constant 0 : index
    %c0_24 = arith.constant 0 : index
    %c11 = arith.constant 11 : index
    %25 = vector.load %arg1[%c0_23, %c0_24, %c11] : memref<1x8x1152xbf16, #tpu.memory_space<vmem>>, vector<1x8x896xbf16>
    %26 = vector.shape_cast %25 : vector<1x8x896xbf16> to vector<8x896xbf16>
    %c4 = arith.constant 4 : index
    %c0_25 = arith.constant 0 : index
    %c0_26 = arith.constant 0 : index
    %27 = vector.load %arg2[%c4, %c0_25, %c0_26] : memref<27x4x8xbf16, #tpu.memory_space<vmem>>, vector<1x4x8xbf16>
    %28 = vector.shape_cast %27 : vector<1x4x8xbf16> to vector<4x8xbf16>
    %cst_27 = arith.constant dense<0.000000e+00> : vector<4x896xf32>
    %29 = tpu.matmul %28, %26, %cst_27 {dimension_numbers = #tpu.dot_dimension_numbers<[1], [0], [0], [1], [0, 0, 1, 1], [], []>} : vector<4x8xbf16>, vector<8x896xbf16>, vector<4x896xf32> -> vector<4x896xf32>
    %30 = arith.addf %24, %29 : vector<4x896xf32>
    %c0_28 = arith.constant 0 : index
    %c0_29 = arith.constant 0 : index
    %c12 = arith.constant 12 : index
    %31 = vector.load %arg1[%c0_28, %c0_29, %c12] : memref<1x8x1152xbf16, #tpu.memory_space<vmem>>, vector<1x8x896xbf16>
    %32 = vector.shape_cast %31 : vector<1x8x896xbf16> to vector<8x896xbf16>
    %c5 = arith.constant 5 : index
    %c0_30 = arith.constant 0 : index
    %c0_31 = arith.constant 0 : index
    %33 = vector.load %arg2[%c5, %c0_30, %c0_31] : memref<27x4x8xbf16, #tpu.memory_space<vmem>>, vector<1x4x8xbf16>
    %34 = vector.shape_cast %33 : vector<1x4x8xbf16> to vector<4x8xbf16>
    %cst_32 = arith.constant dense<0.000000e+00> : vector<4x896xf32>
    %35 = tpu.matmul %34, %32, %cst_32 {dimension_numbers = #tpu.dot_dimension_numbers<[1], [0], [0], [1], [0, 0, 1, 1], [], []>} : vector<4x8xbf16>, vector<8x896xbf16>, vector<4x896xf32> -> vector<4x896xf32>
    %36 = arith.addf %30, %35 : vector<4x896xf32>
    %c0_33 = arith.constant 0 : index
    %c0_34 = arith.constant 0 : index
    %c20 = arith.constant 20 : index
    %37 = vector.load %arg1[%c0_33, %c0_34, %c20] : memref<1x8x1152xbf16, #tpu.memory_space<vmem>>, vector<1x8x896xbf16>
    %38 = vector.shape_cast %37 : vector<1x8x896xbf16> to vector<8x896xbf16>
    %c6 = arith.constant 6 : index
    %c0_35 = arith.constant 0 : index
    %c0_36 = arith.constant 0 : index
    %39 = vector.load %arg2[%c6, %c0_35, %c0_36] : memref<27x4x8xbf16, #tpu.memory_space<vmem>>, vector<1x4x8xbf16>
    %40 = vector.shape_cast %39 : vector<1x4x8xbf16> to vector<4x8xbf16>
    %cst_37 = arith.constant dense<0.000000e+00> : vector<4x896xf32>
    %41 = tpu.matmul %40, %38, %cst_37 {dimension_numbers = #tpu.dot_dimension_numbers<[1], [0], [0], [1], [0, 0, 1, 1], [], []>} : vector<4x8xbf16>, vector<8x896xbf16>, vector<4x896xf32> -> vector<4x896xf32>
    %42 = arith.addf %36, %41 : vector<4x896xf32>
    %c0_38 = arith.constant 0 : index
    %c0_39 = arith.constant 0 : index
    %c21 = arith.constant 21 : index
    %43 = vector.load %arg1[%c0_38, %c0_39, %c21] : memref<1x8x1152xbf16, #tpu.memory_space<vmem>>, vector<1x8x896xbf16>
    %44 = vector.shape_cast %43 : vector<1x8x896xbf16> to vector<8x896xbf16>
    %c7 = arith.constant 7 : index
    %c0_40 = arith.constant 0 : index
    %c0_41 = arith.constant 0 : index
    %45 = vector.load %arg2[%c7, %c0_40, %c0_41] : memref<27x4x8xbf16, #tpu.memory_space<vmem>>, vector<1x4x8xbf16>
    %46 = vector.shape_cast %45 : vector<1x4x8xbf16> to vector<4x8xbf16>
    %cst_42 = arith.constant dense<0.000000e+00> : vector<4x896xf32>
    %47 = tpu.matmul %46, %44, %cst_42 {dimension_numbers = #tpu.dot_dimension_numbers<[1], [0], [0], [1], [0, 0, 1, 1], [], []>} : vector<4x8xbf16>, vector<8x896xbf16>, vector<4x896xf32> -> vector<4x896xf32>
    %48 = arith.addf %42, %47 : vector<4x896xf32>
    %c0_43 = arith.constant 0 : index
    %c0_44 = arith.constant 0 : index
    %c22 = arith.constant 22 : index
    %49 = vector.load %arg1[%c0_43, %c0_44, %c22] : memref<1x8x1152xbf16, #tpu.memory_space<vmem>>, vector<1x8x896xbf16>
    %50 = vector.shape_cast %49 : vector<1x8x896xbf16> to vector<8x896xbf16>
    %c8 = arith.constant 8 : index
    %c0_45 = arith.constant 0 : index
    %c0_46 = arith.constant 0 : index
    %51 = vector.load %arg2[%c8, %c0_45, %c0_46] : memref<27x4x8xbf16, #tpu.memory_space<vmem>>, vector<1x4x8xbf16>
    %52 = vector.shape_cast %51 : vector<1x4x8xbf16> to vector<4x8xbf16>
    %cst_47 = arith.constant dense<0.000000e+00> : vector<4x896xf32>
    %53 = tpu.matmul %52, %50, %cst_47 {dimension_numbers = #tpu.dot_dimension_numbers<[1], [0], [0], [1], [0, 0, 1, 1], [], []>} : vector<4x8xbf16>, vector<8x896xbf16>, vector<4x896xf32> -> vector<4x896xf32>
    %54 = arith.addf %48, %53 : vector<4x896xf32>
    %c0_48 = arith.constant 0 : index
    %c0_49 = arith.constant 0 : index
    %c100 = arith.constant 100 : index
    %55 = vector.load %arg1[%c0_48, %c0_49, %c100] : memref<1x8x1152xbf16, #tpu.memory_space<vmem>>, vector<1x8x896xbf16>
    %56 = vector.shape_cast %55 : vector<1x8x896xbf16> to vector<8x896xbf16>
    %c9 = arith.constant 9 : index
    %c0_50 = arith.constant 0 : index
    %c0_51 = arith.constant 0 : index
    %57 = vector.load %arg2[%c9, %c0_50, %c0_51] : memref<27x4x8xbf16, #tpu.memory_space<vmem>>, vector<1x4x8xbf16>
    %58 = vector.shape_cast %57 : vector<1x4x8xbf16> to vector<4x8xbf16>
    %cst_52 = arith.constant dense<0.000000e+00> : vector<4x896xf32>
    %59 = tpu.matmul %58, %56, %cst_52 {dimension_numbers = #tpu.dot_dimension_numbers<[1], [0], [0], [1], [0, 0, 1, 1], [], []>} : vector<4x8xbf16>, vector<8x896xbf16>, vector<4x896xf32> -> vector<4x896xf32>
    %60 = arith.addf %54, %59 : vector<4x896xf32>
    %c0_53 = arith.constant 0 : index
    %c0_54 = arith.constant 0 : index
    %c101 = arith.constant 101 : index
    %61 = vector.load %arg1[%c0_53, %c0_54, %c101] : memref<1x8x1152xbf16, #tpu.memory_space<vmem>>, vector<1x8x896xbf16>
    %62 = vector.shape_cast %61 : vector<1x8x896xbf16> to vector<8x896xbf16>
    %c10_55 = arith.constant 10 : index
    %c0_56 = arith.constant 0 : index
    %c0_57 = arith.constant 0 : index
    %63 = vector.load %arg2[%c10_55, %c0_56, %c0_57] : memref<27x4x8xbf16, #tpu.memory_space<vmem>>, vector<1x4x8xbf16>
    %64 = vector.shape_cast %63 : vector<1x4x8xbf16> to vector<4x8xbf16>
    %cst_58 = arith.constant dense<0.000000e+00> : vector<4x896xf32>
    %65 = tpu.matmul %64, %62, %cst_58 {dimension_numbers = #tpu.dot_dimension_numbers<[1], [0], [0], [1], [0, 0, 1, 1], [], []>} : vector<4x8xbf16>, vector<8x896xbf16>, vector<4x896xf32> -> vector<4x896xf32>
    %66 = arith.addf %60, %65 : vector<4x896xf32>
    %c0_59 = arith.constant 0 : index
    %c0_60 = arith.constant 0 : index
    %c102 = arith.constant 102 : index
    %67 = vector.load %arg1[%c0_59, %c0_60, %c102] : memref<1x8x1152xbf16, #tpu.memory_space<vmem>>, vector<1x8x896xbf16>
    %68 = vector.shape_cast %67 : vector<1x8x896xbf16> to vector<8x896xbf16>
    %c11_61 = arith.constant 11 : index
    %c0_62 = arith.constant 0 : index
    %c0_63 = arith.constant 0 : index
    %69 = vector.load %arg2[%c11_61, %c0_62, %c0_63] : memref<27x4x8xbf16, #tpu.memory_space<vmem>>, vector<1x4x8xbf16>
    %70 = vector.shape_cast %69 : vector<1x4x8xbf16> to vector<4x8xbf16>
    %cst_64 = arith.constant dense<0.000000e+00> : vector<4x896xf32>
    %71 = tpu.matmul %70, %68, %cst_64 {dimension_numbers = #tpu.dot_dimension_numbers<[1], [0], [0], [1], [0, 0, 1, 1], [], []>} : vector<4x8xbf16>, vector<8x896xbf16>, vector<4x896xf32> -> vector<4x896xf32>
    %72 = arith.addf %66, %71 : vector<4x896xf32>
    %c0_65 = arith.constant 0 : index
    %c0_66 = arith.constant 0 : index
    %c110 = arith.constant 110 : index
    %73 = vector.load %arg1[%c0_65, %c0_66, %c110] : memref<1x8x1152xbf16, #tpu.memory_space<vmem>>, vector<1x8x896xbf16>
    %74 = vector.shape_cast %73 : vector<1x8x896xbf16> to vector<8x896xbf16>
    %c12_67 = arith.constant 12 : index
    %c0_68 = arith.constant 0 : index
    %c0_69 = arith.constant 0 : index
    %75 = vector.load %arg2[%c12_67, %c0_68, %c0_69] : memref<27x4x8xbf16, #tpu.memory_space<vmem>>, vector<1x4x8xbf16>
    %76 = vector.shape_cast %75 : vector<1x4x8xbf16> to vector<4x8xbf16>
    %cst_70 = arith.constant dense<0.000000e+00> : vector<4x896xf32>
    %77 = tpu.matmul %76, %74, %cst_70 {dimension_numbers = #tpu.dot_dimension_numbers<[1], [0], [0], [1], [0, 0, 1, 1], [], []>} : vector<4x8xbf16>, vector<8x896xbf16>, vector<4x896xf32> -> vector<4x896xf32>
    %78 = arith.addf %72, %77 : vector<4x896xf32>
    %c0_71 = arith.constant 0 : index
    %c0_72 = arith.constant 0 : index
    %c111 = arith.constant 111 : index
    %79 = vector.load %arg1[%c0_71, %c0_72, %c111] : memref<1x8x1152xbf16, #tpu.memory_space<vmem>>, vector<1x8x896xbf16>
    %80 = vector.shape_cast %79 : vector<1x8x896xbf16> to vector<8x896xbf16>
    %c13 = arith.constant 13 : index
    %c0_73 = arith.constant 0 : index
    %c0_74 = arith.constant 0 : index
    %81 = vector.load %arg2[%c13, %c0_73, %c0_74] : memref<27x4x8xbf16, #tpu.memory_space<vmem>>, vector<1x4x8xbf16>
    %82 = vector.shape_cast %81 : vector<1x4x8xbf16> to vector<4x8xbf16>
    %cst_75 = arith.constant dense<0.000000e+00> : vector<4x896xf32>
    %83 = tpu.matmul %82, %80, %cst_75 {dimension_numbers = #tpu.dot_dimension_numbers<[1], [0], [0], [1], [0, 0, 1, 1], [], []>} : vector<4x8xbf16>, vector<8x896xbf16>, vector<4x896xf32> -> vector<4x896xf32>
    %84 = arith.addf %78, %83 : vector<4x896xf32>
    %c0_76 = arith.constant 0 : index
    %c0_77 = arith.constant 0 : index
    %c112 = arith.constant 112 : index
    %85 = vector.load %arg1[%c0_76, %c0_77, %c112] : memref<1x8x1152xbf16, #tpu.memory_space<vmem>>, vector<1x8x896xbf16>
    %86 = vector.shape_cast %85 : vector<1x8x896xbf16> to vector<8x896xbf16>
    %c14 = arith.constant 14 : index
    %c0_78 = arith.constant 0 : index
    %c0_79 = arith.constant 0 : index
    %87 = vector.load %arg2[%c14, %c0_78, %c0_79] : memref<27x4x8xbf16, #tpu.memory_space<vmem>>, vector<1x4x8xbf16>
    %88 = vector.shape_cast %87 : vector<1x4x8xbf16> to vector<4x8xbf16>
    %cst_80 = arith.constant dense<0.000000e+00> : vector<4x896xf32>
    %89 = tpu.matmul %88, %86, %cst_80 {dimension_numbers = #tpu.dot_dimension_numbers<[1], [0], [0], [1], [0, 0, 1, 1], [], []>} : vector<4x8xbf16>, vector<8x896xbf16>, vector<4x896xf32> -> vector<4x896xf32>
    %90 = arith.addf %84, %89 : vector<4x896xf32>
    %c0_81 = arith.constant 0 : index
    %c0_82 = arith.constant 0 : index
    %c120 = arith.constant 120 : index
    %91 = vector.load %arg1[%c0_81, %c0_82, %c120] : memref<1x8x1152xbf16, #tpu.memory_space<vmem>>, vector<1x8x896xbf16>
    %92 = vector.shape_cast %91 : vector<1x8x896xbf16> to vector<8x896xbf16>
    %c15 = arith.constant 15 : index
    %c0_83 = arith.constant 0 : index
    %c0_84 = arith.constant 0 : index
    %93 = vector.load %arg2[%c15, %c0_83, %c0_84] : memref<27x4x8xbf16, #tpu.memory_space<vmem>>, vector<1x4x8xbf16>
    %94 = vector.shape_cast %93 : vector<1x4x8xbf16> to vector<4x8xbf16>
    %cst_85 = arith.constant dense<0.000000e+00> : vector<4x896xf32>
    %95 = tpu.matmul %94, %92, %cst_85 {dimension_numbers = #tpu.dot_dimension_numbers<[1], [0], [0], [1], [0, 0, 1, 1], [], []>} : vector<4x8xbf16>, vector<8x896xbf16>, vector<4x896xf32> -> vector<4x896xf32>
    %96 = arith.addf %90, %95 : vector<4x896xf32>
    %c0_86 = arith.constant 0 : index
    %c0_87 = arith.constant 0 : index
    %c121 = arith.constant 121 : index
    %97 = vector.load %arg1[%c0_86, %c0_87, %c121] : memref<1x8x1152xbf16, #tpu.memory_space<vmem>>, vector<1x8x896xbf16>
    %98 = vector.shape_cast %97 : vector<1x8x896xbf16> to vector<8x896xbf16>
    %c16 = arith.constant 16 : index
    %c0_88 = arith.constant 0 : index
    %c0_89 = arith.constant 0 : index
    %99 = vector.load %arg2[%c16, %c0_88, %c0_89] : memref<27x4x8xbf16, #tpu.memory_space<vmem>>, vector<1x4x8xbf16>
    %100 = vector.shape_cast %99 : vector<1x4x8xbf16> to vector<4x8xbf16>
    %cst_90 = arith.constant dense<0.000000e+00> : vector<4x896xf32>
    %101 = tpu.matmul %100, %98, %cst_90 {dimension_numbers = #tpu.dot_dimension_numbers<[1], [0], [0], [1], [0, 0, 1, 1], [], []>} : vector<4x8xbf16>, vector<8x896xbf16>, vector<4x896xf32> -> vector<4x896xf32>
    %102 = arith.addf %96, %101 : vector<4x896xf32>
    %c0_91 = arith.constant 0 : index
    %c0_92 = arith.constant 0 : index
    %c122 = arith.constant 122 : index
    %103 = vector.load %arg1[%c0_91, %c0_92, %c122] : memref<1x8x1152xbf16, #tpu.memory_space<vmem>>, vector<1x8x896xbf16>
    %104 = vector.shape_cast %103 : vector<1x8x896xbf16> to vector<8x896xbf16>
    %c17 = arith.constant 17 : index
    %c0_93 = arith.constant 0 : index
    %c0_94 = arith.constant 0 : index
    %105 = vector.load %arg2[%c17, %c0_93, %c0_94] : memref<27x4x8xbf16, #tpu.memory_space<vmem>>, vector<1x4x8xbf16>
    %106 = vector.shape_cast %105 : vector<1x4x8xbf16> to vector<4x8xbf16>
    %cst_95 = arith.constant dense<0.000000e+00> : vector<4x896xf32>
    %107 = tpu.matmul %106, %104, %cst_95 {dimension_numbers = #tpu.dot_dimension_numbers<[1], [0], [0], [1], [0, 0, 1, 1], [], []>} : vector<4x8xbf16>, vector<8x896xbf16>, vector<4x896xf32> -> vector<4x896xf32>
    %108 = arith.addf %102, %107 : vector<4x896xf32>
    %c0_96 = arith.constant 0 : index
    %c0_97 = arith.constant 0 : index
    %c200 = arith.constant 200 : index
    %109 = vector.load %arg1[%c0_96, %c0_97, %c200] : memref<1x8x1152xbf16, #tpu.memory_space<vmem>>, vector<1x8x896xbf16>
    %110 = vector.shape_cast %109 : vector<1x8x896xbf16> to vector<8x896xbf16>
    %c18 = arith.constant 18 : index
    %c0_98 = arith.constant 0 : index
    %c0_99 = arith.constant 0 : index
    %111 = vector.load %arg2[%c18, %c0_98, %c0_99] : memref<27x4x8xbf16, #tpu.memory_space<vmem>>, vector<1x4x8xbf16>
    %112 = vector.shape_cast %111 : vector<1x4x8xbf16> to vector<4x8xbf16>
    %cst_100 = arith.constant dense<0.000000e+00> : vector<4x896xf32>
    %113 = tpu.matmul %112, %110, %cst_100 {dimension_numbers = #tpu.dot_dimension_numbers<[1], [0], [0], [1], [0, 0, 1, 1], [], []>} : vector<4x8xbf16>, vector<8x896xbf16>, vector<4x896xf32> -> vector<4x896xf32>
    %114 = arith.addf %108, %113 : vector<4x896xf32>
    %c0_101 = arith.constant 0 : index
    %c0_102 = arith.constant 0 : index
    %c201 = arith.constant 201 : index
    %115 = vector.load %arg1[%c0_101, %c0_102, %c201] : memref<1x8x1152xbf16, #tpu.memory_space<vmem>>, vector<1x8x896xbf16>
    %116 = vector.shape_cast %115 : vector<1x8x896xbf16> to vector<8x896xbf16>
    %c19 = arith.constant 19 : index
    %c0_103 = arith.constant 0 : index
    %c0_104 = arith.constant 0 : index
    %117 = vector.load %arg2[%c19, %c0_103, %c0_104] : memref<27x4x8xbf16, #tpu.memory_space<vmem>>, vector<1x4x8xbf16>
    %118 = vector.shape_cast %117 : vector<1x4x8xbf16> to vector<4x8xbf16>
    %cst_105 = arith.constant dense<0.000000e+00> : vector<4x896xf32>
    %119 = tpu.matmul %118, %116, %cst_105 {dimension_numbers = #tpu.dot_dimension_numbers<[1], [0], [0], [1], [0, 0, 1, 1], [], []>} : vector<4x8xbf16>, vector<8x896xbf16>, vector<4x896xf32> -> vector<4x896xf32>
    %120 = arith.addf %114, %119 : vector<4x896xf32>
    %c0_106 = arith.constant 0 : index
    %c0_107 = arith.constant 0 : index
    %c202 = arith.constant 202 : index
    %121 = vector.load %arg1[%c0_106, %c0_107, %c202] : memref<1x8x1152xbf16, #tpu.memory_space<vmem>>, vector<1x8x896xbf16>
    %122 = vector.shape_cast %121 : vector<1x8x896xbf16> to vector<8x896xbf16>
    %c20_108 = arith.constant 20 : index
    %c0_109 = arith.constant 0 : index
    %c0_110 = arith.constant 0 : index
    %123 = vector.load %arg2[%c20_108, %c0_109, %c0_110] : memref<27x4x8xbf16, #tpu.memory_space<vmem>>, vector<1x4x8xbf16>
    %124 = vector.shape_cast %123 : vector<1x4x8xbf16> to vector<4x8xbf16>
    %cst_111 = arith.constant dense<0.000000e+00> : vector<4x896xf32>
    %125 = tpu.matmul %124, %122, %cst_111 {dimension_numbers = #tpu.dot_dimension_numbers<[1], [0], [0], [1], [0, 0, 1, 1], [], []>} : vector<4x8xbf16>, vector<8x896xbf16>, vector<4x896xf32> -> vector<4x896xf32>
    %126 = arith.addf %120, %125 : vector<4x896xf32>
    %c0_112 = arith.constant 0 : index
    %c0_113 = arith.constant 0 : index
    %c210 = arith.constant 210 : index
    %127 = vector.load %arg1[%c0_112, %c0_113, %c210] : memref<1x8x1152xbf16, #tpu.memory_space<vmem>>, vector<1x8x896xbf16>
    %128 = vector.shape_cast %127 : vector<1x8x896xbf16> to vector<8x896xbf16>
    %c21_114 = arith.constant 21 : index
    %c0_115 = arith.constant 0 : index
    %c0_116 = arith.constant 0 : index
    %129 = vector.load %arg2[%c21_114, %c0_115, %c0_116] : memref<27x4x8xbf16, #tpu.memory_space<vmem>>, vector<1x4x8xbf16>
    %130 = vector.shape_cast %129 : vector<1x4x8xbf16> to vector<4x8xbf16>
    %cst_117 = arith.constant dense<0.000000e+00> : vector<4x896xf32>
    %131 = tpu.matmul %130, %128, %cst_117 {dimension_numbers = #tpu.dot_dimension_numbers<[1], [0], [0], [1], [0, 0, 1, 1], [], []>} : vector<4x8xbf16>, vector<8x896xbf16>, vector<4x896xf32> -> vector<4x896xf32>
    %132 = arith.addf %126, %131 : vector<4x896xf32>
    %c0_118 = arith.constant 0 : index
    %c0_119 = arith.constant 0 : index
    %c211 = arith.constant 211 : index
    %133 = vector.load %arg1[%c0_118, %c0_119, %c211] : memref<1x8x1152xbf16, #tpu.memory_space<vmem>>, vector<1x8x896xbf16>
    %134 = vector.shape_cast %133 : vector<1x8x896xbf16> to vector<8x896xbf16>
    %c22_120 = arith.constant 22 : index
    %c0_121 = arith.constant 0 : index
    %c0_122 = arith.constant 0 : index
    %135 = vector.load %arg2[%c22_120, %c0_121, %c0_122] : memref<27x4x8xbf16, #tpu.memory_space<vmem>>, vector<1x4x8xbf16>
    %136 = vector.shape_cast %135 : vector<1x4x8xbf16> to vector<4x8xbf16>
    %cst_123 = arith.constant dense<0.000000e+00> : vector<4x896xf32>
    %137 = tpu.matmul %136, %134, %cst_123 {dimension_numbers = #tpu.dot_dimension_numbers<[1], [0], [0], [1], [0, 0, 1, 1], [], []>} : vector<4x8xbf16>, vector<8x896xbf16>, vector<4x896xf32> -> vector<4x896xf32>
    %138 = arith.addf %132, %137 : vector<4x896xf32>
    %c0_124 = arith.constant 0 : index
    %c0_125 = arith.constant 0 : index
    %c212 = arith.constant 212 : index
    %139 = vector.load %arg1[%c0_124, %c0_125, %c212] : memref<1x8x1152xbf16, #tpu.memory_space<vmem>>, vector<1x8x896xbf16>
    %140 = vector.shape_cast %139 : vector<1x8x896xbf16> to vector<8x896xbf16>
    %c23 = arith.constant 23 : index
    %c0_126 = arith.constant 0 : index
    %c0_127 = arith.constant 0 : index
    %141 = vector.load %arg2[%c23, %c0_126, %c0_127] : memref<27x4x8xbf16, #tpu.memory_space<vmem>>, vector<1x4x8xbf16>
    %142 = vector.shape_cast %141 : vector<1x4x8xbf16> to vector<4x8xbf16>
    %cst_128 = arith.constant dense<0.000000e+00> : vector<4x896xf32>
    %143 = tpu.matmul %142, %140, %cst_128 {dimension_numbers = #tpu.dot_dimension_numbers<[1], [0], [0], [1], [0, 0, 1, 1], [], []>} : vector<4x8xbf16>, vector<8x896xbf16>, vector<4x896xf32> -> vector<4x896xf32>
    %144 = arith.addf %138, %143 : vector<4x896xf32>
    %c0_129 = arith.constant 0 : index
    %c0_130 = arith.constant 0 : index
    %c220 = arith.constant 220 : index
    %145 = vector.load %arg1[%c0_129, %c0_130, %c220] : memref<1x8x1152xbf16, #tpu.memory_space<vmem>>, vector<1x8x896xbf16>
    %146 = vector.shape_cast %145 : vector<1x8x896xbf16> to vector<8x896xbf16>
    %c24 = arith.constant 24 : index
    %c0_131 = arith.constant 0 : index
    %c0_132 = arith.constant 0 : index
    %147 = vector.load %arg2[%c24, %c0_131, %c0_132] : memref<27x4x8xbf16, #tpu.memory_space<vmem>>, vector<1x4x8xbf16>
    %148 = vector.shape_cast %147 : vector<1x4x8xbf16> to vector<4x8xbf16>
    %cst_133 = arith.constant dense<0.000000e+00> : vector<4x896xf32>
    %149 = tpu.matmul %148, %146, %cst_133 {dimension_numbers = #tpu.dot_dimension_numbers<[1], [0], [0], [1], [0, 0, 1, 1], [], []>} : vector<4x8xbf16>, vector<8x896xbf16>, vector<4x896xf32> -> vector<4x896xf32>
    %150 = arith.addf %144, %149 : vector<4x896xf32>
    %c0_134 = arith.constant 0 : index
    %c0_135 = arith.constant 0 : index
    %c221 = arith.constant 221 : index
    %151 = vector.load %arg1[%c0_134, %c0_135, %c221] : memref<1x8x1152xbf16, #tpu.memory_space<vmem>>, vector<1x8x896xbf16>
    %152 = vector.shape_cast %151 : vector<1x8x896xbf16> to vector<8x896xbf16>
    %c25 = arith.constant 25 : index
    %c0_136 = arith.constant 0 : index
    %c0_137 = arith.constant 0 : index
    %153 = vector.load %arg2[%c25, %c0_136, %c0_137] : memref<27x4x8xbf16, #tpu.memory_space<vmem>>, vector<1x4x8xbf16>
    %154 = vector.shape_cast %153 : vector<1x4x8xbf16> to vector<4x8xbf16>
    %cst_138 = arith.constant dense<0.000000e+00> : vector<4x896xf32>
    %155 = tpu.matmul %154, %152, %cst_138 {dimension_numbers = #tpu.dot_dimension_numbers<[1], [0], [0], [1], [0, 0, 1, 1], [], []>} : vector<4x8xbf16>, vector<8x896xbf16>, vector<4x896xf32> -> vector<4x896xf32>
    %156 = arith.addf %150, %155 : vector<4x896xf32>
    %c0_139 = arith.constant 0 : index
    %c0_140 = arith.constant 0 : index
    %c222 = arith.constant 222 : index
    %157 = vector.load %arg1[%c0_139, %c0_140, %c222] : memref<1x8x1152xbf16, #tpu.memory_space<vmem>>, vector<1x8x896xbf16>
    %158 = vector.shape_cast %157 : vector<1x8x896xbf16> to vector<8x896xbf16>
    %c26 = arith.constant 26 : index
    %c0_141 = arith.constant 0 : index
    %c0_142 = arith.constant 0 : index
    %159 = vector.load %arg2[%c26, %c0_141, %c0_142] : memref<27x4x8xbf16, #tpu.memory_space<vmem>>, vector<1x4x8xbf16>
    %160 = vector.shape_cast %159 : vector<1x4x8xbf16> to vector<4x8xbf16>
    %cst_143 = arith.constant dense<0.000000e+00> : vector<4x896xf32>
    %161 = tpu.matmul %160, %158, %cst_143 {dimension_numbers = #tpu.dot_dimension_numbers<[1], [0], [0], [1], [0, 0, 1, 1], [], []>} : vector<4x8xbf16>, vector<8x896xbf16>, vector<4x896xf32> -> vector<4x896xf32>
    %162 = arith.addf %156, %161 : vector<4x896xf32>
    %c0_144 = arith.constant 0 : index
    %c0_145 = arith.constant 0 : index
    %163 = vector.load %arg4[%c0_144, %c0_145] : memref<4x1xf32, #tpu.memory_space<vmem>>, vector<4x1xf32>
    %164 = vector.broadcast %163 : vector<4x1xf32> to vector<4x896xf32>
    %165 = arith.addf %162, %164 : vector<4x896xf32>
    %c0_146 = arith.constant 0 : index
    %c0_147 = arith.constant 0 : index
    %166 = vector.load %arg6[%c0_146, %c0_147] : memref<2x1xf32, #tpu.memory_space<vmem>>, vector<1x1xf32>
    %167 = vector.shape_cast %166 : vector<1x1xf32> to vector<1xf32>
    %cst_148 = arith.constant 0.000000e+00 : f32
    %168 = vector.broadcast %cst_148 : f32 to vector<4x896xf32>
    %169 = arith.cmpf oge, %165, %168 : vector<4x896xf32>
    %170 = vector.shape_cast %167 : vector<1xf32> to vector<1x1xf32>
    %171 = vector.broadcast %170 : vector<1x1xf32> to vector<4x896xf32>
    %172 = arith.mulf %171, %165 : vector<4x896xf32>
    %173 = arith.select %169, %165, %172 : vector<4x896xi1>, vector<4x896xf32>
    %c0_149 = arith.constant 0 : index
    %c0_150 = arith.constant 0 : index
    %c0_151 = arith.constant 0 : index
    %174 = vector.load %arg7[%c0_149, %c0_150, %c0_151] : memref<1x4x896xf32, #tpu.memory_space<vmem>>, vector<1x4x896xf32>
    %175 = vector.shape_cast %174 : vector<1x4x896xf32> to vector<4x896xf32>
    %176 = vector.shape_cast %173 : vector<4x896xf32> to vector<1x4x896xf32>
    tpu.vector_store %arg7[%c0_149, %c0_150, %c0_151], %176 {strides = array<i32>} : memref<1x4x896xf32, #tpu.memory_space<vmem>>, vector<1x4x896xf32>,
    %cst_152 = arith.constant 0.000000e+00 : f32
    %177 = vector.broadcast %cst_152 : f32 to vector<4x896xf32>
    %c0_153 = arith.constant 0 : index
    %c0_154 = arith.constant 0 : index
    %c111_155 = arith.constant 111 : index
    %178 = vector.load %arg1[%c0_153, %c0_154, %c111_155] : memref<1x8x1152xbf16, #tpu.memory_space<vmem>>, vector<1x8x896xbf16>
    %179 = vector.shape_cast %178 : vector<1x8x896xbf16> to vector<8x896xbf16>
    %c0_156 = arith.constant 0 : index
    %c0_157 = arith.constant 0 : index
    %c0_158 = arith.constant 0 : index
    %180 = vector.load %arg3[%c0_156, %c0_157, %c0_158] : memref<1x4x8xbf16, #tpu.memory_space<vmem>>, vector<1x4x8xbf16>
    %181 = vector.shape_cast %180 : vector<1x4x8xbf16> to vector<4x8xbf16>
    %cst_159 = arith.constant dense<0.000000e+00> : vector<4x896xf32>
    %182 = tpu.matmul %181, %179, %cst_159 {dimension_numbers = #tpu.dot_dimension_numbers<[1], [0], [0], [1], [0, 0, 1, 1], [], []>} : vector<4x8xbf16>, vector<8x896xbf16>, vector<4x896xf32> -> vector<4x896xf32>
    %183 = arith.addf %177, %182 : vector<4x896xf32>
    %c0_160 = arith.constant 0 : index
    %c0_161 = arith.constant 0 : index
    %184 = vector.load %arg5[%c0_160, %c0_161] : memref<4x1xf32, #tpu.memory_space<vmem>>, vector<4x1xf32>
    %185 = vector.broadcast %184 : vector<4x1xf32> to vector<4x896xf32>
    %186 = arith.addf %183, %185 : vector<4x896xf32>
    %c1_162 = arith.constant 1 : index
    %c0_163 = arith.constant 0 : index
    %187 = vector.load %arg6[%c1_162, %c0_163] : memref<2x1xf32, #tpu.memory_space<vmem>>, vector<1x1xf32>
    %188 = vector.shape_cast %187 : vector<1x1xf32> to vector<1xf32>
    %cst_164 = arith.constant 0.000000e+00 : f32
    %189 = vector.broadcast %cst_164 : f32 to vector<4x896xf32>
    %190 = arith.cmpf oge, %186, %189 : vector<4x896xf32>
    %191 = vector.shape_cast %188 : vector<1xf32> to vector<1x1xf32>
    %192 = vector.broadcast %191 : vector<1x1xf32> to vector<4x896xf32>
    %193 = arith.mulf %192, %186 : vector<4x896xf32>
    %194 = arith.select %190, %186, %193 : vector<4x896xi1>, vector<4x896xf32>
    %c0_165 = arith.constant 0 : index
    %c0_166 = arith.constant 0 : index
    %c0_167 = arith.constant 0 : index
    %195 = vector.load %arg8[%c0_165, %c0_166, %c0_167] : memref<1x4x896xf32, #tpu.memory_space<vmem>>, vector<1x4x896xf32>
    %196 = vector.shape_cast %195 : vector<1x4x896xf32> to vector<4x896xf32>
    %197 = vector.shape_cast %194 : vector<4x896xf32> to vector<1x4x896xf32>
    tpu.vector_store %arg8[%c0_165, %c0_166, %c0_167], %197 {strides = array<i32>} : memref<1x4x896xf32, #tpu.memory_space<vmem>>, vector<1x4x896xf32>,
    return
  }
  func.func @transform_0(%arg0: i32) -> (i32, i32, i32) {
    %c0_i32 = arith.constant 0 : i32
    %c0_i32_0 = arith.constant 0 : i32
    %c0_i32_1 = arith.constant 0 : i32
    return %arg0, %c0_i32, %c0_i32_0 : i32, i32, i32
  }
  func.func @transform_1(%arg0: i32) -> (i32, i32, i32) {
    %c0_i32 = arith.constant 0 : i32
    %c0_i32_0 = arith.constant 0 : i32
    %c0_i32_1 = arith.constant 0 : i32
    %c0_i32_2 = arith.constant 0 : i32
    return %c0_i32, %c0_i32_0, %c0_i32_1 : i32, i32, i32
  }
  func.func @transform_2(%arg0: i32) -> (i32, i32, i32) {
    %c0_i32 = arith.constant 0 : i32
    %c0_i32_0 = arith.constant 0 : i32
    %c0_i32_1 = arith.constant 0 : i32
    %c0_i32_2 = arith.constant 0 : i32
    return %c0_i32, %c0_i32_0, %c0_i32_1 : i32, i32, i32
  }
  func.func @transform_3(%arg0: i32) -> (i32, i32) {
    %c0_i32 = arith.constant 0 : i32
    %c0_i32_0 = arith.constant 0 : i32
    %c0_i32_1 = arith.constant 0 : i32
    return %c0_i32, %c0_i32_0 : i32, i32
  }
  func.func @transform_4(%arg0: i32) -> (i32, i32) {
    %c0_i32 = arith.constant 0 : i32
    %c0_i32_0 = arith.constant 0 : i32
    %c0_i32_1 = arith.constant 0 : i32
    return %c0_i32, %c0_i32_0 : i32, i32
  }
  func.func @transform_5(%arg0: i32) -> (i32, i32) {
    %c0_i32 = arith.constant 0 : i32
    %c0_i32_0 = arith.constant 0 : i32
    %c0_i32_1 = arith.constant 0 : i32
    return %c0_i32, %c0_i32_0 : i32, i32
  }
  func.func @transform_6(%arg0: i32) -> (i32, i32, i32) {
    %c0_i32 = arith.constant 0 : i32
    %c0_i32_0 = arith.constant 0 : i32
    %c0_i32_1 = arith.constant 0 : i32
    return %arg0, %c0_i32, %c0_i32_0 : i32, i32, i32
  }
  func.func @transform_7(%arg0: i32) -> (i32, i32, i32) {
    %c0_i32 = arith.constant 0 : i32
    %c0_i32_0 = arith.constant 0 : i32
    %c0_i32_1 = arith.constant 0 : i32
    return %arg0, %c0_i32, %c0_i32_0 : i32, i32, i32
  }
}

module attributes {stable_mosaic.version = 11 : i64} {
  func.func @_in_res_kernel(%arg0: i32, %arg1: memref<8x512xf32, #tpu.memory_space<vmem>>, %arg2: memref<8x512xf32, #tpu.memory_space<vmem>>, %arg3: memref<8x512xf32, #tpu.memory_space<vmem>>) attributes {dimension_semantics = [#tpu.dimension_semantics<parallel>], iteration_bounds = array<i64: 1>, scalar_prefetch = 0 : i64, scratch_operands = 0 : i64, tpu.core_type = #tpu.core_type<tc>, window_params = [{transform_indices = @transform_0, window_bounds = array<i64: 8, 512>}, {transform_indices = @transform_1, window_bounds = array<i64: 8, 512>}, {transform_indices = @transform_2, window_bounds = array<i64: 8, 512>}]} {
    %c0 = arith.constant 0 : index
    %c0_0 = arith.constant 0 : index
    %0 = vector.load %arg1[%c0, %c0_0] : memref<8x512xf32, #tpu.memory_space<vmem>>, vector<8x512xf32>
    %cst = arith.constant dense<0.000000e+00> : vector<8xf32>
    %1 = vector.multi_reduction <add>, %0, %cst [1] : vector<8x512xf32> to vector<8xf32>
    %2 = vector.shape_cast %1 : vector<8xf32> to vector<8x1xf32>
    %cst_1 = arith.constant 5.120000e+02 : f32
    %3 = vector.broadcast %cst_1 : f32 to vector<8x1xf32>
    %4 = arith.divf %2, %3 : vector<8x1xf32>
    %5 = vector.broadcast %4 : vector<8x1xf32> to vector<8x512xf32>
    %6 = arith.subf %0, %5 : vector<8x512xf32>
    %7 = arith.mulf %6, %6 : vector<8x512xf32>
    %cst_2 = arith.constant dense<0.000000e+00> : vector<8xf32>
    %8 = vector.multi_reduction <add>, %7, %cst_2 [1] : vector<8x512xf32> to vector<8xf32>
    %9 = vector.shape_cast %8 : vector<8xf32> to vector<8x1xf32>
    %cst_3 = arith.constant 5.120000e+02 : f32
    %10 = vector.broadcast %cst_3 : f32 to vector<8x1xf32>
    %11 = arith.divf %9, %10 : vector<8x1xf32>
    %cst_4 = arith.constant 9.99999974E-6 : f32
    %12 = vector.broadcast %cst_4 : f32 to vector<8x1xf32>
    %13 = arith.addf %11, %12 : vector<8x1xf32>
    %14 = math.rsqrt %13 : vector<8x1xf32>
    %15 = vector.broadcast %14 : vector<8x1xf32> to vector<8x512xf32>
    %16 = arith.mulf %6, %15 : vector<8x512xf32>
    %c0_5 = arith.constant 0 : index
    %c0_6 = arith.constant 0 : index
    %17 = vector.load %arg2[%c0_5, %c0_6] : memref<8x512xf32, #tpu.memory_space<vmem>>, vector<8x512xf32>
    %18 = arith.addf %16, %17 : vector<8x512xf32>
    %c0_7 = arith.constant 0 : index
    %c0_8 = arith.constant 0 : index
    %19 = vector.load %arg3[%c0_7, %c0_8] : memref<8x512xf32, #tpu.memory_space<vmem>>, vector<8x512xf32>
    tpu.vector_store %arg3[%c0_7, %c0_8], %18 {strides = array<i32>} : memref<8x512xf32, #tpu.memory_space<vmem>>, vector<8x512xf32>,
    return
  }
  func.func @transform_0(%arg0: i32) -> (i32, i32) {
    %c0_i32 = arith.constant 0 : i32
    %c0_i32_0 = arith.constant 0 : i32
    return %arg0, %c0_i32 : i32, i32
  }
  func.func @transform_1(%arg0: i32) -> (i32, i32) {
    %c0_i32 = arith.constant 0 : i32
    %c0_i32_0 = arith.constant 0 : i32
    return %arg0, %c0_i32 : i32, i32
  }
  func.func @transform_2(%arg0: i32) -> (i32, i32) {
    %c0_i32 = arith.constant 0 : i32
    %c0_i32_0 = arith.constant 0 : i32
    return %arg0, %c0_i32 : i32, i32
  }
}

module attributes {stable_mosaic.version = 11 : i64} {
  func.func @kernel(%arg0: i32, %arg1: memref<1x4x1152xbf16, #tpu.memory_space<vmem>>, %arg2: memref<27x4x4xbf16, #tpu.memory_space<vmem>>, %arg3: memref<4x1xf32, #tpu.memory_space<vmem>>, %arg4: memref<1x1xf32, #tpu.memory_space<vmem>>, %arg5: memref<1x4x896xf32, #tpu.memory_space<vmem>>) attributes {dimension_semantics = [#tpu.dimension_semantics<parallel>], iteration_bounds = array<i64: 2>, scalar_prefetch = 0 : i64, scratch_operands = 0 : i64, tpu.core_type = #tpu.core_type<tc>, window_params = [{transform_indices = @transform_0, window_bounds = array<i64: 1, 4, 1152>}, {pipeline_mode = #tpu.pipeline_mode<synchronous>, transform_indices = @transform_1, window_bounds = array<i64: 27, 4, 4>}, {pipeline_mode = #tpu.pipeline_mode<synchronous>, transform_indices = @transform_2, window_bounds = array<i64: 4, 1>}, {pipeline_mode = #tpu.pipeline_mode<synchronous>, transform_indices = @transform_3, window_bounds = array<i64: 1, 1>}, {transform_indices = @transform_4, window_bounds = array<i64: 1, 4, 896>}]} {
    %cst = arith.constant 0.000000e+00 : f32
    %0 = vector.broadcast %cst : f32 to vector<4x896xf32>
    %c0 = arith.constant 0 : index
    %c0_0 = arith.constant 0 : index
    %c0_1 = arith.constant 0 : index
    %1 = vector.load %arg1[%c0, %c0_0, %c0_1] : memref<1x4x1152xbf16, #tpu.memory_space<vmem>>, vector<1x4x896xbf16>
    %2 = vector.shape_cast %1 : vector<1x4x896xbf16> to vector<4x896xbf16>
    %c0_2 = arith.constant 0 : index
    %c0_3 = arith.constant 0 : index
    %c0_4 = arith.constant 0 : index
    %3 = vector.load %arg2[%c0_2, %c0_3, %c0_4] : memref<27x4x4xbf16, #tpu.memory_space<vmem>>, vector<1x4x4xbf16>
    %4 = vector.shape_cast %3 : vector<1x4x4xbf16> to vector<4x4xbf16>
    %cst_5 = arith.constant dense<0.000000e+00> : vector<4x896xf32>
    %5 = tpu.matmul %4, %2, %cst_5 {dimension_numbers = #tpu.dot_dimension_numbers<[1], [0], [0], [1], [0, 0, 1, 1], [], []>} : vector<4x4xbf16>, vector<4x896xbf16>, vector<4x896xf32> -> vector<4x896xf32>
    %6 = arith.addf %0, %5 : vector<4x896xf32>
    %c0_6 = arith.constant 0 : index
    %c0_7 = arith.constant 0 : index
    %c1 = arith.constant 1 : index
    %7 = vector.load %arg1[%c0_6, %c0_7, %c1] : memref<1x4x1152xbf16, #tpu.memory_space<vmem>>, vector<1x4x896xbf16>
    %8 = vector.shape_cast %7 : vector<1x4x896xbf16> to vector<4x896xbf16>
    %c1_8 = arith.constant 1 : index
    %c0_9 = arith.constant 0 : index
    %c0_10 = arith.constant 0 : index
    %9 = vector.load %arg2[%c1_8, %c0_9, %c0_10] : memref<27x4x4xbf16, #tpu.memory_space<vmem>>, vector<1x4x4xbf16>
    %10 = vector.shape_cast %9 : vector<1x4x4xbf16> to vector<4x4xbf16>
    %cst_11 = arith.constant dense<0.000000e+00> : vector<4x896xf32>
    %11 = tpu.matmul %10, %8, %cst_11 {dimension_numbers = #tpu.dot_dimension_numbers<[1], [0], [0], [1], [0, 0, 1, 1], [], []>} : vector<4x4xbf16>, vector<4x896xbf16>, vector<4x896xf32> -> vector<4x896xf32>
    %12 = arith.addf %6, %11 : vector<4x896xf32>
    %c0_12 = arith.constant 0 : index
    %c0_13 = arith.constant 0 : index
    %c2 = arith.constant 2 : index
    %13 = vector.load %arg1[%c0_12, %c0_13, %c2] : memref<1x4x1152xbf16, #tpu.memory_space<vmem>>, vector<1x4x896xbf16>
    %14 = vector.shape_cast %13 : vector<1x4x896xbf16> to vector<4x896xbf16>
    %c2_14 = arith.constant 2 : index
    %c0_15 = arith.constant 0 : index
    %c0_16 = arith.constant 0 : index
    %15 = vector.load %arg2[%c2_14, %c0_15, %c0_16] : memref<27x4x4xbf16, #tpu.memory_space<vmem>>, vector<1x4x4xbf16>
    %16 = vector.shape_cast %15 : vector<1x4x4xbf16> to vector<4x4xbf16>
    %cst_17 = arith.constant dense<0.000000e+00> : vector<4x896xf32>
    %17 = tpu.matmul %16, %14, %cst_17 {dimension_numbers = #tpu.dot_dimension_numbers<[1], [0], [0], [1], [0, 0, 1, 1], [], []>} : vector<4x4xbf16>, vector<4x896xbf16>, vector<4x896xf32> -> vector<4x896xf32>
    %18 = arith.addf %12, %17 : vector<4x896xf32>
    %c0_18 = arith.constant 0 : index
    %c0_19 = arith.constant 0 : index
    %c10 = arith.constant 10 : index
    %19 = vector.load %arg1[%c0_18, %c0_19, %c10] : memref<1x4x1152xbf16, #tpu.memory_space<vmem>>, vector<1x4x896xbf16>
    %20 = vector.shape_cast %19 : vector<1x4x896xbf16> to vector<4x896xbf16>
    %c3 = arith.constant 3 : index
    %c0_20 = arith.constant 0 : index
    %c0_21 = arith.constant 0 : index
    %21 = vector.load %arg2[%c3, %c0_20, %c0_21] : memref<27x4x4xbf16, #tpu.memory_space<vmem>>, vector<1x4x4xbf16>
    %22 = vector.shape_cast %21 : vector<1x4x4xbf16> to vector<4x4xbf16>
    %cst_22 = arith.constant dense<0.000000e+00> : vector<4x896xf32>
    %23 = tpu.matmul %22, %20, %cst_22 {dimension_numbers = #tpu.dot_dimension_numbers<[1], [0], [0], [1], [0, 0, 1, 1], [], []>} : vector<4x4xbf16>, vector<4x896xbf16>, vector<4x896xf32> -> vector<4x896xf32>
    %24 = arith.addf %18, %23 : vector<4x896xf32>
    %c0_23 = arith.constant 0 : index
    %c0_24 = arith.constant 0 : index
    %c11 = arith.constant 11 : index
    %25 = vector.load %arg1[%c0_23, %c0_24, %c11] : memref<1x4x1152xbf16, #tpu.memory_space<vmem>>, vector<1x4x896xbf16>
    %26 = vector.shape_cast %25 : vector<1x4x896xbf16> to vector<4x896xbf16>
    %c4 = arith.constant 4 : index
    %c0_25 = arith.constant 0 : index
    %c0_26 = arith.constant 0 : index
    %27 = vector.load %arg2[%c4, %c0_25, %c0_26] : memref<27x4x4xbf16, #tpu.memory_space<vmem>>, vector<1x4x4xbf16>
    %28 = vector.shape_cast %27 : vector<1x4x4xbf16> to vector<4x4xbf16>
    %cst_27 = arith.constant dense<0.000000e+00> : vector<4x896xf32>
    %29 = tpu.matmul %28, %26, %cst_27 {dimension_numbers = #tpu.dot_dimension_numbers<[1], [0], [0], [1], [0, 0, 1, 1], [], []>} : vector<4x4xbf16>, vector<4x896xbf16>, vector<4x896xf32> -> vector<4x896xf32>
    %30 = arith.addf %24, %29 : vector<4x896xf32>
    %c0_28 = arith.constant 0 : index
    %c0_29 = arith.constant 0 : index
    %c12 = arith.constant 12 : index
    %31 = vector.load %arg1[%c0_28, %c0_29, %c12] : memref<1x4x1152xbf16, #tpu.memory_space<vmem>>, vector<1x4x896xbf16>
    %32 = vector.shape_cast %31 : vector<1x4x896xbf16> to vector<4x896xbf16>
    %c5 = arith.constant 5 : index
    %c0_30 = arith.constant 0 : index
    %c0_31 = arith.constant 0 : index
    %33 = vector.load %arg2[%c5, %c0_30, %c0_31] : memref<27x4x4xbf16, #tpu.memory_space<vmem>>, vector<1x4x4xbf16>
    %34 = vector.shape_cast %33 : vector<1x4x4xbf16> to vector<4x4xbf16>
    %cst_32 = arith.constant dense<0.000000e+00> : vector<4x896xf32>
    %35 = tpu.matmul %34, %32, %cst_32 {dimension_numbers = #tpu.dot_dimension_numbers<[1], [0], [0], [1], [0, 0, 1, 1], [], []>} : vector<4x4xbf16>, vector<4x896xbf16>, vector<4x896xf32> -> vector<4x896xf32>
    %36 = arith.addf %30, %35 : vector<4x896xf32>
    %c0_33 = arith.constant 0 : index
    %c0_34 = arith.constant 0 : index
    %c20 = arith.constant 20 : index
    %37 = vector.load %arg1[%c0_33, %c0_34, %c20] : memref<1x4x1152xbf16, #tpu.memory_space<vmem>>, vector<1x4x896xbf16>
    %38 = vector.shape_cast %37 : vector<1x4x896xbf16> to vector<4x896xbf16>
    %c6 = arith.constant 6 : index
    %c0_35 = arith.constant 0 : index
    %c0_36 = arith.constant 0 : index
    %39 = vector.load %arg2[%c6, %c0_35, %c0_36] : memref<27x4x4xbf16, #tpu.memory_space<vmem>>, vector<1x4x4xbf16>
    %40 = vector.shape_cast %39 : vector<1x4x4xbf16> to vector<4x4xbf16>
    %cst_37 = arith.constant dense<0.000000e+00> : vector<4x896xf32>
    %41 = tpu.matmul %40, %38, %cst_37 {dimension_numbers = #tpu.dot_dimension_numbers<[1], [0], [0], [1], [0, 0, 1, 1], [], []>} : vector<4x4xbf16>, vector<4x896xbf16>, vector<4x896xf32> -> vector<4x896xf32>
    %42 = arith.addf %36, %41 : vector<4x896xf32>
    %c0_38 = arith.constant 0 : index
    %c0_39 = arith.constant 0 : index
    %c21 = arith.constant 21 : index
    %43 = vector.load %arg1[%c0_38, %c0_39, %c21] : memref<1x4x1152xbf16, #tpu.memory_space<vmem>>, vector<1x4x896xbf16>
    %44 = vector.shape_cast %43 : vector<1x4x896xbf16> to vector<4x896xbf16>
    %c7 = arith.constant 7 : index
    %c0_40 = arith.constant 0 : index
    %c0_41 = arith.constant 0 : index
    %45 = vector.load %arg2[%c7, %c0_40, %c0_41] : memref<27x4x4xbf16, #tpu.memory_space<vmem>>, vector<1x4x4xbf16>
    %46 = vector.shape_cast %45 : vector<1x4x4xbf16> to vector<4x4xbf16>
    %cst_42 = arith.constant dense<0.000000e+00> : vector<4x896xf32>
    %47 = tpu.matmul %46, %44, %cst_42 {dimension_numbers = #tpu.dot_dimension_numbers<[1], [0], [0], [1], [0, 0, 1, 1], [], []>} : vector<4x4xbf16>, vector<4x896xbf16>, vector<4x896xf32> -> vector<4x896xf32>
    %48 = arith.addf %42, %47 : vector<4x896xf32>
    %c0_43 = arith.constant 0 : index
    %c0_44 = arith.constant 0 : index
    %c22 = arith.constant 22 : index
    %49 = vector.load %arg1[%c0_43, %c0_44, %c22] : memref<1x4x1152xbf16, #tpu.memory_space<vmem>>, vector<1x4x896xbf16>
    %50 = vector.shape_cast %49 : vector<1x4x896xbf16> to vector<4x896xbf16>
    %c8 = arith.constant 8 : index
    %c0_45 = arith.constant 0 : index
    %c0_46 = arith.constant 0 : index
    %51 = vector.load %arg2[%c8, %c0_45, %c0_46] : memref<27x4x4xbf16, #tpu.memory_space<vmem>>, vector<1x4x4xbf16>
    %52 = vector.shape_cast %51 : vector<1x4x4xbf16> to vector<4x4xbf16>
    %cst_47 = arith.constant dense<0.000000e+00> : vector<4x896xf32>
    %53 = tpu.matmul %52, %50, %cst_47 {dimension_numbers = #tpu.dot_dimension_numbers<[1], [0], [0], [1], [0, 0, 1, 1], [], []>} : vector<4x4xbf16>, vector<4x896xbf16>, vector<4x896xf32> -> vector<4x896xf32>
    %54 = arith.addf %48, %53 : vector<4x896xf32>
    %c0_48 = arith.constant 0 : index
    %c0_49 = arith.constant 0 : index
    %c100 = arith.constant 100 : index
    %55 = vector.load %arg1[%c0_48, %c0_49, %c100] : memref<1x4x1152xbf16, #tpu.memory_space<vmem>>, vector<1x4x896xbf16>
    %56 = vector.shape_cast %55 : vector<1x4x896xbf16> to vector<4x896xbf16>
    %c9 = arith.constant 9 : index
    %c0_50 = arith.constant 0 : index
    %c0_51 = arith.constant 0 : index
    %57 = vector.load %arg2[%c9, %c0_50, %c0_51] : memref<27x4x4xbf16, #tpu.memory_space<vmem>>, vector<1x4x4xbf16>
    %58 = vector.shape_cast %57 : vector<1x4x4xbf16> to vector<4x4xbf16>
    %cst_52 = arith.constant dense<0.000000e+00> : vector<4x896xf32>
    %59 = tpu.matmul %58, %56, %cst_52 {dimension_numbers = #tpu.dot_dimension_numbers<[1], [0], [0], [1], [0, 0, 1, 1], [], []>} : vector<4x4xbf16>, vector<4x896xbf16>, vector<4x896xf32> -> vector<4x896xf32>
    %60 = arith.addf %54, %59 : vector<4x896xf32>
    %c0_53 = arith.constant 0 : index
    %c0_54 = arith.constant 0 : index
    %c101 = arith.constant 101 : index
    %61 = vector.load %arg1[%c0_53, %c0_54, %c101] : memref<1x4x1152xbf16, #tpu.memory_space<vmem>>, vector<1x4x896xbf16>
    %62 = vector.shape_cast %61 : vector<1x4x896xbf16> to vector<4x896xbf16>
    %c10_55 = arith.constant 10 : index
    %c0_56 = arith.constant 0 : index
    %c0_57 = arith.constant 0 : index
    %63 = vector.load %arg2[%c10_55, %c0_56, %c0_57] : memref<27x4x4xbf16, #tpu.memory_space<vmem>>, vector<1x4x4xbf16>
    %64 = vector.shape_cast %63 : vector<1x4x4xbf16> to vector<4x4xbf16>
    %cst_58 = arith.constant dense<0.000000e+00> : vector<4x896xf32>
    %65 = tpu.matmul %64, %62, %cst_58 {dimension_numbers = #tpu.dot_dimension_numbers<[1], [0], [0], [1], [0, 0, 1, 1], [], []>} : vector<4x4xbf16>, vector<4x896xbf16>, vector<4x896xf32> -> vector<4x896xf32>
    %66 = arith.addf %60, %65 : vector<4x896xf32>
    %c0_59 = arith.constant 0 : index
    %c0_60 = arith.constant 0 : index
    %c102 = arith.constant 102 : index
    %67 = vector.load %arg1[%c0_59, %c0_60, %c102] : memref<1x4x1152xbf16, #tpu.memory_space<vmem>>, vector<1x4x896xbf16>
    %68 = vector.shape_cast %67 : vector<1x4x896xbf16> to vector<4x896xbf16>
    %c11_61 = arith.constant 11 : index
    %c0_62 = arith.constant 0 : index
    %c0_63 = arith.constant 0 : index
    %69 = vector.load %arg2[%c11_61, %c0_62, %c0_63] : memref<27x4x4xbf16, #tpu.memory_space<vmem>>, vector<1x4x4xbf16>
    %70 = vector.shape_cast %69 : vector<1x4x4xbf16> to vector<4x4xbf16>
    %cst_64 = arith.constant dense<0.000000e+00> : vector<4x896xf32>
    %71 = tpu.matmul %70, %68, %cst_64 {dimension_numbers = #tpu.dot_dimension_numbers<[1], [0], [0], [1], [0, 0, 1, 1], [], []>} : vector<4x4xbf16>, vector<4x896xbf16>, vector<4x896xf32> -> vector<4x896xf32>
    %72 = arith.addf %66, %71 : vector<4x896xf32>
    %c0_65 = arith.constant 0 : index
    %c0_66 = arith.constant 0 : index
    %c110 = arith.constant 110 : index
    %73 = vector.load %arg1[%c0_65, %c0_66, %c110] : memref<1x4x1152xbf16, #tpu.memory_space<vmem>>, vector<1x4x896xbf16>
    %74 = vector.shape_cast %73 : vector<1x4x896xbf16> to vector<4x896xbf16>
    %c12_67 = arith.constant 12 : index
    %c0_68 = arith.constant 0 : index
    %c0_69 = arith.constant 0 : index
    %75 = vector.load %arg2[%c12_67, %c0_68, %c0_69] : memref<27x4x4xbf16, #tpu.memory_space<vmem>>, vector<1x4x4xbf16>
    %76 = vector.shape_cast %75 : vector<1x4x4xbf16> to vector<4x4xbf16>
    %cst_70 = arith.constant dense<0.000000e+00> : vector<4x896xf32>
    %77 = tpu.matmul %76, %74, %cst_70 {dimension_numbers = #tpu.dot_dimension_numbers<[1], [0], [0], [1], [0, 0, 1, 1], [], []>} : vector<4x4xbf16>, vector<4x896xbf16>, vector<4x896xf32> -> vector<4x896xf32>
    %78 = arith.addf %72, %77 : vector<4x896xf32>
    %c0_71 = arith.constant 0 : index
    %c0_72 = arith.constant 0 : index
    %c111 = arith.constant 111 : index
    %79 = vector.load %arg1[%c0_71, %c0_72, %c111] : memref<1x4x1152xbf16, #tpu.memory_space<vmem>>, vector<1x4x896xbf16>
    %80 = vector.shape_cast %79 : vector<1x4x896xbf16> to vector<4x896xbf16>
    %c13 = arith.constant 13 : index
    %c0_73 = arith.constant 0 : index
    %c0_74 = arith.constant 0 : index
    %81 = vector.load %arg2[%c13, %c0_73, %c0_74] : memref<27x4x4xbf16, #tpu.memory_space<vmem>>, vector<1x4x4xbf16>
    %82 = vector.shape_cast %81 : vector<1x4x4xbf16> to vector<4x4xbf16>
    %cst_75 = arith.constant dense<0.000000e+00> : vector<4x896xf32>
    %83 = tpu.matmul %82, %80, %cst_75 {dimension_numbers = #tpu.dot_dimension_numbers<[1], [0], [0], [1], [0, 0, 1, 1], [], []>} : vector<4x4xbf16>, vector<4x896xbf16>, vector<4x896xf32> -> vector<4x896xf32>
    %84 = arith.addf %78, %83 : vector<4x896xf32>
    %c0_76 = arith.constant 0 : index
    %c0_77 = arith.constant 0 : index
    %c112 = arith.constant 112 : index
    %85 = vector.load %arg1[%c0_76, %c0_77, %c112] : memref<1x4x1152xbf16, #tpu.memory_space<vmem>>, vector<1x4x896xbf16>
    %86 = vector.shape_cast %85 : vector<1x4x896xbf16> to vector<4x896xbf16>
    %c14 = arith.constant 14 : index
    %c0_78 = arith.constant 0 : index
    %c0_79 = arith.constant 0 : index
    %87 = vector.load %arg2[%c14, %c0_78, %c0_79] : memref<27x4x4xbf16, #tpu.memory_space<vmem>>, vector<1x4x4xbf16>
    %88 = vector.shape_cast %87 : vector<1x4x4xbf16> to vector<4x4xbf16>
    %cst_80 = arith.constant dense<0.000000e+00> : vector<4x896xf32>
    %89 = tpu.matmul %88, %86, %cst_80 {dimension_numbers = #tpu.dot_dimension_numbers<[1], [0], [0], [1], [0, 0, 1, 1], [], []>} : vector<4x4xbf16>, vector<4x896xbf16>, vector<4x896xf32> -> vector<4x896xf32>
    %90 = arith.addf %84, %89 : vector<4x896xf32>
    %c0_81 = arith.constant 0 : index
    %c0_82 = arith.constant 0 : index
    %c120 = arith.constant 120 : index
    %91 = vector.load %arg1[%c0_81, %c0_82, %c120] : memref<1x4x1152xbf16, #tpu.memory_space<vmem>>, vector<1x4x896xbf16>
    %92 = vector.shape_cast %91 : vector<1x4x896xbf16> to vector<4x896xbf16>
    %c15 = arith.constant 15 : index
    %c0_83 = arith.constant 0 : index
    %c0_84 = arith.constant 0 : index
    %93 = vector.load %arg2[%c15, %c0_83, %c0_84] : memref<27x4x4xbf16, #tpu.memory_space<vmem>>, vector<1x4x4xbf16>
    %94 = vector.shape_cast %93 : vector<1x4x4xbf16> to vector<4x4xbf16>
    %cst_85 = arith.constant dense<0.000000e+00> : vector<4x896xf32>
    %95 = tpu.matmul %94, %92, %cst_85 {dimension_numbers = #tpu.dot_dimension_numbers<[1], [0], [0], [1], [0, 0, 1, 1], [], []>} : vector<4x4xbf16>, vector<4x896xbf16>, vector<4x896xf32> -> vector<4x896xf32>
    %96 = arith.addf %90, %95 : vector<4x896xf32>
    %c0_86 = arith.constant 0 : index
    %c0_87 = arith.constant 0 : index
    %c121 = arith.constant 121 : index
    %97 = vector.load %arg1[%c0_86, %c0_87, %c121] : memref<1x4x1152xbf16, #tpu.memory_space<vmem>>, vector<1x4x896xbf16>
    %98 = vector.shape_cast %97 : vector<1x4x896xbf16> to vector<4x896xbf16>
    %c16 = arith.constant 16 : index
    %c0_88 = arith.constant 0 : index
    %c0_89 = arith.constant 0 : index
    %99 = vector.load %arg2[%c16, %c0_88, %c0_89] : memref<27x4x4xbf16, #tpu.memory_space<vmem>>, vector<1x4x4xbf16>
    %100 = vector.shape_cast %99 : vector<1x4x4xbf16> to vector<4x4xbf16>
    %cst_90 = arith.constant dense<0.000000e+00> : vector<4x896xf32>
    %101 = tpu.matmul %100, %98, %cst_90 {dimension_numbers = #tpu.dot_dimension_numbers<[1], [0], [0], [1], [0, 0, 1, 1], [], []>} : vector<4x4xbf16>, vector<4x896xbf16>, vector<4x896xf32> -> vector<4x896xf32>
    %102 = arith.addf %96, %101 : vector<4x896xf32>
    %c0_91 = arith.constant 0 : index
    %c0_92 = arith.constant 0 : index
    %c122 = arith.constant 122 : index
    %103 = vector.load %arg1[%c0_91, %c0_92, %c122] : memref<1x4x1152xbf16, #tpu.memory_space<vmem>>, vector<1x4x896xbf16>
    %104 = vector.shape_cast %103 : vector<1x4x896xbf16> to vector<4x896xbf16>
    %c17 = arith.constant 17 : index
    %c0_93 = arith.constant 0 : index
    %c0_94 = arith.constant 0 : index
    %105 = vector.load %arg2[%c17, %c0_93, %c0_94] : memref<27x4x4xbf16, #tpu.memory_space<vmem>>, vector<1x4x4xbf16>
    %106 = vector.shape_cast %105 : vector<1x4x4xbf16> to vector<4x4xbf16>
    %cst_95 = arith.constant dense<0.000000e+00> : vector<4x896xf32>
    %107 = tpu.matmul %106, %104, %cst_95 {dimension_numbers = #tpu.dot_dimension_numbers<[1], [0], [0], [1], [0, 0, 1, 1], [], []>} : vector<4x4xbf16>, vector<4x896xbf16>, vector<4x896xf32> -> vector<4x896xf32>
    %108 = arith.addf %102, %107 : vector<4x896xf32>
    %c0_96 = arith.constant 0 : index
    %c0_97 = arith.constant 0 : index
    %c200 = arith.constant 200 : index
    %109 = vector.load %arg1[%c0_96, %c0_97, %c200] : memref<1x4x1152xbf16, #tpu.memory_space<vmem>>, vector<1x4x896xbf16>
    %110 = vector.shape_cast %109 : vector<1x4x896xbf16> to vector<4x896xbf16>
    %c18 = arith.constant 18 : index
    %c0_98 = arith.constant 0 : index
    %c0_99 = arith.constant 0 : index
    %111 = vector.load %arg2[%c18, %c0_98, %c0_99] : memref<27x4x4xbf16, #tpu.memory_space<vmem>>, vector<1x4x4xbf16>
    %112 = vector.shape_cast %111 : vector<1x4x4xbf16> to vector<4x4xbf16>
    %cst_100 = arith.constant dense<0.000000e+00> : vector<4x896xf32>
    %113 = tpu.matmul %112, %110, %cst_100 {dimension_numbers = #tpu.dot_dimension_numbers<[1], [0], [0], [1], [0, 0, 1, 1], [], []>} : vector<4x4xbf16>, vector<4x896xbf16>, vector<4x896xf32> -> vector<4x896xf32>
    %114 = arith.addf %108, %113 : vector<4x896xf32>
    %c0_101 = arith.constant 0 : index
    %c0_102 = arith.constant 0 : index
    %c201 = arith.constant 201 : index
    %115 = vector.load %arg1[%c0_101, %c0_102, %c201] : memref<1x4x1152xbf16, #tpu.memory_space<vmem>>, vector<1x4x896xbf16>
    %116 = vector.shape_cast %115 : vector<1x4x896xbf16> to vector<4x896xbf16>
    %c19 = arith.constant 19 : index
    %c0_103 = arith.constant 0 : index
    %c0_104 = arith.constant 0 : index
    %117 = vector.load %arg2[%c19, %c0_103, %c0_104] : memref<27x4x4xbf16, #tpu.memory_space<vmem>>, vector<1x4x4xbf16>
    %118 = vector.shape_cast %117 : vector<1x4x4xbf16> to vector<4x4xbf16>
    %cst_105 = arith.constant dense<0.000000e+00> : vector<4x896xf32>
    %119 = tpu.matmul %118, %116, %cst_105 {dimension_numbers = #tpu.dot_dimension_numbers<[1], [0], [0], [1], [0, 0, 1, 1], [], []>} : vector<4x4xbf16>, vector<4x896xbf16>, vector<4x896xf32> -> vector<4x896xf32>
    %120 = arith.addf %114, %119 : vector<4x896xf32>
    %c0_106 = arith.constant 0 : index
    %c0_107 = arith.constant 0 : index
    %c202 = arith.constant 202 : index
    %121 = vector.load %arg1[%c0_106, %c0_107, %c202] : memref<1x4x1152xbf16, #tpu.memory_space<vmem>>, vector<1x4x896xbf16>
    %122 = vector.shape_cast %121 : vector<1x4x896xbf16> to vector<4x896xbf16>
    %c20_108 = arith.constant 20 : index
    %c0_109 = arith.constant 0 : index
    %c0_110 = arith.constant 0 : index
    %123 = vector.load %arg2[%c20_108, %c0_109, %c0_110] : memref<27x4x4xbf16, #tpu.memory_space<vmem>>, vector<1x4x4xbf16>
    %124 = vector.shape_cast %123 : vector<1x4x4xbf16> to vector<4x4xbf16>
    %cst_111 = arith.constant dense<0.000000e+00> : vector<4x896xf32>
    %125 = tpu.matmul %124, %122, %cst_111 {dimension_numbers = #tpu.dot_dimension_numbers<[1], [0], [0], [1], [0, 0, 1, 1], [], []>} : vector<4x4xbf16>, vector<4x896xbf16>, vector<4x896xf32> -> vector<4x896xf32>
    %126 = arith.addf %120, %125 : vector<4x896xf32>
    %c0_112 = arith.constant 0 : index
    %c0_113 = arith.constant 0 : index
    %c210 = arith.constant 210 : index
    %127 = vector.load %arg1[%c0_112, %c0_113, %c210] : memref<1x4x1152xbf16, #tpu.memory_space<vmem>>, vector<1x4x896xbf16>
    %128 = vector.shape_cast %127 : vector<1x4x896xbf16> to vector<4x896xbf16>
    %c21_114 = arith.constant 21 : index
    %c0_115 = arith.constant 0 : index
    %c0_116 = arith.constant 0 : index
    %129 = vector.load %arg2[%c21_114, %c0_115, %c0_116] : memref<27x4x4xbf16, #tpu.memory_space<vmem>>, vector<1x4x4xbf16>
    %130 = vector.shape_cast %129 : vector<1x4x4xbf16> to vector<4x4xbf16>
    %cst_117 = arith.constant dense<0.000000e+00> : vector<4x896xf32>
    %131 = tpu.matmul %130, %128, %cst_117 {dimension_numbers = #tpu.dot_dimension_numbers<[1], [0], [0], [1], [0, 0, 1, 1], [], []>} : vector<4x4xbf16>, vector<4x896xbf16>, vector<4x896xf32> -> vector<4x896xf32>
    %132 = arith.addf %126, %131 : vector<4x896xf32>
    %c0_118 = arith.constant 0 : index
    %c0_119 = arith.constant 0 : index
    %c211 = arith.constant 211 : index
    %133 = vector.load %arg1[%c0_118, %c0_119, %c211] : memref<1x4x1152xbf16, #tpu.memory_space<vmem>>, vector<1x4x896xbf16>
    %134 = vector.shape_cast %133 : vector<1x4x896xbf16> to vector<4x896xbf16>
    %c22_120 = arith.constant 22 : index
    %c0_121 = arith.constant 0 : index
    %c0_122 = arith.constant 0 : index
    %135 = vector.load %arg2[%c22_120, %c0_121, %c0_122] : memref<27x4x4xbf16, #tpu.memory_space<vmem>>, vector<1x4x4xbf16>
    %136 = vector.shape_cast %135 : vector<1x4x4xbf16> to vector<4x4xbf16>
    %cst_123 = arith.constant dense<0.000000e+00> : vector<4x896xf32>
    %137 = tpu.matmul %136, %134, %cst_123 {dimension_numbers = #tpu.dot_dimension_numbers<[1], [0], [0], [1], [0, 0, 1, 1], [], []>} : vector<4x4xbf16>, vector<4x896xbf16>, vector<4x896xf32> -> vector<4x896xf32>
    %138 = arith.addf %132, %137 : vector<4x896xf32>
    %c0_124 = arith.constant 0 : index
    %c0_125 = arith.constant 0 : index
    %c212 = arith.constant 212 : index
    %139 = vector.load %arg1[%c0_124, %c0_125, %c212] : memref<1x4x1152xbf16, #tpu.memory_space<vmem>>, vector<1x4x896xbf16>
    %140 = vector.shape_cast %139 : vector<1x4x896xbf16> to vector<4x896xbf16>
    %c23 = arith.constant 23 : index
    %c0_126 = arith.constant 0 : index
    %c0_127 = arith.constant 0 : index
    %141 = vector.load %arg2[%c23, %c0_126, %c0_127] : memref<27x4x4xbf16, #tpu.memory_space<vmem>>, vector<1x4x4xbf16>
    %142 = vector.shape_cast %141 : vector<1x4x4xbf16> to vector<4x4xbf16>
    %cst_128 = arith.constant dense<0.000000e+00> : vector<4x896xf32>
    %143 = tpu.matmul %142, %140, %cst_128 {dimension_numbers = #tpu.dot_dimension_numbers<[1], [0], [0], [1], [0, 0, 1, 1], [], []>} : vector<4x4xbf16>, vector<4x896xbf16>, vector<4x896xf32> -> vector<4x896xf32>
    %144 = arith.addf %138, %143 : vector<4x896xf32>
    %c0_129 = arith.constant 0 : index
    %c0_130 = arith.constant 0 : index
    %c220 = arith.constant 220 : index
    %145 = vector.load %arg1[%c0_129, %c0_130, %c220] : memref<1x4x1152xbf16, #tpu.memory_space<vmem>>, vector<1x4x896xbf16>
    %146 = vector.shape_cast %145 : vector<1x4x896xbf16> to vector<4x896xbf16>
    %c24 = arith.constant 24 : index
    %c0_131 = arith.constant 0 : index
    %c0_132 = arith.constant 0 : index
    %147 = vector.load %arg2[%c24, %c0_131, %c0_132] : memref<27x4x4xbf16, #tpu.memory_space<vmem>>, vector<1x4x4xbf16>
    %148 = vector.shape_cast %147 : vector<1x4x4xbf16> to vector<4x4xbf16>
    %cst_133 = arith.constant dense<0.000000e+00> : vector<4x896xf32>
    %149 = tpu.matmul %148, %146, %cst_133 {dimension_numbers = #tpu.dot_dimension_numbers<[1], [0], [0], [1], [0, 0, 1, 1], [], []>} : vector<4x4xbf16>, vector<4x896xbf16>, vector<4x896xf32> -> vector<4x896xf32>
    %150 = arith.addf %144, %149 : vector<4x896xf32>
    %c0_134 = arith.constant 0 : index
    %c0_135 = arith.constant 0 : index
    %c221 = arith.constant 221 : index
    %151 = vector.load %arg1[%c0_134, %c0_135, %c221] : memref<1x4x1152xbf16, #tpu.memory_space<vmem>>, vector<1x4x896xbf16>
    %152 = vector.shape_cast %151 : vector<1x4x896xbf16> to vector<4x896xbf16>
    %c25 = arith.constant 25 : index
    %c0_136 = arith.constant 0 : index
    %c0_137 = arith.constant 0 : index
    %153 = vector.load %arg2[%c25, %c0_136, %c0_137] : memref<27x4x4xbf16, #tpu.memory_space<vmem>>, vector<1x4x4xbf16>
    %154 = vector.shape_cast %153 : vector<1x4x4xbf16> to vector<4x4xbf16>
    %cst_138 = arith.constant dense<0.000000e+00> : vector<4x896xf32>
    %155 = tpu.matmul %154, %152, %cst_138 {dimension_numbers = #tpu.dot_dimension_numbers<[1], [0], [0], [1], [0, 0, 1, 1], [], []>} : vector<4x4xbf16>, vector<4x896xbf16>, vector<4x896xf32> -> vector<4x896xf32>
    %156 = arith.addf %150, %155 : vector<4x896xf32>
    %c0_139 = arith.constant 0 : index
    %c0_140 = arith.constant 0 : index
    %c222 = arith.constant 222 : index
    %157 = vector.load %arg1[%c0_139, %c0_140, %c222] : memref<1x4x1152xbf16, #tpu.memory_space<vmem>>, vector<1x4x896xbf16>
    %158 = vector.shape_cast %157 : vector<1x4x896xbf16> to vector<4x896xbf16>
    %c26 = arith.constant 26 : index
    %c0_141 = arith.constant 0 : index
    %c0_142 = arith.constant 0 : index
    %159 = vector.load %arg2[%c26, %c0_141, %c0_142] : memref<27x4x4xbf16, #tpu.memory_space<vmem>>, vector<1x4x4xbf16>
    %160 = vector.shape_cast %159 : vector<1x4x4xbf16> to vector<4x4xbf16>
    %cst_143 = arith.constant dense<0.000000e+00> : vector<4x896xf32>
    %161 = tpu.matmul %160, %158, %cst_143 {dimension_numbers = #tpu.dot_dimension_numbers<[1], [0], [0], [1], [0, 0, 1, 1], [], []>} : vector<4x4xbf16>, vector<4x896xbf16>, vector<4x896xf32> -> vector<4x896xf32>
    %162 = arith.addf %156, %161 : vector<4x896xf32>
    %c0_144 = arith.constant 0 : index
    %c0_145 = arith.constant 0 : index
    %163 = vector.load %arg3[%c0_144, %c0_145] : memref<4x1xf32, #tpu.memory_space<vmem>>, vector<4x1xf32>
    %164 = vector.broadcast %163 : vector<4x1xf32> to vector<4x896xf32>
    %165 = arith.addf %162, %164 : vector<4x896xf32>
    %c0_146 = arith.constant 0 : index
    %c0_147 = arith.constant 0 : index
    %166 = vector.load %arg4[%c0_146, %c0_147] : memref<1x1xf32, #tpu.memory_space<vmem>>, vector<1x1xf32>
    %167 = vector.shape_cast %166 : vector<1x1xf32> to vector<1xf32>
    %cst_148 = arith.constant 0.000000e+00 : f32
    %168 = vector.broadcast %cst_148 : f32 to vector<4x896xf32>
    %169 = arith.cmpf oge, %165, %168 : vector<4x896xf32>
    %170 = vector.shape_cast %167 : vector<1xf32> to vector<1x1xf32>
    %171 = vector.broadcast %170 : vector<1x1xf32> to vector<4x896xf32>
    %172 = arith.mulf %171, %165 : vector<4x896xf32>
    %173 = arith.select %169, %165, %172 : vector<4x896xi1>, vector<4x896xf32>
    %c0_149 = arith.constant 0 : index
    %c0_150 = arith.constant 0 : index
    %c0_151 = arith.constant 0 : index
    %174 = vector.load %arg5[%c0_149, %c0_150, %c0_151] : memref<1x4x896xf32, #tpu.memory_space<vmem>>, vector<1x4x896xf32>
    %175 = vector.shape_cast %174 : vector<1x4x896xf32> to vector<4x896xf32>
    %176 = vector.shape_cast %173 : vector<4x896xf32> to vector<1x4x896xf32>
    tpu.vector_store %arg5[%c0_149, %c0_150, %c0_151], %176 {strides = array<i32>} : memref<1x4x896xf32, #tpu.memory_space<vmem>>, vector<1x4x896xf32>,
    return
  }
  func.func @transform_0(%arg0: i32) -> (i32, i32, i32) {
    %c0_i32 = arith.constant 0 : i32
    %c0_i32_0 = arith.constant 0 : i32
    %c0_i32_1 = arith.constant 0 : i32
    return %arg0, %c0_i32, %c0_i32_0 : i32, i32, i32
  }
  func.func @transform_1(%arg0: i32) -> (i32, i32, i32) {
    %c0_i32 = arith.constant 0 : i32
    %c0_i32_0 = arith.constant 0 : i32
    %c0_i32_1 = arith.constant 0 : i32
    %c0_i32_2 = arith.constant 0 : i32
    return %c0_i32, %c0_i32_0, %c0_i32_1 : i32, i32, i32
  }
  func.func @transform_2(%arg0: i32) -> (i32, i32) {
    %c0_i32 = arith.constant 0 : i32
    %c0_i32_0 = arith.constant 0 : i32
    %c0_i32_1 = arith.constant 0 : i32
    return %c0_i32, %c0_i32_0 : i32, i32
  }
  func.func @transform_3(%arg0: i32) -> (i32, i32) {
    %c0_i32 = arith.constant 0 : i32
    %c0_i32_0 = arith.constant 0 : i32
    %c0_i32_1 = arith.constant 0 : i32
    return %c0_i32, %c0_i32_0 : i32, i32
  }
  func.func @transform_4(%arg0: i32) -> (i32, i32, i32) {
    %c0_i32 = arith.constant 0 : i32
    %c0_i32_0 = arith.constant 0 : i32
    %c0_i32_1 = arith.constant 0 : i32
    return %arg0, %c0_i32, %c0_i32_0 : i32, i32, i32
  }
}

</mosaic_0001>

<llo_original>
// kernel: up_forward.8
$region0: #{up_forward.8}
  #allocation0 [shape = 'u32[]', space=smem, size = 0x4, offset = 0x4, fixed_abs, tag = 'smem constant byte address 0x4 - core index']
  #allocation1 [shape = 'u32[72,128]{1,0:T(1,128)}', space=vmem, size = 0x9000, scoped, tag = 'internal scratch']
  %s0 = inlined_call_operand.vmem [shape: f32[8,512], index: 0, kind: input, shape index: {}]
  %s1 = inlined_call_operand.vmem [shape: f32[8,512], index: 1, kind: output, shape index: {}]
  %s2 = sld [smem:[#allocation0]]
  $region14: #{up_forward.8} parent=0
    _
  %s4 = ssub.s32 1, %s2
  %s5 = scalar_select 0, %s4, %s2
  // Predicated region
  $region2: #{up_forward.8} parent=0 // pred_check
    _
  $region3: #{up_forward.8} parent=0 // pred_check_branch
    %7 = sbr.rel (0) target = $region5
  $region4: #{up_forward.8} parent=0 // pred_region
    _
  $region5: #{up_forward.8} parent=0 // pred_fallthru
    _
  %v8 = vld [vmem:[%s0] sm:$0xff]
  %v9 = vld [vmem:[%s0 + $0x8] sm:$0xff]
  %v10 = vld [vmem:[%s0 + $0x10] sm:$0xff]
  %v11 = vld [vmem:[%s0 + $0x18] sm:$0xff]
  %v12 = vadd.f32 %v8, %v9
  %v13 = vadd.f32 %v12, %v10
  %v14 = vadd.f32 %v13, %v11
  %15 = vadd.xlane.f32.xlu0 %v14
  %v16 = vpop.xlane.xlu0 %15
  %v17 = vrcp.pop 512.0
  %v18 = vmul.f32 512.0, %v17
  %v19 = vsub.f32 1.0, %v18
  %v20 = vmul.f32 %v17, %v19
  %v21 = vadd.f32 %v17, %v20
  %vm22 = vweird.f32 %v17
  %v23 = vsel %vm22, %v17, %v21
  %v24 = vmul.f32 %v16, %v23
  %v25 = vsub.f32 %v8, %v24
  %v26 = vsub.f32 %v9, %v24
  %v27 = vsub.f32 %v10, %v24
  %v28 = vsub.f32 %v11, %v24
  %v29 = vmul.f32 %v25, %v25
  %v30 = vmul.f32 %v26, %v26
  %v31 = vmul.f32 %v27, %v27
  %v32 = vmul.f32 %v28, %v28
  %v33 = vadd.f32 %v29, %v30
  %v34 = vadd.f32 %v33, %v31
  %v35 = vadd.f32 %v34, %v32
  %36 = vadd.xlane.f32.xlu0 %v35
  %v37 = vpop.xlane.xlu0 %36
  %v38 = vmul.f32 %v37, %v23
  %v39 = vadd.f32 %v38, 1e-05
  %v40 = vrsqrt.pop %v39
  %v41 = vmul.f32 %v40, %v39
  %v42 = vmul.f32 %v41, %v40
  %v43 = vmul.f32 0.5, %v42
  %v44 = vsub.f32 1.5, %v43
  %v45 = vmul.f32 %v40, %v44
  %vm46 = vweird.f32 %v39
  %vm47 = vweird.f32 %v40
  %vm48 = vmor %vm46, %vm47
  %v49 = vsel %vm48, %v40, %v45
  %v50 = vmul.f32 %v25, %v49
  %v51 = vmul.f32 %v26, %v49
  %v52 = vmul.f32 %v27, %v49
  %v53 = vmul.f32 %v28, %v49
  %54 = vst [vmem:[%s1] sm:$0xff] %v50
  %55 = vst [vmem:[%s1 + $0x8] sm:$0xff] %v51
  %56 = vst [vmem:[%s1 + $0x10] sm:$0xff] %v52
  %57 = vst [vmem:[%s1 + $0x18] sm:$0xff] %v53
  // Predicated region
  $region6: #{up_forward.8} parent=0 // pred_check
    _
  $region7: #{up_forward.8} parent=0 // pred_check_branch
    %59 = sbr.rel (0) target = $region9
  $region8: #{up_forward.8} parent=0 // pred_region
    _
  $region9: #{up_forward.8} parent=0 // pred_fallthru
    _
  // Predicated region
  $region10: #{up_forward.8} parent=0 // pred_check
    _
  $region11: #{up_forward.8} parent=0 // pred_check_branch
    %61 = sbr.rel (0) target = $region13
  $region12: #{up_forward.8} parent=0 // pred_region
    _
  $region13: #{up_forward.8} parent=0 // pred_fallthru
    _

// kernel: up_forward.7
$region0: #{up_forward.7}
  #allocation0 [shape = 'u32[]', space=smem, size = 0x4, offset = 0x4, fixed_abs, tag = 'smem constant byte address 0x4 - core index']
  #allocation1 [shape = 'u32[72,128]{1,0:T(1,128)}', space=vmem, size = 0x9000, scoped, tag = 'internal scratch']
  #allocation2 [shape = 'f32[1,1]{1,0:T(1,128)S(1)}', space=vmem, size = 0x200, scoped, tag = 'scoped memory for up_forward.7']
  %s0 = inlined_call_operand.vmem [shape: bf16[2,8,64], index: 0, kind: input, shape index: {}]
  %s1 = inlined_call_operand.vmem [shape: bf16[32,8], index: 1, kind: input, shape index: {}]
  %s2 = inlined_call_operand.vmem [shape: f32[32,1], index: 2, kind: input, shape index: {}]
  %s3 = inlined_call_operand.<no memory space> [shape: f32[1,1], index: 3, kind: input, shape index: {}]
  %s4 = inlined_call_operand.vmem [shape: f32[2,32,64], index: 4, kind: output, shape index: {}]
  %s5 = sld [smem:[#allocation0]]
  $region49: #{up_forward.7} parent=0
    _
  %s7 = ssub.s32 1, %s5
  %s8 = scalar_select 0, %s7, %s5
  %v9 = vstv %s3
  %10 = vst [vmem:[#allocation2] sm:$0x1] %v9
  loop: start=0, step=1, limit=4
  $region2: #{up_forward.7} parent=0 // loop_pre_header
    _
  $region3: #{up_forward.7} parent=0 // loop_header
    %s12 = sphi 0, %s16
    %p13 = scmp.ge.s32.totalorder %s12, 4
    %s22 = sphi 0, %s24
    %s25 = sphi 0, %s22
    %s26 = sphi 0, %s25
    %s42 = sphi 0, %s26
    %s46 = sphi 0, %s46
    %s48 = sphi 0, %s46
    %s49 = sphi 0, %s48
    %s63 = sphi 0, %s49
    %s67 = sphi 0, %s67
    %s69 = sphi 0, %s67
    %s70 = sphi 0, %s69
    %s84 = sphi 0, %s70
    %s88 = sphi 0, %s88
    %s90 = sphi 0, %s88
    %s91 = sphi 0, %s90
    %s105 = sphi 0, %s91
    %s111 = sphi 0, %s113
    %s114 = sphi 0, %s111
    %s115 = sphi 0, %s114
    %s131 = sphi 0, %s115
  $region4: #{up_forward.7} parent=0 // loop_header_branch
    %15 = sbr.rel (%p13) target = $region8
  $region5: #{up_forward.7} parent=0 // loop_body
    %s17 = ssub.s32 %s12, 1
    %s18 = ssub.s32 %s12, 2
    %s19 = sadd.s32 %s12, 1
    %s20 = ssub.s32 %s12, %s19
    %p21 = scmp.eq.s32.totalorder %s20, 0
    %s23 = sadd.s32 %s22, 1
    %s24 = scalar_select %p21, %s22, %s23
    %p27 = pneg %p21
    %p28 = scmp.eq.s32.totalorder %s12, 1
    %p29 = por %p27, %p28
    %p30 = scmp.ne.s32.totalorder %s22, %s25
    %p31 = scmp.eq.s32.totalorder %s12, 0
    %p32 = por %p30, %p31
    %p33 = scmp.ne.s32.totalorder %s22, %s25
    %p34 = scmp.eq.s32.totalorder %s17, 1
    %p35 = por %p33, %p34
    %p36 = scmp.ne.s32.totalorder %s25, %s26
    %p37 = scmp.eq.s32.totalorder %s17, 0
    %p38 = por %p36, %p37
    %p39 = scmp.ne.s32.totalorder %s25, %s26
    %p40 = scmp.eq.s32.totalorder %s18, 1
    %p41 = por %p39, %p40
    %p43 = scmp.ne.s32.totalorder %s26, %s42
    %p44 = scmp.eq.s32.totalorder %s18, 0
    %p45 = por %p43, %p44
    %s47 = sadd.s32 %s46, 1
    %p50 = scmp.eq.s32.totalorder %s12, 1
    %p51 = scmp.ne.s32.totalorder %s46, %s48
    %p52 = scmp.eq.s32.totalorder %s12, 0
    %p53 = por %p51, %p52
    %p54 = scmp.ne.s32.totalorder %s46, %s48
    %p55 = scmp.eq.s32.totalorder %s17, 1
    %p56 = por %p54, %p55
    %p57 = scmp.ne.s32.totalorder %s48, %s49
    %p58 = scmp.eq.s32.totalorder %s17, 0
    %p59 = por %p57, %p58
    %p60 = scmp.ne.s32.totalorder %s48, %s49
    %p61 = scmp.eq.s32.totalorder %s18, 1
    %p62 = por %p60, %p61
    %p64 = scmp.ne.s32.totalorder %s49, %s63
    %p65 = scmp.eq.s32.totalorder %s18, 0
    %p66 = por %p64, %p65
    %s68 = sadd.s32 %s67, 1
    %p71 = scmp.eq.s32.totalorder %s12, 1
    %p72 = scmp.ne.s32.totalorder %s67, %s69
    %p73 = scmp.eq.s32.totalorder %s12, 0
    %p74 = por %p72, %p73
    %p75 = scmp.ne.s32.totalorder %s67, %s69
    %p76 = scmp.eq.s32.totalorder %s17, 1
    %p77 = por %p75, %p76
    %p78 = scmp.ne.s32.totalorder %s69, %s70
    %p79 = scmp.eq.s32.totalorder %s17, 0
    %p80 = por %p78, %p79
    %p81 = scmp.ne.s32.totalorder %s69, %s70
    %p82 = scmp.eq.s32.totalorder %s18, 1
    %p83 = por %p81, %p82
    %p85 = scmp.ne.s32.totalorder %s70, %s84
    %p86 = scmp.eq.s32.totalorder %s18, 0
    %p87 = por %p85, %p86
    %s89 = sadd.s32 %s88, 1
    %p92 = scmp.eq.s32.totalorder %s12, 1
    %p93 = scmp.ne.s32.totalorder %s88, %s90
    %p94 = scmp.eq.s32.totalorder %s12, 0
    %p95 = por %p93, %p94
    %p96 = scmp.ne.s32.totalorder %s88, %s90
    %p97 = scmp.eq.s32.totalorder %s17, 1
    %p98 = por %p96, %p97
    %p99 = scmp.ne.s32.totalorder %s90, %s91
    %p100 = scmp.eq.s32.totalorder %s17, 0
    %p101 = por %p99, %p100
    %p102 = scmp.ne.s32.totalorder %s90, %s91
    %p103 = scmp.eq.s32.totalorder %s18, 1
    %p104 = por %p102, %p103
    %p106 = scmp.ne.s32.totalorder %s91, %s105
    %p107 = scmp.eq.s32.totalorder %s18, 0
    %p108 = por %p106, %p107
    %s109 = ssub.s32 %s12, %s19
    %p110 = scmp.eq.s32.totalorder %s109, 0
    %s112 = sadd.s32 %s111, 1
    %s113 = scalar_select %p110, %s111, %s112
    %p116 = pneg %p110
    %p117 = scmp.eq.s32.totalorder %s12, 1
    %p118 = por %p116, %p117
    %p119 = scmp.ne.s32.totalorder %s111, %s114
    %p120 = scmp.eq.s32.totalorder %s12, 0
    %p121 = por %p119, %p120
    %p122 = scmp.ne.s32.totalorder %s111, %s114
    %p123 = scmp.eq.s32.totalorder %s17, 1
    %p124 = por %p122, %p123
    %p125 = scmp.ne.s32.totalorder %s114, %s115
    %p126 = scmp.eq.s32.totalorder %s17, 0
    %p127 = por %p125, %p126
    %p128 = scmp.ne.s32.totalorder %s114, %s115
    %p129 = scmp.eq.s32.totalorder %s18, 1
    %p130 = por %p128, %p129
    %p132 = scmp.ne.s32.totalorder %s115, %s131
    %p133 = scmp.eq.s32.totalorder %s18, 0
    %p134 = por %p132, %p133
    %p135 = scmp.le.s32.totalorder 1, %s12
    %p136 = scmp.lt.s32.totalorder %s12, 3
    %p137 = pnand %p135, %p136
    %p138 = pneg %p137
    // Predicated region
    $region9: #{up_forward.7} parent=5 // pred_check
      _
    $region10: #{up_forward.7} parent=5 // pred_check_branch
      %140 = sbr.rel (%p137) target = $region12
    $region11: #{up_forward.7} parent=5 // pred_region
      %s141 = ssub.s32 %s12, 1
      // Predicated region
      $region13: #{up_forward.7} parent=11 // pred_check
        %p142 = pneg %p59
      $region14: #{up_forward.7} parent=11 // pred_check_branch
        %144 = sbr.rel (%p142) target = $region16
      $region15: #{up_forward.7} parent=11 // pred_region
        _
      $region16: #{up_forward.7} parent=11 // pred_fallthru
        _
      // Predicated region
      $region17: #{up_forward.7} parent=11 // pred_check
        %p145 = pneg %p80
      $region18: #{up_forward.7} parent=11 // pred_check_branch
        %147 = sbr.rel (%p145) target = $region20
      $region19: #{up_forward.7} parent=11 // pred_region
        _
      $region20: #{up_forward.7} parent=11 // pred_fallthru
        _
      // Predicated region
      $region21: #{up_forward.7} parent=11 // pred_check
        %p148 = pneg %p101
      $region22: #{up_forward.7} parent=11 // pred_check_branch
        %150 = sbr.rel (%p148) target = $region24
      $region23: #{up_forward.7} parent=11 // pred_region
        _
      $region24: #{up_forward.7} parent=11 // pred_fallthru
        _
    $region12: #{up_forward.7} parent=5 // pred_fallthru
      _
    %p151 = scmp.lt.s32.totalorder %s12, 2
    // Predicated region
    $region25: #{up_forward.7} parent=5 // pred_check
      %p152 = pneg %p151
    $region26: #{up_forward.7} parent=5 // pred_check_branch
      %154 = sbr.rel (%p152) target = $region28
    $region27: #{up_forward.7} parent=5 // pred_region
      // Predicated region
      $region29: #{up_forward.7} parent=27 // pred_check
        %p155 = pneg %p32
      $region30: #{up_forward.7} parent=27 // pred_check_branch
        %157 = sbr.rel (%p155) target = $region32
      $region31: #{up_forward.7} parent=27 // pred_region
        %p158 = scmp.lt.s32.totalorder %s12, 1
        %s159 = scalar_select %p158, %s12, 1
        %s160 = smul.addr %s159, 4
        %s161 = scalar_lea.vmem %s0, %s160
      $region32: #{up_forward.7} parent=27 // pred_fallthru
        _
    $region28: #{up_forward.7} parent=5 // pred_fallthru
      _
    %p162 = scmp.le.s32.totalorder 1, %s12
    %p163 = scmp.lt.s32.totalorder %s12, 3
    %p164 = pnand %p162, %p163
    %p165 = pneg %p164
    // Predicated region
    $region33: #{up_forward.7} parent=5 // pred_check
      _
    $region34: #{up_forward.7} parent=5 // pred_check_branch
      %167 = sbr.rel (%p164) target = $region36
    $region35: #{up_forward.7} parent=5 // pred_region
      %s168 = ssub.s32 %s12, 1
      %p169 = scmp.lt.s32.totalorder %s17, 1
      %s170 = scalar_select %p169, %s17, 1
      %s171 = smul.addr %s170, 4
      %s172 = scalar_lea.vmem %s0, %s171
      %p173 = pneg %p38
      %p174 = pneg %p35
      %p175 = pneg %p59
      %p176 = pneg %p56
      %p177 = pneg %p80
      %p178 = pneg %p77
      %p179 = pneg %p101
      %p180 = pneg %p98
      %p181 = pneg %p127
      %p182 = pneg %p124
      %p183 = scmp.lt.s32.totalorder %s17, 1
      %s184 = scalar_select %p183, %s17, 1
      %s185 = smul.addr %s184, 4
      %s186 = smul.addr %s185, 8
      %s187 = scalar_lea.vmem %s4, %s186
      %p188 = scmp.lt.s32.totalorder %s17, 1
      %s189 = scalar_select %p188, %s17, 1
      %s190 = smul.addr %s189, 4
      %s191 = scalar_lea.vmem %s0, %s190
      %p192 = scmp.lt.s32.totalorder %s17, 1
      %s193 = scalar_select %p192, %s17, 1
      %s194 = smul.addr %s193, 4
      %s195 = smul.addr %s194, 8
      %s196 = scalar_lea.vmem %s4, %s195
      %v198 = vld [vmem:[%s1] sm:$0xf]
      %v199 = vld [vmem:[%s1 + $0x4] sm:$0xf]
      %v200 = vld [vmem:[%s1 + $0x8] sm:$0xf]
      %v201 = vld [vmem:[%s1 + $0xc] sm:$0xf]
      %v202 = vld [vmem:[%s191] sm:$0xf]
      %v203 = vld [vmem:[%s2] sm:$0xff]
      %v204 = vld [vmem:[%s2 + $0x8] sm:$0xff]
      %v205 = vld [vmem:[%s2 + $0x10] sm:$0xff]
      %v206 = vld [vmem:[%s2 + $0x18] sm:$0xff]
      %208 = vset.pattern.permute.xlu0 0
      %209 = vperm.xlu0 %208, %v203
      %v210 = vpop.permute.xlu0 %209
      %213 = vset.pattern.permute.xlu0 0
      %214 = vperm.xlu0 %213, %v204
      %v215 = vpop.permute.xlu0 %214
      %218 = vset.pattern.permute.xlu0 0
      %219 = vperm.xlu0 %218, %v205
      %v220 = vpop.permute.xlu0 %219
      %223 = vset.pattern.permute.xlu0 0
      %224 = vperm.xlu0 %223, %v206
      %v225 = vpop.permute.xlu0 %224
      %v231 = vunpack.c.l.b16 %v198
      %v232 = vunpack.c.l.b16 %v199
      %v233 = vunpack.c.l.b16 %v200
      %v234 = vunpack.c.l.b16 %v201
      %v235 = vpack.c.b16 %v232, %v231
      %v236 = vpack.c.b16 %v234, %v233
      %vm237 = vcmask 64512
      %v239 = vsel %vm237, %v235, 0
      %v242 = vsel %vm237, %v236, 0
      %vm244 = vcmask 1043456
      %v246 = vsel %vm244, %v202, 0
      %248 = vmatpush.bf16.msra.mxu0 0
      %249 = vmatpush.bf16.msra.mxu0 0
      %250 = vmatpush.bf16.msra.mxu0 0
      %251 = vmatpush.bf16.msra.mxu0 0
      %252 = vmatpush.bf16.msra.mxu0 0
      %253 = vmatpush.bf16.msra.mxu0 0
      %254 = vmatpush.bf16.msra.mxu0 0
      %255 = vmatpush.bf16.msra.mxu0 %v246
      %256 = vmatmul.bf16.gmra.mxu0 %v239
      %v257 = vpop.f32.mrf.mxu0
      %v258 = vadd.f32 %v210, %v257
      %v259 = vpop.f32.mrf.mxu0
      %v260 = vadd.f32 %v215, %v259
      %261 = vmatmul.bf16.gmra.mxu0 %v242
      %v262 = vpop.f32.mrf.mxu0
      %v263 = vadd.f32 %v220, %v262
      %v264 = vpop.f32.mrf.mxu0
      %v265 = vadd.f32 %v225, %v264
      %266 = vdwg.mxu0
      %v267 = vld [vmem:[#allocation2] sm:$0x1]
      %vm268 = vcmp.ge.f32.partialorder %v258, 0.0
      %vm269 = vcmp.ge.f32.partialorder %v260, 0.0
      %vm270 = vcmp.ge.f32.partialorder %v263, 0.0
      %vm271 = vcmp.ge.f32.partialorder %v265, 0.0
      %v273 = vperm.slane %v267, 0
      %274 = vset.pattern.permute.xlu0 0
      %275 = vperm.xlu0 %274, %v273
      %v276 = vpop.permute.xlu0 %275
      %v278 = vmul.f32 %v276, %v258
      %v279 = vmul.f32 %v276, %v260
      %v280 = vmul.f32 %v276, %v263
      %v281 = vmul.f32 %v276, %v265
      %v282 = vsel %vm268, %v258, %v278
      %v283 = vsel %vm269, %v260, %v279
      %v284 = vsel %vm270, %v263, %v280
      %v285 = vsel %vm271, %v265, %v281
      %vm286 = vcmask 523264
      %287 = vst.msk [vmem:[%s196] sm:$0xff] %vm286, %v282
      %288 = vst.msk [vmem:[%s196 + $0x8] sm:$0xff] %vm286, %v283
      %289 = vst.msk [vmem:[%s196 + $0x10] sm:$0xff] %vm286, %v284
      %290 = vst.msk [vmem:[%s196 + $0x18] sm:$0xff] %vm286, %v285
      %p291 = scmp.lt.s32.totalorder %s17, 1
      %s292 = scalar_select %p291, %s17, 1
      %s293 = smul.addr %s292, 4
      %s294 = smul.addr %s293, 8
      %s295 = scalar_lea.vmem %s4, %s294
      // Predicated region
      $region37: #{up_forward.7} parent=35 // pred_check
        %p296 = pneg %p124
      $region38: #{up_forward.7} parent=35 // pred_check_branch
        %298 = sbr.rel (%p296) target = $region40
      $region39: #{up_forward.7} parent=35 // pred_region
        _
      $region40: #{up_forward.7} parent=35 // pred_fallthru
        _
    $region36: #{up_forward.7} parent=5 // pred_fallthru
      _
    %p299 = scmp.le.s32.totalorder 2, %s12
    // Predicated region
    $region41: #{up_forward.7} parent=5 // pred_check
      %p300 = pneg %p299
    $region42: #{up_forward.7} parent=5 // pred_check_branch
      %302 = sbr.rel (%p300) target = $region44
    $region43: #{up_forward.7} parent=5 // pred_region
      %s303 = ssub.s32 %s12, 2
      // Predicated region
      $region45: #{up_forward.7} parent=43 // pred_check
        %p304 = pneg %p130
      $region46: #{up_forward.7} parent=43 // pred_check_branch
        %306 = sbr.rel (%p304) target = $region48
      $region47: #{up_forward.7} parent=43 // pred_region
        %p307 = scmp.lt.s32.totalorder %s18, 1
        %s308 = scalar_select %p307, %s18, 1
        %s309 = smul.addr %s308, 4
        %s310 = smul.addr %s309, 8
        %s311 = scalar_lea.vmem %s4, %s310
      $region48: #{up_forward.7} parent=43 // pred_fallthru
        _
    $region44: #{up_forward.7} parent=5 // pred_fallthru
      _
  $region6: #{up_forward.7} parent=0 // loop_footer
    %s16 = sadd.s32 1, %s12
  $region7: #{up_forward.7} parent=0 // loop_footer_branch
    %11 = sbr.rel target = $region3
  $region8: #{up_forward.7} parent=0 // loop_exit
    _

// kernel: up_forward.9
$region0: #{up_forward.9}
  #allocation0 [shape = 'u32[]', space=smem, size = 0x4, offset = 0x4, fixed_abs, tag = 'smem constant byte address 0x4 - core index']
  #allocation1 [shape = 'u32[72,128]{1,0:T(1,128)}', space=vmem, size = 0x9000, scoped, tag = 'internal scratch']
  %s0 = inlined_call_operand.vmem [shape: bf16[2,8,1152], index: 0, kind: input, shape index: {}]
  %s1 = inlined_call_operand.vmem [shape: bf16[27,4,8], index: 1, kind: input, shape index: {}]
  %s2 = inlined_call_operand.vmem [shape: bf16[1,4,8], index: 2, kind: input, shape index: {}]
  %s3 = inlined_call_operand.vmem [shape: f32[4,1], index: 3, kind: input, shape index: {}]
  %s4 = inlined_call_operand.vmem [shape: f32[4,1], index: 4, kind: input, shape index: {}]
  %s5 = inlined_call_operand.vmem [shape: f32[2,1], index: 5, kind: input, shape index: {}]
  %s6 = inlined_call_operand.vmem [shape: f32[2,4,896], index: 6, kind: output, shape index: {0}]
  %s7 = inlined_call_operand.vmem [shape: f32[2,4,896], index: 7, kind: output, shape index: {1}]
  %8 = xla_tuple %s6, %s7
  %s9 = sld [smem:[#allocation0]]
  $region65: #{up_forward.9} parent=0
    _
  %s11 = ssub.s32 1, %s9
  %s12 = scalar_select 0, %s11, %s9
  loop: start=0, step=1, limit=4
  $region2: #{up_forward.9} parent=0 // loop_pre_header
    _
  $region3: #{up_forward.9} parent=0 // loop_header
    %s14 = sphi 0, %s18
    %p15 = scmp.ge.s32.totalorder %s14, 4
    %s24 = sphi 0, %s26
    %s27 = sphi 0, %s24
    %s28 = sphi 0, %s27
    %s44 = sphi 0, %s28
    %s48 = sphi 0, %s48
    %s50 = sphi 0, %s48
    %s51 = sphi 0, %s50
    %s65 = sphi 0, %s51
    %s69 = sphi 0, %s69
    %s71 = sphi 0, %s69
    %s72 = sphi 0, %s71
    %s86 = sphi 0, %s72
    %s90 = sphi 0, %s90
    %s92 = sphi 0, %s90
    %s93 = sphi 0, %s92
    %s107 = sphi 0, %s93
    %s111 = sphi 0, %s111
    %s113 = sphi 0, %s111
    %s114 = sphi 0, %s113
    %s128 = sphi 0, %s114
    %s132 = sphi 0, %s132
    %s134 = sphi 0, %s132
    %s135 = sphi 0, %s134
    %s149 = sphi 0, %s135
    %s155 = sphi 0, %s157
    %s158 = sphi 0, %s155
    %s159 = sphi 0, %s158
    %s175 = sphi 0, %s159
    %s181 = sphi 0, %s183
    %s184 = sphi 0, %s181
    %s185 = sphi 0, %s184
    %s201 = sphi 0, %s185
  $region4: #{up_forward.9} parent=0 // loop_header_branch
    %17 = sbr.rel (%p15) target = $region8
  $region5: #{up_forward.9} parent=0 // loop_body
    %s19 = ssub.s32 %s14, 1
    %s20 = ssub.s32 %s14, 2
    %s21 = sadd.s32 %s14, 1
    %s22 = ssub.s32 %s14, %s21
    %p23 = scmp.eq.s32.totalorder %s22, 0
    %s25 = sadd.s32 %s24, 1
    %s26 = scalar_select %p23, %s24, %s25
    %p29 = pneg %p23
    %p30 = scmp.eq.s32.totalorder %s14, 1
    %p31 = por %p29, %p30
    %p32 = scmp.ne.s32.totalorder %s24, %s27
    %p33 = scmp.eq.s32.totalorder %s14, 0
    %p34 = por %p32, %p33
    %p35 = scmp.ne.s32.totalorder %s24, %s27
    %p36 = scmp.eq.s32.totalorder %s19, 1
    %p37 = por %p35, %p36
    %p38 = scmp.ne.s32.totalorder %s27, %s28
    %p39 = scmp.eq.s32.totalorder %s19, 0
    %p40 = por %p38, %p39
    %p41 = scmp.ne.s32.totalorder %s27, %s28
    %p42 = scmp.eq.s32.totalorder %s20, 1
    %p43 = por %p41, %p42
    %p45 = scmp.ne.s32.totalorder %s28, %s44
    %p46 = scmp.eq.s32.totalorder %s20, 0
    %p47 = por %p45, %p46
    %s49 = sadd.s32 %s48, 1
    %p52 = scmp.eq.s32.totalorder %s14, 1
    %p53 = scmp.ne.s32.totalorder %s48, %s50
    %p54 = scmp.eq.s32.totalorder %s14, 0
    %p55 = por %p53, %p54
    %p56 = scmp.ne.s32.totalorder %s48, %s50
    %p57 = scmp.eq.s32.totalorder %s19, 1
    %p58 = por %p56, %p57
    %p59 = scmp.ne.s32.totalorder %s50, %s51
    %p60 = scmp.eq.s32.totalorder %s19, 0
    %p61 = por %p59, %p60
    %p62 = scmp.ne.s32.totalorder %s50, %s51
    %p63 = scmp.eq.s32.totalorder %s20, 1
    %p64 = por %p62, %p63
    %p66 = scmp.ne.s32.totalorder %s51, %s65
    %p67 = scmp.eq.s32.totalorder %s20, 0
    %p68 = por %p66, %p67
    %s70 = sadd.s32 %s69, 1
    %p73 = scmp.eq.s32.totalorder %s14, 1
    %p74 = scmp.ne.s32.totalorder %s69, %s71
    %p75 = scmp.eq.s32.totalorder %s14, 0
    %p76 = por %p74, %p75
    %p77 = scmp.ne.s32.totalorder %s69, %s71
    %p78 = scmp.eq.s32.totalorder %s19, 1
    %p79 = por %p77, %p78
    %p80 = scmp.ne.s32.totalorder %s71, %s72
    %p81 = scmp.eq.s32.totalorder %s19, 0
    %p82 = por %p80, %p81
    %p83 = scmp.ne.s32.totalorder %s71, %s72
    %p84 = scmp.eq.s32.totalorder %s20, 1
    %p85 = por %p83, %p84
    %p87 = scmp.ne.s32.totalorder %s72, %s86
    %p88 = scmp.eq.s32.totalorder %s20, 0
    %p89 = por %p87, %p88
    %s91 = sadd.s32 %s90, 1
    %p94 = scmp.eq.s32.totalorder %s14, 1
    %p95 = scmp.ne.s32.totalorder %s90, %s92
    %p96 = scmp.eq.s32.totalorder %s14, 0
    %p97 = por %p95, %p96
    %p98 = scmp.ne.s32.totalorder %s90, %s92
    %p99 = scmp.eq.s32.totalorder %s19, 1
    %p100 = por %p98, %p99
    %p101 = scmp.ne.s32.totalorder %s92, %s93
    %p102 = scmp.eq.s32.totalorder %s19, 0
    %p103 = por %p101, %p102
    %p104 = scmp.ne.s32.totalorder %s92, %s93
    %p105 = scmp.eq.s32.totalorder %s20, 1
    %p106 = por %p104, %p105
    %p108 = scmp.ne.s32.totalorder %s93, %s107
    %p109 = scmp.eq.s32.totalorder %s20, 0
    %p110 = por %p108, %p109
    %s112 = sadd.s32 %s111, 1
    %p115 = scmp.eq.s32.totalorder %s14, 1
    %p116 = scmp.ne.s32.totalorder %s111, %s113
    %p117 = scmp.eq.s32.totalorder %s14, 0
    %p118 = por %p116, %p117
    %p119 = scmp.ne.s32.totalorder %s111, %s113
    %p120 = scmp.eq.s32.totalorder %s19, 1
    %p121 = por %p119, %p120
    %p122 = scmp.ne.s32.totalorder %s113, %s114
    %p123 = scmp.eq.s32.totalorder %s19, 0
    %p124 = por %p122, %p123
    %p125 = scmp.ne.s32.totalorder %s113, %s114
    %p126 = scmp.eq.s32.totalorder %s20, 1
    %p127 = por %p125, %p126
    %p129 = scmp.ne.s32.totalorder %s114, %s128
    %p130 = scmp.eq.s32.totalorder %s20, 0
    %p131 = por %p129, %p130
    %s133 = sadd.s32 %s132, 1
    %p136 = scmp.eq.s32.totalorder %s14, 1
    %p137 = scmp.ne.s32.totalorder %s132, %s134
    %p138 = scmp.eq.s32.totalorder %s14, 0
    %p139 = por %p137, %p138
    %p140 = scmp.ne.s32.totalorder %s132, %s134
    %p141 = scmp.eq.s32.totalorder %s19, 1
    %p142 = por %p140, %p141
    %p143 = scmp.ne.s32.totalorder %s134, %s135
    %p144 = scmp.eq.s32.totalorder %s19, 0
    %p145 = por %p143, %p144
    %p146 = scmp.ne.s32.totalorder %s134, %s135
    %p147 = scmp.eq.s32.totalorder %s20, 1
    %p148 = por %p146, %p147
    %p150 = scmp.ne.s32.totalorder %s135, %s149
    %p151 = scmp.eq.s32.totalorder %s20, 0
    %p152 = por %p150, %p151
    %s153 = ssub.s32 %s14, %s21
    %p154 = scmp.eq.s32.totalorder %s153, 0
    %s156 = sadd.s32 %s155, 1
    %s157 = scalar_select %p154, %s155, %s156
    %p160 = pneg %p154
    %p161 = scmp.eq.s32.totalorder %s14, 1
    %p162 = por %p160, %p161
    %p163 = scmp.ne.s32.totalorder %s155, %s158
    %p164 = scmp.eq.s32.totalorder %s14, 0
    %p165 = por %p163, %p164
    %p166 = scmp.ne.s32.totalorder %s155, %s158
    %p167 = scmp.eq.s32.totalorder %s19, 1
    %p168 = por %p166, %p167
    %p169 = scmp.ne.s32.totalorder %s158, %s159
    %p170 = scmp.eq.s32.totalorder %s19, 0
    %p171 = por %p169, %p170
    %p172 = scmp.ne.s32.totalorder %s158, %s159
    %p173 = scmp.eq.s32.totalorder %s20, 1
    %p174 = por %p172, %p173
    %p176 = scmp.ne.s32.totalorder %s159, %s175
    %p177 = scmp.eq.s32.totalorder %s20, 0
    %p178 = por %p176, %p177
    %s179 = ssub.s32 %s14, %s21
    %p180 = scmp.eq.s32.totalorder %s179, 0
    %s182 = sadd.s32 %s181, 1
    %s183 = scalar_select %p180, %s181, %s182
    %p186 = pneg %p180
    %p187 = scmp.eq.s32.totalorder %s14, 1
    %p188 = por %p186, %p187
    %p189 = scmp.ne.s32.totalorder %s181, %s184
    %p190 = scmp.eq.s32.totalorder %s14, 0
    %p191 = por %p189, %p190
    %p192 = scmp.ne.s32.totalorder %s181, %s184
    %p193 = scmp.eq.s32.totalorder %s19, 1
    %p194 = por %p192, %p193
    %p195 = scmp.ne.s32.totalorder %s184, %s185
    %p196 = scmp.eq.s32.totalorder %s19, 0
    %p197 = por %p195, %p196
    %p198 = scmp.ne.s32.totalorder %s184, %s185
    %p199 = scmp.eq.s32.totalorder %s20, 1
    %p200 = por %p198, %p199
    %p202 = scmp.ne.s32.totalorder %s185, %s201
    %p203 = scmp.eq.s32.totalorder %s20, 0
    %p204 = por %p202, %p203
    %p205 = scmp.le.s32.totalorder 1, %s14
    %p206 = scmp.lt.s32.totalorder %s14, 3
    %p207 = pnand %p205, %p206
    %p208 = pneg %p207
    // Predicated region
    $region9: #{up_forward.9} parent=5 // pred_check
      _
    $region10: #{up_forward.9} parent=5 // pred_check_branch
      %210 = sbr.rel (%p207) target = $region12
    $region11: #{up_forward.9} parent=5 // pred_region
      %s211 = ssub.s32 %s14, 1
      // Predicated region
      $region13: #{up_forward.9} parent=11 // pred_check
        %p212 = pneg %p61
      $region14: #{up_forward.9} parent=11 // pred_check_branch
        %214 = sbr.rel (%p212) target = $region16
      $region15: #{up_forward.9} parent=11 // pred_region
        _
      $region16: #{up_forward.9} parent=11 // pred_fallthru
        _
      // Predicated region
      $region17: #{up_forward.9} parent=11 // pred_check
        %p215 = pneg %p82
      $region18: #{up_forward.9} parent=11 // pred_check_branch
        %217 = sbr.rel (%p215) target = $region20
      $region19: #{up_forward.9} parent=11 // pred_region
        _
      $region20: #{up_forward.9} parent=11 // pred_fallthru
        _
      // Predicated region
      $region21: #{up_forward.9} parent=11 // pred_check
        %p218 = pneg %p103
      $region22: #{up_forward.9} parent=11 // pred_check_branch
        %220 = sbr.rel (%p218) target = $region24
      $region23: #{up_forward.9} parent=11 // pred_region
        _
      $region24: #{up_forward.9} parent=11 // pred_fallthru
        _
      // Predicated region
      $region25: #{up_forward.9} parent=11 // pred_check
        %p221 = pneg %p124
      $region26: #{up_forward.9} parent=11 // pred_check_branch
        %223 = sbr.rel (%p221) target = $region28
      $region27: #{up_forward.9} parent=11 // pred_region
        _
      $region28: #{up_forward.9} parent=11 // pred_fallthru
        _
      // Predicated region
      $region29: #{up_forward.9} parent=11 // pred_check
        %p224 = pneg %p145
      $region30: #{up_forward.9} parent=11 // pred_check_branch
        %226 = sbr.rel (%p224) target = $region32
      $region31: #{up_forward.9} parent=11 // pred_region
        _
      $region32: #{up_forward.9} parent=11 // pred_fallthru
        _
    $region12: #{up_forward.9} parent=5 // pred_fallthru
      _
    %p227 = scmp.lt.s32.totalorder %s14, 2
    // Predicated region
    $region33: #{up_forward.9} parent=5 // pred_check
      %p228 = pneg %p227
    $region34: #{up_forward.9} parent=5 // pred_check_branch
      %230 = sbr.rel (%p228) target = $region36
    $region35: #{up_forward.9} parent=5 // pred_region
      // Predicated region
      $region37: #{up_forward.9} parent=35 // pred_check
        %p231 = pneg %p34
      $region38: #{up_forward.9} parent=35 // pred_check_branch
        %233 = sbr.rel (%p231) target = $region40
      $region39: #{up_forward.9} parent=35 // pred_region
        %p234 = scmp.lt.s32.totalorder %s14, 1
        %s235 = scalar_select %p234, %s14, 1
        %s236 = smul.addr %s235, 9
        %s237 = smul.addr %s236, 4
        %s238 = scalar_lea.vmem %s0, %s237
      $region40: #{up_forward.9} parent=35 // pred_fallthru
        _
    $region36: #{up_forward.9} parent=5 // pred_fallthru
      _
    %p239 = scmp.le.s32.totalorder 1, %s14
    %p240 = scmp.lt.s32.totalorder %s14, 3
    %p241 = pnand %p239, %p240
    %p242 = pneg %p241
    // Predicated region
    $region41: #{up_forward.9} parent=5 // pred_check
      _
    $region42: #{up_forward.9} parent=5 // pred_check_branch
      %244 = sbr.rel (%p241) target = $region44
    $region43: #{up_forward.9} parent=5 // pred_region
      %s245 = ssub.s32 %s14, 1
      %p246 = scmp.lt.s32.totalorder %s19, 1
      %s247 = scalar_select %p246, %s19, 1
      %s248 = smul.addr %s247, 9
      %s249 = smul.addr %s248, 4
      %s250 = scalar_lea.vmem %s0, %s249
      %p251 = pneg %p40
      %p252 = pneg %p37
      %p253 = pneg %p61
      %p254 = pneg %p58
      %p255 = pneg %p82
      %p256 = pneg %p79
      %p257 = pneg %p103
      %p258 = pneg %p100
      %p259 = pneg %p124
      %p260 = pneg %p121
      %p261 = pneg %p145
      %p262 = pneg %p142
      %p263 = pneg %p171
      %p264 = pneg %p168
      %p265 = scmp.lt.s32.totalorder %s19, 1
      %s266 = scalar_select %p265, %s19, 1
      %s267 = smul.addr %s266, 7
      %s268 = smul.addr %s267, 4
      %s269 = scalar_lea.vmem %s6, %s268
      %p270 = pneg %p197
      %p271 = pneg %p194
      %p272 = scmp.lt.s32.totalorder %s19, 1
      %s273 = scalar_select %p272, %s19, 1
      %s274 = smul.addr %s273, 7
      %s275 = smul.addr %s274, 4
      %s276 = scalar_lea.vmem %s7, %s275
      %p277 = scmp.lt.s32.totalorder %s19, 1
      %s278 = scalar_select %p277, %s19, 1
      %s279 = smul.addr %s278, 9
      %s280 = smul.addr %s279, 4
      %s281 = scalar_lea.vmem %s0, %s280
      %p282 = scmp.lt.s32.totalorder %s19, 1
      %s283 = scalar_select %p282, %s19, 1
      %s284 = smul.addr %s283, 7
      %s285 = smul.addr %s284, 4
      %s286 = scalar_lea.vmem %s6, %s285
      %p287 = scmp.lt.s32.totalorder %s19, 1
      %s288 = scalar_select %p287, %s19, 1
      %s289 = smul.addr %s288, 7
      %s290 = smul.addr %s289, 4
      %s291 = scalar_lea.vmem %s7, %s290
      %v293 = vld [vmem:[%s281] sm:$0xff]
      %v294 = vld [vmem:[%s281 + $0x8] sm:$0xff]
      %v295 = vld [vmem:[%s281 + $0x10] sm:$0xff]
      %v296 = vld [vmem:[%s281 + $0x18] sm:$0xf]
      %v297 = vld [vmem:[%s1] sm:$0x3]
      %v298 = vld [vmem:[%s281 + $0x18] sm:$0xff]
      %s299 = scalar_lea.vmem %s1, 2
      %v300 = vld [vmem:[%s299] sm:$0x3]
      %v305 = vunpack.c.l.b16 %v293
      %v306 = vunpack.c.h.b16 %v293
      %v307 = vunpack.c.l.b16 %v294
      %v308 = vunpack.c.h.b16 %v294
      %v309 = vunpack.c.l.b16 %v295
      %v310 = vunpack.c.h.b16 %v295
      %v311 = vunpack.c.l.b16 %v298
      %v312 = vunpack.c.h.b16 %v298
      %v313 = vpack.c.b16 %v305, %v305
      %v314 = vpack.c.b16 %v306, %v306
      %v315 = vpack.c.b16 %v307, %v307
      %v316 = vpack.c.b16 %v308, %v308
      %v317 = vpack.c.b16 %v309, %v309
      %v318 = vpack.c.b16 %v310, %v310
      %v319 = vpack.c.b16 %v311, %v311
      %v320 = vpack.c.b16 %v312, %v312
      %321 = vrot.lane.b32.xlu0 %v313, 127
      %v322 = vpop.permute.xlu0 %321
      %323 = vrot.lane.b32.xlu0 %v314, 127
      %v324 = vpop.permute.xlu0 %323
      %325 = vrot.lane.b32.xlu0 %v315, 127
      %v326 = vpop.permute.xlu0 %325
      %327 = vrot.lane.b32.xlu0 %v316, 127
      %v328 = vpop.permute.xlu0 %327
      %329 = vrot.lane.b32.xlu0 %v317, 127
      %v330 = vpop.permute.xlu0 %329
      %331 = vrot.lane.b32.xlu0 %v318, 127
      %v332 = vpop.permute.xlu0 %331
      %333 = vrot.lane.b32.xlu0 %v319, 127
      %v334 = vpop.permute.xlu0 %333
      %335 = vrot.lane.b32.xlu0 %v320, 127
      %v336 = vpop.permute.xlu0 %335
      %vm337 = vcmask 1039360
      %v338 = vsel %vm337, %v322, %v324
      %v339 = vsel %vm337, %v324, %v326
      %v340 = vsel %vm337, %v326, %v328
      %v341 = vsel %vm337, %v328, %v330
      %v342 = vsel %vm337, %v330, %v332
      %v343 = vsel %vm337, %v332, %v334
      %v344 = vsel %vm337, %v334, %v336
      %vm345 = vcmask 64512
      %v347 = vsel %vm345, %v300, 0
      %vm349 = vcmask 1043456
      %v351 = vsel %vm349, %v338, 0
      %v354 = vsel %vm349, %v339, 0
      %v357 = vsel %vm349, %v340, 0
      %v360 = vsel %vm349, %v341, 0
      %v363 = vsel %vm349, %v342, 0
      %v366 = vsel %vm349, %v343, 0
      %v369 = vsel %vm349, %v344, 0
      %371 = vmatpush.bf16.msra.mxu0 0
      %372 = vmatpush.bf16.msra.mxu0 0
      %373 = vmatpush.bf16.msra.mxu0 0
      %374 = vmatpush.bf16.msra.mxu0 0
      %375 = vmatpush.bf16.msra.mxu0 0
      %376 = vmatpush.bf16.msra.mxu0 0
      %377 = vmatpush.bf16.msra.mxu0 0
      %378 = vmatpush.bf16.msra.mxu0 %v351
      %379 = vmatmul.bf16.gmra.mxu0 %v347
      %v380 = vpop.f32.mrf.mxu0
      %v381 = vadd.f32 0.0, %v380
      %v382 = vpop.f32.mrf.mxu0
      %383 = vdwg.mxu0
      %384 = vmatpush.bf16.msra.mxu0 0
      %385 = vmatpush.bf16.msra.mxu0 0
      %386 = vmatpush.bf16.msra.mxu0 0
      %387 = vmatpush.bf16.msra.mxu0 0
      %388 = vmatpush.bf16.msra.mxu0 0
      %389 = vmatpush.bf16.msra.mxu0 0
      %390 = vmatpush.bf16.msra.mxu0 0
      %391 = vmatpush.bf16.msra.mxu0 %v354
      %392 = vmatmul.bf16.gmra.mxu0 %v347
      %v393 = vpop.f32.mrf.mxu0
      %v394 = vadd.f32 0.0, %v393
      %v395 = vpop.f32.mrf.mxu0
      %396 = vdwg.mxu0
      %397 = vmatpush.bf16.msra.mxu0 0
      %398 = vmatpush.bf16.msra.mxu0 0
      %399 = vmatpush.bf16.msra.mxu0 0
      %400 = vmatpush.bf16.msra.mxu0 0
      %401 = vmatpush.bf16.msra.mxu0 0
      %402 = vmatpush.bf16.msra.mxu0 0
      %403 = vmatpush.bf16.msra.mxu0 0
      %404 = vmatpush.bf16.msra.mxu0 %v357
      %405 = vmatmul.bf16.gmra.mxu0 %v347
      %v406 = vpop.f32.mrf.mxu0
      %v407 = vadd.f32 0.0, %v406
      %v408 = vpop.f32.mrf.mxu0
      %409 = vdwg.mxu0
      %410 = vmatpush.bf16.msra.mxu0 0
      %411 = vmatpush.bf16.msra.mxu0 0
      %412 = vmatpush.bf16.msra.mxu0 0
      %413 = vmatpush.bf16.msra.mxu0 0
      %414 = vmatpush.bf16.msra.mxu0 0
      %415 = vmatpush.bf16.msra.mxu0 0
      %416 = vmatpush.bf16.msra.mxu0 0
      %417 = vmatpush.bf16.msra.mxu0 %v360
      %418 = vmatmul.bf16.gmra.mxu0 %v347
      %v419 = vpop.f32.mrf.mxu0
      %v420 = vadd.f32 0.0, %v419
      %v421 = vpop.f32.mrf.mxu0
      %422 = vdwg.mxu0
      %423 = vmatpush.bf16.msra.mxu0 0
      %424 = vmatpush.bf16.msra.mxu0 0
      %425 = vmatpush.bf16.msra.mxu0 0
      %426 = vmatpush.bf16.msra.mxu0 0
      %427 = vmatpush.bf16.msra.mxu0 0
      %428 = vmatpush.bf16.msra.mxu0 0
      %429 = vmatpush.bf16.msra.mxu0 0
      %430 = vmatpush.bf16.msra.mxu0 %v363
      %431 = vmatmul.bf16.gmra.mxu0 %v347
      %v432 = vpop.f32.mrf.mxu0
      %v433 = vadd.f32 0.0, %v432
      %v434 = vpop.f32.mrf.mxu0
      %435 = vdwg.mxu0
      %436 = vmatpush.bf16.msra.mxu0 0
      %437 = vmatpush.bf16.msra.mxu0 0
      %438 = vmatpush.bf16.msra.mxu0 0
      %439 = vmatpush.bf16.msra.mxu0 0
      %440 = vmatpush.bf16.msra.mxu0 0
      %441 = vmatpush.bf16.msra.mxu0 0
      %442 = vmatpush.bf16.msra.mxu0 0
      %443 = vmatpush.bf16.msra.mxu0 %v366
      %444 = vmatmul.bf16.gmra.mxu0 %v347
      %v445 = vpop.f32.mrf.mxu0
      %v446 = vadd.f32 0.0, %v445
      %v447 = vpop.f32.mrf.mxu0
      %448 = vdwg.mxu0
      %449 = vmatpush.bf16.msra.mxu0 0
      %450 = vmatpush.bf16.msra.mxu0 0
      %451 = vmatpush.bf16.msra.mxu0 0
      %452 = vmatpush.bf16.msra.mxu0 0
      %453 = vmatpush.bf16.msra.mxu0 0
      %454 = vmatpush.bf16.msra.mxu0 0
      %455 = vmatpush.bf16.msra.mxu0 0
      %456 = vmatpush.bf16.msra.mxu0 %v369
      %457 = vmatmul.bf16.gmra.mxu0 %v347
      %v458 = vpop.f32.mrf.mxu0
      %v459 = vadd.f32 0.0, %v458
      %v460 = vpop.f32.mrf.mxu0
      %461 = vdwg.mxu0
      %v463 = vunpack.c.l.b16 %v296
      %v464 = vpack.c.b16 %v463, %v463
      %v466 = vsel %vm345, %v297, 0
      %v469 = vsel %vm349, %v313, 0
      %v472 = vsel %vm349, %v314, 0
      %v475 = vsel %vm349, %v315, 0
      %v478 = vsel %vm349, %v316, 0
      %v481 = vsel %vm349, %v317, 0
      %v484 = vsel %vm349, %v318, 0
      %v487 = vsel %vm349, %v464, 0
      %489 = vmatpush.bf16.msra.mxu0 0
      %490 = vmatpush.bf16.msra.mxu0 0
      %491 = vmatpush.bf16.msra.mxu0 0
      %492 = vmatpush.bf16.msra.mxu0 0
      %493 = vmatpush.bf16.msra.mxu0 0
      %494 = vmatpush.bf16.msra.mxu0 0
      %495 = vmatpush.bf16.msra.mxu0 0
      %496 = vmatpush.bf16.msra.mxu0 %v469
      %497 = vmatmul.bf16.gmra.mxu0 %v466
      %v498 = vpop.f32.mrf.mxu0
      %v499 = vadd.f32 %v381, %v498
      %v500 = vpop.f32.mrf.mxu0
      %501 = vdwg.mxu0
      %502 = vmatpush.bf16.msra.mxu0 0
      %503 = vmatpush.bf16.msra.mxu0 0
      %504 = vmatpush.bf16.msra.mxu0 0
      %505 = vmatpush.bf16.msra.mxu0 0
      %506 = vmatpush.bf16.msra.mxu0 0
      %507 = vmatpush.bf16.msra.mxu0 0
      %508 = vmatpush.bf16.msra.mxu0 0
      %509 = vmatpush.bf16.msra.mxu0 %v472
      %510 = vmatmul.bf16.gmra.mxu0 %v466
      %v511 = vpop.f32.mrf.mxu0
      %v512 = vadd.f32 %v394, %v511
      %v513 = vpop.f32.mrf.mxu0
      %514 = vdwg.mxu0
      %515 = vmatpush.bf16.msra.mxu0 0
      %516 = vmatpush.bf16.msra.mxu0 0
      %517 = vmatpush.bf16.msra.mxu0 0
      %518 = vmatpush.bf16.msra.mxu0 0
      %519 = vmatpush.bf16.msra.mxu0 0
      %520 = vmatpush.bf16.msra.mxu0 0
      %521 = vmatpush.bf16.msra.mxu0 0
      %522 = vmatpush.bf16.msra.mxu0 %v475
      %523 = vmatmul.bf16.gmra.mxu0 %v466
      %v524 = vpop.f32.mrf.mxu0
      %v525 = vadd.f32 %v407, %v524
      %v526 = vpop.f32.mrf.mxu0
      %527 = vdwg.mxu0
      %528 = vmatpush.bf16.msra.mxu0 0
      %529 = vmatpush.bf16.msra.mxu0 0
      %530 = vmatpush.bf16.msra.mxu0 0
      %531 = vmatpush.bf16.msra.mxu0 0
      %532 = vmatpush.bf16.msra.mxu0 0
      %533 = vmatpush.bf16.msra.mxu0 0
      %534 = vmatpush.bf16.msra.mxu0 0
      %535 = vmatpush.bf16.msra.mxu0 %v478
      %536 = vmatmul.bf16.gmra.mxu0 %v466
      %v537 = vpop.f32.mrf.mxu0
      %v538 = vadd.f32 %v420, %v537
      %v539 = vpop.f32.mrf.mxu0
      %540 = vdwg.mxu0
      %541 = vmatpush.bf16.msra.mxu0 0
      %542 = vmatpush.bf16.msra.mxu0 0
      %543 = vmatpush.bf16.msra.mxu0 0
      %544 = vmatpush.bf16.msra.mxu0 0
      %545 = vmatpush.bf16.msra.mxu0 0
      %546 = vmatpush.bf16.msra.mxu0 0
      %547 = vmatpush.bf16.msra.mxu0 0
      %548 = vmatpush.bf16.msra.mxu0 %v481
      %549 = vmatmul.bf16.gmra.mxu0 %v466
      %v550 = vpop.f32.mrf.mxu0
      %v551 = vadd.f32 %v433, %v550
      %v552 = vpop.f32.mrf.mxu0
      %553 = vdwg.mxu0
      %554 = vmatpush.bf16.msra.mxu0 0
      %555 = vmatpush.bf16.msra.mxu0 0
      %556 = vmatpush.bf16.msra.mxu0 0
      %557 = vmatpush.bf16.msra.mxu0 0
      %558 = vmatpush.bf16.msra.mxu0 0
      %559 = vmatpush.bf16.msra.mxu0 0
      %560 = vmatpush.bf16.msra.mxu0 0
      %561 = vmatpush.bf16.msra.mxu0 %v484
      %562 = vmatmul.bf16.gmra.mxu0 %v466
      %v563 = vpop.f32.mrf.mxu0
      %v564 = vadd.f32 %v446, %v563
      %v565 = vpop.f32.mrf.mxu0
      %566 = vdwg.mxu0
      %567 = vmatpush.bf16.msra.mxu0 0
      %568 = vmatpush.bf16.msra.mxu0 0
      %569 = vmatpush.bf16.msra.mxu0 0
      %570 = vmatpush.bf16.msra.mxu0 0
      %571 = vmatpush.bf16.msra.mxu0 0
      %572 = vmatpush.bf16.msra.mxu0 0
      %573 = vmatpush.bf16.msra.mxu0 0
      %574 = vmatpush.bf16.msra.mxu0 %v487
      %575 = vmatmul.bf16.gmra.mxu0 %v466
      %v576 = vpop.f32.mrf.mxu0
      %v577 = vadd.f32 %v459, %v576
      %v578 = vpop.f32.mrf.mxu0
      %579 = vdwg.mxu0
      %s580 = scalar_lea.vmem %s1, 4
      %v581 = vld [vmem:[%s580] sm:$0x3]
      %582 = vrot.lane.b32.xlu0 %v313, 126
      %v583 = vpop.permute.xlu0 %582
      %584 = vrot.lane.b32.xlu0 %v314, 126
      %v585 = vpop.permute.xlu0 %584
      %586 = vrot.lane.b32.xlu0 %v315, 126
      %v587 = vpop.permute.xlu0 %586
      %588 = vrot.lane.b32.xlu0 %v316, 126
      %v589 = vpop.permute.xlu0 %588
      %590 = vrot.lane.b32.xlu0 %v317, 126
      %v591 = vpop.permute.xlu0 %590
      %592 = vrot.lane.b32.xlu0 %v318, 126
      %v593 = vpop.permute.xlu0 %592
      %594 = vrot.lane.b32.xlu0 %v319, 126
      %v595 = vpop.permute.xlu0 %594
      %596 = vrot.lane.b32.xlu0 %v320, 126
      %v597 = vpop.permute.xlu0 %596
      %vm598 = vcmask 1031168
      %v599 = vsel %vm598, %v583, %v585
      %v600 = vsel %vm598, %v585, %v587
      %v601 = vsel %vm598, %v587, %v589
      %v602 = vsel %vm598, %v589, %v591
      %v603 = vsel %vm598, %v591, %v593
      %v604 = vsel %vm598, %v593, %v595
      %v605 = vsel %vm598, %v595, %v597
      %v607 = vsel %vm345, %v581, 0
      %v610 = vsel %vm349, %v599, 0
      %v613 = vsel %vm349, %v600, 0
      %v616 = vsel %vm349, %v601, 0
      %v619 = vsel %vm349, %v602, 0
      %v622 = vsel %vm349, %v603, 0
      %v625 = vsel %vm349, %v604, 0
      %v628 = vsel %vm349, %v605, 0
      %630 = vmatpush.bf16.msra.mxu0 0
      %631 = vmatpush.bf16.msra.mxu0 0
      %632 = vmatpush.bf16.msra.mxu0 0
      %633 = vmatpush.bf16.msra.mxu0 0
      %634 = vmatpush.bf16.msra.mxu0 0
      %635 = vmatpush.bf16.msra.mxu0 0
      %636 = vmatpush.bf16.msra.mxu0 0
      %637 = vmatpush.bf16.msra.mxu0 %v610
      %638 = vmatmul.bf16.gmra.mxu0 %v607
      %v639 = vpop.f32.mrf.mxu0
      %v640 = vadd.f32 0.0, %v639
      %v641 = vpop.f32.mrf.mxu0
      %642 = vdwg.mxu0
      %643 = vmatpush.bf16.msra.mxu0 0
      %644 = vmatpush.bf16.msra.mxu0 0
      %645 = vmatpush.bf16.msra.mxu0 0
      %646 = vmatpush.bf16.msra.mxu0 0
      %647 = vmatpush.bf16.msra.mxu0 0
      %648 = vmatpush.bf16.msra.mxu0 0
      %649 = vmatpush.bf16.msra.mxu0 0
      %650 = vmatpush.bf16.msra.mxu0 %v613
      %651 = vmatmul.bf16.gmra.mxu0 %v607
      %v652 = vpop.f32.mrf.mxu0
      %v653 = vadd.f32 0.0, %v652
      %v654 = vpop.f32.mrf.mxu0
      %655 = vdwg.mxu0
      %656 = vmatpush.bf16.msra.mxu0 0
      %657 = vmatpush.bf16.msra.mxu0 0
      %658 = vmatpush.bf16.msra.mxu0 0
      %659 = vmatpush.bf16.msra.mxu0 0
      %660 = vmatpush.bf16.msra.mxu0 0
      %661 = vmatpush.bf16.msra.mxu0 0
      %662 = vmatpush.bf16.msra.mxu0 0
      %663 = vmatpush.bf16.msra.mxu0 %v616
      %664 = vmatmul.bf16.gmra.mxu0 %v607
      %v665 = vpop.f32.mrf.mxu0
      %v666 = vadd.f32 0.0, %v665
      %v667 = vpop.f32.mrf.mxu0
      %668 = vdwg.mxu0
      %669 = vmatpush.bf16.msra.mxu0 0
      %670 = vmatpush.bf16.msra.mxu0 0
      %671 = vmatpush.bf16.msra.mxu0 0
      %672 = vmatpush.bf16.msra.mxu0 0
      %673 = vmatpush.bf16.msra.mxu0 0
      %674 = vmatpush.bf16.msra.mxu0 0
      %675 = vmatpush.bf16.msra.mxu0 0
      %676 = vmatpush.bf16.msra.mxu0 %v619
      %677 = vmatmul.bf16.gmra.mxu0 %v607
      %v678 = vpop.f32.mrf.mxu0
      %v679 = vadd.f32 0.0, %v678
      %v680 = vpop.f32.mrf.mxu0
      %681 = vdwg.mxu0
      %682 = vmatpush.bf16.msra.mxu0 0
      %683 = vmatpush.bf16.msra.mxu0 0
      %684 = vmatpush.bf16.msra.mxu0 0
      %685 = vmatpush.bf16.msra.mxu0 0
      %686 = vmatpush.bf16.msra.mxu0 0
      %687 = vmatpush.bf16.msra.mxu0 0
      %688 = vmatpush.bf16.msra.mxu0 0
      %689 = vmatpush.bf16.msra.mxu0 %v622
      %690 = vmatmul.bf16.gmra.mxu0 %v607
      %v691 = vpop.f32.mrf.mxu0
      %v692 = vadd.f32 0.0, %v691
      %v693 = vpop.f32.mrf.mxu0
      %694 = vdwg.mxu0
      %695 = vmatpush.bf16.msra.mxu0 0
      %696 = vmatpush.bf16.msra.mxu0 0
      %697 = vmatpush.bf16.msra.mxu0 0
      %698 = vmatpush.bf16.msra.mxu0 0
      %699 = vmatpush.bf16.msra.mxu0 0
      %700 = vmatpush.bf16.msra.mxu0 0
      %701 = vmatpush.bf16.msra.mxu0 0
      %702 = vmatpush.bf16.msra.mxu0 %v625
      %703 = vmatmul.bf16.gmra.mxu0 %v607
      %v704 = vpop.f32.mrf.mxu0
      %v705 = vadd.f32 0.0, %v704
      %v706 = vpop.f32.mrf.mxu0
      %707 = vdwg.mxu0
      %708 = vmatpush.bf16.msra.mxu0 0
      %709 = vmatpush.bf16.msra.mxu0 0
      %710 = vmatpush.bf16.msra.mxu0 0
      %711 = vmatpush.bf16.msra.mxu0 0
      %712 = vmatpush.bf16.msra.mxu0 0
      %713 = vmatpush.bf16.msra.mxu0 0
      %714 = vmatpush.bf16.msra.mxu0 0
      %715 = vmatpush.bf16.msra.mxu0 %v628
      %716 = vmatmul.bf16.gmra.mxu0 %v607
      %v717 = vpop.f32.mrf.mxu0
      %v718 = vadd.f32 0.0, %v717
      %v719 = vpop.f32.mrf.mxu0
      %720 = vdwg.mxu0
      %v721 = vadd.f32 %v499, %v640
      %v722 = vadd.f32 %v512, %v653
      %v723 = vadd.f32 %v525, %v666
      %v724 = vadd.f32 %v538, %v679
      %v725 = vadd.f32 %v551, %v692
      %v726 = vadd.f32 %v564, %v705
      %v727 = vadd.f32 %v577, %v718
      %s728 = scalar_lea.vmem %s1, 6
      %v729 = vld [vmem:[%s728] sm:$0x3]
      %730 = vrot.lane.b32.xlu0 %v313, 118
      %v731 = vpop.permute.xlu0 %730
      %732 = vrot.lane.b32.xlu0 %v314, 118
      %v733 = vpop.permute.xlu0 %732
      %734 = vrot.lane.b32.xlu0 %v315, 118
      %v735 = vpop.permute.xlu0 %734
      %736 = vrot.lane.b32.xlu0 %v316, 118
      %v737 = vpop.permute.xlu0 %736
      %738 = vrot.lane.b32.xlu0 %v317, 118
      %v739 = vpop.permute.xlu0 %738
      %740 = vrot.lane.b32.xlu0 %v318, 118
      %v741 = vpop.permute.xlu0 %740
      %742 = vrot.lane.b32.xlu0 %v319, 118
      %v743 = vpop.permute.xlu0 %742
      %744 = vrot.lane.b32.xlu0 %v320, 118
      %v745 = vpop.permute.xlu0 %744
      %vm746 = vcmask 965632
      %v747 = vsel %vm746, %v731, %v733
      %v748 = vsel %vm746, %v733, %v735
      %v749 = vsel %vm746, %v735, %v737
      %v750 = vsel %vm746, %v737, %v739
      %v751 = vsel %vm746, %v739, %v741
      %v752 = vsel %vm746, %v741, %v743
      %v753 = vsel %vm746, %v743, %v745
      %v755 = vsel %vm345, %v729, 0
      %v758 = vsel %vm349, %v747, 0
      %v761 = vsel %vm349, %v748, 0
      %v764 = vsel %vm349, %v749, 0
      %v767 = vsel %vm349, %v750, 0
      %v770 = vsel %vm349, %v751, 0
      %v773 = vsel %vm349, %v752, 0
      %v776 = vsel %vm349, %v753, 0
      %778 = vmatpush.bf16.msra.mxu0 0
      %779 = vmatpush.bf16.msra.mxu0 0
      %780 = vmatpush.bf16.msra.mxu0 0
      %781 = vmatpush.bf16.msra.mxu0 0
      %782 = vmatpush.bf16.msra.mxu0 0
      %783 = vmatpush.bf16.msra.mxu0 0
      %784 = vmatpush.bf16.msra.mxu0 0
      %785 = vmatpush.bf16.msra.mxu0 %v758
      %786 = vmatmul.bf16.gmra.mxu0 %v755
      %v787 = vpop.f32.mrf.mxu0
      %v788 = vadd.f32 0.0, %v787
      %v789 = vpop.f32.mrf.mxu0
      %790 = vdwg.mxu0
      %791 = vmatpush.bf16.msra.mxu0 0
      %792 = vmatpush.bf16.msra.mxu0 0
      %793 = vmatpush.bf16.msra.mxu0 0
      %794 = vmatpush.bf16.msra.mxu0 0
      %795 = vmatpush.bf16.msra.mxu0 0
      %796 = vmatpush.bf16.msra.mxu0 0
      %797 = vmatpush.bf16.msra.mxu0 0
      %798 = vmatpush.bf16.msra.mxu0 %v761
      %799 = vmatmul.bf16.gmra.mxu0 %v755
      %v800 = vpop.f32.mrf.mxu0
      %v801 = vadd.f32 0.0, %v800
      %v802 = vpop.f32.mrf.mxu0
      %803 = vdwg.mxu0
      %804 = vmatpush.bf16.msra.mxu0 0
      %805 = vmatpush.bf16.msra.mxu0 0
      %806 = vmatpush.bf16.msra.mxu0 0
      %807 = vmatpush.bf16.msra.mxu0 0
      %808 = vmatpush.bf16.msra.mxu0 0
      %809 = vmatpush.bf16.msra.mxu0 0
      %810 = vmatpush.bf16.msra.mxu0 0
      %811 = vmatpush.bf16.msra.mxu0 %v764
      %812 = vmatmul.bf16.gmra.mxu0 %v755
      %v813 = vpop.f32.mrf.mxu0
      %v814 = vadd.f32 0.0, %v813
      %v815 = vpop.f32.mrf.mxu0
      %816 = vdwg.mxu0
      %817 = vmatpush.bf16.msra.mxu0 0
      %818 = vmatpush.bf16.msra.mxu0 0
      %819 = vmatpush.bf16.msra.mxu0 0
      %820 = vmatpush.bf16.msra.mxu0 0
      %821 = vmatpush.bf16.msra.mxu0 0
      %822 = vmatpush.bf16.msra.mxu0 0
      %823 = vmatpush.bf16.msra.mxu0 0
      %824 = vmatpush.bf16.msra.mxu0 %v767
      %825 = vmatmul.bf16.gmra.mxu0 %v755
      %v826 = vpop.f32.mrf.mxu0
      %v827 = vadd.f32 0.0, %v826
      %v828 = vpop.f32.mrf.mxu0
      %829 = vdwg.mxu0
      %830 = vmatpush.bf16.msra.mxu0 0
      %831 = vmatpush.bf16.msra.mxu0 0
      %832 = vmatpush.bf16.msra.mxu0 0
      %833 = vmatpush.bf16.msra.mxu0 0
      %834 = vmatpush.bf16.msra.mxu0 0
      %835 = vmatpush.bf16.msra.mxu0 0
      %836 = vmatpush.bf16.msra.mxu0 0
      %837 = vmatpush.bf16.msra.mxu0 %v770
      %838 = vmatmul.bf16.gmra.mxu0 %v755
      %v839 = vpop.f32.mrf.mxu0
      %v840 = vadd.f32 0.0, %v839
      %v841 = vpop.f32.mrf.mxu0
      %842 = vdwg.mxu0
      %843 = vmatpush.bf16.msra.mxu0 0
      %844 = vmatpush.bf16.msra.mxu0 0
      %845 = vmatpush.bf16.msra.mxu0 0
      %846 = vmatpush.bf16.msra.mxu0 0
      %847 = vmatpush.bf16.msra.mxu0 0
      %848 = vmatpush.bf16.msra.mxu0 0
      %849 = vmatpush.bf16.msra.mxu0 0
      %850 = vmatpush.bf16.msra.mxu0 %v773
      %851 = vmatmul.bf16.gmra.mxu0 %v755
      %v852 = vpop.f32.mrf.mxu0
      %v853 = vadd.f32 0.0, %v852
      %v854 = vpop.f32.mrf.mxu0
      %855 = vdwg.mxu0
      %856 = vmatpush.bf16.msra.mxu0 0
      %857 = vmatpush.bf16.msra.mxu0 0
      %858 = vmatpush.bf16.msra.mxu0 0
      %859 = vmatpush.bf16.msra.mxu0 0
      %860 = vmatpush.bf16.msra.mxu0 0
      %861 = vmatpush.bf16.msra.mxu0 0
      %862 = vmatpush.bf16.msra.mxu0 0
      %863 = vmatpush.bf16.msra.mxu0 %v776
      %864 = vmatmul.bf16.gmra.mxu0 %v755
      %v865 = vpop.f32.mrf.mxu0
      %v866 = vadd.f32 0.0, %v865
      %v867 = vpop.f32.mrf.mxu0
      %868 = vdwg.mxu0
      %v869 = vadd.f32 %v721, %v788
      %v870 = vadd.f32 %v722, %v801
      %v871 = vadd.f32 %v723, %v814
      %v872 = vadd.f32 %v724, %v827
      %v873 = vadd.f32 %v725, %v840
      %v874 = vadd.f32 %v726, %v853
      %v875 = vadd.f32 %v727, %v866
      %s876 = scalar_lea.vmem %s1, 8
      %v877 = vld [vmem:[%s876] sm:$0x3]
      %878 = vrot.lane.b32.xlu0 %v313, 117
      %v879 = vpop.permute.xlu0 %878
      %880 = vrot.lane.b32.xlu0 %v314, 117
      %v881 = vpop.permute.xlu0 %880
      %882 = vrot.lane.b32.xlu0 %v315, 117
      %v883 = vpop.permute.xlu0 %882
      %884 = vrot.lane.b32.xlu0 %v316, 117
      %v885 = vpop.permute.xlu0 %884
      %886 = vrot.lane.b32.xlu0 %v317, 117
      %v887 = vpop.permute.xlu0 %886
      %888 = vrot.lane.b32.xlu0 %v318, 117
      %v889 = vpop.permute.xlu0 %888
      %890 = vrot.lane.b32.xlu0 %v319, 117
      %v891 = vpop.permute.xlu0 %890
      %892 = vrot.lane.b32.xlu0 %v320, 117
      %v893 = vpop.permute.xlu0 %892
      %vm894 = vcmask 957440
      %v895 = vsel %vm894, %v879, %v881
      %v896 = vsel %vm894, %v881, %v883
      %v897 = vsel %vm894, %v883, %v885
      %v898 = vsel %vm894, %v885, %v887
      %v899 = vsel %vm894, %v887, %v889
      %v900 = vsel %vm894, %v889, %v891
      %v901 = vsel %vm894, %v891, %v893
      %v903 = vsel %vm345, %v877, 0
      %v906 = vsel %vm349, %v895, 0
      %v909 = vsel %vm349, %v896, 0
      %v912 = vsel %vm349, %v897, 0
      %v915 = vsel %vm349, %v898, 0
      %v918 = vsel %vm349, %v899, 0
      %v921 = vsel %vm349, %v900, 0
      %v924 = vsel %vm349, %v901, 0
      %926 = vmatpush.bf16.msra.mxu0 0
      %927 = vmatpush.bf16.msra.mxu0 0
      %928 = vmatpush.bf16.msra.mxu0 0
      %929 = vmatpush.bf16.msra.mxu0 0
      %930 = vmatpush.bf16.msra.mxu0 0
      %931 = vmatpush.bf16.msra.mxu0 0
      %932 = vmatpush.bf16.msra.mxu0 0
      %933 = vmatpush.bf16.msra.mxu0 %v906
      %934 = vmatmul.bf16.gmra.mxu0 %v903
      %v935 = vpop.f32.mrf.mxu0
      %v936 = vadd.f32 0.0, %v935
      %v937 = vpop.f32.mrf.mxu0
      %938 = vdwg.mxu0
      %939 = vmatpush.bf16.msra.mxu0 0
      %940 = vmatpush.bf16.msra.mxu0 0
      %941 = vmatpush.bf16.msra.mxu0 0
      %942 = vmatpush.bf16.msra.mxu0 0
      %943 = vmatpush.bf16.msra.mxu0 0
      %944 = vmatpush.bf16.msra.mxu0 0
      %945 = vmatpush.bf16.msra.mxu0 0
      %946 = vmatpush.bf16.msra.mxu0 %v909
      %947 = vmatmul.bf16.gmra.mxu0 %v903
      %v948 = vpop.f32.mrf.mxu0
      %v949 = vadd.f32 0.0, %v948
      %v950 = vpop.f32.mrf.mxu0
      %951 = vdwg.mxu0
      %952 = vmatpush.bf16.msra.mxu0 0
      %953 = vmatpush.bf16.msra.mxu0 0
      %954 = vmatpush.bf16.msra.mxu0 0
      %955 = vmatpush.bf16.msra.mxu0 0
      %956 = vmatpush.bf16.msra.mxu0 0
      %957 = vmatpush.bf16.msra.mxu0 0
      %958 = vmatpush.bf16.msra.mxu0 0
      %959 = vmatpush.bf16.msra.mxu0 %v912
      %960 = vmatmul.bf16.gmra.mxu0 %v903
      %v961 = vpop.f32.mrf.mxu0
      %v962 = vadd.f32 0.0, %v961
      %v963 = vpop.f32.mrf.mxu0
      %964 = vdwg.mxu0
      %965 = vmatpush.bf16.msra.mxu0 0
      %966 = vmatpush.bf16.msra.mxu0 0
      %967 = vmatpush.bf16.msra.mxu0 0
      %968 = vmatpush.bf16.msra.mxu0 0
      %969 = vmatpush.bf16.msra.mxu0 0
      %970 = vmatpush.bf16.msra.mxu0 0
      %971 = vmatpush.bf16.msra.mxu0 0
      %972 = vmatpush.bf16.msra.mxu0 %v915
      %973 = vmatmul.bf16.gmra.mxu0 %v903
      %v974 = vpop.f32.mrf.mxu0
      %v975 = vadd.f32 0.0, %v974
      %v976 = vpop.f32.mrf.mxu0
      %977 = vdwg.mxu0
      %978 = vmatpush.bf16.msra.mxu0 0
      %979 = vmatpush.bf16.msra.mxu0 0
      %980 = vmatpush.bf16.msra.mxu0 0
      %981 = vmatpush.bf16.msra.mxu0 0
      %982 = vmatpush.bf16.msra.mxu0 0
      %983 = vmatpush.bf16.msra.mxu0 0
      %984 = vmatpush.bf16.msra.mxu0 0
      %985 = vmatpush.bf16.msra.mxu0 %v918
      %986 = vmatmul.bf16.gmra.mxu0 %v903
      %v987 = vpop.f32.mrf.mxu0
      %v988 = vadd.f32 0.0, %v987
      %v989 = vpop.f32.mrf.mxu0
      %990 = vdwg.mxu0
      %991 = vmatpush.bf16.msra.mxu0 0
      %992 = vmatpush.bf16.msra.mxu0 0
      %993 = vmatpush.bf16.msra.mxu0 0
      %994 = vmatpush.bf16.msra.mxu0 0
      %995 = vmatpush.bf16.msra.mxu0 0
      %996 = vmatpush.bf16.msra.mxu0 0
      %997 = vmatpush.bf16.msra.mxu0 0
      %998 = vmatpush.bf16.msra.mxu0 %v921
      %999 = vmatmul.bf16.gmra.mxu0 %v903
      %v1000 = vpop.f32.mrf.mxu0
      %v1001 = vadd.f32 0.0, %v1000
      %v1002 = vpop.f32.mrf.mxu0
      %1003 = vdwg.mxu0
      %1004 = vmatpush.bf16.msra.mxu0 0
      %1005 = vmatpush.bf16.msra.mxu0 0
      %1006 = vmatpush.bf16.msra.mxu0 0
      %1007 = vmatpush.bf16.msra.mxu0 0
      %1008 = vmatpush.bf16.msra.mxu0 0
      %1009 = vmatpush.bf16.msra.mxu0 0
      %1010 = vmatpush.bf16.msra.mxu0 0
      %1011 = vmatpush.bf16.msra.mxu0 %v924
      %1012 = vmatmul.bf16.gmra.mxu0 %v903
      %v1013 = vpop.f32.mrf.mxu0
      %v1014 = vadd.f32 0.0, %v1013
      %v1015 = vpop.f32.mrf.mxu0
      %1016 = vdwg.mxu0
      %v1017 = vadd.f32 %v869, %v936
      %v1018 = vadd.f32 %v870, %v949
      %v1019 = vadd.f32 %v871, %v962
      %v1020 = vadd.f32 %v872, %v975
      %v1021 = vadd.f32 %v873, %v988
      %v1022 = vadd.f32 %v874, %v1001
      %v1023 = vadd.f32 %v875, %v1014
      %s1024 = scalar_lea.vmem %s1, 10
      %v1025 = vld [vmem:[%s1024] sm:$0x3]
      %1026 = vrot.lane.b32.xlu0 %v313, 116
      %v1027 = vpop.permute.xlu0 %1026
      %1028 = vrot.lane.b32.xlu0 %v314, 116
      %v1029 = vpop.permute.xlu0 %1028
      %1030 = vrot.lane.b32.xlu0 %v315, 116
      %v1031 = vpop.permute.xlu0 %1030
      %1032 = vrot.lane.b32.xlu0 %v316, 116
      %v1033 = vpop.permute.xlu0 %1032
      %1034 = vrot.lane.b32.xlu0 %v317, 116
      %v1035 = vpop.permute.xlu0 %1034
      %1036 = vrot.lane.b32.xlu0 %v318, 116
      %v1037 = vpop.permute.xlu0 %1036
      %1038 = vrot.lane.b32.xlu0 %v319, 116
      %v1039 = vpop.permute.xlu0 %1038
      %1040 = vrot.lane.b32.xlu0 %v320, 116
      %v1041 = vpop.permute.xlu0 %1040
      %vm1042 = vcmask 949248
      %v1043 = vsel %vm1042, %v1027, %v1029
      %v1044 = vsel %vm1042, %v1029, %v1031
      %v1045 = vsel %vm1042, %v1031, %v1033
      %v1046 = vsel %vm1042, %v1033, %v1035
      %v1047 = vsel %vm1042, %v1035, %v1037
      %v1048 = vsel %vm1042, %v1037, %v1039
      %v1049 = vsel %vm1042, %v1039, %v1041
      %v1051 = vsel %vm345, %v1025, 0
      %v1054 = vsel %vm349, %v1043, 0
      %v1057 = vsel %vm349, %v1044, 0
      %v1060 = vsel %vm349, %v1045, 0
      %v1063 = vsel %vm349, %v1046, 0
      %v1066 = vsel %vm349, %v1047, 0
      %v1069 = vsel %vm349, %v1048, 0
      %v1072 = vsel %vm349, %v1049, 0
      %1074 = vmatpush.bf16.msra.mxu0 0
      %1075 = vmatpush.bf16.msra.mxu0 0
      %1076 = vmatpush.bf16.msra.mxu0 0
      %1077 = vmatpush.bf16.msra.mxu0 0
      %1078 = vmatpush.bf16.msra.mxu0 0
      %1079 = vmatpush.bf16.msra.mxu0 0
      %1080 = vmatpush.bf16.msra.mxu0 0
      %1081 = vmatpush.bf16.msra.mxu0 %v1054
      %1082 = vmatmul.bf16.gmra.mxu0 %v1051
      %v1083 = vpop.f32.mrf.mxu0
      %v1084 = vadd.f32 0.0, %v1083
      %v1085 = vpop.f32.mrf.mxu0
      %1086 = vdwg.mxu0
      %1087 = vmatpush.bf16.msra.mxu0 0
      %1088 = vmatpush.bf16.msra.mxu0 0
      %1089 = vmatpush.bf16.msra.mxu0 0
      %1090 = vmatpush.bf16.msra.mxu0 0
      %1091 = vmatpush.bf16.msra.mxu0 0
      %1092 = vmatpush.bf16.msra.mxu0 0
      %1093 = vmatpush.bf16.msra.mxu0 0
      %1094 = vmatpush.bf16.msra.mxu0 %v1057
      %1095 = vmatmul.bf16.gmra.mxu0 %v1051
      %v1096 = vpop.f32.mrf.mxu0
      %v1097 = vadd.f32 0.0, %v1096
      %v1098 = vpop.f32.mrf.mxu0
      %1099 = vdwg.mxu0
      %1100 = vmatpush.bf16.msra.mxu0 0
      %1101 = vmatpush.bf16.msra.mxu0 0
      %1102 = vmatpush.bf16.msra.mxu0 0
      %1103 = vmatpush.bf16.msra.mxu0 0
      %1104 = vmatpush.bf16.msra.mxu0 0
      %1105 = vmatpush.bf16.msra.mxu0 0
      %1106 = vmatpush.bf16.msra.mxu0 0
      %1107 = vmatpush.bf16.msra.mxu0 %v1060
      %1108 = vmatmul.bf16.gmra.mxu0 %v1051
      %v1109 = vpop.f32.mrf.mxu0
      %v1110 = vadd.f32 0.0, %v1109
      %v1111 = vpop.f32.mrf.mxu0
      %1112 = vdwg.mxu0
      %1113 = vmatpush.bf16.msra.mxu0 0
      %1114 = vmatpush.bf16.msra.mxu0 0
      %1115 = vmatpush.bf16.msra.mxu0 0
      %1116 = vmatpush.bf16.msra.mxu0 0
      %1117 = vmatpush.bf16.msra.mxu0 0
      %1118 = vmatpush.bf16.msra.mxu0 0
      %1119 = vmatpush.bf16.msra.mxu0 0
      %1120 = vmatpush.bf16.msra.mxu0 %v1063
      %1121 = vmatmul.bf16.gmra.mxu0 %v1051
      %v1122 = vpop.f32.mrf.mxu0
      %v1123 = vadd.f32 0.0, %v1122
      %v1124 = vpop.f32.mrf.mxu0
      %1125 = vdwg.mxu0
      %1126 = vmatpush.bf16.msra.mxu0 0
      %1127 = vmatpush.bf16.msra.mxu0 0
      %1128 = vmatpush.bf16.msra.mxu0 0
      %1129 = vmatpush.bf16.msra.mxu0 0
      %1130 = vmatpush.bf16.msra.mxu0 0
      %1131 = vmatpush.bf16.msra.mxu0 0
      %1132 = vmatpush.bf16.msra.mxu0 0
      %1133 = vmatpush.bf16.msra.mxu0 %v1066
      %1134 = vmatmul.bf16.gmra.mxu0 %v1051
      %v1135 = vpop.f32.mrf.mxu0
      %v1136 = vadd.f32 0.0, %v1135
      %v1137 = vpop.f32.mrf.mxu0
      %1138 = vdwg.mxu0
      %1139 = vmatpush.bf16.msra.mxu0 0
      %1140 = vmatpush.bf16.msra.mxu0 0
      %1141 = vmatpush.bf16.msra.mxu0 0
      %1142 = vmatpush.bf16.msra.mxu0 0
      %1143 = vmatpush.bf16.msra.mxu0 0
      %1144 = vmatpush.bf16.msra.mxu0 0
      %1145 = vmatpush.bf16.msra.mxu0 0
      %1146 = vmatpush.bf16.msra.mxu0 %v1069
      %1147 = vmatmul.bf16.gmra.mxu0 %v1051
      %v1148 = vpop.f32.mrf.mxu0
      %v1149 = vadd.f32 0.0, %v1148
      %v1150 = vpop.f32.mrf.mxu0
      %1151 = vdwg.mxu0
      %1152 = vmatpush.bf16.msra.mxu0 0
      %1153 = vmatpush.bf16.msra.mxu0 0
      %1154 = vmatpush.bf16.msra.mxu0 0
      %1155 = vmatpush.bf16.msra.mxu0 0
      %1156 = vmatpush.bf16.msra.mxu0 0
      %1157 = vmatpush.bf16.msra.mxu0 0
      %1158 = vmatpush.bf16.msra.mxu0 0
      %1159 = vmatpush.bf16.msra.mxu0 %v1072
      %1160 = vmatmul.bf16.gmra.mxu0 %v1051
      %v1161 = vpop.f32.mrf.mxu0
      %v1162 = vadd.f32 0.0, %v1161
      %v1163 = vpop.f32.mrf.mxu0
      %1164 = vdwg.mxu0
      %v1165 = vadd.f32 %v1017, %v1084
      %v1166 = vadd.f32 %v1018, %v1097
      %v1167 = vadd.f32 %v1019, %v1110
      %v1168 = vadd.f32 %v1020, %v1123
      %v1169 = vadd.f32 %v1021, %v1136
      %v1170 = vadd.f32 %v1022, %v1149
      %v1171 = vadd.f32 %v1023, %v1162
      %s1172 = scalar_lea.vmem %s1, 12
      %v1173 = vld [vmem:[%s1172] sm:$0x3]
      %1174 = vrot.lane.b32.xlu0 %v313, 108
      %v1175 = vpop.permute.xlu0 %1174
      %1176 = vrot.lane.b32.xlu0 %v314, 108
      %v1177 = vpop.permute.xlu0 %1176
      %1178 = vrot.lane.b32.xlu0 %v315, 108
      %v1179 = vpop.permute.xlu0 %1178
      %1180 = vrot.lane.b32.xlu0 %v316, 108
      %v1181 = vpop.permute.xlu0 %1180
      %1182 = vrot.lane.b32.xlu0 %v317, 108
      %v1183 = vpop.permute.xlu0 %1182
      %1184 = vrot.lane.b32.xlu0 %v318, 108
      %v1185 = vpop.permute.xlu0 %1184
      %1186 = vrot.lane.b32.xlu0 %v319, 108
      %v1187 = vpop.permute.xlu0 %1186
      %1188 = vrot.lane.b32.xlu0 %v320, 108
      %v1189 = vpop.permute.xlu0 %1188
      %vm1190 = vcmask 883712
      %v1191 = vsel %vm1190, %v1175, %v1177
      %v1192 = vsel %vm1190, %v1177, %v1179
      %v1193 = vsel %vm1190, %v1179, %v1181
      %v1194 = vsel %vm1190, %v1181, %v1183
      %v1195 = vsel %vm1190, %v1183, %v1185
      %v1196 = vsel %vm1190, %v1185, %v1187
      %v1197 = vsel %vm1190, %v1187, %v1189
      %v1199 = vsel %vm345, %v1173, 0
      %v1202 = vsel %vm349, %v1191, 0
      %v1205 = vsel %vm349, %v1192, 0
      %v1208 = vsel %vm349, %v1193, 0
      %v1211 = vsel %vm349, %v1194, 0
      %v1214 = vsel %vm349, %v1195, 0
      %v1217 = vsel %vm349, %v1196, 0
      %v1220 = vsel %vm349, %v1197, 0
      %1222 = vmatpush.bf16.msra.mxu0 0
      %1223 = vmatpush.bf16.msra.mxu0 0
      %1224 = vmatpush.bf16.msra.mxu0 0
      %1225 = vmatpush.bf16.msra.mxu0 0
      %1226 = vmatpush.bf16.msra.mxu0 0
      %1227 = vmatpush.bf16.msra.mxu0 0
      %1228 = vmatpush.bf16.msra.mxu0 0
      %1229 = vmatpush.bf16.msra.mxu0 %v1202
      %1230 = vmatmul.bf16.gmra.mxu0 %v1199
      %v1231 = vpop.f32.mrf.mxu0
      %v1232 = vadd.f32 0.0, %v1231
      %v1233 = vpop.f32.mrf.mxu0
      %1234 = vdwg.mxu0
      %1235 = vmatpush.bf16.msra.mxu0 0
      %1236 = vmatpush.bf16.msra.mxu0 0
      %1237 = vmatpush.bf16.msra.mxu0 0
      %1238 = vmatpush.bf16.msra.mxu0 0
      %1239 = vmatpush.bf16.msra.mxu0 0
      %1240 = vmatpush.bf16.msra.mxu0 0
      %1241 = vmatpush.bf16.msra.mxu0 0
      %1242 = vmatpush.bf16.msra.mxu0 %v1205
      %1243 = vmatmul.bf16.gmra.mxu0 %v1199
      %v1244 = vpop.f32.mrf.mxu0
      %v1245 = vadd.f32 0.0, %v1244
      %v1246 = vpop.f32.mrf.mxu0
      %1247 = vdwg.mxu0
      %1248 = vmatpush.bf16.msra.mxu0 0
      %1249 = vmatpush.bf16.msra.mxu0 0
      %1250 = vmatpush.bf16.msra.mxu0 0
      %1251 = vmatpush.bf16.msra.mxu0 0
      %1252 = vmatpush.bf16.msra.mxu0 0
      %1253 = vmatpush.bf16.msra.mxu0 0
      %1254 = vmatpush.bf16.msra.mxu0 0
      %1255 = vmatpush.bf16.msra.mxu0 %v1208
      %1256 = vmatmul.bf16.gmra.mxu0 %v1199
      %v1257 = vpop.f32.mrf.mxu0
      %v1258 = vadd.f32 0.0, %v1257
      %v1259 = vpop.f32.mrf.mxu0
      %1260 = vdwg.mxu0
      %1261 = vmatpush.bf16.msra.mxu0 0
      %1262 = vmatpush.bf16.msra.mxu0 0
      %1263 = vmatpush.bf16.msra.mxu0 0
      %1264 = vmatpush.bf16.msra.mxu0 0
      %1265 = vmatpush.bf16.msra.mxu0 0
      %1266 = vmatpush.bf16.msra.mxu0 0
      %1267 = vmatpush.bf16.msra.mxu0 0
      %1268 = vmatpush.bf16.msra.mxu0 %v1211
      %1269 = vmatmul.bf16.gmra.mxu0 %v1199
      %v1270 = vpop.f32.mrf.mxu0
      %v1271 = vadd.f32 0.0, %v1270
      %v1272 = vpop.f32.mrf.mxu0
      %1273 = vdwg.mxu0
      %1274 = vmatpush.bf16.msra.mxu0 0
      %1275 = vmatpush.bf16.msra.mxu0 0
      %1276 = vmatpush.bf16.msra.mxu0 0
      %1277 = vmatpush.bf16.msra.mxu0 0
      %1278 = vmatpush.bf16.msra.mxu0 0
      %1279 = vmatpush.bf16.msra.mxu0 0
      %1280 = vmatpush.bf16.msra.mxu0 0
      %1281 = vmatpush.bf16.msra.mxu0 %v1214
      %1282 = vmatmul.bf16.gmra.mxu0 %v1199
      %v1283 = vpop.f32.mrf.mxu0
      %v1284 = vadd.f32 0.0, %v1283
      %v1285 = vpop.f32.mrf.mxu0
      %1286 = vdwg.mxu0
      %1287 = vmatpush.bf16.msra.mxu0 0
      %1288 = vmatpush.bf16.msra.mxu0 0
      %1289 = vmatpush.bf16.msra.mxu0 0
      %1290 = vmatpush.bf16.msra.mxu0 0
      %1291 = vmatpush.bf16.msra.mxu0 0
      %1292 = vmatpush.bf16.msra.mxu0 0
      %1293 = vmatpush.bf16.msra.mxu0 0
      %1294 = vmatpush.bf16.msra.mxu0 %v1217
      %1295 = vmatmul.bf16.gmra.mxu0 %v1199
      %v1296 = vpop.f32.mrf.mxu0
      %v1297 = vadd.f32 0.0, %v1296
      %v1298 = vpop.f32.mrf.mxu0
      %1299 = vdwg.mxu0
      %1300 = vmatpush.bf16.msra.mxu0 0
      %1301 = vmatpush.bf16.msra.mxu0 0
      %1302 = vmatpush.bf16.msra.mxu0 0
      %1303 = vmatpush.bf16.msra.mxu0 0
      %1304 = vmatpush.bf16.msra.mxu0 0
      %1305 = vmatpush.bf16.msra.mxu0 0
      %1306 = vmatpush.bf16.msra.mxu0 0
      %1307 = vmatpush.bf16.msra.mxu0 %v1220
      %1308 = vmatmul.bf16.gmra.mxu0 %v1199
      %v1309 = vpop.f32.mrf.mxu0
      %v1310 = vadd.f32 0.0, %v1309
      %v1311 = vpop.f32.mrf.mxu0
      %1312 = vdwg.mxu0
      %v1313 = vadd.f32 %v1165, %v1232
      %v1314 = vadd.f32 %v1166, %v1245
      %v1315 = vadd.f32 %v1167, %v1258
      %v1316 = vadd.f32 %v1168, %v1271
      %v1317 = vadd.f32 %v1169, %v1284
      %v1318 = vadd.f32 %v1170, %v1297
      %v1319 = vadd.f32 %v1171, %v1310
      %s1320 = scalar_lea.vmem %s1, 14
      %v1321 = vld [vmem:[%s1320] sm:$0x3]
      %1322 = vrot.lane.b32.xlu0 %v313, 107
      %v1323 = vpop.permute.xlu0 %1322
      %1324 = vrot.lane.b32.xlu0 %v314, 107
      %v1325 = vpop.permute.xlu0 %1324
      %1326 = vrot.lane.b32.xlu0 %v315, 107
      %v1327 = vpop.permute.xlu0 %1326
      %1328 = vrot.lane.b32.xlu0 %v316, 107
      %v1329 = vpop.permute.xlu0 %1328
      %1330 = vrot.lane.b32.xlu0 %v317, 107
      %v1331 = vpop.permute.xlu0 %1330
      %1332 = vrot.lane.b32.xlu0 %v318, 107
      %v1333 = vpop.permute.xlu0 %1332
      %1334 = vrot.lane.b32.xlu0 %v319, 107
      %v1335 = vpop.permute.xlu0 %1334
      %1336 = vrot.lane.b32.xlu0 %v320, 107
      %v1337 = vpop.permute.xlu0 %1336
      %vm1338 = vcmask 875520
      %v1339 = vsel %vm1338, %v1323, %v1325
      %v1340 = vsel %vm1338, %v1325, %v1327
      %v1341 = vsel %vm1338, %v1327, %v1329
      %v1342 = vsel %vm1338, %v1329, %v1331
      %v1343 = vsel %vm1338, %v1331, %v1333
      %v1344 = vsel %vm1338, %v1333, %v1335
      %v1345 = vsel %vm1338, %v1335, %v1337
      %v1347 = vsel %vm345, %v1321, 0
      %v1350 = vsel %vm349, %v1339, 0
      %v1353 = vsel %vm349, %v1340, 0
      %v1356 = vsel %vm349, %v1341, 0
      %v1359 = vsel %vm349, %v1342, 0
      %v1362 = vsel %vm349, %v1343, 0
      %v1365 = vsel %vm349, %v1344, 0
      %v1368 = vsel %vm349, %v1345, 0
      %1370 = vmatpush.bf16.msra.mxu0 0
      %1371 = vmatpush.bf16.msra.mxu0 0
      %1372 = vmatpush.bf16.msra.mxu0 0
      %1373 = vmatpush.bf16.msra.mxu0 0
      %1374 = vmatpush.bf16.msra.mxu0 0
      %1375 = vmatpush.bf16.msra.mxu0 0
      %1376 = vmatpush.bf16.msra.mxu0 0
      %1377 = vmatpush.bf16.msra.mxu0 %v1350
      %1378 = vmatmul.bf16.gmra.mxu0 %v1347
      %v1379 = vpop.f32.mrf.mxu0
      %v1380 = vadd.f32 0.0, %v1379
      %v1381 = vpop.f32.mrf.mxu0
      %1382 = vdwg.mxu0
      %1383 = vmatpush.bf16.msra.mxu0 0
      %1384 = vmatpush.bf16.msra.mxu0 0
      %1385 = vmatpush.bf16.msra.mxu0 0
      %1386 = vmatpush.bf16.msra.mxu0 0
      %1387 = vmatpush.bf16.msra.mxu0 0
      %1388 = vmatpush.bf16.msra.mxu0 0
      %1389 = vmatpush.bf16.msra.mxu0 0
      %1390 = vmatpush.bf16.msra.mxu0 %v1353
      %1391 = vmatmul.bf16.gmra.mxu0 %v1347
      %v1392 = vpop.f32.mrf.mxu0
      %v1393 = vadd.f32 0.0, %v1392
      %v1394 = vpop.f32.mrf.mxu0
      %1395 = vdwg.mxu0
      %1396 = vmatpush.bf16.msra.mxu0 0
      %1397 = vmatpush.bf16.msra.mxu0 0
      %1398 = vmatpush.bf16.msra.mxu0 0
      %1399 = vmatpush.bf16.msra.mxu0 0
      %1400 = vmatpush.bf16.msra.mxu0 0
      %1401 = vmatpush.bf16.msra.mxu0 0
      %1402 = vmatpush.bf16.msra.mxu0 0
      %1403 = vmatpush.bf16.msra.mxu0 %v1356
      %1404 = vmatmul.bf16.gmra.mxu0 %v1347
      %v1405 = vpop.f32.mrf.mxu0
      %v1406 = vadd.f32 0.0, %v1405
      %v1407 = vpop.f32.mrf.mxu0
      %1408 = vdwg.mxu0
      %1409 = vmatpush.bf16.msra.mxu0 0
      %1410 = vmatpush.bf16.msra.mxu0 0
      %1411 = vmatpush.bf16.msra.mxu0 0
      %1412 = vmatpush.bf16.msra.mxu0 0
      %1413 = vmatpush.bf16.msra.mxu0 0
      %1414 = vmatpush.bf16.msra.mxu0 0
      %1415 = vmatpush.bf16.msra.mxu0 0
      %1416 = vmatpush.bf16.msra.mxu0 %v1359
      %1417 = vmatmul.bf16.gmra.mxu0 %v1347
      %v1418 = vpop.f32.mrf.mxu0
      %v1419 = vadd.f32 0.0, %v1418
      %v1420 = vpop.f32.mrf.mxu0
      %1421 = vdwg.mxu0
      %1422 = vmatpush.bf16.msra.mxu0 0
      %1423 = vmatpush.bf16.msra.mxu0 0
      %1424 = vmatpush.bf16.msra.mxu0 0
      %1425 = vmatpush.bf16.msra.mxu0 0
      %1426 = vmatpush.bf16.msra.mxu0 0
      %1427 = vmatpush.bf16.msra.mxu0 0
      %1428 = vmatpush.bf16.msra.mxu0 0
      %1429 = vmatpush.bf16.msra.mxu0 %v1362
      %1430 = vmatmul.bf16.gmra.mxu0 %v1347
      %v1431 = vpop.f32.mrf.mxu0
      %v1432 = vadd.f32 0.0, %v1431
      %v1433 = vpop.f32.mrf.mxu0
      %1434 = vdwg.mxu0
      %1435 = vmatpush.bf16.msra.mxu0 0
      %1436 = vmatpush.bf16.msra.mxu0 0
      %1437 = vmatpush.bf16.msra.mxu0 0
      %1438 = vmatpush.bf16.msra.mxu0 0
      %1439 = vmatpush.bf16.msra.mxu0 0
      %1440 = vmatpush.bf16.msra.mxu0 0
      %1441 = vmatpush.bf16.msra.mxu0 0
      %1442 = vmatpush.bf16.msra.mxu0 %v1365
      %1443 = vmatmul.bf16.gmra.mxu0 %v1347
      %v1444 = vpop.f32.mrf.mxu0
      %v1445 = vadd.f32 0.0, %v1444
      %v1446 = vpop.f32.mrf.mxu0
      %1447 = vdwg.mxu0
      %1448 = vmatpush.bf16.msra.mxu0 0
      %1449 = vmatpush.bf16.msra.mxu0 0
      %1450 = vmatpush.bf16.msra.mxu0 0
      %1451 = vmatpush.bf16.msra.mxu0 0
      %1452 = vmatpush.bf16.msra.mxu0 0
      %1453 = vmatpush.bf16.msra.mxu0 0
      %1454 = vmatpush.bf16.msra.mxu0 0
      %1455 = vmatpush.bf16.msra.mxu0 %v1368
      %1456 = vmatmul.bf16.gmra.mxu0 %v1347
      %v1457 = vpop.f32.mrf.mxu0
      %v1458 = vadd.f32 0.0, %v1457
      %v1459 = vpop.f32.mrf.mxu0
      %1460 = vdwg.mxu0
      %v1461 = vadd.f32 %v1313, %v1380
      %v1462 = vadd.f32 %v1314, %v1393
      %v1463 = vadd.f32 %v1315, %v1406
      %v1464 = vadd.f32 %v1316, %v1419
      %v1465 = vadd.f32 %v1317, %v1432
      %v1466 = vadd.f32 %v1318, %v1445
      %v1467 = vadd.f32 %v1319, %v1458
      %s1468 = scalar_lea.vmem %s1, 16
      %v1469 = vld [vmem:[%s1468] sm:$0x3]
      %1470 = vrot.lane.b32.xlu0 %v313, 106
      %v1471 = vpop.permute.xlu0 %1470
      %1472 = vrot.lane.b32.xlu0 %v314, 106
      %v1473 = vpop.permute.xlu0 %1472
      %1474 = vrot.lane.b32.xlu0 %v315, 106
      %v1475 = vpop.permute.xlu0 %1474
      %1476 = vrot.lane.b32.xlu0 %v316, 106
      %v1477 = vpop.permute.xlu0 %1476
      %1478 = vrot.lane.b32.xlu0 %v317, 106
      %v1479 = vpop.permute.xlu0 %1478
      %1480 = vrot.lane.b32.xlu0 %v318, 106
      %v1481 = vpop.permute.xlu0 %1480
      %1482 = vrot.lane.b32.xlu0 %v319, 106
      %v1483 = vpop.permute.xlu0 %1482
      %1484 = vrot.lane.b32.xlu0 %v320, 106
      %v1485 = vpop.permute.xlu0 %1484
      %vm1486 = vcmask 867328
      %v1487 = vsel %vm1486, %v1471, %v1473
      %v1488 = vsel %vm1486, %v1473, %v1475
      %v1489 = vsel %vm1486, %v1475, %v1477
      %v1490 = vsel %vm1486, %v1477, %v1479
      %v1491 = vsel %vm1486, %v1479, %v1481
      %v1492 = vsel %vm1486, %v1481, %v1483
      %v1493 = vsel %vm1486, %v1483, %v1485
      %v1495 = vsel %vm345, %v1469, 0
      %v1498 = vsel %vm349, %v1487, 0
      %v1501 = vsel %vm349, %v1488, 0
      %v1504 = vsel %vm349, %v1489, 0
      %v1507 = vsel %vm349, %v1490, 0
      %v1510 = vsel %vm349, %v1491, 0
      %v1513 = vsel %vm349, %v1492, 0
      %v1516 = vsel %vm349, %v1493, 0
      %1518 = vmatpush.bf16.msra.mxu0 0
      %1519 = vmatpush.bf16.msra.mxu0 0
      %1520 = vmatpush.bf16.msra.mxu0 0
      %1521 = vmatpush.bf16.msra.mxu0 0
      %1522 = vmatpush.bf16.msra.mxu0 0
      %1523 = vmatpush.bf16.msra.mxu0 0
      %1524 = vmatpush.bf16.msra.mxu0 0
      %1525 = vmatpush.bf16.msra.mxu0 %v1498
      %1526 = vmatmul.bf16.gmra.mxu0 %v1495
      %v1527 = vpop.f32.mrf.mxu0
      %v1528 = vadd.f32 0.0, %v1527
      %v1529 = vpop.f32.mrf.mxu0
      %1530 = vdwg.mxu0
      %1531 = vmatpush.bf16.msra.mxu0 0
      %1532 = vmatpush.bf16.msra.mxu0 0
      %1533 = vmatpush.bf16.msra.mxu0 0
      %1534 = vmatpush.bf16.msra.mxu0 0
      %1535 = vmatpush.bf16.msra.mxu0 0
      %1536 = vmatpush.bf16.msra.mxu0 0
      %1537 = vmatpush.bf16.msra.mxu0 0
      %1538 = vmatpush.bf16.msra.mxu0 %v1501
      %1539 = vmatmul.bf16.gmra.mxu0 %v1495
      %v1540 = vpop.f32.mrf.mxu0
      %v1541 = vadd.f32 0.0, %v1540
      %v1542 = vpop.f32.mrf.mxu0
      %1543 = vdwg.mxu0
      %1544 = vmatpush.bf16.msra.mxu0 0
      %1545 = vmatpush.bf16.msra.mxu0 0
      %1546 = vmatpush.bf16.msra.mxu0 0
      %1547 = vmatpush.bf16.msra.mxu0 0
      %1548 = vmatpush.bf16.msra.mxu0 0
      %1549 = vmatpush.bf16.msra.mxu0 0
      %1550 = vmatpush.bf16.msra.mxu0 0
      %1551 = vmatpush.bf16.msra.mxu0 %v1504
      %1552 = vmatmul.bf16.gmra.mxu0 %v1495
      %v1553 = vpop.f32.mrf.mxu0
      %v1554 = vadd.f32 0.0, %v1553
      %v1555 = vpop.f32.mrf.mxu0
      %1556 = vdwg.mxu0
      %1557 = vmatpush.bf16.msra.mxu0 0
      %1558 = vmatpush.bf16.msra.mxu0 0
      %1559 = vmatpush.bf16.msra.mxu0 0
      %1560 = vmatpush.bf16.msra.mxu0 0
      %1561 = vmatpush.bf16.msra.mxu0 0
      %1562 = vmatpush.bf16.msra.mxu0 0
      %1563 = vmatpush.bf16.msra.mxu0 0
      %1564 = vmatpush.bf16.msra.mxu0 %v1507
      %1565 = vmatmul.bf16.gmra.mxu0 %v1495
      %v1566 = vpop.f32.mrf.mxu0
      %v1567 = vadd.f32 0.0, %v1566
      %v1568 = vpop.f32.mrf.mxu0
      %1569 = vdwg.mxu0
      %1570 = vmatpush.bf16.msra.mxu0 0
      %1571 = vmatpush.bf16.msra.mxu0 0
      %1572 = vmatpush.bf16.msra.mxu0 0
      %1573 = vmatpush.bf16.msra.mxu0 0
      %1574 = vmatpush.bf16.msra.mxu0 0
      %1575 = vmatpush.bf16.msra.mxu0 0
      %1576 = vmatpush.bf16.msra.mxu0 0
      %1577 = vmatpush.bf16.msra.mxu0 %v1510
      %1578 = vmatmul.bf16.gmra.mxu0 %v1495
      %v1579 = vpop.f32.mrf.mxu0
      %v1580 = vadd.f32 0.0, %v1579
      %v1581 = vpop.f32.mrf.mxu0
      %1582 = vdwg.mxu0
      %1583 = vmatpush.bf16.msra.mxu0 0
      %1584 = vmatpush.bf16.msra.mxu0 0
      %1585 = vmatpush.bf16.msra.mxu0 0
      %1586 = vmatpush.bf16.msra.mxu0 0
      %1587 = vmatpush.bf16.msra.mxu0 0
      %1588 = vmatpush.bf16.msra.mxu0 0
      %1589 = vmatpush.bf16.msra.mxu0 0
      %1590 = vmatpush.bf16.msra.mxu0 %v1513
      %1591 = vmatmul.bf16.gmra.mxu0 %v1495
      %v1592 = vpop.f32.mrf.mxu0
      %v1593 = vadd.f32 0.0, %v1592
      %v1594 = vpop.f32.mrf.mxu0
      %1595 = vdwg.mxu0
      %1596 = vmatpush.bf16.msra.mxu0 0
      %1597 = vmatpush.bf16.msra.mxu0 0
      %1598 = vmatpush.bf16.msra.mxu0 0
      %1599 = vmatpush.bf16.msra.mxu0 0
      %1600 = vmatpush.bf16.msra.mxu0 0
      %1601 = vmatpush.bf16.msra.mxu0 0
      %1602 = vmatpush.bf16.msra.mxu0 0
      %1603 = vmatpush.bf16.msra.mxu0 %v1516
      %1604 = vmatmul.bf16.gmra.mxu0 %v1495
      %v1605 = vpop.f32.mrf.mxu0
      %v1606 = vadd.f32 0.0, %v1605
      %v1607 = vpop.f32.mrf.mxu0
      %1608 = vdwg.mxu0
      %v1609 = vadd.f32 %v1461, %v1528
      %v1610 = vadd.f32 %v1462, %v1541
      %v1611 = vadd.f32 %v1463, %v1554
      %v1612 = vadd.f32 %v1464, %v1567
      %v1613 = vadd.f32 %v1465, %v1580
      %v1614 = vadd.f32 %v1466, %v1593
      %v1615 = vadd.f32 %v1467, %v1606
      %s1616 = scalar_lea.vmem %s1, 18
      %v1617 = vld [vmem:[%s1616] sm:$0x3]
      %1618 = vrot.lane.b32.xlu0 %v313, 28
      %v1619 = vpop.permute.xlu0 %1618
      %1620 = vrot.lane.b32.xlu0 %v314, 28
      %v1621 = vpop.permute.xlu0 %1620
      %1622 = vrot.lane.b32.xlu0 %v315, 28
      %v1623 = vpop.permute.xlu0 %1622
      %1624 = vrot.lane.b32.xlu0 %v316, 28
      %v1625 = vpop.permute.xlu0 %1624
      %1626 = vrot.lane.b32.xlu0 %v317, 28
      %v1627 = vpop.permute.xlu0 %1626
      %1628 = vrot.lane.b32.xlu0 %v318, 28
      %v1629 = vpop.permute.xlu0 %1628
      %1630 = vrot.lane.b32.xlu0 %v319, 28
      %v1631 = vpop.permute.xlu0 %1630
      %1632 = vrot.lane.b32.xlu0 %v320, 28
      %v1633 = vpop.permute.xlu0 %1632
      %vm1634 = vcmask 228352
      %v1635 = vsel %vm1634, %v1619, %v1621
      %v1636 = vsel %vm1634, %v1621, %v1623
      %v1637 = vsel %vm1634, %v1623, %v1625
      %v1638 = vsel %vm1634, %v1625, %v1627
      %v1639 = vsel %vm1634, %v1627, %v1629
      %v1640 = vsel %vm1634, %v1629, %v1631
      %v1641 = vsel %vm1634, %v1631, %v1633
      %v1643 = vsel %vm345, %v1617, 0
      %v1646 = vsel %vm349, %v1635, 0
      %v1649 = vsel %vm349, %v1636, 0
      %v1652 = vsel %vm349, %v1637, 0
      %v1655 = vsel %vm349, %v1638, 0
      %v1658 = vsel %vm349, %v1639, 0
      %v1661 = vsel %vm349, %v1640, 0
      %v1664 = vsel %vm349, %v1641, 0
      %1666 = vmatpush.bf16.msra.mxu0 0
      %1667 = vmatpush.bf16.msra.mxu0 0
      %1668 = vmatpush.bf16.msra.mxu0 0
      %1669 = vmatpush.bf16.msra.mxu0 0
      %1670 = vmatpush.bf16.msra.mxu0 0
      %1671 = vmatpush.bf16.msra.mxu0 0
      %1672 = vmatpush.bf16.msra.mxu0 0
      %1673 = vmatpush.bf16.msra.mxu0 %v1646
      %1674 = vmatmul.bf16.gmra.mxu0 %v1643
      %v1675 = vpop.f32.mrf.mxu0
      %v1676 = vadd.f32 0.0, %v1675
      %v1677 = vpop.f32.mrf.mxu0
      %1678 = vdwg.mxu0
      %1679 = vmatpush.bf16.msra.mxu0 0
      %1680 = vmatpush.bf16.msra.mxu0 0
      %1681 = vmatpush.bf16.msra.mxu0 0
      %1682 = vmatpush.bf16.msra.mxu0 0
      %1683 = vmatpush.bf16.msra.mxu0 0
      %1684 = vmatpush.bf16.msra.mxu0 0
      %1685 = vmatpush.bf16.msra.mxu0 0
      %1686 = vmatpush.bf16.msra.mxu0 %v1649
      %1687 = vmatmul.bf16.gmra.mxu0 %v1643
      %v1688 = vpop.f32.mrf.mxu0
      %v1689 = vadd.f32 0.0, %v1688
      %v1690 = vpop.f32.mrf.mxu0
      %1691 = vdwg.mxu0
      %1692 = vmatpush.bf16.msra.mxu0 0
      %1693 = vmatpush.bf16.msra.mxu0 0
      %1694 = vmatpush.bf16.msra.mxu0 0
      %1695 = vmatpush.bf16.msra.mxu0 0
      %1696 = vmatpush.bf16.msra.mxu0 0
      %1697 = vmatpush.bf16.msra.mxu0 0
      %1698 = vmatpush.bf16.msra.mxu0 0
      %1699 = vmatpush.bf16.msra.mxu0 %v1652
      %1700 = vmatmul.bf16.gmra.mxu0 %v1643
      %v1701 = vpop.f32.mrf.mxu0
      %v1702 = vadd.f32 0.0, %v1701
      %v1703 = vpop.f32.mrf.mxu0
      %1704 = vdwg.mxu0
      %1705 = vmatpush.bf16.msra.mxu0 0
      %1706 = vmatpush.bf16.msra.mxu0 0
      %1707 = vmatpush.bf16.msra.mxu0 0
      %1708 = vmatpush.bf16.msra.mxu0 0
      %1709 = vmatpush.bf16.msra.mxu0 0
      %1710 = vmatpush.bf16.msra.mxu0 0
      %1711 = vmatpush.bf16.msra.mxu0 0
      %1712 = vmatpush.bf16.msra.mxu0 %v1655
      %1713 = vmatmul.bf16.gmra.mxu0 %v1643
      %v1714 = vpop.f32.mrf.mxu0
      %v1715 = vadd.f32 0.0, %v1714
      %v1716 = vpop.f32.mrf.mxu0
      %1717 = vdwg.mxu0
      %1718 = vmatpush.bf16.msra.mxu0 0
      %1719 = vmatpush.bf16.msra.mxu0 0
      %1720 = vmatpush.bf16.msra.mxu0 0
      %1721 = vmatpush.bf16.msra.mxu0 0
      %1722 = vmatpush.bf16.msra.mxu0 0
      %1723 = vmatpush.bf16.msra.mxu0 0
      %1724 = vmatpush.bf16.msra.mxu0 0
      %1725 = vmatpush.bf16.msra.mxu0 %v1658
      %1726 = vmatmul.bf16.gmra.mxu0 %v1643
      %v1727 = vpop.f32.mrf.mxu0
      %v1728 = vadd.f32 0.0, %v1727
      %v1729 = vpop.f32.mrf.mxu0
      %1730 = vdwg.mxu0
      %1731 = vmatpush.bf16.msra.mxu0 0
      %1732 = vmatpush.bf16.msra.mxu0 0
      %1733 = vmatpush.bf16.msra.mxu0 0
      %1734 = vmatpush.bf16.msra.mxu0 0
      %1735 = vmatpush.bf16.msra.mxu0 0
      %1736 = vmatpush.bf16.msra.mxu0 0
      %1737 = vmatpush.bf16.msra.mxu0 0
      %1738 = vmatpush.bf16.msra.mxu0 %v1661
      %1739 = vmatmul.bf16.gmra.mxu0 %v1643
      %v1740 = vpop.f32.mrf.mxu0
      %v1741 = vadd.f32 0.0, %v1740
      %v1742 = vpop.f32.mrf.mxu0
      %1743 = vdwg.mxu0
      %1744 = vmatpush.bf16.msra.mxu0 0
      %1745 = vmatpush.bf16.msra.mxu0 0
      %1746 = vmatpush.bf16.msra.mxu0 0
      %1747 = vmatpush.bf16.msra.mxu0 0
      %1748 = vmatpush.bf16.msra.mxu0 0
      %1749 = vmatpush.bf16.msra.mxu0 0
      %1750 = vmatpush.bf16.msra.mxu0 0
      %1751 = vmatpush.bf16.msra.mxu0 %v1664
      %1752 = vmatmul.bf16.gmra.mxu0 %v1643
      %v1753 = vpop.f32.mrf.mxu0
      %v1754 = vadd.f32 0.0, %v1753
      %v1755 = vpop.f32.mrf.mxu0
      %1756 = vdwg.mxu0
      %v1757 = vadd.f32 %v1609, %v1676
      %v1758 = vadd.f32 %v1610, %v1689
      %v1759 = vadd.f32 %v1611, %v1702
      %v1760 = vadd.f32 %v1612, %v1715
      %v1761 = vadd.f32 %v1613, %v1728
      %v1762 = vadd.f32 %v1614, %v1741
      %v1763 = vadd.f32 %v1615, %v1754
      %s1764 = scalar_lea.vmem %s1, 20
      %v1765 = vld [vmem:[%s1764] sm:$0x3]
      %1766 = vrot.lane.b32.xlu0 %v313, 27
      %v1767 = vpop.permute.xlu0 %1766
      %1768 = vrot.lane.b32.xlu0 %v314, 27
      %v1769 = vpop.permute.xlu0 %1768
      %1770 = vrot.lane.b32.xlu0 %v315, 27
      %v1771 = vpop.permute.xlu0 %1770
      %1772 = vrot.lane.b32.xlu0 %v316, 27
      %v1773 = vpop.permute.xlu0 %1772
      %1774 = vrot.lane.b32.xlu0 %v317, 27
      %v1775 = vpop.permute.xlu0 %1774
      %1776 = vrot.lane.b32.xlu0 %v318, 27
      %v1777 = vpop.permute.xlu0 %1776
      %1778 = vrot.lane.b32.xlu0 %v319, 27
      %v1779 = vpop.permute.xlu0 %1778
      %1780 = vrot.lane.b32.xlu0 %v320, 27
      %v1781 = vpop.permute.xlu0 %1780
      %vm1782 = vcmask 220160
      %v1783 = vsel %vm1782, %v1767, %v1769
      %v1784 = vsel %vm1782, %v1769, %v1771
      %v1785 = vsel %vm1782, %v1771, %v1773
      %v1786 = vsel %vm1782, %v1773, %v1775
      %v1787 = vsel %vm1782, %v1775, %v1777
      %v1788 = vsel %vm1782, %v1777, %v1779
      %v1789 = vsel %vm1782, %v1779, %v1781
      %v1791 = vsel %vm345, %v1765, 0
      %v1794 = vsel %vm349, %v1783, 0
      %v1797 = vsel %vm349, %v1784, 0
      %v1800 = vsel %vm349, %v1785, 0
      %v1803 = vsel %vm349, %v1786, 0
      %v1806 = vsel %vm349, %v1787, 0
      %v1809 = vsel %vm349, %v1788, 0
      %v1812 = vsel %vm349, %v1789, 0
      %1814 = vmatpush.bf16.msra.mxu0 0
      %1815 = vmatpush.bf16.msra.mxu0 0
      %1816 = vmatpush.bf16.msra.mxu0 0
      %1817 = vmatpush.bf16.msra.mxu0 0
      %1818 = vmatpush.bf16.msra.mxu0 0
      %1819 = vmatpush.bf16.msra.mxu0 0
      %1820 = vmatpush.bf16.msra.mxu0 0
      %1821 = vmatpush.bf16.msra.mxu0 %v1794
      %1822 = vmatmul.bf16.gmra.mxu0 %v1791
      %v1823 = vpop.f32.mrf.mxu0
      %v1824 = vadd.f32 0.0, %v1823
      %v1825 = vpop.f32.mrf.mxu0
      %1826 = vdwg.mxu0
      %1827 = vmatpush.bf16.msra.mxu0 0
      %1828 = vmatpush.bf16.msra.mxu0 0
      %1829 = vmatpush.bf16.msra.mxu0 0
      %1830 = vmatpush.bf16.msra.mxu0 0
      %1831 = vmatpush.bf16.msra.mxu0 0
      %1832 = vmatpush.bf16.msra.mxu0 0
      %1833 = vmatpush.bf16.msra.mxu0 0
      %1834 = vmatpush.bf16.msra.mxu0 %v1797
      %1835 = vmatmul.bf16.gmra.mxu0 %v1791
      %v1836 = vpop.f32.mrf.mxu0
      %v1837 = vadd.f32 0.0, %v1836
      %v1838 = vpop.f32.mrf.mxu0
      %1839 = vdwg.mxu0
      %1840 = vmatpush.bf16.msra.mxu0 0
      %1841 = vmatpush.bf16.msra.mxu0 0
      %1842 = vmatpush.bf16.msra.mxu0 0
      %1843 = vmatpush.bf16.msra.mxu0 0
      %1844 = vmatpush.bf16.msra.mxu0 0
      %1845 = vmatpush.bf16.msra.mxu0 0
      %1846 = vmatpush.bf16.msra.mxu0 0
      %1847 = vmatpush.bf16.msra.mxu0 %v1800
      %1848 = vmatmul.bf16.gmra.mxu0 %v1791
      %v1849 = vpop.f32.mrf.mxu0
      %v1850 = vadd.f32 0.0, %v1849
      %v1851 = vpop.f32.mrf.mxu0
      %1852 = vdwg.mxu0
      %1853 = vmatpush.bf16.msra.mxu0 0
      %1854 = vmatpush.bf16.msra.mxu0 0
      %1855 = vmatpush.bf16.msra.mxu0 0
      %1856 = vmatpush.bf16.msra.mxu0 0
      %1857 = vmatpush.bf16.msra.mxu0 0
      %1858 = vmatpush.bf16.msra.mxu0 0
      %1859 = vmatpush.bf16.msra.mxu0 0
      %1860 = vmatpush.bf16.msra.mxu0 %v1803
      %1861 = vmatmul.bf16.gmra.mxu0 %v1791
      %v1862 = vpop.f32.mrf.mxu0
      %v1863 = vadd.f32 0.0, %v1862
      %v1864 = vpop.f32.mrf.mxu0
      %1865 = vdwg.mxu0
      %1866 = vmatpush.bf16.msra.mxu0 0
      %1867 = vmatpush.bf16.msra.mxu0 0
      %1868 = vmatpush.bf16.msra.mxu0 0
      %1869 = vmatpush.bf16.msra.mxu0 0
      %1870 = vmatpush.bf16.msra.mxu0 0
      %1871 = vmatpush.bf16.msra.mxu0 0
      %1872 = vmatpush.bf16.msra.mxu0 0
      %1873 = vmatpush.bf16.msra.mxu0 %v1806
      %1874 = vmatmul.bf16.gmra.mxu0 %v1791
      %v1875 = vpop.f32.mrf.mxu0
      %v1876 = vadd.f32 0.0, %v1875
      %v1877 = vpop.f32.mrf.mxu0
      %1878 = vdwg.mxu0
      %1879 = vmatpush.bf16.msra.mxu0 0
      %1880 = vmatpush.bf16.msra.mxu0 0
      %1881 = vmatpush.bf16.msra.mxu0 0
      %1882 = vmatpush.bf16.msra.mxu0 0
      %1883 = vmatpush.bf16.msra.mxu0 0
      %1884 = vmatpush.bf16.msra.mxu0 0
      %1885 = vmatpush.bf16.msra.mxu0 0
      %1886 = vmatpush.bf16.msra.mxu0 %v1809
      %1887 = vmatmul.bf16.gmra.mxu0 %v1791
      %v1888 = vpop.f32.mrf.mxu0
      %v1889 = vadd.f32 0.0, %v1888
      %v1890 = vpop.f32.mrf.mxu0
      %1891 = vdwg.mxu0
      %1892 = vmatpush.bf16.msra.mxu0 0
      %1893 = vmatpush.bf16.msra.mxu0 0
      %1894 = vmatpush.bf16.msra.mxu0 0
      %1895 = vmatpush.bf16.msra.mxu0 0
      %1896 = vmatpush.bf16.msra.mxu0 0
      %1897 = vmatpush.bf16.msra.mxu0 0
      %1898 = vmatpush.bf16.msra.mxu0 0
      %1899 = vmatpush.bf16.msra.mxu0 %v1812
      %1900 = vmatmul.bf16.gmra.mxu0 %v1791
      %v1901 = vpop.f32.mrf.mxu0
      %v1902 = vadd.f32 0.0, %v1901
      %v1903 = vpop.f32.mrf.mxu0
      %1904 = vdwg.mxu0
      %v1905 = vadd.f32 %v1757, %v1824
      %v1906 = vadd.f32 %v1758, %v1837
      %v1907 = vadd.f32 %v1759, %v1850
      %v1908 = vadd.f32 %v1760, %v1863
      %v1909 = vadd.f32 %v1761, %v1876
      %v1910 = vadd.f32 %v1762, %v1889
      %v1911 = vadd.f32 %v1763, %v1902
      %s1912 = scalar_lea.vmem %s1, 22
      %v1913 = vld [vmem:[%s1912] sm:$0x3]
      %1914 = vrot.lane.b32.xlu0 %v313, 26
      %v1915 = vpop.permute.xlu0 %1914
      %1916 = vrot.lane.b32.xlu0 %v314, 26
      %v1917 = vpop.permute.xlu0 %1916
      %1918 = vrot.lane.b32.xlu0 %v315, 26
      %v1919 = vpop.permute.xlu0 %1918
      %1920 = vrot.lane.b32.xlu0 %v316, 26
      %v1921 = vpop.permute.xlu0 %1920
      %1922 = vrot.lane.b32.xlu0 %v317, 26
      %v1923 = vpop.permute.xlu0 %1922
      %1924 = vrot.lane.b32.xlu0 %v318, 26
      %v1925 = vpop.permute.xlu0 %1924
      %1926 = vrot.lane.b32.xlu0 %v319, 26
      %v1927 = vpop.permute.xlu0 %1926
      %1928 = vrot.lane.b32.xlu0 %v320, 26
      %v1929 = vpop.permute.xlu0 %1928
      %vm1930 = vcmask 211968
      %v1931 = vsel %vm1930, %v1915, %v1917
      %v1932 = vsel %vm1930, %v1917, %v1919
      %v1933 = vsel %vm1930, %v1919, %v1921
      %v1934 = vsel %vm1930, %v1921, %v1923
      %v1935 = vsel %vm1930, %v1923, %v1925
      %v1936 = vsel %vm1930, %v1925, %v1927
      %v1937 = vsel %vm1930, %v1927, %v1929
      %v1939 = vsel %vm345, %v1913, 0
      %v1942 = vsel %vm349, %v1931, 0
      %v1945 = vsel %vm349, %v1932, 0
      %v1948 = vsel %vm349, %v1933, 0
      %v1951 = vsel %vm349, %v1934, 0
      %v1954 = vsel %vm349, %v1935, 0
      %v1957 = vsel %vm349, %v1936, 0
      %v1960 = vsel %vm349, %v1937, 0
      %1962 = vmatpush.bf16.msra.mxu0 0
      %1963 = vmatpush.bf16.msra.mxu0 0
      %1964 = vmatpush.bf16.msra.mxu0 0
      %1965 = vmatpush.bf16.msra.mxu0 0
      %1966 = vmatpush.bf16.msra.mxu0 0
      %1967 = vmatpush.bf16.msra.mxu0 0
      %1968 = vmatpush.bf16.msra.mxu0 0
      %1969 = vmatpush.bf16.msra.mxu0 %v1942
      %1970 = vmatmul.bf16.gmra.mxu0 %v1939
      %v1971 = vpop.f32.mrf.mxu0
      %v1972 = vadd.f32 0.0, %v1971
      %v1973 = vpop.f32.mrf.mxu0
      %1974 = vdwg.mxu0
      %1975 = vmatpush.bf16.msra.mxu0 0
      %1976 = vmatpush.bf16.msra.mxu0 0
      %1977 = vmatpush.bf16.msra.mxu0 0
      %1978 = vmatpush.bf16.msra.mxu0 0
      %1979 = vmatpush.bf16.msra.mxu0 0
      %1980 = vmatpush.bf16.msra.mxu0 0
      %1981 = vmatpush.bf16.msra.mxu0 0
      %1982 = vmatpush.bf16.msra.mxu0 %v1945
      %1983 = vmatmul.bf16.gmra.mxu0 %v1939
      %v1984 = vpop.f32.mrf.mxu0
      %v1985 = vadd.f32 0.0, %v1984
      %v1986 = vpop.f32.mrf.mxu0
      %1987 = vdwg.mxu0
      %1988 = vmatpush.bf16.msra.mxu0 0
      %1989 = vmatpush.bf16.msra.mxu0 0
      %1990 = vmatpush.bf16.msra.mxu0 0
      %1991 = vmatpush.bf16.msra.mxu0 0
      %1992 = vmatpush.bf16.msra.mxu0 0
      %1993 = vmatpush.bf16.msra.mxu0 0
      %1994 = vmatpush.bf16.msra.mxu0 0
      %1995 = vmatpush.bf16.msra.mxu0 %v1948
      %1996 = vmatmul.bf16.gmra.mxu0 %v1939
      %v1997 = vpop.f32.mrf.mxu0
      %v1998 = vadd.f32 0.0, %v1997
      %v1999 = vpop.f32.mrf.mxu0
      %2000 = vdwg.mxu0
      %2001 = vmatpush.bf16.msra.mxu0 0
      %2002 = vmatpush.bf16.msra.mxu0 0
      %2003 = vmatpush.bf16.msra.mxu0 0
      %2004 = vmatpush.bf16.msra.mxu0 0
      %2005 = vmatpush.bf16.msra.mxu0 0
      %2006 = vmatpush.bf16.msra.mxu0 0
      %2007 = vmatpush.bf16.msra.mxu0 0
      %2008 = vmatpush.bf16.msra.mxu0 %v1951
      %2009 = vmatmul.bf16.gmra.mxu0 %v1939
      %v2010 = vpop.f32.mrf.mxu0
      %v2011 = vadd.f32 0.0, %v2010
      %v2012 = vpop.f32.mrf.mxu0
      %2013 = vdwg.mxu0
      %2014 = vmatpush.bf16.msra.mxu0 0
      %2015 = vmatpush.bf16.msra.mxu0 0
      %2016 = vmatpush.bf16.msra.mxu0 0
      %2017 = vmatpush.bf16.msra.mxu0 0
      %2018 = vmatpush.bf16.msra.mxu0 0
      %2019 = vmatpush.bf16.msra.mxu0 0
      %2020 = vmatpush.bf16.msra.mxu0 0
      %2021 = vmatpush.bf16.msra.mxu0 %v1954
      %2022 = vmatmul.bf16.gmra.mxu0 %v1939
      %v2023 = vpop.f32.mrf.mxu0
      %v2024 = vadd.f32 0.0, %v2023
      %v2025 = vpop.f32.mrf.mxu0
      %2026 = vdwg.mxu0
      %2027 = vmatpush.bf16.msra.mxu0 0
      %2028 = vmatpush.bf16.msra.mxu0 0
      %2029 = vmatpush.bf16.msra.mxu0 0
      %2030 = vmatpush.bf16.msra.mxu0 0
      %2031 = vmatpush.bf16.msra.mxu0 0
      %2032 = vmatpush.bf16.msra.mxu0 0
      %2033 = vmatpush.bf16.msra.mxu0 0
      %2034 = vmatpush.bf16.msra.mxu0 %v1957
      %2035 = vmatmul.bf16.gmra.mxu0 %v1939
      %v2036 = vpop.f32.mrf.mxu0
      %v2037 = vadd.f32 0.0, %v2036
      %v2038 = vpop.f32.mrf.mxu0
      %2039 = vdwg.mxu0
      %2040 = vmatpush.bf16.msra.mxu0 0
      %2041 = vmatpush.bf16.msra.mxu0 0
      %2042 = vmatpush.bf16.msra.mxu0 0
      %2043 = vmatpush.bf16.msra.mxu0 0
      %2044 = vmatpush.bf16.msra.mxu0 0
      %2045 = vmatpush.bf16.msra.mxu0 0
      %2046 = vmatpush.bf16.msra.mxu0 0
      %2047 = vmatpush.bf16.msra.mxu0 %v1960
      %2048 = vmatmul.bf16.gmra.mxu0 %v1939
      %v2049 = vpop.f32.mrf.mxu0
      %v2050 = vadd.f32 0.0, %v2049
      %v2051 = vpop.f32.mrf.mxu0
      %2052 = vdwg.mxu0
      %v2053 = vadd.f32 %v1905, %v1972
      %v2054 = vadd.f32 %v1906, %v1985
      %v2055 = vadd.f32 %v1907, %v1998
      %v2056 = vadd.f32 %v1908, %v2011
      %v2057 = vadd.f32 %v1909, %v2024
      %v2058 = vadd.f32 %v1910, %v2037
      %v2059 = vadd.f32 %v1911, %v2050
      %s2060 = scalar_lea.vmem %s1, 24
      %v2061 = vld [vmem:[%s2060] sm:$0x3]
      %2062 = vrot.lane.b32.xlu0 %v313, 18
      %v2063 = vpop.permute.xlu0 %2062
      %2064 = vrot.lane.b32.xlu0 %v314, 18
      %v2065 = vpop.permute.xlu0 %2064
      %2066 = vrot.lane.b32.xlu0 %v315, 18
      %v2067 = vpop.permute.xlu0 %2066
      %2068 = vrot.lane.b32.xlu0 %v316, 18
      %v2069 = vpop.permute.xlu0 %2068
      %2070 = vrot.lane.b32.xlu0 %v317, 18
      %v2071 = vpop.permute.xlu0 %2070
      %2072 = vrot.lane.b32.xlu0 %v318, 18
      %v2073 = vpop.permute.xlu0 %2072
      %2074 = vrot.lane.b32.xlu0 %v319, 18
      %v2075 = vpop.permute.xlu0 %2074
      %2076 = vrot.lane.b32.xlu0 %v320, 18
      %v2077 = vpop.permute.xlu0 %2076
      %vm2078 = vcmask 146432
      %v2079 = vsel %vm2078, %v2063, %v2065
      %v2080 = vsel %vm2078, %v2065, %v2067
      %v2081 = vsel %vm2078, %v2067, %v2069
      %v2082 = vsel %vm2078, %v2069, %v2071
      %v2083 = vsel %vm2078, %v2071, %v2073
      %v2084 = vsel %vm2078, %v2073, %v2075
      %v2085 = vsel %vm2078, %v2075, %v2077
      %v2087 = vsel %vm345, %v2061, 0
      %v2090 = vsel %vm349, %v2079, 0
      %v2093 = vsel %vm349, %v2080, 0
      %v2096 = vsel %vm349, %v2081, 0
      %v2099 = vsel %vm349, %v2082, 0
      %v2102 = vsel %vm349, %v2083, 0
      %v2105 = vsel %vm349, %v2084, 0
      %v2108 = vsel %vm349, %v2085, 0
      %2110 = vmatpush.bf16.msra.mxu0 0
      %2111 = vmatpush.bf16.msra.mxu0 0
      %2112 = vmatpush.bf16.msra.mxu0 0
      %2113 = vmatpush.bf16.msra.mxu0 0
      %2114 = vmatpush.bf16.msra.mxu0 0
      %2115 = vmatpush.bf16.msra.mxu0 0
      %2116 = vmatpush.bf16.msra.mxu0 0
      %2117 = vmatpush.bf16.msra.mxu0 %v2090
      %2118 = vmatmul.bf16.gmra.mxu0 %v2087
      %v2119 = vpop.f32.mrf.mxu0
      %v2120 = vadd.f32 0.0, %v2119
      %v2121 = vpop.f32.mrf.mxu0
      %2122 = vdwg.mxu0
      %2123 = vmatpush.bf16.msra.mxu0 0
      %2124 = vmatpush.bf16.msra.mxu0 0
      %2125 = vmatpush.bf16.msra.mxu0 0
      %2126 = vmatpush.bf16.msra.mxu0 0
      %2127 = vmatpush.bf16.msra.mxu0 0
      %2128 = vmatpush.bf16.msra.mxu0 0
      %2129 = vmatpush.bf16.msra.mxu0 0
      %2130 = vmatpush.bf16.msra.mxu0 %v2093
      %2131 = vmatmul.bf16.gmra.mxu0 %v2087
      %v2132 = vpop.f32.mrf.mxu0
      %v2133 = vadd.f32 0.0, %v2132
      %v2134 = vpop.f32.mrf.mxu0
      %2135 = vdwg.mxu0
      %2136 = vmatpush.bf16.msra.mxu0 0
      %2137 = vmatpush.bf16.msra.mxu0 0
      %2138 = vmatpush.bf16.msra.mxu0 0
      %2139 = vmatpush.bf16.msra.mxu0 0
      %2140 = vmatpush.bf16.msra.mxu0 0
      %2141 = vmatpush.bf16.msra.mxu0 0
      %2142 = vmatpush.bf16.msra.mxu0 0
      %2143 = vmatpush.bf16.msra.mxu0 %v2096
      %2144 = vmatmul.bf16.gmra.mxu0 %v2087
      %v2145 = vpop.f32.mrf.mxu0
      %v2146 = vadd.f32 0.0, %v2145
      %v2147 = vpop.f32.mrf.mxu0
      %2148 = vdwg.mxu0
      %2149 = vmatpush.bf16.msra.mxu0 0
      %2150 = vmatpush.bf16.msra.mxu0 0
      %2151 = vmatpush.bf16.msra.mxu0 0
      %2152 = vmatpush.bf16.msra.mxu0 0
      %2153 = vmatpush.bf16.msra.mxu0 0
      %2154 = vmatpush.bf16.msra.mxu0 0
      %2155 = vmatpush.bf16.msra.mxu0 0
      %2156 = vmatpush.bf16.msra.mxu0 %v2099
      %2157 = vmatmul.bf16.gmra.mxu0 %v2087
      %v2158 = vpop.f32.mrf.mxu0
      %v2159 = vadd.f32 0.0, %v2158
      %v2160 = vpop.f32.mrf.mxu0
      %2161 = vdwg.mxu0
      %2162 = vmatpush.bf16.msra.mxu0 0
      %2163 = vmatpush.bf16.msra.mxu0 0
      %2164 = vmatpush.bf16.msra.mxu0 0
      %2165 = vmatpush.bf16.msra.mxu0 0
      %2166 = vmatpush.bf16.msra.mxu0 0
      %2167 = vmatpush.bf16.msra.mxu0 0
      %2168 = vmatpush.bf16.msra.mxu0 0
      %2169 = vmatpush.bf16.msra.mxu0 %v2102
      %2170 = vmatmul.bf16.gmra.mxu0 %v2087
      %v2171 = vpop.f32.mrf.mxu0
      %v2172 = vadd.f32 0.0, %v2171
      %v2173 = vpop.f32.mrf.mxu0
      %2174 = vdwg.mxu0
      %2175 = vmatpush.bf16.msra.mxu0 0
      %2176 = vmatpush.bf16.msra.mxu0 0
      %2177 = vmatpush.bf16.msra.mxu0 0
      %2178 = vmatpush.bf16.msra.mxu0 0
      %2179 = vmatpush.bf16.msra.mxu0 0
      %2180 = vmatpush.bf16.msra.mxu0 0
      %2181 = vmatpush.bf16.msra.mxu0 0
      %2182 = vmatpush.bf16.msra.mxu0 %v2105
      %2183 = vmatmul.bf16.gmra.mxu0 %v2087
      %v2184 = vpop.f32.mrf.mxu0
      %v2185 = vadd.f32 0.0, %v2184
      %v2186 = vpop.f32.mrf.mxu0
      %2187 = vdwg.mxu0
      %2188 = vmatpush.bf16.msra.mxu0 0
      %2189 = vmatpush.bf16.msra.mxu0 0
      %2190 = vmatpush.bf16.msra.mxu0 0
      %2191 = vmatpush.bf16.msra.mxu0 0
      %2192 = vmatpush.bf16.msra.mxu0 0
      %2193 = vmatpush.bf16.msra.mxu0 0
      %2194 = vmatpush.bf16.msra.mxu0 0
      %2195 = vmatpush.bf16.msra.mxu0 %v2108
      %2196 = vmatmul.bf16.gmra.mxu0 %v2087
      %v2197 = vpop.f32.mrf.mxu0
      %v2198 = vadd.f32 0.0, %v2197
      %v2199 = vpop.f32.mrf.mxu0
      %2200 = vdwg.mxu0
      %v2201 = vadd.f32 %v2053, %v2120
      %v2202 = vadd.f32 %v2054, %v2133
      %v2203 = vadd.f32 %v2055, %v2146
      %v2204 = vadd.f32 %v2056, %v2159
      %v2205 = vadd.f32 %v2057, %v2172
      %v2206 = vadd.f32 %v2058, %v2185
      %v2207 = vadd.f32 %v2059, %v2198
      %s2208 = scalar_lea.vmem %s1, 26
      %v2209 = vld [vmem:[%s2208] sm:$0x3]
      %2210 = vrot.lane.b32.xlu0 %v313, 17
      %v2211 = vpop.permute.xlu0 %2210
      %2212 = vrot.lane.b32.xlu0 %v314, 17
      %v2213 = vpop.permute.xlu0 %2212
      %2214 = vrot.lane.b32.xlu0 %v315, 17
      %v2215 = vpop.permute.xlu0 %2214
      %2216 = vrot.lane.b32.xlu0 %v316, 17
      %v2217 = vpop.permute.xlu0 %2216
      %2218 = vrot.lane.b32.xlu0 %v317, 17
      %v2219 = vpop.permute.xlu0 %2218
      %2220 = vrot.lane.b32.xlu0 %v318, 17
      %v2221 = vpop.permute.xlu0 %2220
      %2222 = vrot.lane.b32.xlu0 %v319, 17
      %v2223 = vpop.permute.xlu0 %2222
      %2224 = vrot.lane.b32.xlu0 %v320, 17
      %v2225 = vpop.permute.xlu0 %2224
      %vm2226 = vcmask 138240
      %v2227 = vsel %vm2226, %v2211, %v2213
      %v2228 = vsel %vm2226, %v2213, %v2215
      %v2229 = vsel %vm2226, %v2215, %v2217
      %v2230 = vsel %vm2226, %v2217, %v2219
      %v2231 = vsel %vm2226, %v2219, %v2221
      %v2232 = vsel %vm2226, %v2221, %v2223
      %v2233 = vsel %vm2226, %v2223, %v2225
      %v2235 = vsel %vm345, %v2209, 0
      %v2238 = vsel %vm349, %v2227, 0
      %v2241 = vsel %vm349, %v2228, 0
      %v2244 = vsel %vm349, %v2229, 0
      %v2247 = vsel %vm349, %v2230, 0
      %v2250 = vsel %vm349, %v2231, 0
      %v2253 = vsel %vm349, %v2232, 0
      %v2256 = vsel %vm349, %v2233, 0
      %2258 = vmatpush.bf16.msra.mxu0 0
      %2259 = vmatpush.bf16.msra.mxu0 0
      %2260 = vmatpush.bf16.msra.mxu0 0
      %2261 = vmatpush.bf16.msra.mxu0 0
      %2262 = vmatpush.bf16.msra.mxu0 0
      %2263 = vmatpush.bf16.msra.mxu0 0
      %2264 = vmatpush.bf16.msra.mxu0 0
      %2265 = vmatpush.bf16.msra.mxu0 %v2238
      %2266 = vmatmul.bf16.gmra.mxu0 %v2235
      %v2267 = vpop.f32.mrf.mxu0
      %v2268 = vadd.f32 0.0, %v2267
      %v2269 = vpop.f32.mrf.mxu0
      %2270 = vdwg.mxu0
      %2271 = vmatpush.bf16.msra.mxu0 0
      %2272 = vmatpush.bf16.msra.mxu0 0
      %2273 = vmatpush.bf16.msra.mxu0 0
      %2274 = vmatpush.bf16.msra.mxu0 0
      %2275 = vmatpush.bf16.msra.mxu0 0
      %2276 = vmatpush.bf16.msra.mxu0 0
      %2277 = vmatpush.bf16.msra.mxu0 0
      %2278 = vmatpush.bf16.msra.mxu0 %v2241
      %2279 = vmatmul.bf16.gmra.mxu0 %v2235
      %v2280 = vpop.f32.mrf.mxu0
      %v2281 = vadd.f32 0.0, %v2280
      %v2282 = vpop.f32.mrf.mxu0
      %2283 = vdwg.mxu0
      %2284 = vmatpush.bf16.msra.mxu0 0
      %2285 = vmatpush.bf16.msra.mxu0 0
      %2286 = vmatpush.bf16.msra.mxu0 0
      %2287 = vmatpush.bf16.msra.mxu0 0
      %2288 = vmatpush.bf16.msra.mxu0 0
      %2289 = vmatpush.bf16.msra.mxu0 0
      %2290 = vmatpush.bf16.msra.mxu0 0
      %2291 = vmatpush.bf16.msra.mxu0 %v2244
      %2292 = vmatmul.bf16.gmra.mxu0 %v2235
      %v2293 = vpop.f32.mrf.mxu0
      %v2294 = vadd.f32 0.0, %v2293
      %v2295 = vpop.f32.mrf.mxu0
      %2296 = vdwg.mxu0
      %2297 = vmatpush.bf16.msra.mxu0 0
      %2298 = vmatpush.bf16.msra.mxu0 0
      %2299 = vmatpush.bf16.msra.mxu0 0
      %2300 = vmatpush.bf16.msra.mxu0 0
      %2301 = vmatpush.bf16.msra.mxu0 0
      %2302 = vmatpush.bf16.msra.mxu0 0
      %2303 = vmatpush.bf16.msra.mxu0 0
      %2304 = vmatpush.bf16.msra.mxu0 %v2247
      %2305 = vmatmul.bf16.gmra.mxu0 %v2235
      %v2306 = vpop.f32.mrf.mxu0
      %v2307 = vadd.f32 0.0, %v2306
      %v2308 = vpop.f32.mrf.mxu0
      %2309 = vdwg.mxu0
      %2310 = vmatpush.bf16.msra.mxu0 0
      %2311 = vmatpush.bf16.msra.mxu0 0
      %2312 = vmatpush.bf16.msra.mxu0 0
      %2313 = vmatpush.bf16.msra.mxu0 0
      %2314 = vmatpush.bf16.msra.mxu0 0
      %2315 = vmatpush.bf16.msra.mxu0 0
      %2316 = vmatpush.bf16.msra.mxu0 0
      %2317 = vmatpush.bf16.msra.mxu0 %v2250
      %2318 = vmatmul.bf16.gmra.mxu0 %v2235
      %v2319 = vpop.f32.mrf.mxu0
      %v2320 = vadd.f32 0.0, %v2319
      %v2321 = vpop.f32.mrf.mxu0
      %2322 = vdwg.mxu0
      %2323 = vmatpush.bf16.msra.mxu0 0
      %2324 = vmatpush.bf16.msra.mxu0 0
      %2325 = vmatpush.bf16.msra.mxu0 0
      %2326 = vmatpush.bf16.msra.mxu0 0
      %2327 = vmatpush.bf16.msra.mxu0 0
      %2328 = vmatpush.bf16.msra.mxu0 0
      %2329 = vmatpush.bf16.msra.mxu0 0
      %2330 = vmatpush.bf16.msra.mxu0 %v2253
      %2331 = vmatmul.bf16.gmra.mxu0 %v2235
      %v2332 = vpop.f32.mrf.mxu0
      %v2333 = vadd.f32 0.0, %v2332
      %v2334 = vpop.f32.mrf.mxu0
      %2335 = vdwg.mxu0
      %2336 = vmatpush.bf16.msra.mxu0 0
      %2337 = vmatpush.bf16.msra.mxu0 0
      %2338 = vmatpush.bf16.msra.mxu0 0
      %2339 = vmatpush.bf16.msra.mxu0 0
      %2340 = vmatpush.bf16.msra.mxu0 0
      %2341 = vmatpush.bf16.msra.mxu0 0
      %2342 = vmatpush.bf16.msra.mxu0 0
      %2343 = vmatpush.bf16.msra.mxu0 %v2256
      %2344 = vmatmul.bf16.gmra.mxu0 %v2235
      %v2345 = vpop.f32.mrf.mxu0
      %v2346 = vadd.f32 0.0, %v2345
      %v2347 = vpop.f32.mrf.mxu0
      %2348 = vdwg.mxu0
      %v2349 = vadd.f32 %v2201, %v2268
      %v2350 = vadd.f32 %v2202, %v2281
      %v2351 = vadd.f32 %v2203, %v2294
      %v2352 = vadd.f32 %v2204, %v2307
      %v2353 = vadd.f32 %v2205, %v2320
      %v2354 = vadd.f32 %v2206, %v2333
      %v2355 = vadd.f32 %v2207, %v2346
      %s2356 = scalar_lea.vmem %s1, 28
      %v2357 = vld [vmem:[%s2356] sm:$0x3]
      %2358 = vrot.lane.b32.xlu0 %v313, 16
      %v2359 = vpop.permute.xlu0 %2358
      %2360 = vrot.lane.b32.xlu0 %v314, 16
      %v2361 = vpop.permute.xlu0 %2360
      %2362 = vrot.lane.b32.xlu0 %v315, 16
      %v2363 = vpop.permute.xlu0 %2362
      %2364 = vrot.lane.b32.xlu0 %v316, 16
      %v2365 = vpop.permute.xlu0 %2364
      %2366 = vrot.lane.b32.xlu0 %v317, 16
      %v2367 = vpop.permute.xlu0 %2366
      %2368 = vrot.lane.b32.xlu0 %v318, 16
      %v2369 = vpop.permute.xlu0 %2368
      %2370 = vrot.lane.b32.xlu0 %v319, 16
      %v2371 = vpop.permute.xlu0 %2370
      %2372 = vrot.lane.b32.xlu0 %v320, 16
      %v2373 = vpop.permute.xlu0 %2372
      %vm2374 = vcmask 130048
      %v2375 = vsel %vm2374, %v2359, %v2361
      %v2376 = vsel %vm2374, %v2361, %v2363
      %v2377 = vsel %vm2374, %v2363, %v2365
      %v2378 = vsel %vm2374, %v2365, %v2367
      %v2379 = vsel %vm2374, %v2367, %v2369
      %v2380 = vsel %vm2374, %v2369, %v2371
      %v2381 = vsel %vm2374, %v2371, %v2373
      %v2383 = vsel %vm345, %v2357, 0
      %v2386 = vsel %vm349, %v2375, 0
      %v2389 = vsel %vm349, %v2376, 0
      %v2392 = vsel %vm349, %v2377, 0
      %v2395 = vsel %vm349, %v2378, 0
      %v2398 = vsel %vm349, %v2379, 0
      %v2401 = vsel %vm349, %v2380, 0
      %v2404 = vsel %vm349, %v2381, 0
      %2406 = vmatpush.bf16.msra.mxu0 0
      %2407 = vmatpush.bf16.msra.mxu0 0
      %2408 = vmatpush.bf16.msra.mxu0 0
      %2409 = vmatpush.bf16.msra.mxu0 0
      %2410 = vmatpush.bf16.msra.mxu0 0
      %2411 = vmatpush.bf16.msra.mxu0 0
      %2412 = vmatpush.bf16.msra.mxu0 0
      %2413 = vmatpush.bf16.msra.mxu0 %v2386
      %2414 = vmatmul.bf16.gmra.mxu0 %v2383
      %v2415 = vpop.f32.mrf.mxu0
      %v2416 = vadd.f32 0.0, %v2415
      %v2417 = vpop.f32.mrf.mxu0
      %2418 = vdwg.mxu0
      %2419 = vmatpush.bf16.msra.mxu0 0
      %2420 = vmatpush.bf16.msra.mxu0 0
      %2421 = vmatpush.bf16.msra.mxu0 0
      %2422 = vmatpush.bf16.msra.mxu0 0
      %2423 = vmatpush.bf16.msra.mxu0 0
      %2424 = vmatpush.bf16.msra.mxu0 0
      %2425 = vmatpush.bf16.msra.mxu0 0
      %2426 = vmatpush.bf16.msra.mxu0 %v2389
      %2427 = vmatmul.bf16.gmra.mxu0 %v2383
      %v2428 = vpop.f32.mrf.mxu0
      %v2429 = vadd.f32 0.0, %v2428
      %v2430 = vpop.f32.mrf.mxu0
      %2431 = vdwg.mxu0
      %2432 = vmatpush.bf16.msra.mxu0 0
      %2433 = vmatpush.bf16.msra.mxu0 0
      %2434 = vmatpush.bf16.msra.mxu0 0
      %2435 = vmatpush.bf16.msra.mxu0 0
      %2436 = vmatpush.bf16.msra.mxu0 0
      %2437 = vmatpush.bf16.msra.mxu0 0
      %2438 = vmatpush.bf16.msra.mxu0 0
      %2439 = vmatpush.bf16.msra.mxu0 %v2392
      %2440 = vmatmul.bf16.gmra.mxu0 %v2383
      %v2441 = vpop.f32.mrf.mxu0
      %v2442 = vadd.f32 0.0, %v2441
      %v2443 = vpop.f32.mrf.mxu0
      %2444 = vdwg.mxu0
      %2445 = vmatpush.bf16.msra.mxu0 0
      %2446 = vmatpush.bf16.msra.mxu0 0
      %2447 = vmatpush.bf16.msra.mxu0 0
      %2448 = vmatpush.bf16.msra.mxu0 0
      %2449 = vmatpush.bf16.msra.mxu0 0
      %2450 = vmatpush.bf16.msra.mxu0 0
      %2451 = vmatpush.bf16.msra.mxu0 0
      %2452 = vmatpush.bf16.msra.mxu0 %v2395
      %2453 = vmatmul.bf16.gmra.mxu0 %v2383
      %v2454 = vpop.f32.mrf.mxu0
      %v2455 = vadd.f32 0.0, %v2454
      %v2456 = vpop.f32.mrf.mxu0
      %2457 = vdwg.mxu0
      %2458 = vmatpush.bf16.msra.mxu0 0
      %2459 = vmatpush.bf16.msra.mxu0 0
      %2460 = vmatpush.bf16.msra.mxu0 0
      %2461 = vmatpush.bf16.msra.mxu0 0
      %2462 = vmatpush.bf16.msra.mxu0 0
      %2463 = vmatpush.bf16.msra.mxu0 0
      %2464 = vmatpush.bf16.msra.mxu0 0
      %2465 = vmatpush.bf16.msra.mxu0 %v2398
      %2466 = vmatmul.bf16.gmra.mxu0 %v2383
      %v2467 = vpop.f32.mrf.mxu0
      %v2468 = vadd.f32 0.0, %v2467
      %v2469 = vpop.f32.mrf.mxu0
      %2470 = vdwg.mxu0
      %2471 = vmatpush.bf16.msra.mxu0 0
      %2472 = vmatpush.bf16.msra.mxu0 0
      %2473 = vmatpush.bf16.msra.mxu0 0
      %2474 = vmatpush.bf16.msra.mxu0 0
      %2475 = vmatpush.bf16.msra.mxu0 0
      %2476 = vmatpush.bf16.msra.mxu0 0
      %2477 = vmatpush.bf16.msra.mxu0 0
      %2478 = vmatpush.bf16.msra.mxu0 %v2401
      %2479 = vmatmul.bf16.gmra.mxu0 %v2383
      %v2480 = vpop.f32.mrf.mxu0
      %v2481 = vadd.f32 0.0, %v2480
      %v2482 = vpop.f32.mrf.mxu0
      %2483 = vdwg.mxu0
      %2484 = vmatpush.bf16.msra.mxu0 0
      %2485 = vmatpush.bf16.msra.mxu0 0
      %2486 = vmatpush.bf16.msra.mxu0 0
      %2487 = vmatpush.bf16.msra.mxu0 0
      %2488 = vmatpush.bf16.msra.mxu0 0
      %2489 = vmatpush.bf16.msra.mxu0 0
      %2490 = vmatpush.bf16.msra.mxu0 0
      %2491 = vmatpush.bf16.msra.mxu0 %v2404
      %2492 = vmatmul.bf16.gmra.mxu0 %v2383
      %v2493 = vpop.f32.mrf.mxu0
      %v2494 = vadd.f32 0.0, %v2493
      %v2495 = vpop.f32.mrf.mxu0
      %2496 = vdwg.mxu0
      %v2497 = vadd.f32 %v2349, %v2416
      %v2498 = vadd.f32 %v2350, %v2429
      %v2499 = vadd.f32 %v2351, %v2442
      %v2500 = vadd.f32 %v2352, %v2455
      %v2501 = vadd.f32 %v2353, %v2468
      %v2502 = vadd.f32 %v2354, %v2481
      %v2503 = vadd.f32 %v2355, %v2494
      %s2504 = scalar_lea.vmem %s1, 30
      %v2505 = vld [vmem:[%s2504] sm:$0x3]
      %2506 = vrot.lane.b32.xlu0 %v313, 8
      %v2507 = vpop.permute.xlu0 %2506
      %2508 = vrot.lane.b32.xlu0 %v314, 8
      %v2509 = vpop.permute.xlu0 %2508
      %2510 = vrot.lane.b32.xlu0 %v315, 8
      %v2511 = vpop.permute.xlu0 %2510
      %2512 = vrot.lane.b32.xlu0 %v316, 8
      %v2513 = vpop.permute.xlu0 %2512
      %2514 = vrot.lane.b32.xlu0 %v317, 8
      %v2515 = vpop.permute.xlu0 %2514
      %2516 = vrot.lane.b32.xlu0 %v318, 8
      %v2517 = vpop.permute.xlu0 %2516
      %2518 = vrot.lane.b32.xlu0 %v319, 8
      %v2519 = vpop.permute.xlu0 %2518
      %2520 = vrot.lane.b32.xlu0 %v320, 8
      %v2521 = vpop.permute.xlu0 %2520
      %vm2522 = vcmask 64512
      %v2523 = vsel %vm2522, %v2507, %v2509
      %v2524 = vsel %vm2522, %v2509, %v2511
      %v2525 = vsel %vm2522, %v2511, %v2513
      %v2526 = vsel %vm2522, %v2513, %v2515
      %v2527 = vsel %vm2522, %v2515, %v2517
      %v2528 = vsel %vm2522, %v2517, %v2519
      %v2529 = vsel %vm2522, %v2519, %v2521
      %v2531 = vsel %vm345, %v2505, 0
      %v2534 = vsel %vm349, %v2523, 0
      %v2537 = vsel %vm349, %v2524, 0
      %v2540 = vsel %vm349, %v2525, 0
      %v2543 = vsel %vm349, %v2526, 0
      %v2546 = vsel %vm349, %v2527, 0
      %v2549 = vsel %vm349, %v2528, 0
      %v2552 = vsel %vm349, %v2529, 0
      %2554 = vmatpush.bf16.msra.mxu0 0
      %2555 = vmatpush.bf16.msra.mxu0 0
      %2556 = vmatpush.bf16.msra.mxu0 0
      %2557 = vmatpush.bf16.msra.mxu0 0
      %2558 = vmatpush.bf16.msra.mxu0 0
      %2559 = vmatpush.bf16.msra.mxu0 0
      %2560 = vmatpush.bf16.msra.mxu0 0
      %2561 = vmatpush.bf16.msra.mxu0 %v2534
      %2562 = vmatmul.bf16.gmra.mxu0 %v2531
      %v2563 = vpop.f32.mrf.mxu0
      %v2564 = vadd.f32 0.0, %v2563
      %v2565 = vpop.f32.mrf.mxu0
      %2566 = vdwg.mxu0
      %2567 = vmatpush.bf16.msra.mxu0 0
      %2568 = vmatpush.bf16.msra.mxu0 0
      %2569 = vmatpush.bf16.msra.mxu0 0
      %2570 = vmatpush.bf16.msra.mxu0 0
      %2571 = vmatpush.bf16.msra.mxu0 0
      %2572 = vmatpush.bf16.msra.mxu0 0
      %2573 = vmatpush.bf16.msra.mxu0 0
      %2574 = vmatpush.bf16.msra.mxu0 %v2537
      %2575 = vmatmul.bf16.gmra.mxu0 %v2531
      %v2576 = vpop.f32.mrf.mxu0
      %v2577 = vadd.f32 0.0, %v2576
      %v2578 = vpop.f32.mrf.mxu0
      %2579 = vdwg.mxu0
      %2580 = vmatpush.bf16.msra.mxu0 0
      %2581 = vmatpush.bf16.msra.mxu0 0
      %2582 = vmatpush.bf16.msra.mxu0 0
      %2583 = vmatpush.bf16.msra.mxu0 0
      %2584 = vmatpush.bf16.msra.mxu0 0
      %2585 = vmatpush.bf16.msra.mxu0 0
      %2586 = vmatpush.bf16.msra.mxu0 0
      %2587 = vmatpush.bf16.msra.mxu0 %v2540
      %2588 = vmatmul.bf16.gmra.mxu0 %v2531
      %v2589 = vpop.f32.mrf.mxu0
      %v2590 = vadd.f32 0.0, %v2589
      %v2591 = vpop.f32.mrf.mxu0
      %2592 = vdwg.mxu0
      %2593 = vmatpush.bf16.msra.mxu0 0
      %2594 = vmatpush.bf16.msra.mxu0 0
      %2595 = vmatpush.bf16.msra.mxu0 0
      %2596 = vmatpush.bf16.msra.mxu0 0
      %2597 = vmatpush.bf16.msra.mxu0 0
      %2598 = vmatpush.bf16.msra.mxu0 0
      %2599 = vmatpush.bf16.msra.mxu0 0
      %2600 = vmatpush.bf16.msra.mxu0 %v2543
      %2601 = vmatmul.bf16.gmra.mxu0 %v2531
      %v2602 = vpop.f32.mrf.mxu0
      %v2603 = vadd.f32 0.0, %v2602
      %v2604 = vpop.f32.mrf.mxu0
      %2605 = vdwg.mxu0
      %2606 = vmatpush.bf16.msra.mxu0 0
      %2607 = vmatpush.bf16.msra.mxu0 0
      %2608 = vmatpush.bf16.msra.mxu0 0
      %2609 = vmatpush.bf16.msra.mxu0 0
      %2610 = vmatpush.bf16.msra.mxu0 0
      %2611 = vmatpush.bf16.msra.mxu0 0
      %2612 = vmatpush.bf16.msra.mxu0 0
      %2613 = vmatpush.bf16.msra.mxu0 %v2546
      %2614 = vmatmul.bf16.gmra.mxu0 %v2531
      %v2615 = vpop.f32.mrf.mxu0
      %v2616 = vadd.f32 0.0, %v2615
      %v2617 = vpop.f32.mrf.mxu0
      %2618 = vdwg.mxu0
      %2619 = vmatpush.bf16.msra.mxu0 0
      %2620 = vmatpush.bf16.msra.mxu0 0
      %2621 = vmatpush.bf16.msra.mxu0 0
      %2622 = vmatpush.bf16.msra.mxu0 0
      %2623 = vmatpush.bf16.msra.mxu0 0
      %2624 = vmatpush.bf16.msra.mxu0 0
      %2625 = vmatpush.bf16.msra.mxu0 0
      %2626 = vmatpush.bf16.msra.mxu0 %v2549
      %2627 = vmatmul.bf16.gmra.mxu0 %v2531
      %v2628 = vpop.f32.mrf.mxu0
      %v2629 = vadd.f32 0.0, %v2628
      %v2630 = vpop.f32.mrf.mxu0
      %2631 = vdwg.mxu0
      %2632 = vmatpush.bf16.msra.mxu0 0
      %2633 = vmatpush.bf16.msra.mxu0 0
      %2634 = vmatpush.bf16.msra.mxu0 0
      %2635 = vmatpush.bf16.msra.mxu0 0
      %2636 = vmatpush.bf16.msra.mxu0 0
      %2637 = vmatpush.bf16.msra.mxu0 0
      %2638 = vmatpush.bf16.msra.mxu0 0
      %2639 = vmatpush.bf16.msra.mxu0 %v2552
      %2640 = vmatmul.bf16.gmra.mxu0 %v2531
      %v2641 = vpop.f32.mrf.mxu0
      %v2642 = vadd.f32 0.0, %v2641
      %v2643 = vpop.f32.mrf.mxu0
      %2644 = vdwg.mxu0
      %v2645 = vadd.f32 %v2497, %v2564
      %v2646 = vadd.f32 %v2498, %v2577
      %v2647 = vadd.f32 %v2499, %v2590
      %v2648 = vadd.f32 %v2500, %v2603
      %v2649 = vadd.f32 %v2501, %v2616
      %v2650 = vadd.f32 %v2502, %v2629
      %v2651 = vadd.f32 %v2503, %v2642
      %s2652 = scalar_lea.vmem %s1, 32
      %v2653 = vld [vmem:[%s2652] sm:$0x3]
      %2654 = vrot.lane.b32.xlu0 %v313, 7
      %v2655 = vpop.permute.xlu0 %2654
      %2656 = vrot.lane.b32.xlu0 %v314, 7
      %v2657 = vpop.permute.xlu0 %2656
      %2658 = vrot.lane.b32.xlu0 %v315, 7
      %v2659 = vpop.permute.xlu0 %2658
      %2660 = vrot.lane.b32.xlu0 %v316, 7
      %v2661 = vpop.permute.xlu0 %2660
      %2662 = vrot.lane.b32.xlu0 %v317, 7
      %v2663 = vpop.permute.xlu0 %2662
      %2664 = vrot.lane.b32.xlu0 %v318, 7
      %v2665 = vpop.permute.xlu0 %2664
      %2666 = vrot.lane.b32.xlu0 %v319, 7
      %v2667 = vpop.permute.xlu0 %2666
      %2668 = vrot.lane.b32.xlu0 %v320, 7
      %v2669 = vpop.permute.xlu0 %2668
      %vm2670 = vcmask 56320
      %v2671 = vsel %vm2670, %v2655, %v2657
      %v2672 = vsel %vm2670, %v2657, %v2659
      %v2673 = vsel %vm2670, %v2659, %v2661
      %v2674 = vsel %vm2670, %v2661, %v2663
      %v2675 = vsel %vm2670, %v2663, %v2665
      %v2676 = vsel %vm2670, %v2665, %v2667
      %v2677 = vsel %vm2670, %v2667, %v2669
      %v2679 = vsel %vm345, %v2653, 0
      %v2682 = vsel %vm349, %v2671, 0
      %v2685 = vsel %vm349, %v2672, 0
      %v2688 = vsel %vm349, %v2673, 0
      %v2691 = vsel %vm349, %v2674, 0
      %v2694 = vsel %vm349, %v2675, 0
      %v2697 = vsel %vm349, %v2676, 0
      %v2700 = vsel %vm349, %v2677, 0
      %2702 = vmatpush.bf16.msra.mxu0 0
      %2703 = vmatpush.bf16.msra.mxu0 0
      %2704 = vmatpush.bf16.msra.mxu0 0
      %2705 = vmatpush.bf16.msra.mxu0 0
      %2706 = vmatpush.bf16.msra.mxu0 0
      %2707 = vmatpush.bf16.msra.mxu0 0
      %2708 = vmatpush.bf16.msra.mxu0 0
      %2709 = vmatpush.bf16.msra.mxu0 %v2682
      %2710 = vmatmul.bf16.gmra.mxu0 %v2679
      %v2711 = vpop.f32.mrf.mxu0
      %v2712 = vadd.f32 0.0, %v2711
      %v2713 = vpop.f32.mrf.mxu0
      %2714 = vdwg.mxu0
      %2715 = vmatpush.bf16.msra.mxu0 0
      %2716 = vmatpush.bf16.msra.mxu0 0
      %2717 = vmatpush.bf16.msra.mxu0 0
      %2718 = vmatpush.bf16.msra.mxu0 0
      %2719 = vmatpush.bf16.msra.mxu0 0
      %2720 = vmatpush.bf16.msra.mxu0 0
      %2721 = vmatpush.bf16.msra.mxu0 0
      %2722 = vmatpush.bf16.msra.mxu0 %v2685
      %2723 = vmatmul.bf16.gmra.mxu0 %v2679
      %v2724 = vpop.f32.mrf.mxu0
      %v2725 = vadd.f32 0.0, %v2724
      %v2726 = vpop.f32.mrf.mxu0
      %2727 = vdwg.mxu0
      %2728 = vmatpush.bf16.msra.mxu0 0
      %2729 = vmatpush.bf16.msra.mxu0 0
      %2730 = vmatpush.bf16.msra.mxu0 0
      %2731 = vmatpush.bf16.msra.mxu0 0
      %2732 = vmatpush.bf16.msra.mxu0 0
      %2733 = vmatpush.bf16.msra.mxu0 0
      %2734 = vmatpush.bf16.msra.mxu0 0
      %2735 = vmatpush.bf16.msra.mxu0 %v2688
      %2736 = vmatmul.bf16.gmra.mxu0 %v2679
      %v2737 = vpop.f32.mrf.mxu0
      %v2738 = vadd.f32 0.0, %v2737
      %v2739 = vpop.f32.mrf.mxu0
      %2740 = vdwg.mxu0
      %2741 = vmatpush.bf16.msra.mxu0 0
      %2742 = vmatpush.bf16.msra.mxu0 0
      %2743 = vmatpush.bf16.msra.mxu0 0
      %2744 = vmatpush.bf16.msra.mxu0 0
      %2745 = vmatpush.bf16.msra.mxu0 0
      %2746 = vmatpush.bf16.msra.mxu0 0
      %2747 = vmatpush.bf16.msra.mxu0 0
      %2748 = vmatpush.bf16.msra.mxu0 %v2691
      %2749 = vmatmul.bf16.gmra.mxu0 %v2679
      %v2750 = vpop.f32.mrf.mxu0
      %v2751 = vadd.f32 0.0, %v2750
      %v2752 = vpop.f32.mrf.mxu0
      %2753 = vdwg.mxu0
      %2754 = vmatpush.bf16.msra.mxu0 0
      %2755 = vmatpush.bf16.msra.mxu0 0
      %2756 = vmatpush.bf16.msra.mxu0 0
      %2757 = vmatpush.bf16.msra.mxu0 0
      %2758 = vmatpush.bf16.msra.mxu0 0
      %2759 = vmatpush.bf16.msra.mxu0 0
      %2760 = vmatpush.bf16.msra.mxu0 0
      %2761 = vmatpush.bf16.msra.mxu0 %v2694
      %2762 = vmatmul.bf16.gmra.mxu0 %v2679
      %v2763 = vpop.f32.mrf.mxu0
      %v2764 = vadd.f32 0.0, %v2763
      %v2765 = vpop.f32.mrf.mxu0
      %2766 = vdwg.mxu0
      %2767 = vmatpush.bf16.msra.mxu0 0
      %2768 = vmatpush.bf16.msra.mxu0 0
      %2769 = vmatpush.bf16.msra.mxu0 0
      %2770 = vmatpush.bf16.msra.mxu0 0
      %2771 = vmatpush.bf16.msra.mxu0 0
      %2772 = vmatpush.bf16.msra.mxu0 0
      %2773 = vmatpush.bf16.msra.mxu0 0
      %2774 = vmatpush.bf16.msra.mxu0 %v2697
      %2775 = vmatmul.bf16.gmra.mxu0 %v2679
      %v2776 = vpop.f32.mrf.mxu0
      %v2777 = vadd.f32 0.0, %v2776
      %v2778 = vpop.f32.mrf.mxu0
      %2779 = vdwg.mxu0
      %2780 = vmatpush.bf16.msra.mxu0 0
      %2781 = vmatpush.bf16.msra.mxu0 0
      %2782 = vmatpush.bf16.msra.mxu0 0
      %2783 = vmatpush.bf16.msra.mxu0 0
      %2784 = vmatpush.bf16.msra.mxu0 0
      %2785 = vmatpush.bf16.msra.mxu0 0
      %2786 = vmatpush.bf16.msra.mxu0 0
      %2787 = vmatpush.bf16.msra.mxu0 %v2700
      %2788 = vmatmul.bf16.gmra.mxu0 %v2679
      %v2789 = vpop.f32.mrf.mxu0
      %v2790 = vadd.f32 0.0, %v2789
      %v2791 = vpop.f32.mrf.mxu0
      %2792 = vdwg.mxu0
      %v2793 = vadd.f32 %v2645, %v2712
      %v2794 = vadd.f32 %v2646, %v2725
      %v2795 = vadd.f32 %v2647, %v2738
      %v2796 = vadd.f32 %v2648, %v2751
      %v2797 = vadd.f32 %v2649, %v2764
      %v2798 = vadd.f32 %v2650, %v2777
      %v2799 = vadd.f32 %v2651, %v2790
      %s2800 = scalar_lea.vmem %s1, 34
      %v2801 = vld [vmem:[%s2800] sm:$0x3]
      %2802 = vrot.lane.b32.xlu0 %v313, 6
      %v2803 = vpop.permute.xlu0 %2802
      %2804 = vrot.lane.b32.xlu0 %v314, 6
      %v2805 = vpop.permute.xlu0 %2804
      %2806 = vrot.lane.b32.xlu0 %v315, 6
      %v2807 = vpop.permute.xlu0 %2806
      %2808 = vrot.lane.b32.xlu0 %v316, 6
      %v2809 = vpop.permute.xlu0 %2808
      %2810 = vrot.lane.b32.xlu0 %v317, 6
      %v2811 = vpop.permute.xlu0 %2810
      %2812 = vrot.lane.b32.xlu0 %v318, 6
      %v2813 = vpop.permute.xlu0 %2812
      %2814 = vrot.lane.b32.xlu0 %v319, 6
      %v2815 = vpop.permute.xlu0 %2814
      %2816 = vrot.lane.b32.xlu0 %v320, 6
      %v2817 = vpop.permute.xlu0 %2816
      %vm2818 = vcmask 48128
      %v2819 = vsel %vm2818, %v2803, %v2805
      %v2820 = vsel %vm2818, %v2805, %v2807
      %v2821 = vsel %vm2818, %v2807, %v2809
      %v2822 = vsel %vm2818, %v2809, %v2811
      %v2823 = vsel %vm2818, %v2811, %v2813
      %v2824 = vsel %vm2818, %v2813, %v2815
      %v2825 = vsel %vm2818, %v2815, %v2817
      %v2827 = vsel %vm345, %v2801, 0
      %v2830 = vsel %vm349, %v2819, 0
      %v2833 = vsel %vm349, %v2820, 0
      %v2836 = vsel %vm349, %v2821, 0
      %v2839 = vsel %vm349, %v2822, 0
      %v2842 = vsel %vm349, %v2823, 0
      %v2845 = vsel %vm349, %v2824, 0
      %v2848 = vsel %vm349, %v2825, 0
      %2850 = vmatpush.bf16.msra.mxu0 0
      %2851 = vmatpush.bf16.msra.mxu0 0
      %2852 = vmatpush.bf16.msra.mxu0 0
      %2853 = vmatpush.bf16.msra.mxu0 0
      %2854 = vmatpush.bf16.msra.mxu0 0
      %2855 = vmatpush.bf16.msra.mxu0 0
      %2856 = vmatpush.bf16.msra.mxu0 0
      %2857 = vmatpush.bf16.msra.mxu0 %v2830
      %2858 = vmatmul.bf16.gmra.mxu0 %v2827
      %v2859 = vpop.f32.mrf.mxu0
      %v2860 = vadd.f32 0.0, %v2859
      %v2861 = vpop.f32.mrf.mxu0
      %2862 = vdwg.mxu0
      %2863 = vmatpush.bf16.msra.mxu0 0
      %2864 = vmatpush.bf16.msra.mxu0 0
      %2865 = vmatpush.bf16.msra.mxu0 0
      %2866 = vmatpush.bf16.msra.mxu0 0
      %2867 = vmatpush.bf16.msra.mxu0 0
      %2868 = vmatpush.bf16.msra.mxu0 0
      %2869 = vmatpush.bf16.msra.mxu0 0
      %2870 = vmatpush.bf16.msra.mxu0 %v2833
      %2871 = vmatmul.bf16.gmra.mxu0 %v2827
      %v2872 = vpop.f32.mrf.mxu0
      %v2873 = vadd.f32 0.0, %v2872
      %v2874 = vpop.f32.mrf.mxu0
      %2875 = vdwg.mxu0
      %2876 = vmatpush.bf16.msra.mxu0 0
      %2877 = vmatpush.bf16.msra.mxu0 0
      %2878 = vmatpush.bf16.msra.mxu0 0
      %2879 = vmatpush.bf16.msra.mxu0 0
      %2880 = vmatpush.bf16.msra.mxu0 0
      %2881 = vmatpush.bf16.msra.mxu0 0
      %2882 = vmatpush.bf16.msra.mxu0 0
      %2883 = vmatpush.bf16.msra.mxu0 %v2836
      %2884 = vmatmul.bf16.gmra.mxu0 %v2827
      %v2885 = vpop.f32.mrf.mxu0
      %v2886 = vadd.f32 0.0, %v2885
      %v2887 = vpop.f32.mrf.mxu0
      %2888 = vdwg.mxu0
      %2889 = vmatpush.bf16.msra.mxu0 0
      %2890 = vmatpush.bf16.msra.mxu0 0
      %2891 = vmatpush.bf16.msra.mxu0 0
      %2892 = vmatpush.bf16.msra.mxu0 0
      %2893 = vmatpush.bf16.msra.mxu0 0
      %2894 = vmatpush.bf16.msra.mxu0 0
      %2895 = vmatpush.bf16.msra.mxu0 0
      %2896 = vmatpush.bf16.msra.mxu0 %v2839
      %2897 = vmatmul.bf16.gmra.mxu0 %v2827
      %v2898 = vpop.f32.mrf.mxu0
      %v2899 = vadd.f32 0.0, %v2898
      %v2900 = vpop.f32.mrf.mxu0
      %2901 = vdwg.mxu0
      %2902 = vmatpush.bf16.msra.mxu0 0
      %2903 = vmatpush.bf16.msra.mxu0 0
      %2904 = vmatpush.bf16.msra.mxu0 0
      %2905 = vmatpush.bf16.msra.mxu0 0
      %2906 = vmatpush.bf16.msra.mxu0 0
      %2907 = vmatpush.bf16.msra.mxu0 0
      %2908 = vmatpush.bf16.msra.mxu0 0
      %2909 = vmatpush.bf16.msra.mxu0 %v2842
      %2910 = vmatmul.bf16.gmra.mxu0 %v2827
      %v2911 = vpop.f32.mrf.mxu0
      %v2912 = vadd.f32 0.0, %v2911
      %v2913 = vpop.f32.mrf.mxu0
      %2914 = vdwg.mxu0
      %2915 = vmatpush.bf16.msra.mxu0 0
      %2916 = vmatpush.bf16.msra.mxu0 0
      %2917 = vmatpush.bf16.msra.mxu0 0
      %2918 = vmatpush.bf16.msra.mxu0 0
      %2919 = vmatpush.bf16.msra.mxu0 0
      %2920 = vmatpush.bf16.msra.mxu0 0
      %2921 = vmatpush.bf16.msra.mxu0 0
      %2922 = vmatpush.bf16.msra.mxu0 %v2845
      %2923 = vmatmul.bf16.gmra.mxu0 %v2827
      %v2924 = vpop.f32.mrf.mxu0
      %v2925 = vadd.f32 0.0, %v2924
      %v2926 = vpop.f32.mrf.mxu0
      %2927 = vdwg.mxu0
      %2928 = vmatpush.bf16.msra.mxu0 0
      %2929 = vmatpush.bf16.msra.mxu0 0
      %2930 = vmatpush.bf16.msra.mxu0 0
      %2931 = vmatpush.bf16.msra.mxu0 0
      %2932 = vmatpush.bf16.msra.mxu0 0
      %2933 = vmatpush.bf16.msra.mxu0 0
      %2934 = vmatpush.bf16.msra.mxu0 0
      %2935 = vmatpush.bf16.msra.mxu0 %v2848
      %2936 = vmatmul.bf16.gmra.mxu0 %v2827
      %v2937 = vpop.f32.mrf.mxu0
      %v2938 = vadd.f32 0.0, %v2937
      %v2939 = vpop.f32.mrf.mxu0
      %2940 = vdwg.mxu0
      %v2941 = vadd.f32 %v2793, %v2860
      %v2942 = vadd.f32 %v2794, %v2873
      %v2943 = vadd.f32 %v2795, %v2886
      %v2944 = vadd.f32 %v2796, %v2899
      %v2945 = vadd.f32 %v2797, %v2912
      %v2946 = vadd.f32 %v2798, %v2925
      %v2947 = vadd.f32 %v2799, %v2938
      %v2948 = vld [vmem:[%s281 + $0x4] sm:$0xff]
      %v2949 = vld [vmem:[%s281 + $0xc] sm:$0xff]
      %v2950 = vld [vmem:[%s281 + $0x14] sm:$0xff]
      %v2951 = vld [vmem:[%s281 + $0x1c] sm:$0xff]
      %s2952 = scalar_lea.vmem %s1, 36
      %v2953 = vld [vmem:[%s2952] sm:$0x3]
      %v2958 = vunpack.c.l.b16 %v2948
      %v2959 = vunpack.c.h.b16 %v2948
      %v2960 = vunpack.c.l.b16 %v2949
      %v2961 = vunpack.c.h.b16 %v2949
      %v2962 = vunpack.c.l.b16 %v2950
      %v2963 = vunpack.c.h.b16 %v2950
      %v2964 = vunpack.c.l.b16 %v2951
      %v2965 = vunpack.c.h.b16 %v2951
      %v2966 = vpack.c.b16 %v2958, %v2958
      %v2967 = vpack.c.b16 %v2959, %v2959
      %v2968 = vpack.c.b16 %v2960, %v2960
      %v2969 = vpack.c.b16 %v2961, %v2961
      %v2970 = vpack.c.b16 %v2962, %v2962
      %v2971 = vpack.c.b16 %v2963, %v2963
      %v2972 = vpack.c.b16 %v2964, %v2964
      %v2973 = vpack.c.b16 %v2965, %v2965
      %2974 = vrot.lane.b32.xlu0 %v2966, 56
      %v2975 = vpop.permute.xlu0 %2974
      %2976 = vrot.lane.b32.xlu0 %v2967, 56
      %v2977 = vpop.permute.xlu0 %2976
      %2978 = vrot.lane.b32.xlu0 %v2968, 56
      %v2979 = vpop.permute.xlu0 %2978
      %2980 = vrot.lane.b32.xlu0 %v2969, 56
      %v2981 = vpop.permute.xlu0 %2980
      %2982 = vrot.lane.b32.xlu0 %v2970, 56
      %v2983 = vpop.permute.xlu0 %2982
      %2984 = vrot.lane.b32.xlu0 %v2971, 56
      %v2985 = vpop.permute.xlu0 %2984
      %2986 = vrot.lane.b32.xlu0 %v2972, 56
      %v2987 = vpop.permute.xlu0 %2986
      %2988 = vrot.lane.b32.xlu0 %v2973, 56
      %v2989 = vpop.permute.xlu0 %2988
      %vm2990 = vcmask 457728
      %v2991 = vsel %vm2990, %v2975, %v2977
      %v2992 = vsel %vm2990, %v2977, %v2979
      %v2993 = vsel %vm2990, %v2979, %v2981
      %v2994 = vsel %vm2990, %v2981, %v2983
      %v2995 = vsel %vm2990, %v2983, %v2985
      %v2996 = vsel %vm2990, %v2985, %v2987
      %v2997 = vsel %vm2990, %v2987, %v2989
      %v2999 = vsel %vm345, %v2953, 0
      %v3002 = vsel %vm349, %v2991, 0
      %v3005 = vsel %vm349, %v2992, 0
      %v3008 = vsel %vm349, %v2993, 0
      %v3011 = vsel %vm349, %v2994, 0
      %v3014 = vsel %vm349, %v2995, 0
      %v3017 = vsel %vm349, %v2996, 0
      %v3020 = vsel %vm349, %v2997, 0
      %3022 = vmatpush.bf16.msra.mxu0 0
      %3023 = vmatpush.bf16.msra.mxu0 0
      %3024 = vmatpush.bf16.msra.mxu0 0
      %3025 = vmatpush.bf16.msra.mxu0 0
      %3026 = vmatpush.bf16.msra.mxu0 0
      %3027 = vmatpush.bf16.msra.mxu0 0
      %3028 = vmatpush.bf16.msra.mxu0 0
      %3029 = vmatpush.bf16.msra.mxu0 %v3002
      %3030 = vmatmul.bf16.gmra.mxu0 %v2999
      %v3031 = vpop.f32.mrf.mxu0
      %v3032 = vadd.f32 0.0, %v3031
      %v3033 = vpop.f32.mrf.mxu0
      %3034 = vdwg.mxu0
      %3035 = vmatpush.bf16.msra.mxu0 0
      %3036 = vmatpush.bf16.msra.mxu0 0
      %3037 = vmatpush.bf16.msra.mxu0 0
      %3038 = vmatpush.bf16.msra.mxu0 0
      %3039 = vmatpush.bf16.msra.mxu0 0
      %3040 = vmatpush.bf16.msra.mxu0 0
      %3041 = vmatpush.bf16.msra.mxu0 0
      %3042 = vmatpush.bf16.msra.mxu0 %v3005
      %3043 = vmatmul.bf16.gmra.mxu0 %v2999
      %v3044 = vpop.f32.mrf.mxu0
      %v3045 = vadd.f32 0.0, %v3044
      %v3046 = vpop.f32.mrf.mxu0
      %3047 = vdwg.mxu0
      %3048 = vmatpush.bf16.msra.mxu0 0
      %3049 = vmatpush.bf16.msra.mxu0 0
      %3050 = vmatpush.bf16.msra.mxu0 0
      %3051 = vmatpush.bf16.msra.mxu0 0
      %3052 = vmatpush.bf16.msra.mxu0 0
      %3053 = vmatpush.bf16.msra.mxu0 0
      %3054 = vmatpush.bf16.msra.mxu0 0
      %3055 = vmatpush.bf16.msra.mxu0 %v3008
      %3056 = vmatmul.bf16.gmra.mxu0 %v2999
      %v3057 = vpop.f32.mrf.mxu0
      %v3058 = vadd.f32 0.0, %v3057
      %v3059 = vpop.f32.mrf.mxu0
      %3060 = vdwg.mxu0
      %3061 = vmatpush.bf16.msra.mxu0 0
      %3062 = vmatpush.bf16.msra.mxu0 0
      %3063 = vmatpush.bf16.msra.mxu0 0
      %3064 = vmatpush.bf16.msra.mxu0 0
      %3065 = vmatpush.bf16.msra.mxu0 0
      %3066 = vmatpush.bf16.msra.mxu0 0
      %3067 = vmatpush.bf16.msra.mxu0 0
      %3068 = vmatpush.bf16.msra.mxu0 %v3011
      %3069 = vmatmul.bf16.gmra.mxu0 %v2999
      %v3070 = vpop.f32.mrf.mxu0
      %v3071 = vadd.f32 0.0, %v3070
      %v3072 = vpop.f32.mrf.mxu0
      %3073 = vdwg.mxu0
      %3074 = vmatpush.bf16.msra.mxu0 0
      %3075 = vmatpush.bf16.msra.mxu0 0
      %3076 = vmatpush.bf16.msra.mxu0 0
      %3077 = vmatpush.bf16.msra.mxu0 0
      %3078 = vmatpush.bf16.msra.mxu0 0
      %3079 = vmatpush.bf16.msra.mxu0 0
      %3080 = vmatpush.bf16.msra.mxu0 0
      %3081 = vmatpush.bf16.msra.mxu0 %v3014
      %3082 = vmatmul.bf16.gmra.mxu0 %v2999
      %v3083 = vpop.f32.mrf.mxu0
      %v3084 = vadd.f32 0.0, %v3083
      %v3085 = vpop.f32.mrf.mxu0
      %3086 = vdwg.mxu0
      %3087 = vmatpush.bf16.msra.mxu0 0
      %3088 = vmatpush.bf16.msra.mxu0 0
      %3089 = vmatpush.bf16.msra.mxu0 0
      %3090 = vmatpush.bf16.msra.mxu0 0
      %3091 = vmatpush.bf16.msra.mxu0 0
      %3092 = vmatpush.bf16.msra.mxu0 0
      %3093 = vmatpush.bf16.msra.mxu0 0
      %3094 = vmatpush.bf16.msra.mxu0 %v3017
      %3095 = vmatmul.bf16.gmra.mxu0 %v2999
      %v3096 = vpop.f32.mrf.mxu0
      %v3097 = vadd.f32 0.0, %v3096
      %v3098 = vpop.f32.mrf.mxu0
      %3099 = vdwg.mxu0
      %3100 = vmatpush.bf16.msra.mxu0 0
      %3101 = vmatpush.bf16.msra.mxu0 0
      %3102 = vmatpush.bf16.msra.mxu0 0
      %3103 = vmatpush.bf16.msra.mxu0 0
      %3104 = vmatpush.bf16.msra.mxu0 0
      %3105 = vmatpush.bf16.msra.mxu0 0
      %3106 = vmatpush.bf16.msra.mxu0 0
      %3107 = vmatpush.bf16.msra.mxu0 %v3020
      %3108 = vmatmul.bf16.gmra.mxu0 %v2999
      %v3109 = vpop.f32.mrf.mxu0
      %v3110 = vadd.f32 0.0, %v3109
      %v3111 = vpop.f32.mrf.mxu0
      %3112 = vdwg.mxu0
      %v3113 = vadd.f32 %v2941, %v3032
      %v3114 = vadd.f32 %v2942, %v3045
      %v3115 = vadd.f32 %v2943, %v3058
      %v3116 = vadd.f32 %v2944, %v3071
      %v3117 = vadd.f32 %v2945, %v3084
      %v3118 = vadd.f32 %v2946, %v3097
      %v3119 = vadd.f32 %v2947, %v3110
      %s3120 = scalar_lea.vmem %s1, 38
      %v3121 = vld [vmem:[%s3120] sm:$0x3]
      %3122 = vrot.lane.b32.xlu0 %v2966, 55
      %v3123 = vpop.permute.xlu0 %3122
      %3124 = vrot.lane.b32.xlu0 %v2967, 55
      %v3125 = vpop.permute.xlu0 %3124
      %3126 = vrot.lane.b32.xlu0 %v2968, 55
      %v3127 = vpop.permute.xlu0 %3126
      %3128 = vrot.lane.b32.xlu0 %v2969, 55
      %v3129 = vpop.permute.xlu0 %3128
      %3130 = vrot.lane.b32.xlu0 %v2970, 55
      %v3131 = vpop.permute.xlu0 %3130
      %3132 = vrot.lane.b32.xlu0 %v2971, 55
      %v3133 = vpop.permute.xlu0 %3132
      %3134 = vrot.lane.b32.xlu0 %v2972, 55
      %v3135 = vpop.permute.xlu0 %3134
      %3136 = vrot.lane.b32.xlu0 %v2973, 55
      %v3137 = vpop.permute.xlu0 %3136
      %vm3138 = vcmask 449536
      %v3139 = vsel %vm3138, %v3123, %v3125
      %v3140 = vsel %vm3138, %v3125, %v3127
      %v3141 = vsel %vm3138, %v3127, %v3129
      %v3142 = vsel %vm3138, %v3129, %v3131
      %v3143 = vsel %vm3138, %v3131, %v3133
      %v3144 = vsel %vm3138, %v3133, %v3135
      %v3145 = vsel %vm3138, %v3135, %v3137
      %v3147 = vsel %vm345, %v3121, 0
      %v3150 = vsel %vm349, %v3139, 0
      %v3153 = vsel %vm349, %v3140, 0
      %v3156 = vsel %vm349, %v3141, 0
      %v3159 = vsel %vm349, %v3142, 0
      %v3162 = vsel %vm349, %v3143, 0
      %v3165 = vsel %vm349, %v3144, 0
      %v3168 = vsel %vm349, %v3145, 0
      %3170 = vmatpush.bf16.msra.mxu0 0
      %3171 = vmatpush.bf16.msra.mxu0 0
      %3172 = vmatpush.bf16.msra.mxu0 0
      %3173 = vmatpush.bf16.msra.mxu0 0
      %3174 = vmatpush.bf16.msra.mxu0 0
      %3175 = vmatpush.bf16.msra.mxu0 0
      %3176 = vmatpush.bf16.msra.mxu0 0
      %3177 = vmatpush.bf16.msra.mxu0 %v3150
      %3178 = vmatmul.bf16.gmra.mxu0 %v3147
      %v3179 = vpop.f32.mrf.mxu0
      %v3180 = vadd.f32 0.0, %v3179
      %v3181 = vpop.f32.mrf.mxu0
      %3182 = vdwg.mxu0
      %3183 = vmatpush.bf16.msra.mxu0 0
      %3184 = vmatpush.bf16.msra.mxu0 0
      %3185 = vmatpush.bf16.msra.mxu0 0
      %3186 = vmatpush.bf16.msra.mxu0 0
      %3187 = vmatpush.bf16.msra.mxu0 0
      %3188 = vmatpush.bf16.msra.mxu0 0
      %3189 = vmatpush.bf16.msra.mxu0 0
      %3190 = vmatpush.bf16.msra.mxu0 %v3153
      %3191 = vmatmul.bf16.gmra.mxu0 %v3147
      %v3192 = vpop.f32.mrf.mxu0
      %v3193 = vadd.f32 0.0, %v3192
      %v3194 = vpop.f32.mrf.mxu0
      %3195 = vdwg.mxu0
      %3196 = vmatpush.bf16.msra.mxu0 0
      %3197 = vmatpush.bf16.msra.mxu0 0
      %3198 = vmatpush.bf16.msra.mxu0 0
      %3199 = vmatpush.bf16.msra.mxu0 0
      %3200 = vmatpush.bf16.msra.mxu0 0
      %3201 = vmatpush.bf16.msra.mxu0 0
      %3202 = vmatpush.bf16.msra.mxu0 0
      %3203 = vmatpush.bf16.msra.mxu0 %v3156
      %3204 = vmatmul.bf16.gmra.mxu0 %v3147
      %v3205 = vpop.f32.mrf.mxu0
      %v3206 = vadd.f32 0.0, %v3205
      %v3207 = vpop.f32.mrf.mxu0
      %3208 = vdwg.mxu0
      %3209 = vmatpush.bf16.msra.mxu0 0
      %3210 = vmatpush.bf16.msra.mxu0 0
      %3211 = vmatpush.bf16.msra.mxu0 0
      %3212 = vmatpush.bf16.msra.mxu0 0
      %3213 = vmatpush.bf16.msra.mxu0 0
      %3214 = vmatpush.bf16.msra.mxu0 0
      %3215 = vmatpush.bf16.msra.mxu0 0
      %3216 = vmatpush.bf16.msra.mxu0 %v3159
      %3217 = vmatmul.bf16.gmra.mxu0 %v3147
      %v3218 = vpop.f32.mrf.mxu0
      %v3219 = vadd.f32 0.0, %v3218
      %v3220 = vpop.f32.mrf.mxu0
      %3221 = vdwg.mxu0
      %3222 = vmatpush.bf16.msra.mxu0 0
      %3223 = vmatpush.bf16.msra.mxu0 0
      %3224 = vmatpush.bf16.msra.mxu0 0
      %3225 = vmatpush.bf16.msra.mxu0 0
      %3226 = vmatpush.bf16.msra.mxu0 0
      %3227 = vmatpush.bf16.msra.mxu0 0
      %3228 = vmatpush.bf16.msra.mxu0 0
      %3229 = vmatpush.bf16.msra.mxu0 %v3162
      %3230 = vmatmul.bf16.gmra.mxu0 %v3147
      %v3231 = vpop.f32.mrf.mxu0
      %v3232 = vadd.f32 0.0, %v3231
      %v3233 = vpop.f32.mrf.mxu0
      %3234 = vdwg.mxu0
      %3235 = vmatpush.bf16.msra.mxu0 0
      %3236 = vmatpush.bf16.msra.mxu0 0
      %3237 = vmatpush.bf16.msra.mxu0 0
      %3238 = vmatpush.bf16.msra.mxu0 0
      %3239 = vmatpush.bf16.msra.mxu0 0
      %3240 = vmatpush.bf16.msra.mxu0 0
      %3241 = vmatpush.bf16.msra.mxu0 0
      %3242 = vmatpush.bf16.msra.mxu0 %v3165
      %3243 = vmatmul.bf16.gmra.mxu0 %v3147
      %v3244 = vpop.f32.mrf.mxu0
      %v3245 = vadd.f32 0.0, %v3244
      %v3246 = vpop.f32.mrf.mxu0
      %3247 = vdwg.mxu0
      %3248 = vmatpush.bf16.msra.mxu0 0
      %3249 = vmatpush.bf16.msra.mxu0 0
      %3250 = vmatpush.bf16.msra.mxu0 0
      %3251 = vmatpush.bf16.msra.mxu0 0
      %3252 = vmatpush.bf16.msra.mxu0 0
      %3253 = vmatpush.bf16.msra.mxu0 0
      %3254 = vmatpush.bf16.msra.mxu0 0
      %3255 = vmatpush.bf16.msra.mxu0 %v3168
      %3256 = vmatmul.bf16.gmra.mxu0 %v3147
      %v3257 = vpop.f32.mrf.mxu0
      %v3258 = vadd.f32 0.0, %v3257
      %v3259 = vpop.f32.mrf.mxu0
      %3260 = vdwg.mxu0
      %v3261 = vadd.f32 %v3113, %v3180
      %v3262 = vadd.f32 %v3114, %v3193
      %v3263 = vadd.f32 %v3115, %v3206
      %v3264 = vadd.f32 %v3116, %v3219
      %v3265 = vadd.f32 %v3117, %v3232
      %v3266 = vadd.f32 %v3118, %v3245
      %v3267 = vadd.f32 %v3119, %v3258
      %s3268 = scalar_lea.vmem %s1, 40
      %v3269 = vld [vmem:[%s3268] sm:$0x3]
      %3270 = vrot.lane.b32.xlu0 %v2966, 54
      %v3271 = vpop.permute.xlu0 %3270
      %3272 = vrot.lane.b32.xlu0 %v2967, 54
      %v3273 = vpop.permute.xlu0 %3272
      %3274 = vrot.lane.b32.xlu0 %v2968, 54
      %v3275 = vpop.permute.xlu0 %3274
      %3276 = vrot.lane.b32.xlu0 %v2969, 54
      %v3277 = vpop.permute.xlu0 %3276
      %3278 = vrot.lane.b32.xlu0 %v2970, 54
      %v3279 = vpop.permute.xlu0 %3278
      %3280 = vrot.lane.b32.xlu0 %v2971, 54
      %v3281 = vpop.permute.xlu0 %3280
      %3282 = vrot.lane.b32.xlu0 %v2972, 54
      %v3283 = vpop.permute.xlu0 %3282
      %3284 = vrot.lane.b32.xlu0 %v2973, 54
      %v3285 = vpop.permute.xlu0 %3284
      %vm3286 = vcmask 441344
      %v3287 = vsel %vm3286, %v3271, %v3273
      %v3288 = vsel %vm3286, %v3273, %v3275
      %v3289 = vsel %vm3286, %v3275, %v3277
      %v3290 = vsel %vm3286, %v3277, %v3279
      %v3291 = vsel %vm3286, %v3279, %v3281
      %v3292 = vsel %vm3286, %v3281, %v3283
      %v3293 = vsel %vm3286, %v3283, %v3285
      %v3295 = vsel %vm345, %v3269, 0
      %v3298 = vsel %vm349, %v3287, 0
      %v3301 = vsel %vm349, %v3288, 0
      %v3304 = vsel %vm349, %v3289, 0
      %v3307 = vsel %vm349, %v3290, 0
      %v3310 = vsel %vm349, %v3291, 0
      %v3313 = vsel %vm349, %v3292, 0
      %v3316 = vsel %vm349, %v3293, 0
      %3318 = vmatpush.bf16.msra.mxu0 0
      %3319 = vmatpush.bf16.msra.mxu0 0
      %3320 = vmatpush.bf16.msra.mxu0 0
      %3321 = vmatpush.bf16.msra.mxu0 0
      %3322 = vmatpush.bf16.msra.mxu0 0
      %3323 = vmatpush.bf16.msra.mxu0 0
      %3324 = vmatpush.bf16.msra.mxu0 0
      %3325 = vmatpush.bf16.msra.mxu0 %v3298
      %3326 = vmatmul.bf16.gmra.mxu0 %v3295
      %v3327 = vpop.f32.mrf.mxu0
      %v3328 = vadd.f32 0.0, %v3327
      %v3329 = vpop.f32.mrf.mxu0
      %3330 = vdwg.mxu0
      %3331 = vmatpush.bf16.msra.mxu0 0
      %3332 = vmatpush.bf16.msra.mxu0 0
      %3333 = vmatpush.bf16.msra.mxu0 0
      %3334 = vmatpush.bf16.msra.mxu0 0
      %3335 = vmatpush.bf16.msra.mxu0 0
      %3336 = vmatpush.bf16.msra.mxu0 0
      %3337 = vmatpush.bf16.msra.mxu0 0
      %3338 = vmatpush.bf16.msra.mxu0 %v3301
      %3339 = vmatmul.bf16.gmra.mxu0 %v3295
      %v3340 = vpop.f32.mrf.mxu0
      %v3341 = vadd.f32 0.0, %v3340
      %v3342 = vpop.f32.mrf.mxu0
      %3343 = vdwg.mxu0
      %3344 = vmatpush.bf16.msra.mxu0 0
      %3345 = vmatpush.bf16.msra.mxu0 0
      %3346 = vmatpush.bf16.msra.mxu0 0
      %3347 = vmatpush.bf16.msra.mxu0 0
      %3348 = vmatpush.bf16.msra.mxu0 0
      %3349 = vmatpush.bf16.msra.mxu0 0
      %3350 = vmatpush.bf16.msra.mxu0 0
      %3351 = vmatpush.bf16.msra.mxu0 %v3304
      %3352 = vmatmul.bf16.gmra.mxu0 %v3295
      %v3353 = vpop.f32.mrf.mxu0
      %v3354 = vadd.f32 0.0, %v3353
      %v3355 = vpop.f32.mrf.mxu0
      %3356 = vdwg.mxu0
      %3357 = vmatpush.bf16.msra.mxu0 0
      %3358 = vmatpush.bf16.msra.mxu0 0
      %3359 = vmatpush.bf16.msra.mxu0 0
      %3360 = vmatpush.bf16.msra.mxu0 0
      %3361 = vmatpush.bf16.msra.mxu0 0
      %3362 = vmatpush.bf16.msra.mxu0 0
      %3363 = vmatpush.bf16.msra.mxu0 0
      %3364 = vmatpush.bf16.msra.mxu0 %v3307
      %3365 = vmatmul.bf16.gmra.mxu0 %v3295
      %v3366 = vpop.f32.mrf.mxu0
      %v3367 = vadd.f32 0.0, %v3366
      %v3368 = vpop.f32.mrf.mxu0
      %3369 = vdwg.mxu0
      %3370 = vmatpush.bf16.msra.mxu0 0
      %3371 = vmatpush.bf16.msra.mxu0 0
      %3372 = vmatpush.bf16.msra.mxu0 0
      %3373 = vmatpush.bf16.msra.mxu0 0
      %3374 = vmatpush.bf16.msra.mxu0 0
      %3375 = vmatpush.bf16.msra.mxu0 0
      %3376 = vmatpush.bf16.msra.mxu0 0
      %3377 = vmatpush.bf16.msra.mxu0 %v3310
      %3378 = vmatmul.bf16.gmra.mxu0 %v3295
      %v3379 = vpop.f32.mrf.mxu0
      %v3380 = vadd.f32 0.0, %v3379
      %v3381 = vpop.f32.mrf.mxu0
      %3382 = vdwg.mxu0
      %3383 = vmatpush.bf16.msra.mxu0 0
      %3384 = vmatpush.bf16.msra.mxu0 0
      %3385 = vmatpush.bf16.msra.mxu0 0
      %3386 = vmatpush.bf16.msra.mxu0 0
      %3387 = vmatpush.bf16.msra.mxu0 0
      %3388 = vmatpush.bf16.msra.mxu0 0
      %3389 = vmatpush.bf16.msra.mxu0 0
      %3390 = vmatpush.bf16.msra.mxu0 %v3313
      %3391 = vmatmul.bf16.gmra.mxu0 %v3295
      %v3392 = vpop.f32.mrf.mxu0
      %v3393 = vadd.f32 0.0, %v3392
      %v3394 = vpop.f32.mrf.mxu0
      %3395 = vdwg.mxu0
      %3396 = vmatpush.bf16.msra.mxu0 0
      %3397 = vmatpush.bf16.msra.mxu0 0
      %3398 = vmatpush.bf16.msra.mxu0 0
      %3399 = vmatpush.bf16.msra.mxu0 0
      %3400 = vmatpush.bf16.msra.mxu0 0
      %3401 = vmatpush.bf16.msra.mxu0 0
      %3402 = vmatpush.bf16.msra.mxu0 0
      %3403 = vmatpush.bf16.msra.mxu0 %v3316
      %3404 = vmatmul.bf16.gmra.mxu0 %v3295
      %v3405 = vpop.f32.mrf.mxu0
      %v3406 = vadd.f32 0.0, %v3405
      %v3407 = vpop.f32.mrf.mxu0
      %3408 = vdwg.mxu0
      %v3409 = vadd.f32 %v3261, %v3328
      %v3410 = vadd.f32 %v3262, %v3341
      %v3411 = vadd.f32 %v3263, %v3354
      %v3412 = vadd.f32 %v3264, %v3367
      %v3413 = vadd.f32 %v3265, %v3380
      %v3414 = vadd.f32 %v3266, %v3393
      %v3415 = vadd.f32 %v3267, %v3406
      %s3416 = scalar_lea.vmem %s1, 42
      %v3417 = vld [vmem:[%s3416] sm:$0x3]
      %3418 = vrot.lane.b32.xlu0 %v2966, 46
      %v3419 = vpop.permute.xlu0 %3418
      %3420 = vrot.lane.b32.xlu0 %v2967, 46
      %v3421 = vpop.permute.xlu0 %3420
      %3422 = vrot.lane.b32.xlu0 %v2968, 46
      %v3423 = vpop.permute.xlu0 %3422
      %3424 = vrot.lane.b32.xlu0 %v2969, 46
      %v3425 = vpop.permute.xlu0 %3424
      %3426 = vrot.lane.b32.xlu0 %v2970, 46
      %v3427 = vpop.permute.xlu0 %3426
      %3428 = vrot.lane.b32.xlu0 %v2971, 46
      %v3429 = vpop.permute.xlu0 %3428
      %3430 = vrot.lane.b32.xlu0 %v2972, 46
      %v3431 = vpop.permute.xlu0 %3430
      %3432 = vrot.lane.b32.xlu0 %v2973, 46
      %v3433 = vpop.permute.xlu0 %3432
      %vm3434 = vcmask 375808
      %v3435 = vsel %vm3434, %v3419, %v3421
      %v3436 = vsel %vm3434, %v3421, %v3423
      %v3437 = vsel %vm3434, %v3423, %v3425
      %v3438 = vsel %vm3434, %v3425, %v3427
      %v3439 = vsel %vm3434, %v3427, %v3429
      %v3440 = vsel %vm3434, %v3429, %v3431
      %v3441 = vsel %vm3434, %v3431, %v3433
      %v3443 = vsel %vm345, %v3417, 0
      %v3446 = vsel %vm349, %v3435, 0
      %v3449 = vsel %vm349, %v3436, 0
      %v3452 = vsel %vm349, %v3437, 0
      %v3455 = vsel %vm349, %v3438, 0
      %v3458 = vsel %vm349, %v3439, 0
      %v3461 = vsel %vm349, %v3440, 0
      %v3464 = vsel %vm349, %v3441, 0
      %3466 = vmatpush.bf16.msra.mxu0 0
      %3467 = vmatpush.bf16.msra.mxu0 0
      %3468 = vmatpush.bf16.msra.mxu0 0
      %3469 = vmatpush.bf16.msra.mxu0 0
      %3470 = vmatpush.bf16.msra.mxu0 0
      %3471 = vmatpush.bf16.msra.mxu0 0
      %3472 = vmatpush.bf16.msra.mxu0 0
      %3473 = vmatpush.bf16.msra.mxu0 %v3446
      %3474 = vmatmul.bf16.gmra.mxu0 %v3443
      %v3475 = vpop.f32.mrf.mxu0
      %v3476 = vadd.f32 0.0, %v3475
      %v3477 = vpop.f32.mrf.mxu0
      %3478 = vdwg.mxu0
      %3479 = vmatpush.bf16.msra.mxu0 0
      %3480 = vmatpush.bf16.msra.mxu0 0
      %3481 = vmatpush.bf16.msra.mxu0 0
      %3482 = vmatpush.bf16.msra.mxu0 0
      %3483 = vmatpush.bf16.msra.mxu0 0
      %3484 = vmatpush.bf16.msra.mxu0 0
      %3485 = vmatpush.bf16.msra.mxu0 0
      %3486 = vmatpush.bf16.msra.mxu0 %v3449
      %3487 = vmatmul.bf16.gmra.mxu0 %v3443
      %v3488 = vpop.f32.mrf.mxu0
      %v3489 = vadd.f32 0.0, %v3488
      %v3490 = vpop.f32.mrf.mxu0
      %3491 = vdwg.mxu0
      %3492 = vmatpush.bf16.msra.mxu0 0
      %3493 = vmatpush.bf16.msra.mxu0 0
      %3494 = vmatpush.bf16.msra.mxu0 0
      %3495 = vmatpush.bf16.msra.mxu0 0
      %3496 = vmatpush.bf16.msra.mxu0 0
      %3497 = vmatpush.bf16.msra.mxu0 0
      %3498 = vmatpush.bf16.msra.mxu0 0
      %3499 = vmatpush.bf16.msra.mxu0 %v3452
      %3500 = vmatmul.bf16.gmra.mxu0 %v3443
      %v3501 = vpop.f32.mrf.mxu0
      %v3502 = vadd.f32 0.0, %v3501
      %v3503 = vpop.f32.mrf.mxu0
      %3504 = vdwg.mxu0
      %3505 = vmatpush.bf16.msra.mxu0 0
      %3506 = vmatpush.bf16.msra.mxu0 0
      %3507 = vmatpush.bf16.msra.mxu0 0
      %3508 = vmatpush.bf16.msra.mxu0 0
      %3509 = vmatpush.bf16.msra.mxu0 0
      %3510 = vmatpush.bf16.msra.mxu0 0
      %3511 = vmatpush.bf16.msra.mxu0 0
      %3512 = vmatpush.bf16.msra.mxu0 %v3455
      %3513 = vmatmul.bf16.gmra.mxu0 %v3443
      %v3514 = vpop.f32.mrf.mxu0
      %v3515 = vadd.f32 0.0, %v3514
      %v3516 = vpop.f32.mrf.mxu0
      %3517 = vdwg.mxu0
      %3518 = vmatpush.bf16.msra.mxu0 0
      %3519 = vmatpush.bf16.msra.mxu0 0
      %3520 = vmatpush.bf16.msra.mxu0 0
      %3521 = vmatpush.bf16.msra.mxu0 0
      %3522 = vmatpush.bf16.msra.mxu0 0
      %3523 = vmatpush.bf16.msra.mxu0 0
      %3524 = vmatpush.bf16.msra.mxu0 0
      %3525 = vmatpush.bf16.msra.mxu0 %v3458
      %3526 = vmatmul.bf16.gmra.mxu0 %v3443
      %v3527 = vpop.f32.mrf.mxu0
      %v3528 = vadd.f32 0.0, %v3527
      %v3529 = vpop.f32.mrf.mxu0
      %3530 = vdwg.mxu0
      %3531 = vmatpush.bf16.msra.mxu0 0
      %3532 = vmatpush.bf16.msra.mxu0 0
      %3533 = vmatpush.bf16.msra.mxu0 0
      %3534 = vmatpush.bf16.msra.mxu0 0
      %3535 = vmatpush.bf16.msra.mxu0 0
      %3536 = vmatpush.bf16.msra.mxu0 0
      %3537 = vmatpush.bf16.msra.mxu0 0
      %3538 = vmatpush.bf16.msra.mxu0 %v3461
      %3539 = vmatmul.bf16.gmra.mxu0 %v3443
      %v3540 = vpop.f32.mrf.mxu0
      %v3541 = vadd.f32 0.0, %v3540
      %v3542 = vpop.f32.mrf.mxu0
      %3543 = vdwg.mxu0
      %3544 = vmatpush.bf16.msra.mxu0 0
      %3545 = vmatpush.bf16.msra.mxu0 0
      %3546 = vmatpush.bf16.msra.mxu0 0
      %3547 = vmatpush.bf16.msra.mxu0 0
      %3548 = vmatpush.bf16.msra.mxu0 0
      %3549 = vmatpush.bf16.msra.mxu0 0
      %3550 = vmatpush.bf16.msra.mxu0 0
      %3551 = vmatpush.bf16.msra.mxu0 %v3464
      %3552 = vmatmul.bf16.gmra.mxu0 %v3443
      %v3553 = vpop.f32.mrf.mxu0
      %v3554 = vadd.f32 0.0, %v3553
      %v3555 = vpop.f32.mrf.mxu0
      %3556 = vdwg.mxu0
      %v3557 = vadd.f32 %v3409, %v3476
      %v3558 = vadd.f32 %v3410, %v3489
      %v3559 = vadd.f32 %v3411, %v3502
      %v3560 = vadd.f32 %v3412, %v3515
      %v3561 = vadd.f32 %v3413, %v3528
      %v3562 = vadd.f32 %v3414, %v3541
      %v3563 = vadd.f32 %v3415, %v3554
      %s3564 = scalar_lea.vmem %s1, 44
      %v3565 = vld [vmem:[%s3564] sm:$0x3]
      %3566 = vrot.lane.b32.xlu0 %v2966, 45
      %v3567 = vpop.permute.xlu0 %3566
      %3568 = vrot.lane.b32.xlu0 %v2967, 45
      %v3569 = vpop.permute.xlu0 %3568
      %3570 = vrot.lane.b32.xlu0 %v2968, 45
      %v3571 = vpop.permute.xlu0 %3570
      %3572 = vrot.lane.b32.xlu0 %v2969, 45
      %v3573 = vpop.permute.xlu0 %3572
      %3574 = vrot.lane.b32.xlu0 %v2970, 45
      %v3575 = vpop.permute.xlu0 %3574
      %3576 = vrot.lane.b32.xlu0 %v2971, 45
      %v3577 = vpop.permute.xlu0 %3576
      %3578 = vrot.lane.b32.xlu0 %v2972, 45
      %v3579 = vpop.permute.xlu0 %3578
      %3580 = vrot.lane.b32.xlu0 %v2973, 45
      %v3581 = vpop.permute.xlu0 %3580
      %vm3582 = vcmask 367616
      %v3583 = vsel %vm3582, %v3567, %v3569
      %v3584 = vsel %vm3582, %v3569, %v3571
      %v3585 = vsel %vm3582, %v3571, %v3573
      %v3586 = vsel %vm3582, %v3573, %v3575
      %v3587 = vsel %vm3582, %v3575, %v3577
      %v3588 = vsel %vm3582, %v3577, %v3579
      %v3589 = vsel %vm3582, %v3579, %v3581
      %v3591 = vsel %vm345, %v3565, 0
      %v3594 = vsel %vm349, %v3583, 0
      %v3597 = vsel %vm349, %v3584, 0
      %v3600 = vsel %vm349, %v3585, 0
      %v3603 = vsel %vm349, %v3586, 0
      %v3606 = vsel %vm349, %v3587, 0
      %v3609 = vsel %vm349, %v3588, 0
      %v3612 = vsel %vm349, %v3589, 0
      %3614 = vmatpush.bf16.msra.mxu0 0
      %3615 = vmatpush.bf16.msra.mxu0 0
      %3616 = vmatpush.bf16.msra.mxu0 0
      %3617 = vmatpush.bf16.msra.mxu0 0
      %3618 = vmatpush.bf16.msra.mxu0 0
      %3619 = vmatpush.bf16.msra.mxu0 0
      %3620 = vmatpush.bf16.msra.mxu0 0
      %3621 = vmatpush.bf16.msra.mxu0 %v3594
      %3622 = vmatmul.bf16.gmra.mxu0 %v3591
      %v3623 = vpop.f32.mrf.mxu0
      %v3624 = vadd.f32 0.0, %v3623
      %v3625 = vpop.f32.mrf.mxu0
      %3626 = vdwg.mxu0
      %3627 = vmatpush.bf16.msra.mxu0 0
      %3628 = vmatpush.bf16.msra.mxu0 0
      %3629 = vmatpush.bf16.msra.mxu0 0
      %3630 = vmatpush.bf16.msra.mxu0 0
      %3631 = vmatpush.bf16.msra.mxu0 0
      %3632 = vmatpush.bf16.msra.mxu0 0
      %3633 = vmatpush.bf16.msra.mxu0 0
      %3634 = vmatpush.bf16.msra.mxu0 %v3597
      %3635 = vmatmul.bf16.gmra.mxu0 %v3591
      %v3636 = vpop.f32.mrf.mxu0
      %v3637 = vadd.f32 0.0, %v3636
      %v3638 = vpop.f32.mrf.mxu0
      %3639 = vdwg.mxu0
      %3640 = vmatpush.bf16.msra.mxu0 0
      %3641 = vmatpush.bf16.msra.mxu0 0
      %3642 = vmatpush.bf16.msra.mxu0 0
      %3643 = vmatpush.bf16.msra.mxu0 0
      %3644 = vmatpush.bf16.msra.mxu0 0
      %3645 = vmatpush.bf16.msra.mxu0 0
      %3646 = vmatpush.bf16.msra.mxu0 0
      %3647 = vmatpush.bf16.msra.mxu0 %v3600
      %3648 = vmatmul.bf16.gmra.mxu0 %v3591
      %v3649 = vpop.f32.mrf.mxu0
      %v3650 = vadd.f32 0.0, %v3649
      %v3651 = vpop.f32.mrf.mxu0
      %3652 = vdwg.mxu0
      %3653 = vmatpush.bf16.msra.mxu0 0
      %3654 = vmatpush.bf16.msra.mxu0 0
      %3655 = vmatpush.bf16.msra.mxu0 0
      %3656 = vmatpush.bf16.msra.mxu0 0
      %3657 = vmatpush.bf16.msra.mxu0 0
      %3658 = vmatpush.bf16.msra.mxu0 0
      %3659 = vmatpush.bf16.msra.mxu0 0
      %3660 = vmatpush.bf16.msra.mxu0 %v3603
      %3661 = vmatmul.bf16.gmra.mxu0 %v3591
      %v3662 = vpop.f32.mrf.mxu0
      %v3663 = vadd.f32 0.0, %v3662
      %v3664 = vpop.f32.mrf.mxu0
      %3665 = vdwg.mxu0
      %3666 = vmatpush.bf16.msra.mxu0 0
      %3667 = vmatpush.bf16.msra.mxu0 0
      %3668 = vmatpush.bf16.msra.mxu0 0
      %3669 = vmatpush.bf16.msra.mxu0 0
      %3670 = vmatpush.bf16.msra.mxu0 0
      %3671 = vmatpush.bf16.msra.mxu0 0
      %3672 = vmatpush.bf16.msra.mxu0 0
      %3673 = vmatpush.bf16.msra.mxu0 %v3606
      %3674 = vmatmul.bf16.gmra.mxu0 %v3591
      %v3675 = vpop.f32.mrf.mxu0
      %v3676 = vadd.f32 0.0, %v3675
      %v3677 = vpop.f32.mrf.mxu0
      %3678 = vdwg.mxu0
      %3679 = vmatpush.bf16.msra.mxu0 0
      %3680 = vmatpush.bf16.msra.mxu0 0
      %3681 = vmatpush.bf16.msra.mxu0 0
      %3682 = vmatpush.bf16.msra.mxu0 0
      %3683 = vmatpush.bf16.msra.mxu0 0
      %3684 = vmatpush.bf16.msra.mxu0 0
      %3685 = vmatpush.bf16.msra.mxu0 0
      %3686 = vmatpush.bf16.msra.mxu0 %v3609
      %3687 = vmatmul.bf16.gmra.mxu0 %v3591
      %v3688 = vpop.f32.mrf.mxu0
      %v3689 = vadd.f32 0.0, %v3688
      %v3690 = vpop.f32.mrf.mxu0
      %3691 = vdwg.mxu0
      %3692 = vmatpush.bf16.msra.mxu0 0
      %3693 = vmatpush.bf16.msra.mxu0 0
      %3694 = vmatpush.bf16.msra.mxu0 0
      %3695 = vmatpush.bf16.msra.mxu0 0
      %3696 = vmatpush.bf16.msra.mxu0 0
      %3697 = vmatpush.bf16.msra.mxu0 0
      %3698 = vmatpush.bf16.msra.mxu0 0
      %3699 = vmatpush.bf16.msra.mxu0 %v3612
      %3700 = vmatmul.bf16.gmra.mxu0 %v3591
      %v3701 = vpop.f32.mrf.mxu0
      %v3702 = vadd.f32 0.0, %v3701
      %v3703 = vpop.f32.mrf.mxu0
      %3704 = vdwg.mxu0
      %v3705 = vadd.f32 %v3557, %v3624
      %v3706 = vadd.f32 %v3558, %v3637
      %v3707 = vadd.f32 %v3559, %v3650
      %v3708 = vadd.f32 %v3560, %v3663
      %v3709 = vadd.f32 %v3561, %v3676
      %v3710 = vadd.f32 %v3562, %v3689
      %v3711 = vadd.f32 %v3563, %v3702
      %s3712 = scalar_lea.vmem %s1, 46
      %v3713 = vld [vmem:[%s3712] sm:$0x3]
      %3714 = vrot.lane.b32.xlu0 %v2966, 44
      %v3715 = vpop.permute.xlu0 %3714
      %3716 = vrot.lane.b32.xlu0 %v2967, 44
      %v3717 = vpop.permute.xlu0 %3716
      %3718 = vrot.lane.b32.xlu0 %v2968, 44
      %v3719 = vpop.permute.xlu0 %3718
      %3720 = vrot.lane.b32.xlu0 %v2969, 44
      %v3721 = vpop.permute.xlu0 %3720
      %3722 = vrot.lane.b32.xlu0 %v2970, 44
      %v3723 = vpop.permute.xlu0 %3722
      %3724 = vrot.lane.b32.xlu0 %v2971, 44
      %v3725 = vpop.permute.xlu0 %3724
      %3726 = vrot.lane.b32.xlu0 %v2972, 44
      %v3727 = vpop.permute.xlu0 %3726
      %3728 = vrot.lane.b32.xlu0 %v2973, 44
      %v3729 = vpop.permute.xlu0 %3728
      %vm3730 = vcmask 359424
      %v3731 = vsel %vm3730, %v3715, %v3717
      %v3732 = vsel %vm3730, %v3717, %v3719
      %v3733 = vsel %vm3730, %v3719, %v3721
      %v3734 = vsel %vm3730, %v3721, %v3723
      %v3735 = vsel %vm3730, %v3723, %v3725
      %v3736 = vsel %vm3730, %v3725, %v3727
      %v3737 = vsel %vm3730, %v3727, %v3729
      %v3739 = vsel %vm345, %v3713, 0
      %v3742 = vsel %vm349, %v3731, 0
      %v3745 = vsel %vm349, %v3732, 0
      %v3748 = vsel %vm349, %v3733, 0
      %v3751 = vsel %vm349, %v3734, 0
      %v3754 = vsel %vm349, %v3735, 0
      %v3757 = vsel %vm349, %v3736, 0
      %v3760 = vsel %vm349, %v3737, 0
      %3762 = vmatpush.bf16.msra.mxu0 0
      %3763 = vmatpush.bf16.msra.mxu0 0
      %3764 = vmatpush.bf16.msra.mxu0 0
      %3765 = vmatpush.bf16.msra.mxu0 0
      %3766 = vmatpush.bf16.msra.mxu0 0
      %3767 = vmatpush.bf16.msra.mxu0 0
      %3768 = vmatpush.bf16.msra.mxu0 0
      %3769 = vmatpush.bf16.msra.mxu0 %v3742
      %3770 = vmatmul.bf16.gmra.mxu0 %v3739
      %v3771 = vpop.f32.mrf.mxu0
      %v3772 = vadd.f32 0.0, %v3771
      %v3773 = vpop.f32.mrf.mxu0
      %3774 = vdwg.mxu0
      %3775 = vmatpush.bf16.msra.mxu0 0
      %3776 = vmatpush.bf16.msra.mxu0 0
      %3777 = vmatpush.bf16.msra.mxu0 0
      %3778 = vmatpush.bf16.msra.mxu0 0
      %3779 = vmatpush.bf16.msra.mxu0 0
      %3780 = vmatpush.bf16.msra.mxu0 0
      %3781 = vmatpush.bf16.msra.mxu0 0
      %3782 = vmatpush.bf16.msra.mxu0 %v3745
      %3783 = vmatmul.bf16.gmra.mxu0 %v3739
      %v3784 = vpop.f32.mrf.mxu0
      %v3785 = vadd.f32 0.0, %v3784
      %v3786 = vpop.f32.mrf.mxu0
      %3787 = vdwg.mxu0
      %3788 = vmatpush.bf16.msra.mxu0 0
      %3789 = vmatpush.bf16.msra.mxu0 0
      %3790 = vmatpush.bf16.msra.mxu0 0
      %3791 = vmatpush.bf16.msra.mxu0 0
      %3792 = vmatpush.bf16.msra.mxu0 0
      %3793 = vmatpush.bf16.msra.mxu0 0
      %3794 = vmatpush.bf16.msra.mxu0 0
      %3795 = vmatpush.bf16.msra.mxu0 %v3748
      %3796 = vmatmul.bf16.gmra.mxu0 %v3739
      %v3797 = vpop.f32.mrf.mxu0
      %v3798 = vadd.f32 0.0, %v3797
      %v3799 = vpop.f32.mrf.mxu0
      %3800 = vdwg.mxu0
      %3801 = vmatpush.bf16.msra.mxu0 0
      %3802 = vmatpush.bf16.msra.mxu0 0
      %3803 = vmatpush.bf16.msra.mxu0 0
      %3804 = vmatpush.bf16.msra.mxu0 0
      %3805 = vmatpush.bf16.msra.mxu0 0
      %3806 = vmatpush.bf16.msra.mxu0 0
      %3807 = vmatpush.bf16.msra.mxu0 0
      %3808 = vmatpush.bf16.msra.mxu0 %v3751
      %3809 = vmatmul.bf16.gmra.mxu0 %v3739
      %v3810 = vpop.f32.mrf.mxu0
      %v3811 = vadd.f32 0.0, %v3810
      %v3812 = vpop.f32.mrf.mxu0
      %3813 = vdwg.mxu0
      %3814 = vmatpush.bf16.msra.mxu0 0
      %3815 = vmatpush.bf16.msra.mxu0 0
      %3816 = vmatpush.bf16.msra.mxu0 0
      %3817 = vmatpush.bf16.msra.mxu0 0
      %3818 = vmatpush.bf16.msra.mxu0 0
      %3819 = vmatpush.bf16.msra.mxu0 0
      %3820 = vmatpush.bf16.msra.mxu0 0
      %3821 = vmatpush.bf16.msra.mxu0 %v3754
      %3822 = vmatmul.bf16.gmra.mxu0 %v3739
      %v3823 = vpop.f32.mrf.mxu0
      %v3824 = vadd.f32 0.0, %v3823
      %v3825 = vpop.f32.mrf.mxu0
      %3826 = vdwg.mxu0
      %3827 = vmatpush.bf16.msra.mxu0 0
      %3828 = vmatpush.bf16.msra.mxu0 0
      %3829 = vmatpush.bf16.msra.mxu0 0
      %3830 = vmatpush.bf16.msra.mxu0 0
      %3831 = vmatpush.bf16.msra.mxu0 0
      %3832 = vmatpush.bf16.msra.mxu0 0
      %3833 = vmatpush.bf16.msra.mxu0 0
      %3834 = vmatpush.bf16.msra.mxu0 %v3757
      %3835 = vmatmul.bf16.gmra.mxu0 %v3739
      %v3836 = vpop.f32.mrf.mxu0
      %v3837 = vadd.f32 0.0, %v3836
      %v3838 = vpop.f32.mrf.mxu0
      %3839 = vdwg.mxu0
      %3840 = vmatpush.bf16.msra.mxu0 0
      %3841 = vmatpush.bf16.msra.mxu0 0
      %3842 = vmatpush.bf16.msra.mxu0 0
      %3843 = vmatpush.bf16.msra.mxu0 0
      %3844 = vmatpush.bf16.msra.mxu0 0
      %3845 = vmatpush.bf16.msra.mxu0 0
      %3846 = vmatpush.bf16.msra.mxu0 0
      %3847 = vmatpush.bf16.msra.mxu0 %v3760
      %3848 = vmatmul.bf16.gmra.mxu0 %v3739
      %v3849 = vpop.f32.mrf.mxu0
      %v3850 = vadd.f32 0.0, %v3849
      %v3851 = vpop.f32.mrf.mxu0
      %3852 = vdwg.mxu0
      %v3853 = vadd.f32 %v3705, %v3772
      %v3854 = vadd.f32 %v3706, %v3785
      %v3855 = vadd.f32 %v3707, %v3798
      %v3856 = vadd.f32 %v3708, %v3811
      %v3857 = vadd.f32 %v3709, %v3824
      %v3858 = vadd.f32 %v3710, %v3837
      %v3859 = vadd.f32 %v3711, %v3850
      %s3860 = scalar_lea.vmem %s1, 48
      %v3861 = vld [vmem:[%s3860] sm:$0x3]
      %3862 = vrot.lane.b32.xlu0 %v2966, 36
      %v3863 = vpop.permute.xlu0 %3862
      %3864 = vrot.lane.b32.xlu0 %v2967, 36
      %v3865 = vpop.permute.xlu0 %3864
      %3866 = vrot.lane.b32.xlu0 %v2968, 36
      %v3867 = vpop.permute.xlu0 %3866
      %3868 = vrot.lane.b32.xlu0 %v2969, 36
      %v3869 = vpop.permute.xlu0 %3868
      %3870 = vrot.lane.b32.xlu0 %v2970, 36
      %v3871 = vpop.permute.xlu0 %3870
      %3872 = vrot.lane.b32.xlu0 %v2971, 36
      %v3873 = vpop.permute.xlu0 %3872
      %3874 = vrot.lane.b32.xlu0 %v2972, 36
      %v3875 = vpop.permute.xlu0 %3874
      %3876 = vrot.lane.b32.xlu0 %v2973, 36
      %v3877 = vpop.permute.xlu0 %3876
      %vm3878 = vcmask 293888
      %v3879 = vsel %vm3878, %v3863, %v3865
      %v3880 = vsel %vm3878, %v3865, %v3867
      %v3881 = vsel %vm3878, %v3867, %v3869
      %v3882 = vsel %vm3878, %v3869, %v3871
      %v3883 = vsel %vm3878, %v3871, %v3873
      %v3884 = vsel %vm3878, %v3873, %v3875
      %v3885 = vsel %vm3878, %v3875, %v3877
      %v3887 = vsel %vm345, %v3861, 0
      %v3890 = vsel %vm349, %v3879, 0
      %v3893 = vsel %vm349, %v3880, 0
      %v3896 = vsel %vm349, %v3881, 0
      %v3899 = vsel %vm349, %v3882, 0
      %v3902 = vsel %vm349, %v3883, 0
      %v3905 = vsel %vm349, %v3884, 0
      %v3908 = vsel %vm349, %v3885, 0
      %3910 = vmatpush.bf16.msra.mxu0 0
      %3911 = vmatpush.bf16.msra.mxu0 0
      %3912 = vmatpush.bf16.msra.mxu0 0
      %3913 = vmatpush.bf16.msra.mxu0 0
      %3914 = vmatpush.bf16.msra.mxu0 0
      %3915 = vmatpush.bf16.msra.mxu0 0
      %3916 = vmatpush.bf16.msra.mxu0 0
      %3917 = vmatpush.bf16.msra.mxu0 %v3890
      %3918 = vmatmul.bf16.gmra.mxu0 %v3887
      %v3919 = vpop.f32.mrf.mxu0
      %v3920 = vadd.f32 0.0, %v3919
      %v3921 = vpop.f32.mrf.mxu0
      %3922 = vdwg.mxu0
      %3923 = vmatpush.bf16.msra.mxu0 0
      %3924 = vmatpush.bf16.msra.mxu0 0
      %3925 = vmatpush.bf16.msra.mxu0 0
      %3926 = vmatpush.bf16.msra.mxu0 0
      %3927 = vmatpush.bf16.msra.mxu0 0
      %3928 = vmatpush.bf16.msra.mxu0 0
      %3929 = vmatpush.bf16.msra.mxu0 0
      %3930 = vmatpush.bf16.msra.mxu0 %v3893
      %3931 = vmatmul.bf16.gmra.mxu0 %v3887
      %v3932 = vpop.f32.mrf.mxu0
      %v3933 = vadd.f32 0.0, %v3932
      %v3934 = vpop.f32.mrf.mxu0
      %3935 = vdwg.mxu0
      %3936 = vmatpush.bf16.msra.mxu0 0
      %3937 = vmatpush.bf16.msra.mxu0 0
      %3938 = vmatpush.bf16.msra.mxu0 0
      %3939 = vmatpush.bf16.msra.mxu0 0
      %3940 = vmatpush.bf16.msra.mxu0 0
      %3941 = vmatpush.bf16.msra.mxu0 0
      %3942 = vmatpush.bf16.msra.mxu0 0
      %3943 = vmatpush.bf16.msra.mxu0 %v3896
      %3944 = vmatmul.bf16.gmra.mxu0 %v3887
      %v3945 = vpop.f32.mrf.mxu0
      %v3946 = vadd.f32 0.0, %v3945
      %v3947 = vpop.f32.mrf.mxu0
      %3948 = vdwg.mxu0
      %3949 = vmatpush.bf16.msra.mxu0 0
      %3950 = vmatpush.bf16.msra.mxu0 0
      %3951 = vmatpush.bf16.msra.mxu0 0
      %3952 = vmatpush.bf16.msra.mxu0 0
      %3953 = vmatpush.bf16.msra.mxu0 0
      %3954 = vmatpush.bf16.msra.mxu0 0
      %3955 = vmatpush.bf16.msra.mxu0 0
      %3956 = vmatpush.bf16.msra.mxu0 %v3899
      %3957 = vmatmul.bf16.gmra.mxu0 %v3887
      %v3958 = vpop.f32.mrf.mxu0
      %v3959 = vadd.f32 0.0, %v3958
      %v3960 = vpop.f32.mrf.mxu0
      %3961 = vdwg.mxu0
      %3962 = vmatpush.bf16.msra.mxu0 0
      %3963 = vmatpush.bf16.msra.mxu0 0
      %3964 = vmatpush.bf16.msra.mxu0 0
      %3965 = vmatpush.bf16.msra.mxu0 0
      %3966 = vmatpush.bf16.msra.mxu0 0
      %3967 = vmatpush.bf16.msra.mxu0 0
      %3968 = vmatpush.bf16.msra.mxu0 0
      %3969 = vmatpush.bf16.msra.mxu0 %v3902
      %3970 = vmatmul.bf16.gmra.mxu0 %v3887
      %v3971 = vpop.f32.mrf.mxu0
      %v3972 = vadd.f32 0.0, %v3971
      %v3973 = vpop.f32.mrf.mxu0
      %3974 = vdwg.mxu0
      %3975 = vmatpush.bf16.msra.mxu0 0
      %3976 = vmatpush.bf16.msra.mxu0 0
      %3977 = vmatpush.bf16.msra.mxu0 0
      %3978 = vmatpush.bf16.msra.mxu0 0
      %3979 = vmatpush.bf16.msra.mxu0 0
      %3980 = vmatpush.bf16.msra.mxu0 0
      %3981 = vmatpush.bf16.msra.mxu0 0
      %3982 = vmatpush.bf16.msra.mxu0 %v3905
      %3983 = vmatmul.bf16.gmra.mxu0 %v3887
      %v3984 = vpop.f32.mrf.mxu0
      %v3985 = vadd.f32 0.0, %v3984
      %v3986 = vpop.f32.mrf.mxu0
      %3987 = vdwg.mxu0
      %3988 = vmatpush.bf16.msra.mxu0 0
      %3989 = vmatpush.bf16.msra.mxu0 0
      %3990 = vmatpush.bf16.msra.mxu0 0
      %3991 = vmatpush.bf16.msra.mxu0 0
      %3992 = vmatpush.bf16.msra.mxu0 0
      %3993 = vmatpush.bf16.msra.mxu0 0
      %3994 = vmatpush.bf16.msra.mxu0 0
      %3995 = vmatpush.bf16.msra.mxu0 %v3908
      %3996 = vmatmul.bf16.gmra.mxu0 %v3887
      %v3997 = vpop.f32.mrf.mxu0
      %v3998 = vadd.f32 0.0, %v3997
      %v3999 = vpop.f32.mrf.mxu0
      %4000 = vdwg.mxu0
      %v4001 = vadd.f32 %v3853, %v3920
      %v4002 = vadd.f32 %v3854, %v3933
      %v4003 = vadd.f32 %v3855, %v3946
      %v4004 = vadd.f32 %v3856, %v3959
      %v4005 = vadd.f32 %v3857, %v3972
      %v4006 = vadd.f32 %v3858, %v3985
      %v4007 = vadd.f32 %v3859, %v3998
      %s4008 = scalar_lea.vmem %s1, 50
      %v4009 = vld [vmem:[%s4008] sm:$0x3]
      %4010 = vrot.lane.b32.xlu0 %v2966, 35
      %v4011 = vpop.permute.xlu0 %4010
      %4012 = vrot.lane.b32.xlu0 %v2967, 35
      %v4013 = vpop.permute.xlu0 %4012
      %4014 = vrot.lane.b32.xlu0 %v2968, 35
      %v4015 = vpop.permute.xlu0 %4014
      %4016 = vrot.lane.b32.xlu0 %v2969, 35
      %v4017 = vpop.permute.xlu0 %4016
      %4018 = vrot.lane.b32.xlu0 %v2970, 35
      %v4019 = vpop.permute.xlu0 %4018
      %4020 = vrot.lane.b32.xlu0 %v2971, 35
      %v4021 = vpop.permute.xlu0 %4020
      %4022 = vrot.lane.b32.xlu0 %v2972, 35
      %v4023 = vpop.permute.xlu0 %4022
      %4024 = vrot.lane.b32.xlu0 %v2973, 35
      %v4025 = vpop.permute.xlu0 %4024
      %vm4026 = vcmask 285696
      %v4027 = vsel %vm4026, %v4011, %v4013
      %v4028 = vsel %vm4026, %v4013, %v4015
      %v4029 = vsel %vm4026, %v4015, %v4017
      %v4030 = vsel %vm4026, %v4017, %v4019
      %v4031 = vsel %vm4026, %v4019, %v4021
      %v4032 = vsel %vm4026, %v4021, %v4023
      %v4033 = vsel %vm4026, %v4023, %v4025
      %v4035 = vsel %vm345, %v4009, 0
      %v4038 = vsel %vm349, %v4027, 0
      %v4041 = vsel %vm349, %v4028, 0
      %v4044 = vsel %vm349, %v4029, 0
      %v4047 = vsel %vm349, %v4030, 0
      %v4050 = vsel %vm349, %v4031, 0
      %v4053 = vsel %vm349, %v4032, 0
      %v4056 = vsel %vm349, %v4033, 0
      %4058 = vmatpush.bf16.msra.mxu0 0
      %4059 = vmatpush.bf16.msra.mxu0 0
      %4060 = vmatpush.bf16.msra.mxu0 0
      %4061 = vmatpush.bf16.msra.mxu0 0
      %4062 = vmatpush.bf16.msra.mxu0 0
      %4063 = vmatpush.bf16.msra.mxu0 0
      %4064 = vmatpush.bf16.msra.mxu0 0
      %4065 = vmatpush.bf16.msra.mxu0 %v4038
      %4066 = vmatmul.bf16.gmra.mxu0 %v4035
      %v4067 = vpop.f32.mrf.mxu0
      %v4068 = vadd.f32 0.0, %v4067
      %v4069 = vpop.f32.mrf.mxu0
      %4070 = vdwg.mxu0
      %4071 = vmatpush.bf16.msra.mxu0 0
      %4072 = vmatpush.bf16.msra.mxu0 0
      %4073 = vmatpush.bf16.msra.mxu0 0
      %4074 = vmatpush.bf16.msra.mxu0 0
      %4075 = vmatpush.bf16.msra.mxu0 0
      %4076 = vmatpush.bf16.msra.mxu0 0
      %4077 = vmatpush.bf16.msra.mxu0 0
      %4078 = vmatpush.bf16.msra.mxu0 %v4041
      %4079 = vmatmul.bf16.gmra.mxu0 %v4035
      %v4080 = vpop.f32.mrf.mxu0
      %v4081 = vadd.f32 0.0, %v4080
      %v4082 = vpop.f32.mrf.mxu0
      %4083 = vdwg.mxu0
      %4084 = vmatpush.bf16.msra.mxu0 0
      %4085 = vmatpush.bf16.msra.mxu0 0
      %4086 = vmatpush.bf16.msra.mxu0 0
      %4087 = vmatpush.bf16.msra.mxu0 0
      %4088 = vmatpush.bf16.msra.mxu0 0
      %4089 = vmatpush.bf16.msra.mxu0 0
      %4090 = vmatpush.bf16.msra.mxu0 0
      %4091 = vmatpush.bf16.msra.mxu0 %v4044
      %4092 = vmatmul.bf16.gmra.mxu0 %v4035
      %v4093 = vpop.f32.mrf.mxu0
      %v4094 = vadd.f32 0.0, %v4093
      %v4095 = vpop.f32.mrf.mxu0
      %4096 = vdwg.mxu0
      %4097 = vmatpush.bf16.msra.mxu0 0
      %4098 = vmatpush.bf16.msra.mxu0 0
      %4099 = vmatpush.bf16.msra.mxu0 0
      %4100 = vmatpush.bf16.msra.mxu0 0
      %4101 = vmatpush.bf16.msra.mxu0 0
      %4102 = vmatpush.bf16.msra.mxu0 0
      %4103 = vmatpush.bf16.msra.mxu0 0
      %4104 = vmatpush.bf16.msra.mxu0 %v4047
      %4105 = vmatmul.bf16.gmra.mxu0 %v4035
      %v4106 = vpop.f32.mrf.mxu0
      %v4107 = vadd.f32 0.0, %v4106
      %v4108 = vpop.f32.mrf.mxu0
      %4109 = vdwg.mxu0
      %4110 = vmatpush.bf16.msra.mxu0 0
      %4111 = vmatpush.bf16.msra.mxu0 0
      %4112 = vmatpush.bf16.msra.mxu0 0
      %4113 = vmatpush.bf16.msra.mxu0 0
      %4114 = vmatpush.bf16.msra.mxu0 0
      %4115 = vmatpush.bf16.msra.mxu0 0
      %4116 = vmatpush.bf16.msra.mxu0 0
      %4117 = vmatpush.bf16.msra.mxu0 %v4050
      %4118 = vmatmul.bf16.gmra.mxu0 %v4035
      %v4119 = vpop.f32.mrf.mxu0
      %v4120 = vadd.f32 0.0, %v4119
      %v4121 = vpop.f32.mrf.mxu0
      %4122 = vdwg.mxu0
      %4123 = vmatpush.bf16.msra.mxu0 0
      %4124 = vmatpush.bf16.msra.mxu0 0
      %4125 = vmatpush.bf16.msra.mxu0 0
      %4126 = vmatpush.bf16.msra.mxu0 0
      %4127 = vmatpush.bf16.msra.mxu0 0
      %4128 = vmatpush.bf16.msra.mxu0 0
      %4129 = vmatpush.bf16.msra.mxu0 0
      %4130 = vmatpush.bf16.msra.mxu0 %v4053
      %4131 = vmatmul.bf16.gmra.mxu0 %v4035
      %v4132 = vpop.f32.mrf.mxu0
      %v4133 = vadd.f32 0.0, %v4132
      %v4134 = vpop.f32.mrf.mxu0
      %4135 = vdwg.mxu0
      %4136 = vmatpush.bf16.msra.mxu0 0
      %4137 = vmatpush.bf16.msra.mxu0 0
      %4138 = vmatpush.bf16.msra.mxu0 0
      %4139 = vmatpush.bf16.msra.mxu0 0
      %4140 = vmatpush.bf16.msra.mxu0 0
      %4141 = vmatpush.bf16.msra.mxu0 0
      %4142 = vmatpush.bf16.msra.mxu0 0
      %4143 = vmatpush.bf16.msra.mxu0 %v4056
      %4144 = vmatmul.bf16.gmra.mxu0 %v4035
      %v4145 = vpop.f32.mrf.mxu0
      %v4146 = vadd.f32 0.0, %v4145
      %v4147 = vpop.f32.mrf.mxu0
      %4148 = vdwg.mxu0
      %v4149 = vadd.f32 %v4001, %v4068
      %v4150 = vadd.f32 %v4002, %v4081
      %v4151 = vadd.f32 %v4003, %v4094
      %v4152 = vadd.f32 %v4004, %v4107
      %v4153 = vadd.f32 %v4005, %v4120
      %v4154 = vadd.f32 %v4006, %v4133
      %v4155 = vadd.f32 %v4007, %v4146
      %s4156 = scalar_lea.vmem %s1, 52
      %v4157 = vld [vmem:[%s4156] sm:$0x3]
      %4158 = vrot.lane.b32.xlu0 %v2966, 34
      %v4159 = vpop.permute.xlu0 %4158
      %4160 = vrot.lane.b32.xlu0 %v2967, 34
      %v4161 = vpop.permute.xlu0 %4160
      %4162 = vrot.lane.b32.xlu0 %v2968, 34
      %v4163 = vpop.permute.xlu0 %4162
      %4164 = vrot.lane.b32.xlu0 %v2969, 34
      %v4165 = vpop.permute.xlu0 %4164
      %4166 = vrot.lane.b32.xlu0 %v2970, 34
      %v4167 = vpop.permute.xlu0 %4166
      %4168 = vrot.lane.b32.xlu0 %v2971, 34
      %v4169 = vpop.permute.xlu0 %4168
      %4170 = vrot.lane.b32.xlu0 %v2972, 34
      %v4171 = vpop.permute.xlu0 %4170
      %4172 = vrot.lane.b32.xlu0 %v2973, 34
      %v4173 = vpop.permute.xlu0 %4172
      %vm4174 = vcmask 277504
      %v4175 = vsel %vm4174, %v4159, %v4161
      %v4176 = vsel %vm4174, %v4161, %v4163
      %v4177 = vsel %vm4174, %v4163, %v4165
      %v4178 = vsel %vm4174, %v4165, %v4167
      %v4179 = vsel %vm4174, %v4167, %v4169
      %v4180 = vsel %vm4174, %v4169, %v4171
      %v4181 = vsel %vm4174, %v4171, %v4173
      %v4183 = vsel %vm345, %v4157, 0
      %v4186 = vsel %vm349, %v4175, 0
      %v4189 = vsel %vm349, %v4176, 0
      %v4192 = vsel %vm349, %v4177, 0
      %v4195 = vsel %vm349, %v4178, 0
      %v4198 = vsel %vm349, %v4179, 0
      %v4201 = vsel %vm349, %v4180, 0
      %v4204 = vsel %vm349, %v4181, 0
      %4206 = vmatpush.bf16.msra.mxu0 0
      %4207 = vmatpush.bf16.msra.mxu0 0
      %4208 = vmatpush.bf16.msra.mxu0 0
      %4209 = vmatpush.bf16.msra.mxu0 0
      %4210 = vmatpush.bf16.msra.mxu0 0
      %4211 = vmatpush.bf16.msra.mxu0 0
      %4212 = vmatpush.bf16.msra.mxu0 0
      %4213 = vmatpush.bf16.msra.mxu0 %v4186
      %4214 = vmatmul.bf16.gmra.mxu0 %v4183
      %v4215 = vpop.f32.mrf.mxu0
      %v4216 = vadd.f32 0.0, %v4215
      %v4217 = vpop.f32.mrf.mxu0
      %4218 = vdwg.mxu0
      %4219 = vmatpush.bf16.msra.mxu0 0
      %4220 = vmatpush.bf16.msra.mxu0 0
      %4221 = vmatpush.bf16.msra.mxu0 0
      %4222 = vmatpush.bf16.msra.mxu0 0
      %4223 = vmatpush.bf16.msra.mxu0 0
      %4224 = vmatpush.bf16.msra.mxu0 0
      %4225 = vmatpush.bf16.msra.mxu0 0
      %4226 = vmatpush.bf16.msra.mxu0 %v4189
      %4227 = vmatmul.bf16.gmra.mxu0 %v4183
      %v4228 = vpop.f32.mrf.mxu0
      %v4229 = vadd.f32 0.0, %v4228
      %v4230 = vpop.f32.mrf.mxu0
      %4231 = vdwg.mxu0
      %4232 = vmatpush.bf16.msra.mxu0 0
      %4233 = vmatpush.bf16.msra.mxu0 0
      %4234 = vmatpush.bf16.msra.mxu0 0
      %4235 = vmatpush.bf16.msra.mxu0 0
      %4236 = vmatpush.bf16.msra.mxu0 0
      %4237 = vmatpush.bf16.msra.mxu0 0
      %4238 = vmatpush.bf16.msra.mxu0 0
      %4239 = vmatpush.bf16.msra.mxu0 %v4192
      %4240 = vmatmul.bf16.gmra.mxu0 %v4183
      %v4241 = vpop.f32.mrf.mxu0
      %v4242 = vadd.f32 0.0, %v4241
      %v4243 = vpop.f32.mrf.mxu0
      %4244 = vdwg.mxu0
      %4245 = vmatpush.bf16.msra.mxu0 0
      %4246 = vmatpush.bf16.msra.mxu0 0
      %4247 = vmatpush.bf16.msra.mxu0 0
      %4248 = vmatpush.bf16.msra.mxu0 0
      %4249 = vmatpush.bf16.msra.mxu0 0
      %4250 = vmatpush.bf16.msra.mxu0 0
      %4251 = vmatpush.bf16.msra.mxu0 0
      %4252 = vmatpush.bf16.msra.mxu0 %v4195
      %4253 = vmatmul.bf16.gmra.mxu0 %v4183
      %v4254 = vpop.f32.mrf.mxu0
      %v4255 = vadd.f32 0.0, %v4254
      %v4256 = vpop.f32.mrf.mxu0
      %4257 = vdwg.mxu0
      %4258 = vmatpush.bf16.msra.mxu0 0
      %4259 = vmatpush.bf16.msra.mxu0 0
      %4260 = vmatpush.bf16.msra.mxu0 0
      %4261 = vmatpush.bf16.msra.mxu0 0
      %4262 = vmatpush.bf16.msra.mxu0 0
      %4263 = vmatpush.bf16.msra.mxu0 0
      %4264 = vmatpush.bf16.msra.mxu0 0
      %4265 = vmatpush.bf16.msra.mxu0 %v4198
      %4266 = vmatmul.bf16.gmra.mxu0 %v4183
      %v4267 = vpop.f32.mrf.mxu0
      %v4268 = vadd.f32 0.0, %v4267
      %v4269 = vpop.f32.mrf.mxu0
      %4270 = vdwg.mxu0
      %4271 = vmatpush.bf16.msra.mxu0 0
      %4272 = vmatpush.bf16.msra.mxu0 0
      %4273 = vmatpush.bf16.msra.mxu0 0
      %4274 = vmatpush.bf16.msra.mxu0 0
      %4275 = vmatpush.bf16.msra.mxu0 0
      %4276 = vmatpush.bf16.msra.mxu0 0
      %4277 = vmatpush.bf16.msra.mxu0 0
      %4278 = vmatpush.bf16.msra.mxu0 %v4201
      %4279 = vmatmul.bf16.gmra.mxu0 %v4183
      %v4280 = vpop.f32.mrf.mxu0
      %v4281 = vadd.f32 0.0, %v4280
      %v4282 = vpop.f32.mrf.mxu0
      %4283 = vdwg.mxu0
      %4284 = vmatpush.bf16.msra.mxu0 0
      %4285 = vmatpush.bf16.msra.mxu0 0
      %4286 = vmatpush.bf16.msra.mxu0 0
      %4287 = vmatpush.bf16.msra.mxu0 0
      %4288 = vmatpush.bf16.msra.mxu0 0
      %4289 = vmatpush.bf16.msra.mxu0 0
      %4290 = vmatpush.bf16.msra.mxu0 0
      %4291 = vmatpush.bf16.msra.mxu0 %v4204
      %4292 = vmatmul.bf16.gmra.mxu0 %v4183
      %v4293 = vpop.f32.mrf.mxu0
      %v4294 = vadd.f32 0.0, %v4293
      %v4295 = vpop.f32.mrf.mxu0
      %4296 = vdwg.mxu0
      %v4297 = vadd.f32 %v4149, %v4216
      %v4298 = vadd.f32 %v4150, %v4229
      %v4299 = vadd.f32 %v4151, %v4242
      %v4300 = vadd.f32 %v4152, %v4255
      %v4301 = vadd.f32 %v4153, %v4268
      %v4302 = vadd.f32 %v4154, %v4281
      %v4303 = vadd.f32 %v4155, %v4294
      %v4304 = vld [vmem:[%s3] sm:$0xf]
      %4306 = vset.pattern.permute.xlu0 0
      %4307 = vperm.xlu0 %4306, %v4304
      %v4308 = vpop.permute.xlu0 %4307
      %v4310 = vadd.f32 %v4297, %v4308
      %v4311 = vadd.f32 %v4298, %v4308
      %v4312 = vadd.f32 %v4299, %v4308
      %v4313 = vadd.f32 %v4300, %v4308
      %v4314 = vadd.f32 %v4301, %v4308
      %v4315 = vadd.f32 %v4302, %v4308
      %v4316 = vadd.f32 %v4303, %v4308
      %v4317 = vld [vmem:[%s5] sm:$0x1]
      %vm4318 = vcmp.ge.f32.partialorder %v4310, 0.0
      %vm4319 = vcmp.ge.f32.partialorder %v4311, 0.0
      %vm4320 = vcmp.ge.f32.partialorder %v4312, 0.0
      %vm4321 = vcmp.ge.f32.partialorder %v4313, 0.0
      %vm4322 = vcmp.ge.f32.partialorder %v4314, 0.0
      %vm4323 = vcmp.ge.f32.partialorder %v4315, 0.0
      %vm4324 = vcmp.ge.f32.partialorder %v4316, 0.0
      %s4326 = vtos %v4317
      %v4327 = vstv %s4326
      %v4329 = vmul.f32 %v4327, %v4310
      %v4330 = vmul.f32 %v4327, %v4311
      %v4331 = vmul.f32 %v4327, %v4312
      %v4332 = vmul.f32 %v4327, %v4313
      %v4333 = vmul.f32 %v4327, %v4314
      %v4334 = vmul.f32 %v4327, %v4315
      %v4335 = vmul.f32 %v4327, %v4316
      %v4336 = vsel %vm4318, %v4310, %v4329
      %v4337 = vsel %vm4319, %v4311, %v4330
      %v4338 = vsel %vm4320, %v4312, %v4331
      %v4339 = vsel %vm4321, %v4313, %v4332
      %v4340 = vsel %vm4322, %v4314, %v4333
      %v4341 = vsel %vm4323, %v4315, %v4334
      %v4342 = vsel %vm4324, %v4316, %v4335
      %v4349 = vrot.slane %v4337, 4
      %v4350 = vrot.slane %v4339, 4
      %v4351 = vrot.slane %v4341, 4
      %v4352 = vsel %vm349, %v4336, %v4349
      %v4353 = vsel %vm349, %v4338, %v4350
      %v4354 = vsel %vm349, %v4340, %v4351
      %4358 = vst [vmem:[%s286] sm:$0xff] %v4352
      %4359 = vst [vmem:[%s286 + $0x8] sm:$0xff] %v4353
      %4360 = vst [vmem:[%s286 + $0x10] sm:$0xff] %v4354
      %4361 = vst [vmem:[%s286 + $0x18] sm:$0xf] %v4342
      %v4362 = vld [vmem:[%s281] sm:$0xff]
      %v4363 = vld [vmem:[%s281 + $0x8] sm:$0xff]
      %v4364 = vld [vmem:[%s281 + $0x10] sm:$0xff]
      %v4365 = vld [vmem:[%s281 + $0x18] sm:$0xff]
      %v4366 = vld [vmem:[%s2] sm:$0x3]
      %v4367 = vld [vmem:[%s4] sm:$0xf]
      %4369 = vset.pattern.permute.xlu0 0
      %4370 = vperm.xlu0 %4369, %v4367
      %v4371 = vpop.permute.xlu0 %4370
      %v4377 = vunpack.c.l.b16 %v4362
      %v4378 = vunpack.c.h.b16 %v4362
      %v4379 = vunpack.c.l.b16 %v4363
      %v4380 = vunpack.c.h.b16 %v4363
      %v4381 = vunpack.c.l.b16 %v4364
      %v4382 = vunpack.c.h.b16 %v4364
      %v4383 = vunpack.c.l.b16 %v4365
      %v4384 = vunpack.c.h.b16 %v4365
      %v4385 = vpack.c.b16 %v4377, %v4377
      %v4386 = vpack.c.b16 %v4378, %v4378
      %v4387 = vpack.c.b16 %v4379, %v4379
      %v4388 = vpack.c.b16 %v4380, %v4380
      %v4389 = vpack.c.b16 %v4381, %v4381
      %v4390 = vpack.c.b16 %v4382, %v4382
      %v4391 = vpack.c.b16 %v4383, %v4383
      %v4392 = vpack.c.b16 %v4384, %v4384
      %4393 = vrot.lane.b32.xlu0 %v4385, 17
      %v4394 = vpop.permute.xlu0 %4393
      %4395 = vrot.lane.b32.xlu0 %v4386, 17
      %v4396 = vpop.permute.xlu0 %4395
      %4397 = vrot.lane.b32.xlu0 %v4387, 17
      %v4398 = vpop.permute.xlu0 %4397
      %4399 = vrot.lane.b32.xlu0 %v4388, 17
      %v4400 = vpop.permute.xlu0 %4399
      %4401 = vrot.lane.b32.xlu0 %v4389, 17
      %v4402 = vpop.permute.xlu0 %4401
      %4403 = vrot.lane.b32.xlu0 %v4390, 17
      %v4404 = vpop.permute.xlu0 %4403
      %4405 = vrot.lane.b32.xlu0 %v4391, 17
      %v4406 = vpop.permute.xlu0 %4405
      %4407 = vrot.lane.b32.xlu0 %v4392, 17
      %v4408 = vpop.permute.xlu0 %4407
      %v4409 = vsel %vm2226, %v4394, %v4396
      %v4410 = vsel %vm2226, %v4396, %v4398
      %v4411 = vsel %vm2226, %v4398, %v4400
      %v4412 = vsel %vm2226, %v4400, %v4402
      %v4413 = vsel %vm2226, %v4402, %v4404
      %v4414 = vsel %vm2226, %v4404, %v4406
      %v4415 = vsel %vm2226, %v4406, %v4408
      %v4417 = vsel %vm345, %v4366, 0
      %v4420 = vsel %vm349, %v4409, 0
      %v4423 = vsel %vm349, %v4410, 0
      %v4426 = vsel %vm349, %v4411, 0
      %v4429 = vsel %vm349, %v4412, 0
      %v4432 = vsel %vm349, %v4413, 0
      %v4435 = vsel %vm349, %v4414, 0
      %v4438 = vsel %vm349, %v4415, 0
      %4440 = vmatpush.bf16.msra.mxu0 0
      %4441 = vmatpush.bf16.msra.mxu0 0
      %4442 = vmatpush.bf16.msra.mxu0 0
      %4443 = vmatpush.bf16.msra.mxu0 0
      %4444 = vmatpush.bf16.msra.mxu0 0
      %4445 = vmatpush.bf16.msra.mxu0 0
      %4446 = vmatpush.bf16.msra.mxu0 0
      %4447 = vmatpush.bf16.msra.mxu0 %v4420
      %4448 = vmatmul.bf16.gmra.mxu0 %v4417
      %v4449 = vpop.f32.mrf.mxu0
      %v4450 = vadd.f32 %v4371, %v4449
      %v4451 = vpop.f32.mrf.mxu0
      %4452 = vdwg.mxu0
      %4453 = vmatpush.bf16.msra.mxu0 0
      %4454 = vmatpush.bf16.msra.mxu0 0
      %4455 = vmatpush.bf16.msra.mxu0 0
      %4456 = vmatpush.bf16.msra.mxu0 0
      %4457 = vmatpush.bf16.msra.mxu0 0
      %4458 = vmatpush.bf16.msra.mxu0 0
      %4459 = vmatpush.bf16.msra.mxu0 0
      %4460 = vmatpush.bf16.msra.mxu0 %v4423
      %4461 = vmatmul.bf16.gmra.mxu0 %v4417
      %v4462 = vpop.f32.mrf.mxu0
      %v4463 = vadd.f32 %v4371, %v4462
      %v4464 = vpop.f32.mrf.mxu0
      %4465 = vdwg.mxu0
      %4466 = vmatpush.bf16.msra.mxu0 0
      %4467 = vmatpush.bf16.msra.mxu0 0
      %4468 = vmatpush.bf16.msra.mxu0 0
      %4469 = vmatpush.bf16.msra.mxu0 0
      %4470 = vmatpush.bf16.msra.mxu0 0
      %4471 = vmatpush.bf16.msra.mxu0 0
      %4472 = vmatpush.bf16.msra.mxu0 0
      %4473 = vmatpush.bf16.msra.mxu0 %v4426
      %4474 = vmatmul.bf16.gmra.mxu0 %v4417
      %v4475 = vpop.f32.mrf.mxu0
      %v4476 = vadd.f32 %v4371, %v4475
      %v4477 = vpop.f32.mrf.mxu0
      %4478 = vdwg.mxu0
      %4479 = vmatpush.bf16.msra.mxu0 0
      %4480 = vmatpush.bf16.msra.mxu0 0
      %4481 = vmatpush.bf16.msra.mxu0 0
      %4482 = vmatpush.bf16.msra.mxu0 0
      %4483 = vmatpush.bf16.msra.mxu0 0
      %4484 = vmatpush.bf16.msra.mxu0 0
      %4485 = vmatpush.bf16.msra.mxu0 0
      %4486 = vmatpush.bf16.msra.mxu0 %v4429
      %4487 = vmatmul.bf16.gmra.mxu0 %v4417
      %v4488 = vpop.f32.mrf.mxu0
      %v4489 = vadd.f32 %v4371, %v4488
      %v4490 = vpop.f32.mrf.mxu0
      %4491 = vdwg.mxu0
      %4492 = vmatpush.bf16.msra.mxu0 0
      %4493 = vmatpush.bf16.msra.mxu0 0
      %4494 = vmatpush.bf16.msra.mxu0 0
      %4495 = vmatpush.bf16.msra.mxu0 0
      %4496 = vmatpush.bf16.msra.mxu0 0
      %4497 = vmatpush.bf16.msra.mxu0 0
      %4498 = vmatpush.bf16.msra.mxu0 0
      %4499 = vmatpush.bf16.msra.mxu0 %v4432
      %4500 = vmatmul.bf16.gmra.mxu0 %v4417
      %v4501 = vpop.f32.mrf.mxu0
      %v4502 = vadd.f32 %v4371, %v4501
      %v4503 = vpop.f32.mrf.mxu0
      %4504 = vdwg.mxu0
      %4505 = vmatpush.bf16.msra.mxu0 0
      %4506 = vmatpush.bf16.msra.mxu0 0
      %4507 = vmatpush.bf16.msra.mxu0 0
      %4508 = vmatpush.bf16.msra.mxu0 0
      %4509 = vmatpush.bf16.msra.mxu0 0
      %4510 = vmatpush.bf16.msra.mxu0 0
      %4511 = vmatpush.bf16.msra.mxu0 0
      %4512 = vmatpush.bf16.msra.mxu0 %v4435
      %4513 = vmatmul.bf16.gmra.mxu0 %v4417
      %v4514 = vpop.f32.mrf.mxu0
      %v4515 = vadd.f32 %v4371, %v4514
      %v4516 = vpop.f32.mrf.mxu0
      %4517 = vdwg.mxu0
      %4518 = vmatpush.bf16.msra.mxu0 0
      %4519 = vmatpush.bf16.msra.mxu0 0
      %4520 = vmatpush.bf16.msra.mxu0 0
      %4521 = vmatpush.bf16.msra.mxu0 0
      %4522 = vmatpush.bf16.msra.mxu0 0
      %4523 = vmatpush.bf16.msra.mxu0 0
      %4524 = vmatpush.bf16.msra.mxu0 0
      %4525 = vmatpush.bf16.msra.mxu0 %v4438
      %4526 = vmatmul.bf16.gmra.mxu0 %v4417
      %v4527 = vpop.f32.mrf.mxu0
      %v4528 = vadd.f32 %v4371, %v4527
      %v4529 = vpop.f32.mrf.mxu0
      %4530 = vdwg.mxu0
      %v4531 = vld [vmem:[%s5 + $0x1] sm:$0x1]
      %vm4532 = vcmp.ge.f32.partialorder %v4450, 0.0
      %vm4533 = vcmp.ge.f32.partialorder %v4463, 0.0
      %vm4534 = vcmp.ge.f32.partialorder %v4476, 0.0
      %vm4535 = vcmp.ge.f32.partialorder %v4489, 0.0
      %vm4536 = vcmp.ge.f32.partialorder %v4502, 0.0
      %vm4537 = vcmp.ge.f32.partialorder %v4515, 0.0
      %vm4538 = vcmp.ge.f32.partialorder %v4528, 0.0
      %s4540 = vtos %v4531
      %v4541 = vstv %s4540
      %v4543 = vmul.f32 %v4541, %v4450
      %v4544 = vmul.f32 %v4541, %v4463
      %v4545 = vmul.f32 %v4541, %v4476
      %v4546 = vmul.f32 %v4541, %v4489
      %v4547 = vmul.f32 %v4541, %v4502
      %v4548 = vmul.f32 %v4541, %v4515
      %v4549 = vmul.f32 %v4541, %v4528
      %v4550 = vsel %vm4532, %v4450, %v4543
      %v4551 = vsel %vm4533, %v4463, %v4544
      %v4552 = vsel %vm4534, %v4476, %v4545
      %v4553 = vsel %vm4535, %v4489, %v4546
      %v4554 = vsel %vm4536, %v4502, %v4547
      %v4555 = vsel %vm4537, %v4515, %v4548
      %v4556 = vsel %vm4538, %v4528, %v4549
      %v4563 = vrot.slane %v4551, 4
      %v4564 = vrot.slane %v4553, 4
      %v4565 = vrot.slane %v4555, 4
      %v4566 = vsel %vm349, %v4550, %v4563
      %v4567 = vsel %vm349, %v4552, %v4564
      %v4568 = vsel %vm349, %v4554, %v4565
      %4572 = vst [vmem:[%s291] sm:$0xff] %v4566
      %4573 = vst [vmem:[%s291 + $0x8] sm:$0xff] %v4567
      %4574 = vst [vmem:[%s291 + $0x10] sm:$0xff] %v4568
      %4575 = vst [vmem:[%s291 + $0x18] sm:$0xf] %v4556
      %p4576 = scmp.lt.s32.totalorder %s19, 1
      %s4577 = scalar_select %p4576, %s19, 1
      %s4578 = smul.addr %s4577, 7
      %s4579 = smul.addr %s4578, 4
      %s4580 = scalar_lea.vmem %s6, %s4579
      %p4581 = scmp.lt.s32.totalorder %s19, 1
      %s4582 = scalar_select %p4581, %s19, 1
      %s4583 = smul.addr %s4582, 7
      %s4584 = smul.addr %s4583, 4
      %s4585 = scalar_lea.vmem %s7, %s4584
      // Predicated region
      $region45: #{up_forward.9} parent=43 // pred_check
        %p4586 = pneg %p168
      $region46: #{up_forward.9} parent=43 // pred_check_branch
        %4588 = sbr.rel (%p4586) target = $region48
      $region47: #{up_forward.9} parent=43 // pred_region
        _
      $region48: #{up_forward.9} parent=43 // pred_fallthru
        _
      // Predicated region
      $region49: #{up_forward.9} parent=43 // pred_check
        %p4589 = pneg %p194
      $region50: #{up_forward.9} parent=43 // pred_check_branch
        %4591 = sbr.rel (%p4589) target = $region52
      $region51: #{up_forward.9} parent=43 // pred_region
        _
      $region52: #{up_forward.9} parent=43 // pred_fallthru
        _
    $region44: #{up_forward.9} parent=5 // pred_fallthru
      _
    %p4592 = scmp.le.s32.totalorder 2, %s14
    // Predicated region
    $region53: #{up_forward.9} parent=5 // pred_check
      %p4593 = pneg %p4592
    $region54: #{up_forward.9} parent=5 // pred_check_branch
      %4595 = sbr.rel (%p4593) target = $region56
    $region55: #{up_forward.9} parent=5 // pred_region
      %s4596 = ssub.s32 %s14, 2
      // Predicated region
      $region57: #{up_forward.9} parent=55 // pred_check
        %p4597 = pneg %p174
      $region58: #{up_forward.9} parent=55 // pred_check_branch
        %4599 = sbr.rel (%p4597) target = $region60
      $region59: #{up_forward.9} parent=55 // pred_region
        %p4600 = scmp.lt.s32.totalorder %s20, 1
        %s4601 = scalar_select %p4600, %s20, 1
        %s4602 = smul.addr %s4601, 7
        %s4603 = smul.addr %s4602, 4
        %s4604 = scalar_lea.vmem %s6, %s4603
      $region60: #{up_forward.9} parent=55 // pred_fallthru
        _
      // Predicated region
      $region61: #{up_forward.9} parent=55 // pred_check
        %p4605 = pneg %p200
      $region62: #{up_forward.9} parent=55 // pred_check_branch
        %4607 = sbr.rel (%p4605) target = $region64
      $region63: #{up_forward.9} parent=55 // pred_region
        %p4608 = scmp.lt.s32.totalorder %s20, 1
        %s4609 = scalar_select %p4608, %s20, 1
        %s4610 = smul.addr %s4609, 7
        %s4611 = smul.addr %s4610, 4
        %s4612 = scalar_lea.vmem %s7, %s4611
      $region64: #{up_forward.9} parent=55 // pred_fallthru
        _
    $region56: #{up_forward.9} parent=5 // pred_fallthru
      _
  $region6: #{up_forward.9} parent=0 // loop_footer
    %s18 = sadd.s32 1, %s14
  $region7: #{up_forward.9} parent=0 // loop_footer_branch
    %13 = sbr.rel target = $region3
  $region8: #{up_forward.9} parent=0 // loop_exit
    _

// kernel: up_forward.13
$region0: #{up_forward.13}
  #allocation0 [shape = 'u32[]', space=smem, size = 0x4, offset = 0x4, fixed_abs, tag = 'smem constant byte address 0x4 - core index']
  #allocation1 [shape = 'u32[72,128]{1,0:T(1,128)}', space=vmem, size = 0x9000, scoped, tag = 'internal scratch']
  %s0 = inlined_call_operand.vmem [shape: f32[8,512], index: 0, kind: input, shape index: {}]
  %s1 = inlined_call_operand.vmem [shape: f32[8,512], index: 1, kind: input, shape index: {}]
  %s2 = inlined_call_operand.vmem [shape: f32[8,512], index: 2, kind: output, shape index: {}]
  %s3 = sld [smem:[#allocation0]]
  $region18: #{up_forward.13} parent=0
    _
  %s5 = ssub.s32 1, %s3
  %s6 = scalar_select 0, %s5, %s3
  // Predicated region
  $region2: #{up_forward.13} parent=0 // pred_check
    _
  $region3: #{up_forward.13} parent=0 // pred_check_branch
    %8 = sbr.rel (0) target = $region5
  $region4: #{up_forward.13} parent=0 // pred_region
    _
  $region5: #{up_forward.13} parent=0 // pred_fallthru
    _
  // Predicated region
  $region6: #{up_forward.13} parent=0 // pred_check
    _
  $region7: #{up_forward.13} parent=0 // pred_check_branch
    %10 = sbr.rel (0) target = $region9
  $region8: #{up_forward.13} parent=0 // pred_region
    _
  $region9: #{up_forward.13} parent=0 // pred_fallthru
    _
  %v11 = vld [vmem:[%s0] sm:$0xff]
  %v12 = vld [vmem:[%s0 + $0x8] sm:$0xff]
  %v13 = vld [vmem:[%s0 + $0x10] sm:$0xff]
  %v14 = vld [vmem:[%s0 + $0x18] sm:$0xff]
  %v15 = vadd.f32 %v11, %v12
  %v16 = vadd.f32 %v15, %v13
  %v17 = vadd.f32 %v16, %v14
  %18 = vadd.xlane.f32.xlu0 %v17
  %v19 = vpop.xlane.xlu0 %18
  %v20 = vrcp.pop 512.0
  %v21 = vmul.f32 512.0, %v20
  %v22 = vsub.f32 1.0, %v21
  %v23 = vmul.f32 %v20, %v22
  %v24 = vadd.f32 %v20, %v23
  %vm25 = vweird.f32 %v20
  %v26 = vsel %vm25, %v20, %v24
  %v27 = vmul.f32 %v19, %v26
  %v28 = vsub.f32 %v11, %v27
  %v29 = vsub.f32 %v12, %v27
  %v30 = vsub.f32 %v13, %v27
  %v31 = vsub.f32 %v14, %v27
  %v32 = vmul.f32 %v28, %v28
  %v33 = vmul.f32 %v29, %v29
  %v34 = vmul.f32 %v30, %v30
  %v35 = vmul.f32 %v31, %v31
  %v36 = vadd.f32 %v32, %v33
  %v37 = vadd.f32 %v36, %v34
  %v38 = vadd.f32 %v37, %v35
  %39 = vadd.xlane.f32.xlu0 %v38
  %v40 = vpop.xlane.xlu0 %39
  %v41 = vmul.f32 %v40, %v26
  %v42 = vadd.f32 %v41, 1e-05
  %v43 = vrsqrt.pop %v42
  %v44 = vmul.f32 %v43, %v42
  %v45 = vmul.f32 %v44, %v43
  %v46 = vmul.f32 0.5, %v45
  %v47 = vsub.f32 1.5, %v46
  %v48 = vmul.f32 %v43, %v47
  %vm49 = vweird.f32 %v42
  %vm50 = vweird.f32 %v43
  %vm51 = vmor %vm49, %vm50
  %v52 = vsel %vm51, %v43, %v48
  %v53 = vmul.f32 %v28, %v52
  %v54 = vmul.f32 %v29, %v52
  %v55 = vmul.f32 %v30, %v52
  %v56 = vmul.f32 %v31, %v52
  %v57 = vld [vmem:[%s1] sm:$0xff]
  %v58 = vld [vmem:[%s1 + $0x8] sm:$0xff]
  %v59 = vld [vmem:[%s1 + $0x10] sm:$0xff]
  %v60 = vld [vmem:[%s1 + $0x18] sm:$0xff]
  %v61 = vadd.f32 %v53, %v57
  %v62 = vadd.f32 %v54, %v58
  %v63 = vadd.f32 %v55, %v59
  %v64 = vadd.f32 %v56, %v60
  %65 = vst [vmem:[%s2] sm:$0xff] %v61
  %66 = vst [vmem:[%s2 + $0x8] sm:$0xff] %v62
  %67 = vst [vmem:[%s2 + $0x10] sm:$0xff] %v63
  %68 = vst [vmem:[%s2 + $0x18] sm:$0xff] %v64
  // Predicated region
  $region10: #{up_forward.13} parent=0 // pred_check
    _
  $region11: #{up_forward.13} parent=0 // pred_check_branch
    %70 = sbr.rel (0) target = $region13
  $region12: #{up_forward.13} parent=0 // pred_region
    _
  $region13: #{up_forward.13} parent=0 // pred_fallthru
    _
  // Predicated region
  $region14: #{up_forward.13} parent=0 // pred_check
    _
  $region15: #{up_forward.13} parent=0 // pred_check_branch
    %72 = sbr.rel (0) target = $region17
  $region16: #{up_forward.13} parent=0 // pred_region
    _
  $region17: #{up_forward.13} parent=0 // pred_fallthru
    _

// kernel: up_forward.12
$region0: #{up_forward.12}
  #allocation0 [shape = 'u32[]', space=smem, size = 0x4, offset = 0x4, fixed_abs, tag = 'smem constant byte address 0x4 - core index']
  #allocation1 [shape = 'u32[72,128]{1,0:T(1,128)}', space=vmem, size = 0x9000, scoped, tag = 'internal scratch']
  #allocation2 [shape = 'f32[1,1]{1,0:T(1,128)S(1)}', space=vmem, size = 0x200, scoped, tag = 'scoped memory for up_forward.12']
  %s0 = inlined_call_operand.vmem [shape: bf16[2,4,1152], index: 0, kind: input, shape index: {}]
  %s1 = inlined_call_operand.vmem [shape: bf16[27,4,4], index: 1, kind: input, shape index: {}]
  %s2 = inlined_call_operand.vmem [shape: f32[4,1], index: 2, kind: input, shape index: {}]
  %s3 = inlined_call_operand.<no memory space> [shape: f32[1,1], index: 3, kind: input, shape index: {}]
  %s4 = inlined_call_operand.vmem [shape: f32[2,4,896], index: 4, kind: output, shape index: {}]
  %s5 = sld [smem:[#allocation0]]
  $region49: #{up_forward.12} parent=0
    _
  %s7 = ssub.s32 1, %s5
  %s8 = scalar_select 0, %s7, %s5
  %v9 = vstv %s3
  %10 = vst [vmem:[#allocation2] sm:$0x1] %v9
  loop: start=0, step=1, limit=4
  $region2: #{up_forward.12} parent=0 // loop_pre_header
    _
  $region3: #{up_forward.12} parent=0 // loop_header
    %s12 = sphi 0, %s16
    %p13 = scmp.ge.s32.totalorder %s12, 4
    %s22 = sphi 0, %s24
    %s25 = sphi 0, %s22
    %s26 = sphi 0, %s25
    %s42 = sphi 0, %s26
    %s46 = sphi 0, %s46
    %s48 = sphi 0, %s46
    %s49 = sphi 0, %s48
    %s63 = sphi 0, %s49
    %s67 = sphi 0, %s67
    %s69 = sphi 0, %s67
    %s70 = sphi 0, %s69
    %s84 = sphi 0, %s70
    %s88 = sphi 0, %s88
    %s90 = sphi 0, %s88
    %s91 = sphi 0, %s90
    %s105 = sphi 0, %s91
    %s111 = sphi 0, %s113
    %s114 = sphi 0, %s111
    %s115 = sphi 0, %s114
    %s131 = sphi 0, %s115
  $region4: #{up_forward.12} parent=0 // loop_header_branch
    %15 = sbr.rel (%p13) target = $region8
  $region5: #{up_forward.12} parent=0 // loop_body
    %s17 = ssub.s32 %s12, 1
    %s18 = ssub.s32 %s12, 2
    %s19 = sadd.s32 %s12, 1
    %s20 = ssub.s32 %s12, %s19
    %p21 = scmp.eq.s32.totalorder %s20, 0
    %s23 = sadd.s32 %s22, 1
    %s24 = scalar_select %p21, %s22, %s23
    %p27 = pneg %p21
    %p28 = scmp.eq.s32.totalorder %s12, 1
    %p29 = por %p27, %p28
    %p30 = scmp.ne.s32.totalorder %s22, %s25
    %p31 = scmp.eq.s32.totalorder %s12, 0
    %p32 = por %p30, %p31
    %p33 = scmp.ne.s32.totalorder %s22, %s25
    %p34 = scmp.eq.s32.totalorder %s17, 1
    %p35 = por %p33, %p34
    %p36 = scmp.ne.s32.totalorder %s25, %s26
    %p37 = scmp.eq.s32.totalorder %s17, 0
    %p38 = por %p36, %p37
    %p39 = scmp.ne.s32.totalorder %s25, %s26
    %p40 = scmp.eq.s32.totalorder %s18, 1
    %p41 = por %p39, %p40
    %p43 = scmp.ne.s32.totalorder %s26, %s42
    %p44 = scmp.eq.s32.totalorder %s18, 0
    %p45 = por %p43, %p44
    %s47 = sadd.s32 %s46, 1
    %p50 = scmp.eq.s32.totalorder %s12, 1
    %p51 = scmp.ne.s32.totalorder %s46, %s48
    %p52 = scmp.eq.s32.totalorder %s12, 0
    %p53 = por %p51, %p52
    %p54 = scmp.ne.s32.totalorder %s46, %s48
    %p55 = scmp.eq.s32.totalorder %s17, 1
    %p56 = por %p54, %p55
    %p57 = scmp.ne.s32.totalorder %s48, %s49
    %p58 = scmp.eq.s32.totalorder %s17, 0
    %p59 = por %p57, %p58
    %p60 = scmp.ne.s32.totalorder %s48, %s49
    %p61 = scmp.eq.s32.totalorder %s18, 1
    %p62 = por %p60, %p61
    %p64 = scmp.ne.s32.totalorder %s49, %s63
    %p65 = scmp.eq.s32.totalorder %s18, 0
    %p66 = por %p64, %p65
    %s68 = sadd.s32 %s67, 1
    %p71 = scmp.eq.s32.totalorder %s12, 1
    %p72 = scmp.ne.s32.totalorder %s67, %s69
    %p73 = scmp.eq.s32.totalorder %s12, 0
    %p74 = por %p72, %p73
    %p75 = scmp.ne.s32.totalorder %s67, %s69
    %p76 = scmp.eq.s32.totalorder %s17, 1
    %p77 = por %p75, %p76
    %p78 = scmp.ne.s32.totalorder %s69, %s70
    %p79 = scmp.eq.s32.totalorder %s17, 0
    %p80 = por %p78, %p79
    %p81 = scmp.ne.s32.totalorder %s69, %s70
    %p82 = scmp.eq.s32.totalorder %s18, 1
    %p83 = por %p81, %p82
    %p85 = scmp.ne.s32.totalorder %s70, %s84
    %p86 = scmp.eq.s32.totalorder %s18, 0
    %p87 = por %p85, %p86
    %s89 = sadd.s32 %s88, 1
    %p92 = scmp.eq.s32.totalorder %s12, 1
    %p93 = scmp.ne.s32.totalorder %s88, %s90
    %p94 = scmp.eq.s32.totalorder %s12, 0
    %p95 = por %p93, %p94
    %p96 = scmp.ne.s32.totalorder %s88, %s90
    %p97 = scmp.eq.s32.totalorder %s17, 1
    %p98 = por %p96, %p97
    %p99 = scmp.ne.s32.totalorder %s90, %s91
    %p100 = scmp.eq.s32.totalorder %s17, 0
    %p101 = por %p99, %p100
    %p102 = scmp.ne.s32.totalorder %s90, %s91
    %p103 = scmp.eq.s32.totalorder %s18, 1
    %p104 = por %p102, %p103
    %p106 = scmp.ne.s32.totalorder %s91, %s105
    %p107 = scmp.eq.s32.totalorder %s18, 0
    %p108 = por %p106, %p107
    %s109 = ssub.s32 %s12, %s19
    %p110 = scmp.eq.s32.totalorder %s109, 0
    %s112 = sadd.s32 %s111, 1
    %s113 = scalar_select %p110, %s111, %s112
    %p116 = pneg %p110
    %p117 = scmp.eq.s32.totalorder %s12, 1
    %p118 = por %p116, %p117
    %p119 = scmp.ne.s32.totalorder %s111, %s114
    %p120 = scmp.eq.s32.totalorder %s12, 0
    %p121 = por %p119, %p120
    %p122 = scmp.ne.s32.totalorder %s111, %s114
    %p123 = scmp.eq.s32.totalorder %s17, 1
    %p124 = por %p122, %p123
    %p125 = scmp.ne.s32.totalorder %s114, %s115
    %p126 = scmp.eq.s32.totalorder %s17, 0
    %p127 = por %p125, %p126
    %p128 = scmp.ne.s32.totalorder %s114, %s115
    %p129 = scmp.eq.s32.totalorder %s18, 1
    %p130 = por %p128, %p129
    %p132 = scmp.ne.s32.totalorder %s115, %s131
    %p133 = scmp.eq.s32.totalorder %s18, 0
    %p134 = por %p132, %p133
    %p135 = scmp.le.s32.totalorder 1, %s12
    %p136 = scmp.lt.s32.totalorder %s12, 3
    %p137 = pnand %p135, %p136
    %p138 = pneg %p137
    // Predicated region
    $region9: #{up_forward.12} parent=5 // pred_check
      _
    $region10: #{up_forward.12} parent=5 // pred_check_branch
      %140 = sbr.rel (%p137) target = $region12
    $region11: #{up_forward.12} parent=5 // pred_region
      %s141 = ssub.s32 %s12, 1
      // Predicated region
      $region13: #{up_forward.12} parent=11 // pred_check
        %p142 = pneg %p59
      $region14: #{up_forward.12} parent=11 // pred_check_branch
        %144 = sbr.rel (%p142) target = $region16
      $region15: #{up_forward.12} parent=11 // pred_region
        _
      $region16: #{up_forward.12} parent=11 // pred_fallthru
        _
      // Predicated region
      $region17: #{up_forward.12} parent=11 // pred_check
        %p145 = pneg %p80
      $region18: #{up_forward.12} parent=11 // pred_check_branch
        %147 = sbr.rel (%p145) target = $region20
      $region19: #{up_forward.12} parent=11 // pred_region
        _
      $region20: #{up_forward.12} parent=11 // pred_fallthru
        _
      // Predicated region
      $region21: #{up_forward.12} parent=11 // pred_check
        %p148 = pneg %p101
      $region22: #{up_forward.12} parent=11 // pred_check_branch
        %150 = sbr.rel (%p148) target = $region24
      $region23: #{up_forward.12} parent=11 // pred_region
        _
      $region24: #{up_forward.12} parent=11 // pred_fallthru
        _
    $region12: #{up_forward.12} parent=5 // pred_fallthru
      _
    %p151 = scmp.lt.s32.totalorder %s12, 2
    // Predicated region
    $region25: #{up_forward.12} parent=5 // pred_check
      %p152 = pneg %p151
    $region26: #{up_forward.12} parent=5 // pred_check_branch
      %154 = sbr.rel (%p152) target = $region28
    $region27: #{up_forward.12} parent=5 // pred_region
      // Predicated region
      $region29: #{up_forward.12} parent=27 // pred_check
        %p155 = pneg %p32
      $region30: #{up_forward.12} parent=27 // pred_check_branch
        %157 = sbr.rel (%p155) target = $region32
      $region31: #{up_forward.12} parent=27 // pred_region
        %p158 = scmp.lt.s32.totalorder %s12, 1
        %s159 = scalar_select %p158, %s12, 1
        %s160 = smul.addr %s159, 9
        %s161 = smul.addr %s160, 2
        %s162 = scalar_lea.vmem %s0, %s161
      $region32: #{up_forward.12} parent=27 // pred_fallthru
        _
    $region28: #{up_forward.12} parent=5 // pred_fallthru
      _
    %p163 = scmp.le.s32.totalorder 1, %s12
    %p164 = scmp.lt.s32.totalorder %s12, 3
    %p165 = pnand %p163, %p164
    %p166 = pneg %p165
    // Predicated region
    $region33: #{up_forward.12} parent=5 // pred_check
      _
    $region34: #{up_forward.12} parent=5 // pred_check_branch
      %168 = sbr.rel (%p165) target = $region36
    $region35: #{up_forward.12} parent=5 // pred_region
      %s169 = ssub.s32 %s12, 1
      %p170 = scmp.lt.s32.totalorder %s17, 1
      %s171 = scalar_select %p170, %s17, 1
      %s172 = smul.addr %s171, 9
      %s173 = smul.addr %s172, 2
      %s174 = scalar_lea.vmem %s0, %s173
      %p175 = pneg %p38
      %p176 = pneg %p35
      %p177 = pneg %p59
      %p178 = pneg %p56
      %p179 = pneg %p80
      %p180 = pneg %p77
      %p181 = pneg %p101
      %p182 = pneg %p98
      %p183 = pneg %p127
      %p184 = pneg %p124
      %p185 = scmp.lt.s32.totalorder %s17, 1
      %s186 = scalar_select %p185, %s17, 1
      %s187 = smul.addr %s186, 7
      %s188 = smul.addr %s187, 4
      %s189 = scalar_lea.vmem %s4, %s188
      %p190 = scmp.lt.s32.totalorder %s17, 1
      %s191 = scalar_select %p190, %s17, 1
      %s192 = smul.addr %s191, 9
      %s193 = smul.addr %s192, 2
      %s194 = scalar_lea.vmem %s0, %s193
      %p195 = scmp.lt.s32.totalorder %s17, 1
      %s196 = scalar_select %p195, %s17, 1
      %s197 = smul.addr %s196, 7
      %s198 = smul.addr %s197, 4
      %s199 = scalar_lea.vmem %s4, %s198
      %v201 = vld [vmem:[%s194] sm:$0xff]
      %v202 = vld [vmem:[%s194 + $0x8] sm:$0x3f]
      %v203 = vld [vmem:[%s1] sm:$0x3]
      %v204 = vld [vmem:[%s194 + $0x8] sm:$0xff]
      %s205 = scalar_lea.vmem %s1, 2
      %v206 = vld [vmem:[%s205] sm:$0x3]
      %208 = vst [vmem:[#allocation1] ss:$4 sm:$0xff] %v201
      %s210 = scalar_lea.vmem [#allocation1], 32
      %211 = vst [vmem:[%s210] ss:$4 sm:$0xff] %v204
      %v212 = vld.sshfl [vmem:[#allocation1] sm:$0xff pattern:$0x73625140]
      %v214 = vld.sshfl [vmem:[#allocation1 + $0x8] sm:$0xff pattern:$0x73625140]
      %v216 = vld.sshfl [vmem:[#allocation1 + $0x10] sm:$0xff pattern:$0x73625140]
      %v218 = vld.sshfl [vmem:[#allocation1 + $0x18] sm:$0xff pattern:$0x73625140]
      %v220 = vld.sshfl [vmem:[#allocation1 + $0x20] sm:$0xff pattern:$0x73625140]
      %v222 = vld.sshfl [vmem:[#allocation1 + $0x28] sm:$0xff pattern:$0x73625140]
      %v224 = vld.sshfl [vmem:[#allocation1 + $0x30] sm:$0xff pattern:$0x73625140]
      %v226 = vld.sshfl [vmem:[#allocation1 + $0x38] sm:$0xff pattern:$0x73625140]
      %228 = vrot.lane.b32.xlu0 %v212, 127
      %v229 = vpop.permute.xlu0 %228
      %230 = vrot.lane.b32.xlu0 %v214, 127
      %v231 = vpop.permute.xlu0 %230
      %232 = vrot.lane.b32.xlu0 %v216, 127
      %v233 = vpop.permute.xlu0 %232
      %234 = vrot.lane.b32.xlu0 %v218, 127
      %v235 = vpop.permute.xlu0 %234
      %236 = vrot.lane.b32.xlu0 %v220, 127
      %v237 = vpop.permute.xlu0 %236
      %238 = vrot.lane.b32.xlu0 %v222, 127
      %v239 = vpop.permute.xlu0 %238
      %240 = vrot.lane.b32.xlu0 %v224, 127
      %v241 = vpop.permute.xlu0 %240
      %242 = vrot.lane.b32.xlu0 %v226, 127
      %v243 = vpop.permute.xlu0 %242
      %vm244 = vcmask 1039360
      %v245 = vsel %vm244, %v229, %v231
      %v246 = vsel %vm244, %v231, %v233
      %v247 = vsel %vm244, %v233, %v235
      %v248 = vsel %vm244, %v235, %v237
      %v249 = vsel %vm244, %v237, %v239
      %v250 = vsel %vm244, %v239, %v241
      %v251 = vsel %vm244, %v241, %v243
      %vm252 = vcmask 31744
      %v254 = vsel %vm252, %v206, 0
      %vm256 = vcmask 1041408
      %v258 = vsel %vm256, %v245, 0
      %v261 = vsel %vm256, %v246, 0
      %v264 = vsel %vm256, %v247, 0
      %v267 = vsel %vm256, %v248, 0
      %v270 = vsel %vm256, %v249, 0
      %v273 = vsel %vm256, %v250, 0
      %v276 = vsel %vm256, %v251, 0
      %278 = vmatpush.bf16.msra.mxu0 0
      %279 = vmatpush.bf16.msra.mxu0 0
      %280 = vmatpush.bf16.msra.mxu0 0
      %281 = vmatpush.bf16.msra.mxu0 0
      %282 = vmatpush.bf16.msra.mxu0 0
      %283 = vmatpush.bf16.msra.mxu0 0
      %284 = vmatpush.bf16.msra.mxu0 0
      %285 = vmatpush.bf16.msra.mxu0 %v258
      %286 = vmatmul.bf16.gmra.mxu0 %v254
      %v287 = vpop.f32.mrf.mxu0
      %v288 = vadd.f32 0.0, %v287
      %v289 = vpop.f32.mrf.mxu0
      %290 = vdwg.mxu0
      %291 = vmatpush.bf16.msra.mxu0 0
      %292 = vmatpush.bf16.msra.mxu0 0
      %293 = vmatpush.bf16.msra.mxu0 0
      %294 = vmatpush.bf16.msra.mxu0 0
      %295 = vmatpush.bf16.msra.mxu0 0
      %296 = vmatpush.bf16.msra.mxu0 0
      %297 = vmatpush.bf16.msra.mxu0 0
      %298 = vmatpush.bf16.msra.mxu0 %v261
      %299 = vmatmul.bf16.gmra.mxu0 %v254
      %v300 = vpop.f32.mrf.mxu0
      %v301 = vadd.f32 0.0, %v300
      %v302 = vpop.f32.mrf.mxu0
      %303 = vdwg.mxu0
      %304 = vmatpush.bf16.msra.mxu0 0
      %305 = vmatpush.bf16.msra.mxu0 0
      %306 = vmatpush.bf16.msra.mxu0 0
      %307 = vmatpush.bf16.msra.mxu0 0
      %308 = vmatpush.bf16.msra.mxu0 0
      %309 = vmatpush.bf16.msra.mxu0 0
      %310 = vmatpush.bf16.msra.mxu0 0
      %311 = vmatpush.bf16.msra.mxu0 %v264
      %312 = vmatmul.bf16.gmra.mxu0 %v254
      %v313 = vpop.f32.mrf.mxu0
      %v314 = vadd.f32 0.0, %v313
      %v315 = vpop.f32.mrf.mxu0
      %316 = vdwg.mxu0
      %317 = vmatpush.bf16.msra.mxu0 0
      %318 = vmatpush.bf16.msra.mxu0 0
      %319 = vmatpush.bf16.msra.mxu0 0
      %320 = vmatpush.bf16.msra.mxu0 0
      %321 = vmatpush.bf16.msra.mxu0 0
      %322 = vmatpush.bf16.msra.mxu0 0
      %323 = vmatpush.bf16.msra.mxu0 0
      %324 = vmatpush.bf16.msra.mxu0 %v267
      %325 = vmatmul.bf16.gmra.mxu0 %v254
      %v326 = vpop.f32.mrf.mxu0
      %v327 = vadd.f32 0.0, %v326
      %v328 = vpop.f32.mrf.mxu0
      %329 = vdwg.mxu0
      %330 = vmatpush.bf16.msra.mxu0 0
      %331 = vmatpush.bf16.msra.mxu0 0
      %332 = vmatpush.bf16.msra.mxu0 0
      %333 = vmatpush.bf16.msra.mxu0 0
      %334 = vmatpush.bf16.msra.mxu0 0
      %335 = vmatpush.bf16.msra.mxu0 0
      %336 = vmatpush.bf16.msra.mxu0 0
      %337 = vmatpush.bf16.msra.mxu0 %v270
      %338 = vmatmul.bf16.gmra.mxu0 %v254
      %v339 = vpop.f32.mrf.mxu0
      %v340 = vadd.f32 0.0, %v339
      %v341 = vpop.f32.mrf.mxu0
      %342 = vdwg.mxu0
      %343 = vmatpush.bf16.msra.mxu0 0
      %344 = vmatpush.bf16.msra.mxu0 0
      %345 = vmatpush.bf16.msra.mxu0 0
      %346 = vmatpush.bf16.msra.mxu0 0
      %347 = vmatpush.bf16.msra.mxu0 0
      %348 = vmatpush.bf16.msra.mxu0 0
      %349 = vmatpush.bf16.msra.mxu0 0
      %350 = vmatpush.bf16.msra.mxu0 %v273
      %351 = vmatmul.bf16.gmra.mxu0 %v254
      %v352 = vpop.f32.mrf.mxu0
      %v353 = vadd.f32 0.0, %v352
      %v354 = vpop.f32.mrf.mxu0
      %355 = vdwg.mxu0
      %356 = vmatpush.bf16.msra.mxu0 0
      %357 = vmatpush.bf16.msra.mxu0 0
      %358 = vmatpush.bf16.msra.mxu0 0
      %359 = vmatpush.bf16.msra.mxu0 0
      %360 = vmatpush.bf16.msra.mxu0 0
      %361 = vmatpush.bf16.msra.mxu0 0
      %362 = vmatpush.bf16.msra.mxu0 0
      %363 = vmatpush.bf16.msra.mxu0 %v276
      %364 = vmatmul.bf16.gmra.mxu0 %v254
      %v365 = vpop.f32.mrf.mxu0
      %v366 = vadd.f32 0.0, %v365
      %v367 = vpop.f32.mrf.mxu0
      %368 = vdwg.mxu0
      %369 = vst [vmem:[#allocation1] ss:$4 sm:$0xff] %v201
      %s371 = scalar_lea.vmem [#allocation1], 32
      %372 = vst [vmem:[%s371] ss:$4 sm:$0xff] %v202
      %v373 = vld.sshfl [vmem:[#allocation1] sm:$0xff pattern:$0x73625140]
      %v374 = vld.sshfl [vmem:[#allocation1 + $0x8] sm:$0xff pattern:$0x73625140]
      %v375 = vld.sshfl [vmem:[#allocation1 + $0x10] sm:$0xff pattern:$0x73625140]
      %v376 = vld.sshfl [vmem:[#allocation1 + $0x18] sm:$0xff pattern:$0x73625140]
      %v377 = vld.sshfl [vmem:[#allocation1 + $0x20] sm:$0xff pattern:$0x73625140]
      %v378 = vld.sshfl [vmem:[#allocation1 + $0x28] sm:$0xff pattern:$0x73625140]
      %v379 = vld.sshfl [vmem:[#allocation1 + $0x30] sm:$0xff pattern:$0x73625140]
      %v381 = vsel %vm252, %v203, 0
      %v383 = vsel %vm256, %v373, 0
      %v385 = vsel %vm256, %v374, 0
      %v387 = vsel %vm256, %v375, 0
      %v389 = vsel %vm256, %v376, 0
      %v391 = vsel %vm256, %v377, 0
      %v393 = vsel %vm256, %v378, 0
      %v395 = vsel %vm256, %v379, 0
      %397 = vmatpush.bf16.msra.mxu0 0
      %398 = vmatpush.bf16.msra.mxu0 0
      %399 = vmatpush.bf16.msra.mxu0 0
      %400 = vmatpush.bf16.msra.mxu0 0
      %401 = vmatpush.bf16.msra.mxu0 0
      %402 = vmatpush.bf16.msra.mxu0 0
      %403 = vmatpush.bf16.msra.mxu0 0
      %404 = vmatpush.bf16.msra.mxu0 %v383
      %405 = vmatmul.bf16.gmra.mxu0 %v381
      %v406 = vpop.f32.mrf.mxu0
      %v407 = vadd.f32 %v288, %v406
      %v408 = vpop.f32.mrf.mxu0
      %409 = vdwg.mxu0
      %410 = vmatpush.bf16.msra.mxu0 0
      %411 = vmatpush.bf16.msra.mxu0 0
      %412 = vmatpush.bf16.msra.mxu0 0
      %413 = vmatpush.bf16.msra.mxu0 0
      %414 = vmatpush.bf16.msra.mxu0 0
      %415 = vmatpush.bf16.msra.mxu0 0
      %416 = vmatpush.bf16.msra.mxu0 0
      %417 = vmatpush.bf16.msra.mxu0 %v385
      %418 = vmatmul.bf16.gmra.mxu0 %v381
      %v419 = vpop.f32.mrf.mxu0
      %v420 = vadd.f32 %v301, %v419
      %v421 = vpop.f32.mrf.mxu0
      %422 = vdwg.mxu0
      %423 = vmatpush.bf16.msra.mxu0 0
      %424 = vmatpush.bf16.msra.mxu0 0
      %425 = vmatpush.bf16.msra.mxu0 0
      %426 = vmatpush.bf16.msra.mxu0 0
      %427 = vmatpush.bf16.msra.mxu0 0
      %428 = vmatpush.bf16.msra.mxu0 0
      %429 = vmatpush.bf16.msra.mxu0 0
      %430 = vmatpush.bf16.msra.mxu0 %v387
      %431 = vmatmul.bf16.gmra.mxu0 %v381
      %v432 = vpop.f32.mrf.mxu0
      %v433 = vadd.f32 %v314, %v432
      %v434 = vpop.f32.mrf.mxu0
      %435 = vdwg.mxu0
      %436 = vmatpush.bf16.msra.mxu0 0
      %437 = vmatpush.bf16.msra.mxu0 0
      %438 = vmatpush.bf16.msra.mxu0 0
      %439 = vmatpush.bf16.msra.mxu0 0
      %440 = vmatpush.bf16.msra.mxu0 0
      %441 = vmatpush.bf16.msra.mxu0 0
      %442 = vmatpush.bf16.msra.mxu0 0
      %443 = vmatpush.bf16.msra.mxu0 %v389
      %444 = vmatmul.bf16.gmra.mxu0 %v381
      %v445 = vpop.f32.mrf.mxu0
      %v446 = vadd.f32 %v327, %v445
      %v447 = vpop.f32.mrf.mxu0
      %448 = vdwg.mxu0
      %449 = vmatpush.bf16.msra.mxu0 0
      %450 = vmatpush.bf16.msra.mxu0 0
      %451 = vmatpush.bf16.msra.mxu0 0
      %452 = vmatpush.bf16.msra.mxu0 0
      %453 = vmatpush.bf16.msra.mxu0 0
      %454 = vmatpush.bf16.msra.mxu0 0
      %455 = vmatpush.bf16.msra.mxu0 0
      %456 = vmatpush.bf16.msra.mxu0 %v391
      %457 = vmatmul.bf16.gmra.mxu0 %v381
      %v458 = vpop.f32.mrf.mxu0
      %v459 = vadd.f32 %v340, %v458
      %v460 = vpop.f32.mrf.mxu0
      %461 = vdwg.mxu0
      %462 = vmatpush.bf16.msra.mxu0 0
      %463 = vmatpush.bf16.msra.mxu0 0
      %464 = vmatpush.bf16.msra.mxu0 0
      %465 = vmatpush.bf16.msra.mxu0 0
      %466 = vmatpush.bf16.msra.mxu0 0
      %467 = vmatpush.bf16.msra.mxu0 0
      %468 = vmatpush.bf16.msra.mxu0 0
      %469 = vmatpush.bf16.msra.mxu0 %v393
      %470 = vmatmul.bf16.gmra.mxu0 %v381
      %v471 = vpop.f32.mrf.mxu0
      %v472 = vadd.f32 %v353, %v471
      %v473 = vpop.f32.mrf.mxu0
      %474 = vdwg.mxu0
      %475 = vmatpush.bf16.msra.mxu0 0
      %476 = vmatpush.bf16.msra.mxu0 0
      %477 = vmatpush.bf16.msra.mxu0 0
      %478 = vmatpush.bf16.msra.mxu0 0
      %479 = vmatpush.bf16.msra.mxu0 0
      %480 = vmatpush.bf16.msra.mxu0 0
      %481 = vmatpush.bf16.msra.mxu0 0
      %482 = vmatpush.bf16.msra.mxu0 %v395
      %483 = vmatmul.bf16.gmra.mxu0 %v381
      %v484 = vpop.f32.mrf.mxu0
      %v485 = vadd.f32 %v366, %v484
      %v486 = vpop.f32.mrf.mxu0
      %487 = vdwg.mxu0
      %v488 = vld [vmem:[%s194] sm:$0xff]
      %v489 = vld [vmem:[%s194 + $0x8] sm:$0xff]
      %s490 = scalar_lea.vmem %s1, 4
      %v491 = vld [vmem:[%s490] sm:$0x3]
      %493 = vst [vmem:[#allocation1] ss:$4 sm:$0xff] %v488
      %s495 = scalar_lea.vmem [#allocation1], 32
      %496 = vst [vmem:[%s495] ss:$4 sm:$0xff] %v489
      %v497 = vld.sshfl [vmem:[#allocation1] sm:$0xff pattern:$0x73625140]
      %v499 = vld.sshfl [vmem:[#allocation1 + $0x8] sm:$0xff pattern:$0x73625140]
      %v501 = vld.sshfl [vmem:[#allocation1 + $0x10] sm:$0xff pattern:$0x73625140]
      %v503 = vld.sshfl [vmem:[#allocation1 + $0x18] sm:$0xff pattern:$0x73625140]
      %v505 = vld.sshfl [vmem:[#allocation1 + $0x20] sm:$0xff pattern:$0x73625140]
      %v507 = vld.sshfl [vmem:[#allocation1 + $0x28] sm:$0xff pattern:$0x73625140]
      %v509 = vld.sshfl [vmem:[#allocation1 + $0x30] sm:$0xff pattern:$0x73625140]
      %v511 = vld.sshfl [vmem:[#allocation1 + $0x38] sm:$0xff pattern:$0x73625140]
      %513 = vrot.lane.b32.xlu0 %v497, 126
      %v514 = vpop.permute.xlu0 %513
      %515 = vrot.lane.b32.xlu0 %v499, 126
      %v516 = vpop.permute.xlu0 %515
      %517 = vrot.lane.b32.xlu0 %v501, 126
      %v518 = vpop.permute.xlu0 %517
      %519 = vrot.lane.b32.xlu0 %v503, 126
      %v520 = vpop.permute.xlu0 %519
      %521 = vrot.lane.b32.xlu0 %v505, 126
      %v522 = vpop.permute.xlu0 %521
      %523 = vrot.lane.b32.xlu0 %v507, 126
      %v524 = vpop.permute.xlu0 %523
      %525 = vrot.lane.b32.xlu0 %v509, 126
      %v526 = vpop.permute.xlu0 %525
      %527 = vrot.lane.b32.xlu0 %v511, 126
      %v528 = vpop.permute.xlu0 %527
      %vm529 = vcmask 1031168
      %v530 = vsel %vm529, %v514, %v516
      %v531 = vsel %vm529, %v516, %v518
      %v532 = vsel %vm529, %v518, %v520
      %v533 = vsel %vm529, %v520, %v522
      %v534 = vsel %vm529, %v522, %v524
      %v535 = vsel %vm529, %v524, %v526
      %v536 = vsel %vm529, %v526, %v528
      %v538 = vsel %vm252, %v491, 0
      %v541 = vsel %vm256, %v530, 0
      %v544 = vsel %vm256, %v531, 0
      %v547 = vsel %vm256, %v532, 0
      %v550 = vsel %vm256, %v533, 0
      %v553 = vsel %vm256, %v534, 0
      %v556 = vsel %vm256, %v535, 0
      %v559 = vsel %vm256, %v536, 0
      %561 = vmatpush.bf16.msra.mxu0 0
      %562 = vmatpush.bf16.msra.mxu0 0
      %563 = vmatpush.bf16.msra.mxu0 0
      %564 = vmatpush.bf16.msra.mxu0 0
      %565 = vmatpush.bf16.msra.mxu0 0
      %566 = vmatpush.bf16.msra.mxu0 0
      %567 = vmatpush.bf16.msra.mxu0 0
      %568 = vmatpush.bf16.msra.mxu0 %v541
      %569 = vmatmul.bf16.gmra.mxu0 %v538
      %v570 = vpop.f32.mrf.mxu0
      %v571 = vadd.f32 0.0, %v570
      %v572 = vpop.f32.mrf.mxu0
      %573 = vdwg.mxu0
      %574 = vmatpush.bf16.msra.mxu0 0
      %575 = vmatpush.bf16.msra.mxu0 0
      %576 = vmatpush.bf16.msra.mxu0 0
      %577 = vmatpush.bf16.msra.mxu0 0
      %578 = vmatpush.bf16.msra.mxu0 0
      %579 = vmatpush.bf16.msra.mxu0 0
      %580 = vmatpush.bf16.msra.mxu0 0
      %581 = vmatpush.bf16.msra.mxu0 %v544
      %582 = vmatmul.bf16.gmra.mxu0 %v538
      %v583 = vpop.f32.mrf.mxu0
      %v584 = vadd.f32 0.0, %v583
      %v585 = vpop.f32.mrf.mxu0
      %586 = vdwg.mxu0
      %587 = vmatpush.bf16.msra.mxu0 0
      %588 = vmatpush.bf16.msra.mxu0 0
      %589 = vmatpush.bf16.msra.mxu0 0
      %590 = vmatpush.bf16.msra.mxu0 0
      %591 = vmatpush.bf16.msra.mxu0 0
      %592 = vmatpush.bf16.msra.mxu0 0
      %593 = vmatpush.bf16.msra.mxu0 0
      %594 = vmatpush.bf16.msra.mxu0 %v547
      %595 = vmatmul.bf16.gmra.mxu0 %v538
      %v596 = vpop.f32.mrf.mxu0
      %v597 = vadd.f32 0.0, %v596
      %v598 = vpop.f32.mrf.mxu0
      %599 = vdwg.mxu0
      %600 = vmatpush.bf16.msra.mxu0 0
      %601 = vmatpush.bf16.msra.mxu0 0
      %602 = vmatpush.bf16.msra.mxu0 0
      %603 = vmatpush.bf16.msra.mxu0 0
      %604 = vmatpush.bf16.msra.mxu0 0
      %605 = vmatpush.bf16.msra.mxu0 0
      %606 = vmatpush.bf16.msra.mxu0 0
      %607 = vmatpush.bf16.msra.mxu0 %v550
      %608 = vmatmul.bf16.gmra.mxu0 %v538
      %v609 = vpop.f32.mrf.mxu0
      %v610 = vadd.f32 0.0, %v609
      %v611 = vpop.f32.mrf.mxu0
      %612 = vdwg.mxu0
      %613 = vmatpush.bf16.msra.mxu0 0
      %614 = vmatpush.bf16.msra.mxu0 0
      %615 = vmatpush.bf16.msra.mxu0 0
      %616 = vmatpush.bf16.msra.mxu0 0
      %617 = vmatpush.bf16.msra.mxu0 0
      %618 = vmatpush.bf16.msra.mxu0 0
      %619 = vmatpush.bf16.msra.mxu0 0
      %620 = vmatpush.bf16.msra.mxu0 %v553
      %621 = vmatmul.bf16.gmra.mxu0 %v538
      %v622 = vpop.f32.mrf.mxu0
      %v623 = vadd.f32 0.0, %v622
      %v624 = vpop.f32.mrf.mxu0
      %625 = vdwg.mxu0
      %626 = vmatpush.bf16.msra.mxu0 0
      %627 = vmatpush.bf16.msra.mxu0 0
      %628 = vmatpush.bf16.msra.mxu0 0
      %629 = vmatpush.bf16.msra.mxu0 0
      %630 = vmatpush.bf16.msra.mxu0 0
      %631 = vmatpush.bf16.msra.mxu0 0
      %632 = vmatpush.bf16.msra.mxu0 0
      %633 = vmatpush.bf16.msra.mxu0 %v556
      %634 = vmatmul.bf16.gmra.mxu0 %v538
      %v635 = vpop.f32.mrf.mxu0
      %v636 = vadd.f32 0.0, %v635
      %v637 = vpop.f32.mrf.mxu0
      %638 = vdwg.mxu0
      %639 = vmatpush.bf16.msra.mxu0 0
      %640 = vmatpush.bf16.msra.mxu0 0
      %641 = vmatpush.bf16.msra.mxu0 0
      %642 = vmatpush.bf16.msra.mxu0 0
      %643 = vmatpush.bf16.msra.mxu0 0
      %644 = vmatpush.bf16.msra.mxu0 0
      %645 = vmatpush.bf16.msra.mxu0 0
      %646 = vmatpush.bf16.msra.mxu0 %v559
      %647 = vmatmul.bf16.gmra.mxu0 %v538
      %v648 = vpop.f32.mrf.mxu0
      %v649 = vadd.f32 0.0, %v648
      %v650 = vpop.f32.mrf.mxu0
      %651 = vdwg.mxu0
      %v652 = vadd.f32 %v407, %v571
      %v653 = vadd.f32 %v420, %v584
      %v654 = vadd.f32 %v433, %v597
      %v655 = vadd.f32 %v446, %v610
      %v656 = vadd.f32 %v459, %v623
      %v657 = vadd.f32 %v472, %v636
      %v658 = vadd.f32 %v485, %v649
      %v659 = vld [vmem:[%s194] sm:$0xff]
      %v660 = vld [vmem:[%s194 + $0x8] sm:$0xff]
      %s661 = scalar_lea.vmem %s1, 6
      %v662 = vld [vmem:[%s661] sm:$0x3]
      %664 = vst [vmem:[#allocation1] ss:$4 sm:$0xff] %v659
      %s666 = scalar_lea.vmem [#allocation1], 32
      %667 = vst [vmem:[%s666] ss:$4 sm:$0xff] %v660
      %v668 = vld.sshfl [vmem:[#allocation1] sm:$0xff pattern:$0x73625140]
      %v670 = vld.sshfl [vmem:[#allocation1 + $0x8] sm:$0xff pattern:$0x73625140]
      %v672 = vld.sshfl [vmem:[#allocation1 + $0x10] sm:$0xff pattern:$0x73625140]
      %v674 = vld.sshfl [vmem:[#allocation1 + $0x18] sm:$0xff pattern:$0x73625140]
      %v676 = vld.sshfl [vmem:[#allocation1 + $0x20] sm:$0xff pattern:$0x73625140]
      %v678 = vld.sshfl [vmem:[#allocation1 + $0x28] sm:$0xff pattern:$0x73625140]
      %v680 = vld.sshfl [vmem:[#allocation1 + $0x30] sm:$0xff pattern:$0x73625140]
      %v682 = vld.sshfl [vmem:[#allocation1 + $0x38] sm:$0xff pattern:$0x73625140]
      %684 = vrot.lane.b32.xlu0 %v668, 118
      %v685 = vpop.permute.xlu0 %684
      %686 = vrot.lane.b32.xlu0 %v670, 118
      %v687 = vpop.permute.xlu0 %686
      %688 = vrot.lane.b32.xlu0 %v672, 118
      %v689 = vpop.permute.xlu0 %688
      %690 = vrot.lane.b32.xlu0 %v674, 118
      %v691 = vpop.permute.xlu0 %690
      %692 = vrot.lane.b32.xlu0 %v676, 118
      %v693 = vpop.permute.xlu0 %692
      %694 = vrot.lane.b32.xlu0 %v678, 118
      %v695 = vpop.permute.xlu0 %694
      %696 = vrot.lane.b32.xlu0 %v680, 118
      %v697 = vpop.permute.xlu0 %696
      %698 = vrot.lane.b32.xlu0 %v682, 118
      %v699 = vpop.permute.xlu0 %698
      %vm700 = vcmask 965632
      %v701 = vsel %vm700, %v685, %v687
      %v702 = vsel %vm700, %v687, %v689
      %v703 = vsel %vm700, %v689, %v691
      %v704 = vsel %vm700, %v691, %v693
      %v705 = vsel %vm700, %v693, %v695
      %v706 = vsel %vm700, %v695, %v697
      %v707 = vsel %vm700, %v697, %v699
      %v709 = vsel %vm252, %v662, 0
      %v712 = vsel %vm256, %v701, 0
      %v715 = vsel %vm256, %v702, 0
      %v718 = vsel %vm256, %v703, 0
      %v721 = vsel %vm256, %v704, 0
      %v724 = vsel %vm256, %v705, 0
      %v727 = vsel %vm256, %v706, 0
      %v730 = vsel %vm256, %v707, 0
      %732 = vmatpush.bf16.msra.mxu0 0
      %733 = vmatpush.bf16.msra.mxu0 0
      %734 = vmatpush.bf16.msra.mxu0 0
      %735 = vmatpush.bf16.msra.mxu0 0
      %736 = vmatpush.bf16.msra.mxu0 0
      %737 = vmatpush.bf16.msra.mxu0 0
      %738 = vmatpush.bf16.msra.mxu0 0
      %739 = vmatpush.bf16.msra.mxu0 %v712
      %740 = vmatmul.bf16.gmra.mxu0 %v709
      %v741 = vpop.f32.mrf.mxu0
      %v742 = vadd.f32 0.0, %v741
      %v743 = vpop.f32.mrf.mxu0
      %744 = vdwg.mxu0
      %745 = vmatpush.bf16.msra.mxu0 0
      %746 = vmatpush.bf16.msra.mxu0 0
      %747 = vmatpush.bf16.msra.mxu0 0
      %748 = vmatpush.bf16.msra.mxu0 0
      %749 = vmatpush.bf16.msra.mxu0 0
      %750 = vmatpush.bf16.msra.mxu0 0
      %751 = vmatpush.bf16.msra.mxu0 0
      %752 = vmatpush.bf16.msra.mxu0 %v715
      %753 = vmatmul.bf16.gmra.mxu0 %v709
      %v754 = vpop.f32.mrf.mxu0
      %v755 = vadd.f32 0.0, %v754
      %v756 = vpop.f32.mrf.mxu0
      %757 = vdwg.mxu0
      %758 = vmatpush.bf16.msra.mxu0 0
      %759 = vmatpush.bf16.msra.mxu0 0
      %760 = vmatpush.bf16.msra.mxu0 0
      %761 = vmatpush.bf16.msra.mxu0 0
      %762 = vmatpush.bf16.msra.mxu0 0
      %763 = vmatpush.bf16.msra.mxu0 0
      %764 = vmatpush.bf16.msra.mxu0 0
      %765 = vmatpush.bf16.msra.mxu0 %v718
      %766 = vmatmul.bf16.gmra.mxu0 %v709
      %v767 = vpop.f32.mrf.mxu0
      %v768 = vadd.f32 0.0, %v767
      %v769 = vpop.f32.mrf.mxu0
      %770 = vdwg.mxu0
      %771 = vmatpush.bf16.msra.mxu0 0
      %772 = vmatpush.bf16.msra.mxu0 0
      %773 = vmatpush.bf16.msra.mxu0 0
      %774 = vmatpush.bf16.msra.mxu0 0
      %775 = vmatpush.bf16.msra.mxu0 0
      %776 = vmatpush.bf16.msra.mxu0 0
      %777 = vmatpush.bf16.msra.mxu0 0
      %778 = vmatpush.bf16.msra.mxu0 %v721
      %779 = vmatmul.bf16.gmra.mxu0 %v709
      %v780 = vpop.f32.mrf.mxu0
      %v781 = vadd.f32 0.0, %v780
      %v782 = vpop.f32.mrf.mxu0
      %783 = vdwg.mxu0
      %784 = vmatpush.bf16.msra.mxu0 0
      %785 = vmatpush.bf16.msra.mxu0 0
      %786 = vmatpush.bf16.msra.mxu0 0
      %787 = vmatpush.bf16.msra.mxu0 0
      %788 = vmatpush.bf16.msra.mxu0 0
      %789 = vmatpush.bf16.msra.mxu0 0
      %790 = vmatpush.bf16.msra.mxu0 0
      %791 = vmatpush.bf16.msra.mxu0 %v724
      %792 = vmatmul.bf16.gmra.mxu0 %v709
      %v793 = vpop.f32.mrf.mxu0
      %v794 = vadd.f32 0.0, %v793
      %v795 = vpop.f32.mrf.mxu0
      %796 = vdwg.mxu0
      %797 = vmatpush.bf16.msra.mxu0 0
      %798 = vmatpush.bf16.msra.mxu0 0
      %799 = vmatpush.bf16.msra.mxu0 0
      %800 = vmatpush.bf16.msra.mxu0 0
      %801 = vmatpush.bf16.msra.mxu0 0
      %802 = vmatpush.bf16.msra.mxu0 0
      %803 = vmatpush.bf16.msra.mxu0 0
      %804 = vmatpush.bf16.msra.mxu0 %v727
      %805 = vmatmul.bf16.gmra.mxu0 %v709
      %v806 = vpop.f32.mrf.mxu0
      %v807 = vadd.f32 0.0, %v806
      %v808 = vpop.f32.mrf.mxu0
      %809 = vdwg.mxu0
      %810 = vmatpush.bf16.msra.mxu0 0
      %811 = vmatpush.bf16.msra.mxu0 0
      %812 = vmatpush.bf16.msra.mxu0 0
      %813 = vmatpush.bf16.msra.mxu0 0
      %814 = vmatpush.bf16.msra.mxu0 0
      %815 = vmatpush.bf16.msra.mxu0 0
      %816 = vmatpush.bf16.msra.mxu0 0
      %817 = vmatpush.bf16.msra.mxu0 %v730
      %818 = vmatmul.bf16.gmra.mxu0 %v709
      %v819 = vpop.f32.mrf.mxu0
      %v820 = vadd.f32 0.0, %v819
      %v821 = vpop.f32.mrf.mxu0
      %822 = vdwg.mxu0
      %v823 = vadd.f32 %v652, %v742
      %v824 = vadd.f32 %v653, %v755
      %v825 = vadd.f32 %v654, %v768
      %v826 = vadd.f32 %v655, %v781
      %v827 = vadd.f32 %v656, %v794
      %v828 = vadd.f32 %v657, %v807
      %v829 = vadd.f32 %v658, %v820
      %v830 = vld [vmem:[%s194] sm:$0xff]
      %v831 = vld [vmem:[%s194 + $0x8] sm:$0xff]
      %s832 = scalar_lea.vmem %s1, 8
      %v833 = vld [vmem:[%s832] sm:$0x3]
      %835 = vst [vmem:[#allocation1] ss:$4 sm:$0xff] %v830
      %s837 = scalar_lea.vmem [#allocation1], 32
      %838 = vst [vmem:[%s837] ss:$4 sm:$0xff] %v831
      %v839 = vld.sshfl [vmem:[#allocation1] sm:$0xff pattern:$0x73625140]
      %v841 = vld.sshfl [vmem:[#allocation1 + $0x8] sm:$0xff pattern:$0x73625140]
      %v843 = vld.sshfl [vmem:[#allocation1 + $0x10] sm:$0xff pattern:$0x73625140]
      %v845 = vld.sshfl [vmem:[#allocation1 + $0x18] sm:$0xff pattern:$0x73625140]
      %v847 = vld.sshfl [vmem:[#allocation1 + $0x20] sm:$0xff pattern:$0x73625140]
      %v849 = vld.sshfl [vmem:[#allocation1 + $0x28] sm:$0xff pattern:$0x73625140]
      %v851 = vld.sshfl [vmem:[#allocation1 + $0x30] sm:$0xff pattern:$0x73625140]
      %v853 = vld.sshfl [vmem:[#allocation1 + $0x38] sm:$0xff pattern:$0x73625140]
      %855 = vrot.lane.b32.xlu0 %v839, 117
      %v856 = vpop.permute.xlu0 %855
      %857 = vrot.lane.b32.xlu0 %v841, 117
      %v858 = vpop.permute.xlu0 %857
      %859 = vrot.lane.b32.xlu0 %v843, 117
      %v860 = vpop.permute.xlu0 %859
      %861 = vrot.lane.b32.xlu0 %v845, 117
      %v862 = vpop.permute.xlu0 %861
      %863 = vrot.lane.b32.xlu0 %v847, 117
      %v864 = vpop.permute.xlu0 %863
      %865 = vrot.lane.b32.xlu0 %v849, 117
      %v866 = vpop.permute.xlu0 %865
      %867 = vrot.lane.b32.xlu0 %v851, 117
      %v868 = vpop.permute.xlu0 %867
      %869 = vrot.lane.b32.xlu0 %v853, 117
      %v870 = vpop.permute.xlu0 %869
      %vm871 = vcmask 957440
      %v872 = vsel %vm871, %v856, %v858
      %v873 = vsel %vm871, %v858, %v860
      %v874 = vsel %vm871, %v860, %v862
      %v875 = vsel %vm871, %v862, %v864
      %v876 = vsel %vm871, %v864, %v866
      %v877 = vsel %vm871, %v866, %v868
      %v878 = vsel %vm871, %v868, %v870
      %v880 = vsel %vm252, %v833, 0
      %v883 = vsel %vm256, %v872, 0
      %v886 = vsel %vm256, %v873, 0
      %v889 = vsel %vm256, %v874, 0
      %v892 = vsel %vm256, %v875, 0
      %v895 = vsel %vm256, %v876, 0
      %v898 = vsel %vm256, %v877, 0
      %v901 = vsel %vm256, %v878, 0
      %903 = vmatpush.bf16.msra.mxu0 0
      %904 = vmatpush.bf16.msra.mxu0 0
      %905 = vmatpush.bf16.msra.mxu0 0
      %906 = vmatpush.bf16.msra.mxu0 0
      %907 = vmatpush.bf16.msra.mxu0 0
      %908 = vmatpush.bf16.msra.mxu0 0
      %909 = vmatpush.bf16.msra.mxu0 0
      %910 = vmatpush.bf16.msra.mxu0 %v883
      %911 = vmatmul.bf16.gmra.mxu0 %v880
      %v912 = vpop.f32.mrf.mxu0
      %v913 = vadd.f32 0.0, %v912
      %v914 = vpop.f32.mrf.mxu0
      %915 = vdwg.mxu0
      %916 = vmatpush.bf16.msra.mxu0 0
      %917 = vmatpush.bf16.msra.mxu0 0
      %918 = vmatpush.bf16.msra.mxu0 0
      %919 = vmatpush.bf16.msra.mxu0 0
      %920 = vmatpush.bf16.msra.mxu0 0
      %921 = vmatpush.bf16.msra.mxu0 0
      %922 = vmatpush.bf16.msra.mxu0 0
      %923 = vmatpush.bf16.msra.mxu0 %v886
      %924 = vmatmul.bf16.gmra.mxu0 %v880
      %v925 = vpop.f32.mrf.mxu0
      %v926 = vadd.f32 0.0, %v925
      %v927 = vpop.f32.mrf.mxu0
      %928 = vdwg.mxu0
      %929 = vmatpush.bf16.msra.mxu0 0
      %930 = vmatpush.bf16.msra.mxu0 0
      %931 = vmatpush.bf16.msra.mxu0 0
      %932 = vmatpush.bf16.msra.mxu0 0
      %933 = vmatpush.bf16.msra.mxu0 0
      %934 = vmatpush.bf16.msra.mxu0 0
      %935 = vmatpush.bf16.msra.mxu0 0
      %936 = vmatpush.bf16.msra.mxu0 %v889
      %937 = vmatmul.bf16.gmra.mxu0 %v880
      %v938 = vpop.f32.mrf.mxu0
      %v939 = vadd.f32 0.0, %v938
      %v940 = vpop.f32.mrf.mxu0
      %941 = vdwg.mxu0
      %942 = vmatpush.bf16.msra.mxu0 0
      %943 = vmatpush.bf16.msra.mxu0 0
      %944 = vmatpush.bf16.msra.mxu0 0
      %945 = vmatpush.bf16.msra.mxu0 0
      %946 = vmatpush.bf16.msra.mxu0 0
      %947 = vmatpush.bf16.msra.mxu0 0
      %948 = vmatpush.bf16.msra.mxu0 0
      %949 = vmatpush.bf16.msra.mxu0 %v892
      %950 = vmatmul.bf16.gmra.mxu0 %v880
      %v951 = vpop.f32.mrf.mxu0
      %v952 = vadd.f32 0.0, %v951
      %v953 = vpop.f32.mrf.mxu0
      %954 = vdwg.mxu0
      %955 = vmatpush.bf16.msra.mxu0 0
      %956 = vmatpush.bf16.msra.mxu0 0
      %957 = vmatpush.bf16.msra.mxu0 0
      %958 = vmatpush.bf16.msra.mxu0 0
      %959 = vmatpush.bf16.msra.mxu0 0
      %960 = vmatpush.bf16.msra.mxu0 0
      %961 = vmatpush.bf16.msra.mxu0 0
      %962 = vmatpush.bf16.msra.mxu0 %v895
      %963 = vmatmul.bf16.gmra.mxu0 %v880
      %v964 = vpop.f32.mrf.mxu0
      %v965 = vadd.f32 0.0, %v964
      %v966 = vpop.f32.mrf.mxu0
      %967 = vdwg.mxu0
      %968 = vmatpush.bf16.msra.mxu0 0
      %969 = vmatpush.bf16.msra.mxu0 0
      %970 = vmatpush.bf16.msra.mxu0 0
      %971 = vmatpush.bf16.msra.mxu0 0
      %972 = vmatpush.bf16.msra.mxu0 0
      %973 = vmatpush.bf16.msra.mxu0 0
      %974 = vmatpush.bf16.msra.mxu0 0
      %975 = vmatpush.bf16.msra.mxu0 %v898
      %976 = vmatmul.bf16.gmra.mxu0 %v880
      %v977 = vpop.f32.mrf.mxu0
      %v978 = vadd.f32 0.0, %v977
      %v979 = vpop.f32.mrf.mxu0
      %980 = vdwg.mxu0
      %981 = vmatpush.bf16.msra.mxu0 0
      %982 = vmatpush.bf16.msra.mxu0 0
      %983 = vmatpush.bf16.msra.mxu0 0
      %984 = vmatpush.bf16.msra.mxu0 0
      %985 = vmatpush.bf16.msra.mxu0 0
      %986 = vmatpush.bf16.msra.mxu0 0
      %987 = vmatpush.bf16.msra.mxu0 0
      %988 = vmatpush.bf16.msra.mxu0 %v901
      %989 = vmatmul.bf16.gmra.mxu0 %v880
      %v990 = vpop.f32.mrf.mxu0
      %v991 = vadd.f32 0.0, %v990
      %v992 = vpop.f32.mrf.mxu0
      %993 = vdwg.mxu0
      %v994 = vadd.f32 %v823, %v913
      %v995 = vadd.f32 %v824, %v926
      %v996 = vadd.f32 %v825, %v939
      %v997 = vadd.f32 %v826, %v952
      %v998 = vadd.f32 %v827, %v965
      %v999 = vadd.f32 %v828, %v978
      %v1000 = vadd.f32 %v829, %v991
      %v1001 = vld [vmem:[%s194] sm:$0xff]
      %v1002 = vld [vmem:[%s194 + $0x8] sm:$0xff]
      %s1003 = scalar_lea.vmem %s1, 10
      %v1004 = vld [vmem:[%s1003] sm:$0x3]
      %1006 = vst [vmem:[#allocation1] ss:$4 sm:$0xff] %v1001
      %s1008 = scalar_lea.vmem [#allocation1], 32
      %1009 = vst [vmem:[%s1008] ss:$4 sm:$0xff] %v1002
      %v1010 = vld.sshfl [vmem:[#allocation1] sm:$0xff pattern:$0x73625140]
      %v1012 = vld.sshfl [vmem:[#allocation1 + $0x8] sm:$0xff pattern:$0x73625140]
      %v1014 = vld.sshfl [vmem:[#allocation1 + $0x10] sm:$0xff pattern:$0x73625140]
      %v1016 = vld.sshfl [vmem:[#allocation1 + $0x18] sm:$0xff pattern:$0x73625140]
      %v1018 = vld.sshfl [vmem:[#allocation1 + $0x20] sm:$0xff pattern:$0x73625140]
      %v1020 = vld.sshfl [vmem:[#allocation1 + $0x28] sm:$0xff pattern:$0x73625140]
      %v1022 = vld.sshfl [vmem:[#allocation1 + $0x30] sm:$0xff pattern:$0x73625140]
      %v1024 = vld.sshfl [vmem:[#allocation1 + $0x38] sm:$0xff pattern:$0x73625140]
      %1026 = vrot.lane.b32.xlu0 %v1010, 116
      %v1027 = vpop.permute.xlu0 %1026
      %1028 = vrot.lane.b32.xlu0 %v1012, 116
      %v1029 = vpop.permute.xlu0 %1028
      %1030 = vrot.lane.b32.xlu0 %v1014, 116
      %v1031 = vpop.permute.xlu0 %1030
      %1032 = vrot.lane.b32.xlu0 %v1016, 116
      %v1033 = vpop.permute.xlu0 %1032
      %1034 = vrot.lane.b32.xlu0 %v1018, 116
      %v1035 = vpop.permute.xlu0 %1034
      %1036 = vrot.lane.b32.xlu0 %v1020, 116
      %v1037 = vpop.permute.xlu0 %1036
      %1038 = vrot.lane.b32.xlu0 %v1022, 116
      %v1039 = vpop.permute.xlu0 %1038
      %1040 = vrot.lane.b32.xlu0 %v1024, 116
      %v1041 = vpop.permute.xlu0 %1040
      %vm1042 = vcmask 949248
      %v1043 = vsel %vm1042, %v1027, %v1029
      %v1044 = vsel %vm1042, %v1029, %v1031
      %v1045 = vsel %vm1042, %v1031, %v1033
      %v1046 = vsel %vm1042, %v1033, %v1035
      %v1047 = vsel %vm1042, %v1035, %v1037
      %v1048 = vsel %vm1042, %v1037, %v1039
      %v1049 = vsel %vm1042, %v1039, %v1041
      %v1051 = vsel %vm252, %v1004, 0
      %v1054 = vsel %vm256, %v1043, 0
      %v1057 = vsel %vm256, %v1044, 0
      %v1060 = vsel %vm256, %v1045, 0
      %v1063 = vsel %vm256, %v1046, 0
      %v1066 = vsel %vm256, %v1047, 0
      %v1069 = vsel %vm256, %v1048, 0
      %v1072 = vsel %vm256, %v1049, 0
      %1074 = vmatpush.bf16.msra.mxu0 0
      %1075 = vmatpush.bf16.msra.mxu0 0
      %1076 = vmatpush.bf16.msra.mxu0 0
      %1077 = vmatpush.bf16.msra.mxu0 0
      %1078 = vmatpush.bf16.msra.mxu0 0
      %1079 = vmatpush.bf16.msra.mxu0 0
      %1080 = vmatpush.bf16.msra.mxu0 0
      %1081 = vmatpush.bf16.msra.mxu0 %v1054
      %1082 = vmatmul.bf16.gmra.mxu0 %v1051
      %v1083 = vpop.f32.mrf.mxu0
      %v1084 = vadd.f32 0.0, %v1083
      %v1085 = vpop.f32.mrf.mxu0
      %1086 = vdwg.mxu0
      %1087 = vmatpush.bf16.msra.mxu0 0
      %1088 = vmatpush.bf16.msra.mxu0 0
      %1089 = vmatpush.bf16.msra.mxu0 0
      %1090 = vmatpush.bf16.msra.mxu0 0
      %1091 = vmatpush.bf16.msra.mxu0 0
      %1092 = vmatpush.bf16.msra.mxu0 0
      %1093 = vmatpush.bf16.msra.mxu0 0
      %1094 = vmatpush.bf16.msra.mxu0 %v1057
      %1095 = vmatmul.bf16.gmra.mxu0 %v1051
      %v1096 = vpop.f32.mrf.mxu0
      %v1097 = vadd.f32 0.0, %v1096
      %v1098 = vpop.f32.mrf.mxu0
      %1099 = vdwg.mxu0
      %1100 = vmatpush.bf16.msra.mxu0 0
      %1101 = vmatpush.bf16.msra.mxu0 0
      %1102 = vmatpush.bf16.msra.mxu0 0
      %1103 = vmatpush.bf16.msra.mxu0 0
      %1104 = vmatpush.bf16.msra.mxu0 0
      %1105 = vmatpush.bf16.msra.mxu0 0
      %1106 = vmatpush.bf16.msra.mxu0 0
      %1107 = vmatpush.bf16.msra.mxu0 %v1060
      %1108 = vmatmul.bf16.gmra.mxu0 %v1051
      %v1109 = vpop.f32.mrf.mxu0
      %v1110 = vadd.f32 0.0, %v1109
      %v1111 = vpop.f32.mrf.mxu0
      %1112 = vdwg.mxu0
      %1113 = vmatpush.bf16.msra.mxu0 0
      %1114 = vmatpush.bf16.msra.mxu0 0
      %1115 = vmatpush.bf16.msra.mxu0 0
      %1116 = vmatpush.bf16.msra.mxu0 0
      %1117 = vmatpush.bf16.msra.mxu0 0
      %1118 = vmatpush.bf16.msra.mxu0 0
      %1119 = vmatpush.bf16.msra.mxu0 0
      %1120 = vmatpush.bf16.msra.mxu0 %v1063
      %1121 = vmatmul.bf16.gmra.mxu0 %v1051
      %v1122 = vpop.f32.mrf.mxu0
      %v1123 = vadd.f32 0.0, %v1122
      %v1124 = vpop.f32.mrf.mxu0
      %1125 = vdwg.mxu0
      %1126 = vmatpush.bf16.msra.mxu0 0
      %1127 = vmatpush.bf16.msra.mxu0 0
      %1128 = vmatpush.bf16.msra.mxu0 0
      %1129 = vmatpush.bf16.msra.mxu0 0
      %1130 = vmatpush.bf16.msra.mxu0 0
      %1131 = vmatpush.bf16.msra.mxu0 0
      %1132 = vmatpush.bf16.msra.mxu0 0
      %1133 = vmatpush.bf16.msra.mxu0 %v1066
      %1134 = vmatmul.bf16.gmra.mxu0 %v1051
      %v1135 = vpop.f32.mrf.mxu0
      %v1136 = vadd.f32 0.0, %v1135
      %v1137 = vpop.f32.mrf.mxu0
      %1138 = vdwg.mxu0
      %1139 = vmatpush.bf16.msra.mxu0 0
      %1140 = vmatpush.bf16.msra.mxu0 0
      %1141 = vmatpush.bf16.msra.mxu0 0
      %1142 = vmatpush.bf16.msra.mxu0 0
      %1143 = vmatpush.bf16.msra.mxu0 0
      %1144 = vmatpush.bf16.msra.mxu0 0
      %1145 = vmatpush.bf16.msra.mxu0 0
      %1146 = vmatpush.bf16.msra.mxu0 %v1069
      %1147 = vmatmul.bf16.gmra.mxu0 %v1051
      %v1148 = vpop.f32.mrf.mxu0
      %v1149 = vadd.f32 0.0, %v1148
      %v1150 = vpop.f32.mrf.mxu0
      %1151 = vdwg.mxu0
      %1152 = vmatpush.bf16.msra.mxu0 0
      %1153 = vmatpush.bf16.msra.mxu0 0
      %1154 = vmatpush.bf16.msra.mxu0 0
      %1155 = vmatpush.bf16.msra.mxu0 0
      %1156 = vmatpush.bf16.msra.mxu0 0
      %1157 = vmatpush.bf16.msra.mxu0 0
      %1158 = vmatpush.bf16.msra.mxu0 0
      %1159 = vmatpush.bf16.msra.mxu0 %v1072
      %1160 = vmatmul.bf16.gmra.mxu0 %v1051
      %v1161 = vpop.f32.mrf.mxu0
      %v1162 = vadd.f32 0.0, %v1161
      %v1163 = vpop.f32.mrf.mxu0
      %1164 = vdwg.mxu0
      %v1165 = vadd.f32 %v994, %v1084
      %v1166 = vadd.f32 %v995, %v1097
      %v1167 = vadd.f32 %v996, %v1110
      %v1168 = vadd.f32 %v997, %v1123
      %v1169 = vadd.f32 %v998, %v1136
      %v1170 = vadd.f32 %v999, %v1149
      %v1171 = vadd.f32 %v1000, %v1162
      %v1172 = vld [vmem:[%s194] sm:$0xff]
      %v1173 = vld [vmem:[%s194 + $0x8] sm:$0xff]
      %s1174 = scalar_lea.vmem %s1, 12
      %v1175 = vld [vmem:[%s1174] sm:$0x3]
      %1177 = vst [vmem:[#allocation1] ss:$4 sm:$0xff] %v1172
      %s1179 = scalar_lea.vmem [#allocation1], 32
      %1180 = vst [vmem:[%s1179] ss:$4 sm:$0xff] %v1173
      %v1181 = vld.sshfl [vmem:[#allocation1] sm:$0xff pattern:$0x73625140]
      %v1183 = vld.sshfl [vmem:[#allocation1 + $0x8] sm:$0xff pattern:$0x73625140]
      %v1185 = vld.sshfl [vmem:[#allocation1 + $0x10] sm:$0xff pattern:$0x73625140]
      %v1187 = vld.sshfl [vmem:[#allocation1 + $0x18] sm:$0xff pattern:$0x73625140]
      %v1189 = vld.sshfl [vmem:[#allocation1 + $0x20] sm:$0xff pattern:$0x73625140]
      %v1191 = vld.sshfl [vmem:[#allocation1 + $0x28] sm:$0xff pattern:$0x73625140]
      %v1193 = vld.sshfl [vmem:[#allocation1 + $0x30] sm:$0xff pattern:$0x73625140]
      %v1195 = vld.sshfl [vmem:[#allocation1 + $0x38] sm:$0xff pattern:$0x73625140]
      %1197 = vrot.lane.b32.xlu0 %v1181, 108
      %v1198 = vpop.permute.xlu0 %1197
      %1199 = vrot.lane.b32.xlu0 %v1183, 108
      %v1200 = vpop.permute.xlu0 %1199
      %1201 = vrot.lane.b32.xlu0 %v1185, 108
      %v1202 = vpop.permute.xlu0 %1201
      %1203 = vrot.lane.b32.xlu0 %v1187, 108
      %v1204 = vpop.permute.xlu0 %1203
      %1205 = vrot.lane.b32.xlu0 %v1189, 108
      %v1206 = vpop.permute.xlu0 %1205
      %1207 = vrot.lane.b32.xlu0 %v1191, 108
      %v1208 = vpop.permute.xlu0 %1207
      %1209 = vrot.lane.b32.xlu0 %v1193, 108
      %v1210 = vpop.permute.xlu0 %1209
      %1211 = vrot.lane.b32.xlu0 %v1195, 108
      %v1212 = vpop.permute.xlu0 %1211
      %vm1213 = vcmask 883712
      %v1214 = vsel %vm1213, %v1198, %v1200
      %v1215 = vsel %vm1213, %v1200, %v1202
      %v1216 = vsel %vm1213, %v1202, %v1204
      %v1217 = vsel %vm1213, %v1204, %v1206
      %v1218 = vsel %vm1213, %v1206, %v1208
      %v1219 = vsel %vm1213, %v1208, %v1210
      %v1220 = vsel %vm1213, %v1210, %v1212
      %v1222 = vsel %vm252, %v1175, 0
      %v1225 = vsel %vm256, %v1214, 0
      %v1228 = vsel %vm256, %v1215, 0
      %v1231 = vsel %vm256, %v1216, 0
      %v1234 = vsel %vm256, %v1217, 0
      %v1237 = vsel %vm256, %v1218, 0
      %v1240 = vsel %vm256, %v1219, 0
      %v1243 = vsel %vm256, %v1220, 0
      %1245 = vmatpush.bf16.msra.mxu0 0
      %1246 = vmatpush.bf16.msra.mxu0 0
      %1247 = vmatpush.bf16.msra.mxu0 0
      %1248 = vmatpush.bf16.msra.mxu0 0
      %1249 = vmatpush.bf16.msra.mxu0 0
      %1250 = vmatpush.bf16.msra.mxu0 0
      %1251 = vmatpush.bf16.msra.mxu0 0
      %1252 = vmatpush.bf16.msra.mxu0 %v1225
      %1253 = vmatmul.bf16.gmra.mxu0 %v1222
      %v1254 = vpop.f32.mrf.mxu0
      %v1255 = vadd.f32 0.0, %v1254
      %v1256 = vpop.f32.mrf.mxu0
      %1257 = vdwg.mxu0
      %1258 = vmatpush.bf16.msra.mxu0 0
      %1259 = vmatpush.bf16.msra.mxu0 0
      %1260 = vmatpush.bf16.msra.mxu0 0
      %1261 = vmatpush.bf16.msra.mxu0 0
      %1262 = vmatpush.bf16.msra.mxu0 0
      %1263 = vmatpush.bf16.msra.mxu0 0
      %1264 = vmatpush.bf16.msra.mxu0 0
      %1265 = vmatpush.bf16.msra.mxu0 %v1228
      %1266 = vmatmul.bf16.gmra.mxu0 %v1222
      %v1267 = vpop.f32.mrf.mxu0
      %v1268 = vadd.f32 0.0, %v1267
      %v1269 = vpop.f32.mrf.mxu0
      %1270 = vdwg.mxu0
      %1271 = vmatpush.bf16.msra.mxu0 0
      %1272 = vmatpush.bf16.msra.mxu0 0
      %1273 = vmatpush.bf16.msra.mxu0 0
      %1274 = vmatpush.bf16.msra.mxu0 0
      %1275 = vmatpush.bf16.msra.mxu0 0
      %1276 = vmatpush.bf16.msra.mxu0 0
      %1277 = vmatpush.bf16.msra.mxu0 0
      %1278 = vmatpush.bf16.msra.mxu0 %v1231
      %1279 = vmatmul.bf16.gmra.mxu0 %v1222
      %v1280 = vpop.f32.mrf.mxu0
      %v1281 = vadd.f32 0.0, %v1280
      %v1282 = vpop.f32.mrf.mxu0
      %1283 = vdwg.mxu0
      %1284 = vmatpush.bf16.msra.mxu0 0
      %1285 = vmatpush.bf16.msra.mxu0 0
      %1286 = vmatpush.bf16.msra.mxu0 0
      %1287 = vmatpush.bf16.msra.mxu0 0
      %1288 = vmatpush.bf16.msra.mxu0 0
      %1289 = vmatpush.bf16.msra.mxu0 0
      %1290 = vmatpush.bf16.msra.mxu0 0
      %1291 = vmatpush.bf16.msra.mxu0 %v1234
      %1292 = vmatmul.bf16.gmra.mxu0 %v1222
      %v1293 = vpop.f32.mrf.mxu0
      %v1294 = vadd.f32 0.0, %v1293
      %v1295 = vpop.f32.mrf.mxu0
      %1296 = vdwg.mxu0
      %1297 = vmatpush.bf16.msra.mxu0 0
      %1298 = vmatpush.bf16.msra.mxu0 0
      %1299 = vmatpush.bf16.msra.mxu0 0
      %1300 = vmatpush.bf16.msra.mxu0 0
      %1301 = vmatpush.bf16.msra.mxu0 0
      %1302 = vmatpush.bf16.msra.mxu0 0
      %1303 = vmatpush.bf16.msra.mxu0 0
      %1304 = vmatpush.bf16.msra.mxu0 %v1237
      %1305 = vmatmul.bf16.gmra.mxu0 %v1222
      %v1306 = vpop.f32.mrf.mxu0
      %v1307 = vadd.f32 0.0, %v1306
      %v1308 = vpop.f32.mrf.mxu0
      %1309 = vdwg.mxu0
      %1310 = vmatpush.bf16.msra.mxu0 0
      %1311 = vmatpush.bf16.msra.mxu0 0
      %1312 = vmatpush.bf16.msra.mxu0 0
      %1313 = vmatpush.bf16.msra.mxu0 0
      %1314 = vmatpush.bf16.msra.mxu0 0
      %1315 = vmatpush.bf16.msra.mxu0 0
      %1316 = vmatpush.bf16.msra.mxu0 0
      %1317 = vmatpush.bf16.msra.mxu0 %v1240
      %1318 = vmatmul.bf16.gmra.mxu0 %v1222
      %v1319 = vpop.f32.mrf.mxu0
      %v1320 = vadd.f32 0.0, %v1319
      %v1321 = vpop.f32.mrf.mxu0
      %1322 = vdwg.mxu0
      %1323 = vmatpush.bf16.msra.mxu0 0
      %1324 = vmatpush.bf16.msra.mxu0 0
      %1325 = vmatpush.bf16.msra.mxu0 0
      %1326 = vmatpush.bf16.msra.mxu0 0
      %1327 = vmatpush.bf16.msra.mxu0 0
      %1328 = vmatpush.bf16.msra.mxu0 0
      %1329 = vmatpush.bf16.msra.mxu0 0
      %1330 = vmatpush.bf16.msra.mxu0 %v1243
      %1331 = vmatmul.bf16.gmra.mxu0 %v1222
      %v1332 = vpop.f32.mrf.mxu0
      %v1333 = vadd.f32 0.0, %v1332
      %v1334 = vpop.f32.mrf.mxu0
      %1335 = vdwg.mxu0
      %v1336 = vadd.f32 %v1165, %v1255
      %v1337 = vadd.f32 %v1166, %v1268
      %v1338 = vadd.f32 %v1167, %v1281
      %v1339 = vadd.f32 %v1168, %v1294
      %v1340 = vadd.f32 %v1169, %v1307
      %v1341 = vadd.f32 %v1170, %v1320
      %v1342 = vadd.f32 %v1171, %v1333
      %v1343 = vld [vmem:[%s194] sm:$0xff]
      %v1344 = vld [vmem:[%s194 + $0x8] sm:$0xff]
      %s1345 = scalar_lea.vmem %s1, 14
      %v1346 = vld [vmem:[%s1345] sm:$0x3]
      %1348 = vst [vmem:[#allocation1] ss:$4 sm:$0xff] %v1343
      %s1350 = scalar_lea.vmem [#allocation1], 32
      %1351 = vst [vmem:[%s1350] ss:$4 sm:$0xff] %v1344
      %v1352 = vld.sshfl [vmem:[#allocation1] sm:$0xff pattern:$0x73625140]
      %v1354 = vld.sshfl [vmem:[#allocation1 + $0x8] sm:$0xff pattern:$0x73625140]
      %v1356 = vld.sshfl [vmem:[#allocation1 + $0x10] sm:$0xff pattern:$0x73625140]
      %v1358 = vld.sshfl [vmem:[#allocation1 + $0x18] sm:$0xff pattern:$0x73625140]
      %v1360 = vld.sshfl [vmem:[#allocation1 + $0x20] sm:$0xff pattern:$0x73625140]
      %v1362 = vld.sshfl [vmem:[#allocation1 + $0x28] sm:$0xff pattern:$0x73625140]
      %v1364 = vld.sshfl [vmem:[#allocation1 + $0x30] sm:$0xff pattern:$0x73625140]
      %v1366 = vld.sshfl [vmem:[#allocation1 + $0x38] sm:$0xff pattern:$0x73625140]
      %1368 = vrot.lane.b32.xlu0 %v1352, 107
      %v1369 = vpop.permute.xlu0 %1368
      %1370 = vrot.lane.b32.xlu0 %v1354, 107
      %v1371 = vpop.permute.xlu0 %1370
      %1372 = vrot.lane.b32.xlu0 %v1356, 107
      %v1373 = vpop.permute.xlu0 %1372
      %1374 = vrot.lane.b32.xlu0 %v1358, 107
      %v1375 = vpop.permute.xlu0 %1374
      %1376 = vrot.lane.b32.xlu0 %v1360, 107
      %v1377 = vpop.permute.xlu0 %1376
      %1378 = vrot.lane.b32.xlu0 %v1362, 107
      %v1379 = vpop.permute.xlu0 %1378
      %1380 = vrot.lane.b32.xlu0 %v1364, 107
      %v1381 = vpop.permute.xlu0 %1380
      %1382 = vrot.lane.b32.xlu0 %v1366, 107
      %v1383 = vpop.permute.xlu0 %1382
      %vm1384 = vcmask 875520
      %v1385 = vsel %vm1384, %v1369, %v1371
      %v1386 = vsel %vm1384, %v1371, %v1373
      %v1387 = vsel %vm1384, %v1373, %v1375
      %v1388 = vsel %vm1384, %v1375, %v1377
      %v1389 = vsel %vm1384, %v1377, %v1379
      %v1390 = vsel %vm1384, %v1379, %v1381
      %v1391 = vsel %vm1384, %v1381, %v1383
      %v1393 = vsel %vm252, %v1346, 0
      %v1396 = vsel %vm256, %v1385, 0
      %v1399 = vsel %vm256, %v1386, 0
      %v1402 = vsel %vm256, %v1387, 0
      %v1405 = vsel %vm256, %v1388, 0
      %v1408 = vsel %vm256, %v1389, 0
      %v1411 = vsel %vm256, %v1390, 0
      %v1414 = vsel %vm256, %v1391, 0
      %1416 = vmatpush.bf16.msra.mxu0 0
      %1417 = vmatpush.bf16.msra.mxu0 0
      %1418 = vmatpush.bf16.msra.mxu0 0
      %1419 = vmatpush.bf16.msra.mxu0 0
      %1420 = vmatpush.bf16.msra.mxu0 0
      %1421 = vmatpush.bf16.msra.mxu0 0
      %1422 = vmatpush.bf16.msra.mxu0 0
      %1423 = vmatpush.bf16.msra.mxu0 %v1396
      %1424 = vmatmul.bf16.gmra.mxu0 %v1393
      %v1425 = vpop.f32.mrf.mxu0
      %v1426 = vadd.f32 0.0, %v1425
      %v1427 = vpop.f32.mrf.mxu0
      %1428 = vdwg.mxu0
      %1429 = vmatpush.bf16.msra.mxu0 0
      %1430 = vmatpush.bf16.msra.mxu0 0
      %1431 = vmatpush.bf16.msra.mxu0 0
      %1432 = vmatpush.bf16.msra.mxu0 0
      %1433 = vmatpush.bf16.msra.mxu0 0
      %1434 = vmatpush.bf16.msra.mxu0 0
      %1435 = vmatpush.bf16.msra.mxu0 0
      %1436 = vmatpush.bf16.msra.mxu0 %v1399
      %1437 = vmatmul.bf16.gmra.mxu0 %v1393
      %v1438 = vpop.f32.mrf.mxu0
      %v1439 = vadd.f32 0.0, %v1438
      %v1440 = vpop.f32.mrf.mxu0
      %1441 = vdwg.mxu0
      %1442 = vmatpush.bf16.msra.mxu0 0
      %1443 = vmatpush.bf16.msra.mxu0 0
      %1444 = vmatpush.bf16.msra.mxu0 0
      %1445 = vmatpush.bf16.msra.mxu0 0
      %1446 = vmatpush.bf16.msra.mxu0 0
      %1447 = vmatpush.bf16.msra.mxu0 0
      %1448 = vmatpush.bf16.msra.mxu0 0
      %1449 = vmatpush.bf16.msra.mxu0 %v1402
      %1450 = vmatmul.bf16.gmra.mxu0 %v1393
      %v1451 = vpop.f32.mrf.mxu0
      %v1452 = vadd.f32 0.0, %v1451
      %v1453 = vpop.f32.mrf.mxu0
      %1454 = vdwg.mxu0
      %1455 = vmatpush.bf16.msra.mxu0 0
      %1456 = vmatpush.bf16.msra.mxu0 0
      %1457 = vmatpush.bf16.msra.mxu0 0
      %1458 = vmatpush.bf16.msra.mxu0 0
      %1459 = vmatpush.bf16.msra.mxu0 0
      %1460 = vmatpush.bf16.msra.mxu0 0
      %1461 = vmatpush.bf16.msra.mxu0 0
      %1462 = vmatpush.bf16.msra.mxu0 %v1405
      %1463 = vmatmul.bf16.gmra.mxu0 %v1393
      %v1464 = vpop.f32.mrf.mxu0
      %v1465 = vadd.f32 0.0, %v1464
      %v1466 = vpop.f32.mrf.mxu0
      %1467 = vdwg.mxu0
      %1468 = vmatpush.bf16.msra.mxu0 0
      %1469 = vmatpush.bf16.msra.mxu0 0
      %1470 = vmatpush.bf16.msra.mxu0 0
      %1471 = vmatpush.bf16.msra.mxu0 0
      %1472 = vmatpush.bf16.msra.mxu0 0
      %1473 = vmatpush.bf16.msra.mxu0 0
      %1474 = vmatpush.bf16.msra.mxu0 0
      %1475 = vmatpush.bf16.msra.mxu0 %v1408
      %1476 = vmatmul.bf16.gmra.mxu0 %v1393
      %v1477 = vpop.f32.mrf.mxu0
      %v1478 = vadd.f32 0.0, %v1477
      %v1479 = vpop.f32.mrf.mxu0
      %1480 = vdwg.mxu0
      %1481 = vmatpush.bf16.msra.mxu0 0
      %1482 = vmatpush.bf16.msra.mxu0 0
      %1483 = vmatpush.bf16.msra.mxu0 0
      %1484 = vmatpush.bf16.msra.mxu0 0
      %1485 = vmatpush.bf16.msra.mxu0 0
      %1486 = vmatpush.bf16.msra.mxu0 0
      %1487 = vmatpush.bf16.msra.mxu0 0
      %1488 = vmatpush.bf16.msra.mxu0 %v1411
      %1489 = vmatmul.bf16.gmra.mxu0 %v1393
      %v1490 = vpop.f32.mrf.mxu0
      %v1491 = vadd.f32 0.0, %v1490
      %v1492 = vpop.f32.mrf.mxu0
      %1493 = vdwg.mxu0
      %1494 = vmatpush.bf16.msra.mxu0 0
      %1495 = vmatpush.bf16.msra.mxu0 0
      %1496 = vmatpush.bf16.msra.mxu0 0
      %1497 = vmatpush.bf16.msra.mxu0 0
      %1498 = vmatpush.bf16.msra.mxu0 0
      %1499 = vmatpush.bf16.msra.mxu0 0
      %1500 = vmatpush.bf16.msra.mxu0 0
      %1501 = vmatpush.bf16.msra.mxu0 %v1414
      %1502 = vmatmul.bf16.gmra.mxu0 %v1393
      %v1503 = vpop.f32.mrf.mxu0
      %v1504 = vadd.f32 0.0, %v1503
      %v1505 = vpop.f32.mrf.mxu0
      %1506 = vdwg.mxu0
      %v1507 = vadd.f32 %v1336, %v1426
      %v1508 = vadd.f32 %v1337, %v1439
      %v1509 = vadd.f32 %v1338, %v1452
      %v1510 = vadd.f32 %v1339, %v1465
      %v1511 = vadd.f32 %v1340, %v1478
      %v1512 = vadd.f32 %v1341, %v1491
      %v1513 = vadd.f32 %v1342, %v1504
      %v1514 = vld [vmem:[%s194] sm:$0xff]
      %v1515 = vld [vmem:[%s194 + $0x8] sm:$0xff]
      %s1516 = scalar_lea.vmem %s1, 16
      %v1517 = vld [vmem:[%s1516] sm:$0x3]
      %1519 = vst [vmem:[#allocation1] ss:$4 sm:$0xff] %v1514
      %s1521 = scalar_lea.vmem [#allocation1], 32
      %1522 = vst [vmem:[%s1521] ss:$4 sm:$0xff] %v1515
      %v1523 = vld.sshfl [vmem:[#allocation1] sm:$0xff pattern:$0x73625140]
      %v1525 = vld.sshfl [vmem:[#allocation1 + $0x8] sm:$0xff pattern:$0x73625140]
      %v1527 = vld.sshfl [vmem:[#allocation1 + $0x10] sm:$0xff pattern:$0x73625140]
      %v1529 = vld.sshfl [vmem:[#allocation1 + $0x18] sm:$0xff pattern:$0x73625140]
      %v1531 = vld.sshfl [vmem:[#allocation1 + $0x20] sm:$0xff pattern:$0x73625140]
      %v1533 = vld.sshfl [vmem:[#allocation1 + $0x28] sm:$0xff pattern:$0x73625140]
      %v1535 = vld.sshfl [vmem:[#allocation1 + $0x30] sm:$0xff pattern:$0x73625140]
      %v1537 = vld.sshfl [vmem:[#allocation1 + $0x38] sm:$0xff pattern:$0x73625140]
      %1539 = vrot.lane.b32.xlu0 %v1523, 106
      %v1540 = vpop.permute.xlu0 %1539
      %1541 = vrot.lane.b32.xlu0 %v1525, 106
      %v1542 = vpop.permute.xlu0 %1541
      %1543 = vrot.lane.b32.xlu0 %v1527, 106
      %v1544 = vpop.permute.xlu0 %1543
      %1545 = vrot.lane.b32.xlu0 %v1529, 106
      %v1546 = vpop.permute.xlu0 %1545
      %1547 = vrot.lane.b32.xlu0 %v1531, 106
      %v1548 = vpop.permute.xlu0 %1547
      %1549 = vrot.lane.b32.xlu0 %v1533, 106
      %v1550 = vpop.permute.xlu0 %1549
      %1551 = vrot.lane.b32.xlu0 %v1535, 106
      %v1552 = vpop.permute.xlu0 %1551
      %1553 = vrot.lane.b32.xlu0 %v1537, 106
      %v1554 = vpop.permute.xlu0 %1553
      %vm1555 = vcmask 867328
      %v1556 = vsel %vm1555, %v1540, %v1542
      %v1557 = vsel %vm1555, %v1542, %v1544
      %v1558 = vsel %vm1555, %v1544, %v1546
      %v1559 = vsel %vm1555, %v1546, %v1548
      %v1560 = vsel %vm1555, %v1548, %v1550
      %v1561 = vsel %vm1555, %v1550, %v1552
      %v1562 = vsel %vm1555, %v1552, %v1554
      %v1564 = vsel %vm252, %v1517, 0
      %v1567 = vsel %vm256, %v1556, 0
      %v1570 = vsel %vm256, %v1557, 0
      %v1573 = vsel %vm256, %v1558, 0
      %v1576 = vsel %vm256, %v1559, 0
      %v1579 = vsel %vm256, %v1560, 0
      %v1582 = vsel %vm256, %v1561, 0
      %v1585 = vsel %vm256, %v1562, 0
      %1587 = vmatpush.bf16.msra.mxu0 0
      %1588 = vmatpush.bf16.msra.mxu0 0
      %1589 = vmatpush.bf16.msra.mxu0 0
      %1590 = vmatpush.bf16.msra.mxu0 0
      %1591 = vmatpush.bf16.msra.mxu0 0
      %1592 = vmatpush.bf16.msra.mxu0 0
      %1593 = vmatpush.bf16.msra.mxu0 0
      %1594 = vmatpush.bf16.msra.mxu0 %v1567
      %1595 = vmatmul.bf16.gmra.mxu0 %v1564
      %v1596 = vpop.f32.mrf.mxu0
      %v1597 = vadd.f32 0.0, %v1596
      %v1598 = vpop.f32.mrf.mxu0
      %1599 = vdwg.mxu0
      %1600 = vmatpush.bf16.msra.mxu0 0
      %1601 = vmatpush.bf16.msra.mxu0 0
      %1602 = vmatpush.bf16.msra.mxu0 0
      %1603 = vmatpush.bf16.msra.mxu0 0
      %1604 = vmatpush.bf16.msra.mxu0 0
      %1605 = vmatpush.bf16.msra.mxu0 0
      %1606 = vmatpush.bf16.msra.mxu0 0
      %1607 = vmatpush.bf16.msra.mxu0 %v1570
      %1608 = vmatmul.bf16.gmra.mxu0 %v1564
      %v1609 = vpop.f32.mrf.mxu0
      %v1610 = vadd.f32 0.0, %v1609
      %v1611 = vpop.f32.mrf.mxu0
      %1612 = vdwg.mxu0
      %1613 = vmatpush.bf16.msra.mxu0 0
      %1614 = vmatpush.bf16.msra.mxu0 0
      %1615 = vmatpush.bf16.msra.mxu0 0
      %1616 = vmatpush.bf16.msra.mxu0 0
      %1617 = vmatpush.bf16.msra.mxu0 0
      %1618 = vmatpush.bf16.msra.mxu0 0
      %1619 = vmatpush.bf16.msra.mxu0 0
      %1620 = vmatpush.bf16.msra.mxu0 %v1573
      %1621 = vmatmul.bf16.gmra.mxu0 %v1564
      %v1622 = vpop.f32.mrf.mxu0
      %v1623 = vadd.f32 0.0, %v1622
      %v1624 = vpop.f32.mrf.mxu0
      %1625 = vdwg.mxu0
      %1626 = vmatpush.bf16.msra.mxu0 0
      %1627 = vmatpush.bf16.msra.mxu0 0
      %1628 = vmatpush.bf16.msra.mxu0 0
      %1629 = vmatpush.bf16.msra.mxu0 0
      %1630 = vmatpush.bf16.msra.mxu0 0
      %1631 = vmatpush.bf16.msra.mxu0 0
      %1632 = vmatpush.bf16.msra.mxu0 0
      %1633 = vmatpush.bf16.msra.mxu0 %v1576
      %1634 = vmatmul.bf16.gmra.mxu0 %v1564
      %v1635 = vpop.f32.mrf.mxu0
      %v1636 = vadd.f32 0.0, %v1635
      %v1637 = vpop.f32.mrf.mxu0
      %1638 = vdwg.mxu0
      %1639 = vmatpush.bf16.msra.mxu0 0
      %1640 = vmatpush.bf16.msra.mxu0 0
      %1641 = vmatpush.bf16.msra.mxu0 0
      %1642 = vmatpush.bf16.msra.mxu0 0
      %1643 = vmatpush.bf16.msra.mxu0 0
      %1644 = vmatpush.bf16.msra.mxu0 0
      %1645 = vmatpush.bf16.msra.mxu0 0
      %1646 = vmatpush.bf16.msra.mxu0 %v1579
      %1647 = vmatmul.bf16.gmra.mxu0 %v1564
      %v1648 = vpop.f32.mrf.mxu0
      %v1649 = vadd.f32 0.0, %v1648
      %v1650 = vpop.f32.mrf.mxu0
      %1651 = vdwg.mxu0
      %1652 = vmatpush.bf16.msra.mxu0 0
      %1653 = vmatpush.bf16.msra.mxu0 0
      %1654 = vmatpush.bf16.msra.mxu0 0
      %1655 = vmatpush.bf16.msra.mxu0 0
      %1656 = vmatpush.bf16.msra.mxu0 0
      %1657 = vmatpush.bf16.msra.mxu0 0
      %1658 = vmatpush.bf16.msra.mxu0 0
      %1659 = vmatpush.bf16.msra.mxu0 %v1582
      %1660 = vmatmul.bf16.gmra.mxu0 %v1564
      %v1661 = vpop.f32.mrf.mxu0
      %v1662 = vadd.f32 0.0, %v1661
      %v1663 = vpop.f32.mrf.mxu0
      %1664 = vdwg.mxu0
      %1665 = vmatpush.bf16.msra.mxu0 0
      %1666 = vmatpush.bf16.msra.mxu0 0
      %1667 = vmatpush.bf16.msra.mxu0 0
      %1668 = vmatpush.bf16.msra.mxu0 0
      %1669 = vmatpush.bf16.msra.mxu0 0
      %1670 = vmatpush.bf16.msra.mxu0 0
      %1671 = vmatpush.bf16.msra.mxu0 0
      %1672 = vmatpush.bf16.msra.mxu0 %v1585
      %1673 = vmatmul.bf16.gmra.mxu0 %v1564
      %v1674 = vpop.f32.mrf.mxu0
      %v1675 = vadd.f32 0.0, %v1674
      %v1676 = vpop.f32.mrf.mxu0
      %1677 = vdwg.mxu0
      %v1678 = vadd.f32 %v1507, %v1597
      %v1679 = vadd.f32 %v1508, %v1610
      %v1680 = vadd.f32 %v1509, %v1623
      %v1681 = vadd.f32 %v1510, %v1636
      %v1682 = vadd.f32 %v1511, %v1649
      %v1683 = vadd.f32 %v1512, %v1662
      %v1684 = vadd.f32 %v1513, %v1675
      %v1685 = vld [vmem:[%s194] sm:$0xff]
      %v1686 = vld [vmem:[%s194 + $0x8] sm:$0xff]
      %s1687 = scalar_lea.vmem %s1, 18
      %v1688 = vld [vmem:[%s1687] sm:$0x3]
      %1690 = vst [vmem:[#allocation1] ss:$4 sm:$0xff] %v1685
      %s1692 = scalar_lea.vmem [#allocation1], 32
      %1693 = vst [vmem:[%s1692] ss:$4 sm:$0xff] %v1686
      %v1694 = vld.sshfl [vmem:[#allocation1] sm:$0xff pattern:$0x73625140]
      %v1696 = vld.sshfl [vmem:[#allocation1 + $0x8] sm:$0xff pattern:$0x73625140]
      %v1698 = vld.sshfl [vmem:[#allocation1 + $0x10] sm:$0xff pattern:$0x73625140]
      %v1700 = vld.sshfl [vmem:[#allocation1 + $0x18] sm:$0xff pattern:$0x73625140]
      %v1702 = vld.sshfl [vmem:[#allocation1 + $0x20] sm:$0xff pattern:$0x73625140]
      %v1704 = vld.sshfl [vmem:[#allocation1 + $0x28] sm:$0xff pattern:$0x73625140]
      %v1706 = vld.sshfl [vmem:[#allocation1 + $0x30] sm:$0xff pattern:$0x73625140]
      %v1708 = vld.sshfl [vmem:[#allocation1 + $0x38] sm:$0xff pattern:$0x73625140]
      %1710 = vrot.lane.b32.xlu0 %v1694, 28
      %v1711 = vpop.permute.xlu0 %1710
      %1712 = vrot.lane.b32.xlu0 %v1696, 28
      %v1713 = vpop.permute.xlu0 %1712
      %1714 = vrot.lane.b32.xlu0 %v1698, 28
      %v1715 = vpop.permute.xlu0 %1714
      %1716 = vrot.lane.b32.xlu0 %v1700, 28
      %v1717 = vpop.permute.xlu0 %1716
      %1718 = vrot.lane.b32.xlu0 %v1702, 28
      %v1719 = vpop.permute.xlu0 %1718
      %1720 = vrot.lane.b32.xlu0 %v1704, 28
      %v1721 = vpop.permute.xlu0 %1720
      %1722 = vrot.lane.b32.xlu0 %v1706, 28
      %v1723 = vpop.permute.xlu0 %1722
      %1724 = vrot.lane.b32.xlu0 %v1708, 28
      %v1725 = vpop.permute.xlu0 %1724
      %vm1726 = vcmask 228352
      %v1727 = vsel %vm1726, %v1711, %v1713
      %v1728 = vsel %vm1726, %v1713, %v1715
      %v1729 = vsel %vm1726, %v1715, %v1717
      %v1730 = vsel %vm1726, %v1717, %v1719
      %v1731 = vsel %vm1726, %v1719, %v1721
      %v1732 = vsel %vm1726, %v1721, %v1723
      %v1733 = vsel %vm1726, %v1723, %v1725
      %v1735 = vsel %vm252, %v1688, 0
      %v1738 = vsel %vm256, %v1727, 0
      %v1741 = vsel %vm256, %v1728, 0
      %v1744 = vsel %vm256, %v1729, 0
      %v1747 = vsel %vm256, %v1730, 0
      %v1750 = vsel %vm256, %v1731, 0
      %v1753 = vsel %vm256, %v1732, 0
      %v1756 = vsel %vm256, %v1733, 0
      %1758 = vmatpush.bf16.msra.mxu0 0
      %1759 = vmatpush.bf16.msra.mxu0 0
      %1760 = vmatpush.bf16.msra.mxu0 0
      %1761 = vmatpush.bf16.msra.mxu0 0
      %1762 = vmatpush.bf16.msra.mxu0 0
      %1763 = vmatpush.bf16.msra.mxu0 0
      %1764 = vmatpush.bf16.msra.mxu0 0
      %1765 = vmatpush.bf16.msra.mxu0 %v1738
      %1766 = vmatmul.bf16.gmra.mxu0 %v1735
      %v1767 = vpop.f32.mrf.mxu0
      %v1768 = vadd.f32 0.0, %v1767
      %v1769 = vpop.f32.mrf.mxu0
      %1770 = vdwg.mxu0
      %1771 = vmatpush.bf16.msra.mxu0 0
      %1772 = vmatpush.bf16.msra.mxu0 0
      %1773 = vmatpush.bf16.msra.mxu0 0
      %1774 = vmatpush.bf16.msra.mxu0 0
      %1775 = vmatpush.bf16.msra.mxu0 0
      %1776 = vmatpush.bf16.msra.mxu0 0
      %1777 = vmatpush.bf16.msra.mxu0 0
      %1778 = vmatpush.bf16.msra.mxu0 %v1741
      %1779 = vmatmul.bf16.gmra.mxu0 %v1735
      %v1780 = vpop.f32.mrf.mxu0
      %v1781 = vadd.f32 0.0, %v1780
      %v1782 = vpop.f32.mrf.mxu0
      %1783 = vdwg.mxu0
      %1784 = vmatpush.bf16.msra.mxu0 0
      %1785 = vmatpush.bf16.msra.mxu0 0
      %1786 = vmatpush.bf16.msra.mxu0 0
      %1787 = vmatpush.bf16.msra.mxu0 0
      %1788 = vmatpush.bf16.msra.mxu0 0
      %1789 = vmatpush.bf16.msra.mxu0 0
      %1790 = vmatpush.bf16.msra.mxu0 0
      %1791 = vmatpush.bf16.msra.mxu0 %v1744
      %1792 = vmatmul.bf16.gmra.mxu0 %v1735
      %v1793 = vpop.f32.mrf.mxu0
      %v1794 = vadd.f32 0.0, %v1793
      %v1795 = vpop.f32.mrf.mxu0
      %1796 = vdwg.mxu0
      %1797 = vmatpush.bf16.msra.mxu0 0
      %1798 = vmatpush.bf16.msra.mxu0 0
      %1799 = vmatpush.bf16.msra.mxu0 0
      %1800 = vmatpush.bf16.msra.mxu0 0
      %1801 = vmatpush.bf16.msra.mxu0 0
      %1802 = vmatpush.bf16.msra.mxu0 0
      %1803 = vmatpush.bf16.msra.mxu0 0
      %1804 = vmatpush.bf16.msra.mxu0 %v1747
      %1805 = vmatmul.bf16.gmra.mxu0 %v1735
      %v1806 = vpop.f32.mrf.mxu0
      %v1807 = vadd.f32 0.0, %v1806
      %v1808 = vpop.f32.mrf.mxu0
      %1809 = vdwg.mxu0
      %1810 = vmatpush.bf16.msra.mxu0 0
      %1811 = vmatpush.bf16.msra.mxu0 0
      %1812 = vmatpush.bf16.msra.mxu0 0
      %1813 = vmatpush.bf16.msra.mxu0 0
      %1814 = vmatpush.bf16.msra.mxu0 0
      %1815 = vmatpush.bf16.msra.mxu0 0
      %1816 = vmatpush.bf16.msra.mxu0 0
      %1817 = vmatpush.bf16.msra.mxu0 %v1750
      %1818 = vmatmul.bf16.gmra.mxu0 %v1735
      %v1819 = vpop.f32.mrf.mxu0
      %v1820 = vadd.f32 0.0, %v1819
      %v1821 = vpop.f32.mrf.mxu0
      %1822 = vdwg.mxu0
      %1823 = vmatpush.bf16.msra.mxu0 0
      %1824 = vmatpush.bf16.msra.mxu0 0
      %1825 = vmatpush.bf16.msra.mxu0 0
      %1826 = vmatpush.bf16.msra.mxu0 0
      %1827 = vmatpush.bf16.msra.mxu0 0
      %1828 = vmatpush.bf16.msra.mxu0 0
      %1829 = vmatpush.bf16.msra.mxu0 0
      %1830 = vmatpush.bf16.msra.mxu0 %v1753
      %1831 = vmatmul.bf16.gmra.mxu0 %v1735
      %v1832 = vpop.f32.mrf.mxu0
      %v1833 = vadd.f32 0.0, %v1832
      %v1834 = vpop.f32.mrf.mxu0
      %1835 = vdwg.mxu0
      %1836 = vmatpush.bf16.msra.mxu0 0
      %1837 = vmatpush.bf16.msra.mxu0 0
      %1838 = vmatpush.bf16.msra.mxu0 0
      %1839 = vmatpush.bf16.msra.mxu0 0
      %1840 = vmatpush.bf16.msra.mxu0 0
      %1841 = vmatpush.bf16.msra.mxu0 0
      %1842 = vmatpush.bf16.msra.mxu0 0
      %1843 = vmatpush.bf16.msra.mxu0 %v1756
      %1844 = vmatmul.bf16.gmra.mxu0 %v1735
      %v1845 = vpop.f32.mrf.mxu0
      %v1846 = vadd.f32 0.0, %v1845
      %v1847 = vpop.f32.mrf.mxu0
      %1848 = vdwg.mxu0
      %v1849 = vadd.f32 %v1678, %v1768
      %v1850 = vadd.f32 %v1679, %v1781
      %v1851 = vadd.f32 %v1680, %v1794
      %v1852 = vadd.f32 %v1681, %v1807
      %v1853 = vadd.f32 %v1682, %v1820
      %v1854 = vadd.f32 %v1683, %v1833
      %v1855 = vadd.f32 %v1684, %v1846
      %v1856 = vld [vmem:[%s194] sm:$0xff]
      %v1857 = vld [vmem:[%s194 + $0x8] sm:$0xff]
      %s1858 = scalar_lea.vmem %s1, 20
      %v1859 = vld [vmem:[%s1858] sm:$0x3]
      %1861 = vst [vmem:[#allocation1] ss:$4 sm:$0xff] %v1856
      %s1863 = scalar_lea.vmem [#allocation1], 32
      %1864 = vst [vmem:[%s1863] ss:$4 sm:$0xff] %v1857
      %v1865 = vld.sshfl [vmem:[#allocation1] sm:$0xff pattern:$0x73625140]
      %v1867 = vld.sshfl [vmem:[#allocation1 + $0x8] sm:$0xff pattern:$0x73625140]
      %v1869 = vld.sshfl [vmem:[#allocation1 + $0x10] sm:$0xff pattern:$0x73625140]
      %v1871 = vld.sshfl [vmem:[#allocation1 + $0x18] sm:$0xff pattern:$0x73625140]
      %v1873 = vld.sshfl [vmem:[#allocation1 + $0x20] sm:$0xff pattern:$0x73625140]
      %v1875 = vld.sshfl [vmem:[#allocation1 + $0x28] sm:$0xff pattern:$0x73625140]
      %v1877 = vld.sshfl [vmem:[#allocation1 + $0x30] sm:$0xff pattern:$0x73625140]
      %v1879 = vld.sshfl [vmem:[#allocation1 + $0x38] sm:$0xff pattern:$0x73625140]
      %1881 = vrot.lane.b32.xlu0 %v1865, 27
      %v1882 = vpop.permute.xlu0 %1881
      %1883 = vrot.lane.b32.xlu0 %v1867, 27
      %v1884 = vpop.permute.xlu0 %1883
      %1885 = vrot.lane.b32.xlu0 %v1869, 27
      %v1886 = vpop.permute.xlu0 %1885
      %1887 = vrot.lane.b32.xlu0 %v1871, 27
      %v1888 = vpop.permute.xlu0 %1887
      %1889 = vrot.lane.b32.xlu0 %v1873, 27
      %v1890 = vpop.permute.xlu0 %1889
      %1891 = vrot.lane.b32.xlu0 %v1875, 27
      %v1892 = vpop.permute.xlu0 %1891
      %1893 = vrot.lane.b32.xlu0 %v1877, 27
      %v1894 = vpop.permute.xlu0 %1893
      %1895 = vrot.lane.b32.xlu0 %v1879, 27
      %v1896 = vpop.permute.xlu0 %1895
      %vm1897 = vcmask 220160
      %v1898 = vsel %vm1897, %v1882, %v1884
      %v1899 = vsel %vm1897, %v1884, %v1886
      %v1900 = vsel %vm1897, %v1886, %v1888
      %v1901 = vsel %vm1897, %v1888, %v1890
      %v1902 = vsel %vm1897, %v1890, %v1892
      %v1903 = vsel %vm1897, %v1892, %v1894
      %v1904 = vsel %vm1897, %v1894, %v1896
      %v1906 = vsel %vm252, %v1859, 0
      %v1909 = vsel %vm256, %v1898, 0
      %v1912 = vsel %vm256, %v1899, 0
      %v1915 = vsel %vm256, %v1900, 0
      %v1918 = vsel %vm256, %v1901, 0
      %v1921 = vsel %vm256, %v1902, 0
      %v1924 = vsel %vm256, %v1903, 0
      %v1927 = vsel %vm256, %v1904, 0
      %1929 = vmatpush.bf16.msra.mxu0 0
      %1930 = vmatpush.bf16.msra.mxu0 0
      %1931 = vmatpush.bf16.msra.mxu0 0
      %1932 = vmatpush.bf16.msra.mxu0 0
      %1933 = vmatpush.bf16.msra.mxu0 0
      %1934 = vmatpush.bf16.msra.mxu0 0
      %1935 = vmatpush.bf16.msra.mxu0 0
      %1936 = vmatpush.bf16.msra.mxu0 %v1909
      %1937 = vmatmul.bf16.gmra.mxu0 %v1906
      %v1938 = vpop.f32.mrf.mxu0
      %v1939 = vadd.f32 0.0, %v1938
      %v1940 = vpop.f32.mrf.mxu0
      %1941 = vdwg.mxu0
      %1942 = vmatpush.bf16.msra.mxu0 0
      %1943 = vmatpush.bf16.msra.mxu0 0
      %1944 = vmatpush.bf16.msra.mxu0 0
      %1945 = vmatpush.bf16.msra.mxu0 0
      %1946 = vmatpush.bf16.msra.mxu0 0
      %1947 = vmatpush.bf16.msra.mxu0 0
      %1948 = vmatpush.bf16.msra.mxu0 0
      %1949 = vmatpush.bf16.msra.mxu0 %v1912
      %1950 = vmatmul.bf16.gmra.mxu0 %v1906
      %v1951 = vpop.f32.mrf.mxu0
      %v1952 = vadd.f32 0.0, %v1951
      %v1953 = vpop.f32.mrf.mxu0
      %1954 = vdwg.mxu0
      %1955 = vmatpush.bf16.msra.mxu0 0
      %1956 = vmatpush.bf16.msra.mxu0 0
      %1957 = vmatpush.bf16.msra.mxu0 0
      %1958 = vmatpush.bf16.msra.mxu0 0
      %1959 = vmatpush.bf16.msra.mxu0 0
      %1960 = vmatpush.bf16.msra.mxu0 0
      %1961 = vmatpush.bf16.msra.mxu0 0
      %1962 = vmatpush.bf16.msra.mxu0 %v1915
      %1963 = vmatmul.bf16.gmra.mxu0 %v1906
      %v1964 = vpop.f32.mrf.mxu0
      %v1965 = vadd.f32 0.0, %v1964
      %v1966 = vpop.f32.mrf.mxu0
      %1967 = vdwg.mxu0
      %1968 = vmatpush.bf16.msra.mxu0 0
      %1969 = vmatpush.bf16.msra.mxu0 0
      %1970 = vmatpush.bf16.msra.mxu0 0
      %1971 = vmatpush.bf16.msra.mxu0 0
      %1972 = vmatpush.bf16.msra.mxu0 0
      %1973 = vmatpush.bf16.msra.mxu0 0
      %1974 = vmatpush.bf16.msra.mxu0 0
      %1975 = vmatpush.bf16.msra.mxu0 %v1918
      %1976 = vmatmul.bf16.gmra.mxu0 %v1906
      %v1977 = vpop.f32.mrf.mxu0
      %v1978 = vadd.f32 0.0, %v1977
      %v1979 = vpop.f32.mrf.mxu0
      %1980 = vdwg.mxu0
      %1981 = vmatpush.bf16.msra.mxu0 0
      %1982 = vmatpush.bf16.msra.mxu0 0
      %1983 = vmatpush.bf16.msra.mxu0 0
      %1984 = vmatpush.bf16.msra.mxu0 0
      %1985 = vmatpush.bf16.msra.mxu0 0
      %1986 = vmatpush.bf16.msra.mxu0 0
      %1987 = vmatpush.bf16.msra.mxu0 0
      %1988 = vmatpush.bf16.msra.mxu0 %v1921
      %1989 = vmatmul.bf16.gmra.mxu0 %v1906
      %v1990 = vpop.f32.mrf.mxu0
      %v1991 = vadd.f32 0.0, %v1990
      %v1992 = vpop.f32.mrf.mxu0
      %1993 = vdwg.mxu0
      %1994 = vmatpush.bf16.msra.mxu0 0
      %1995 = vmatpush.bf16.msra.mxu0 0
      %1996 = vmatpush.bf16.msra.mxu0 0
      %1997 = vmatpush.bf16.msra.mxu0 0
      %1998 = vmatpush.bf16.msra.mxu0 0
      %1999 = vmatpush.bf16.msra.mxu0 0
      %2000 = vmatpush.bf16.msra.mxu0 0
      %2001 = vmatpush.bf16.msra.mxu0 %v1924
      %2002 = vmatmul.bf16.gmra.mxu0 %v1906
      %v2003 = vpop.f32.mrf.mxu0
      %v2004 = vadd.f32 0.0, %v2003
      %v2005 = vpop.f32.mrf.mxu0
      %2006 = vdwg.mxu0
      %2007 = vmatpush.bf16.msra.mxu0 0
      %2008 = vmatpush.bf16.msra.mxu0 0
      %2009 = vmatpush.bf16.msra.mxu0 0
      %2010 = vmatpush.bf16.msra.mxu0 0
      %2011 = vmatpush.bf16.msra.mxu0 0
      %2012 = vmatpush.bf16.msra.mxu0 0
      %2013 = vmatpush.bf16.msra.mxu0 0
      %2014 = vmatpush.bf16.msra.mxu0 %v1927
      %2015 = vmatmul.bf16.gmra.mxu0 %v1906
      %v2016 = vpop.f32.mrf.mxu0
      %v2017 = vadd.f32 0.0, %v2016
      %v2018 = vpop.f32.mrf.mxu0
      %2019 = vdwg.mxu0
      %v2020 = vadd.f32 %v1849, %v1939
      %v2021 = vadd.f32 %v1850, %v1952
      %v2022 = vadd.f32 %v1851, %v1965
      %v2023 = vadd.f32 %v1852, %v1978
      %v2024 = vadd.f32 %v1853, %v1991
      %v2025 = vadd.f32 %v1854, %v2004
      %v2026 = vadd.f32 %v1855, %v2017
      %v2027 = vld [vmem:[%s194] sm:$0xff]
      %v2028 = vld [vmem:[%s194 + $0x8] sm:$0xff]
      %s2029 = scalar_lea.vmem %s1, 22
      %v2030 = vld [vmem:[%s2029] sm:$0x3]
      %2032 = vst [vmem:[#allocation1] ss:$4 sm:$0xff] %v2027
      %s2034 = scalar_lea.vmem [#allocation1], 32
      %2035 = vst [vmem:[%s2034] ss:$4 sm:$0xff] %v2028
      %v2036 = vld.sshfl [vmem:[#allocation1] sm:$0xff pattern:$0x73625140]
      %v2038 = vld.sshfl [vmem:[#allocation1 + $0x8] sm:$0xff pattern:$0x73625140]
      %v2040 = vld.sshfl [vmem:[#allocation1 + $0x10] sm:$0xff pattern:$0x73625140]
      %v2042 = vld.sshfl [vmem:[#allocation1 + $0x18] sm:$0xff pattern:$0x73625140]
      %v2044 = vld.sshfl [vmem:[#allocation1 + $0x20] sm:$0xff pattern:$0x73625140]
      %v2046 = vld.sshfl [vmem:[#allocation1 + $0x28] sm:$0xff pattern:$0x73625140]
      %v2048 = vld.sshfl [vmem:[#allocation1 + $0x30] sm:$0xff pattern:$0x73625140]
      %v2050 = vld.sshfl [vmem:[#allocation1 + $0x38] sm:$0xff pattern:$0x73625140]
      %2052 = vrot.lane.b32.xlu0 %v2036, 26
      %v2053 = vpop.permute.xlu0 %2052
      %2054 = vrot.lane.b32.xlu0 %v2038, 26
      %v2055 = vpop.permute.xlu0 %2054
      %2056 = vrot.lane.b32.xlu0 %v2040, 26
      %v2057 = vpop.permute.xlu0 %2056
      %2058 = vrot.lane.b32.xlu0 %v2042, 26
      %v2059 = vpop.permute.xlu0 %2058
      %2060 = vrot.lane.b32.xlu0 %v2044, 26
      %v2061 = vpop.permute.xlu0 %2060
      %2062 = vrot.lane.b32.xlu0 %v2046, 26
      %v2063 = vpop.permute.xlu0 %2062
      %2064 = vrot.lane.b32.xlu0 %v2048, 26
      %v2065 = vpop.permute.xlu0 %2064
      %2066 = vrot.lane.b32.xlu0 %v2050, 26
      %v2067 = vpop.permute.xlu0 %2066
      %vm2068 = vcmask 211968
      %v2069 = vsel %vm2068, %v2053, %v2055
      %v2070 = vsel %vm2068, %v2055, %v2057
      %v2071 = vsel %vm2068, %v2057, %v2059
      %v2072 = vsel %vm2068, %v2059, %v2061
      %v2073 = vsel %vm2068, %v2061, %v2063
      %v2074 = vsel %vm2068, %v2063, %v2065
      %v2075 = vsel %vm2068, %v2065, %v2067
      %v2077 = vsel %vm252, %v2030, 0
      %v2080 = vsel %vm256, %v2069, 0
      %v2083 = vsel %vm256, %v2070, 0
      %v2086 = vsel %vm256, %v2071, 0
      %v2089 = vsel %vm256, %v2072, 0
      %v2092 = vsel %vm256, %v2073, 0
      %v2095 = vsel %vm256, %v2074, 0
      %v2098 = vsel %vm256, %v2075, 0
      %2100 = vmatpush.bf16.msra.mxu0 0
      %2101 = vmatpush.bf16.msra.mxu0 0
      %2102 = vmatpush.bf16.msra.mxu0 0
      %2103 = vmatpush.bf16.msra.mxu0 0
      %2104 = vmatpush.bf16.msra.mxu0 0
      %2105 = vmatpush.bf16.msra.mxu0 0
      %2106 = vmatpush.bf16.msra.mxu0 0
      %2107 = vmatpush.bf16.msra.mxu0 %v2080
      %2108 = vmatmul.bf16.gmra.mxu0 %v2077
      %v2109 = vpop.f32.mrf.mxu0
      %v2110 = vadd.f32 0.0, %v2109
      %v2111 = vpop.f32.mrf.mxu0
      %2112 = vdwg.mxu0
      %2113 = vmatpush.bf16.msra.mxu0 0
      %2114 = vmatpush.bf16.msra.mxu0 0
      %2115 = vmatpush.bf16.msra.mxu0 0
      %2116 = vmatpush.bf16.msra.mxu0 0
      %2117 = vmatpush.bf16.msra.mxu0 0
      %2118 = vmatpush.bf16.msra.mxu0 0
      %2119 = vmatpush.bf16.msra.mxu0 0
      %2120 = vmatpush.bf16.msra.mxu0 %v2083
      %2121 = vmatmul.bf16.gmra.mxu0 %v2077
      %v2122 = vpop.f32.mrf.mxu0
      %v2123 = vadd.f32 0.0, %v2122
      %v2124 = vpop.f32.mrf.mxu0
      %2125 = vdwg.mxu0
      %2126 = vmatpush.bf16.msra.mxu0 0
      %2127 = vmatpush.bf16.msra.mxu0 0
      %2128 = vmatpush.bf16.msra.mxu0 0
      %2129 = vmatpush.bf16.msra.mxu0 0
      %2130 = vmatpush.bf16.msra.mxu0 0
      %2131 = vmatpush.bf16.msra.mxu0 0
      %2132 = vmatpush.bf16.msra.mxu0 0
      %2133 = vmatpush.bf16.msra.mxu0 %v2086
      %2134 = vmatmul.bf16.gmra.mxu0 %v2077
      %v2135 = vpop.f32.mrf.mxu0
      %v2136 = vadd.f32 0.0, %v2135
      %v2137 = vpop.f32.mrf.mxu0
      %2138 = vdwg.mxu0
      %2139 = vmatpush.bf16.msra.mxu0 0
      %2140 = vmatpush.bf16.msra.mxu0 0
      %2141 = vmatpush.bf16.msra.mxu0 0
      %2142 = vmatpush.bf16.msra.mxu0 0
      %2143 = vmatpush.bf16.msra.mxu0 0
      %2144 = vmatpush.bf16.msra.mxu0 0
      %2145 = vmatpush.bf16.msra.mxu0 0
      %2146 = vmatpush.bf16.msra.mxu0 %v2089
      %2147 = vmatmul.bf16.gmra.mxu0 %v2077
      %v2148 = vpop.f32.mrf.mxu0
      %v2149 = vadd.f32 0.0, %v2148
      %v2150 = vpop.f32.mrf.mxu0
      %2151 = vdwg.mxu0
      %2152 = vmatpush.bf16.msra.mxu0 0
      %2153 = vmatpush.bf16.msra.mxu0 0
      %2154 = vmatpush.bf16.msra.mxu0 0
      %2155 = vmatpush.bf16.msra.mxu0 0
      %2156 = vmatpush.bf16.msra.mxu0 0
      %2157 = vmatpush.bf16.msra.mxu0 0
      %2158 = vmatpush.bf16.msra.mxu0 0
      %2159 = vmatpush.bf16.msra.mxu0 %v2092
      %2160 = vmatmul.bf16.gmra.mxu0 %v2077
      %v2161 = vpop.f32.mrf.mxu0
      %v2162 = vadd.f32 0.0, %v2161
      %v2163 = vpop.f32.mrf.mxu0
      %2164 = vdwg.mxu0
      %2165 = vmatpush.bf16.msra.mxu0 0
      %2166 = vmatpush.bf16.msra.mxu0 0
      %2167 = vmatpush.bf16.msra.mxu0 0
      %2168 = vmatpush.bf16.msra.mxu0 0
      %2169 = vmatpush.bf16.msra.mxu0 0
      %2170 = vmatpush.bf16.msra.mxu0 0
      %2171 = vmatpush.bf16.msra.mxu0 0
      %2172 = vmatpush.bf16.msra.mxu0 %v2095
      %2173 = vmatmul.bf16.gmra.mxu0 %v2077
      %v2174 = vpop.f32.mrf.mxu0
      %v2175 = vadd.f32 0.0, %v2174
      %v2176 = vpop.f32.mrf.mxu0
      %2177 = vdwg.mxu0
      %2178 = vmatpush.bf16.msra.mxu0 0
      %2179 = vmatpush.bf16.msra.mxu0 0
      %2180 = vmatpush.bf16.msra.mxu0 0
      %2181 = vmatpush.bf16.msra.mxu0 0
      %2182 = vmatpush.bf16.msra.mxu0 0
      %2183 = vmatpush.bf16.msra.mxu0 0
      %2184 = vmatpush.bf16.msra.mxu0 0
      %2185 = vmatpush.bf16.msra.mxu0 %v2098
      %2186 = vmatmul.bf16.gmra.mxu0 %v2077
      %v2187 = vpop.f32.mrf.mxu0
      %v2188 = vadd.f32 0.0, %v2187
      %v2189 = vpop.f32.mrf.mxu0
      %2190 = vdwg.mxu0
      %v2191 = vadd.f32 %v2020, %v2110
      %v2192 = vadd.f32 %v2021, %v2123
      %v2193 = vadd.f32 %v2022, %v2136
      %v2194 = vadd.f32 %v2023, %v2149
      %v2195 = vadd.f32 %v2024, %v2162
      %v2196 = vadd.f32 %v2025, %v2175
      %v2197 = vadd.f32 %v2026, %v2188
      %v2198 = vld [vmem:[%s194] sm:$0xff]
      %v2199 = vld [vmem:[%s194 + $0x8] sm:$0xff]
      %s2200 = scalar_lea.vmem %s1, 24
      %v2201 = vld [vmem:[%s2200] sm:$0x3]
      %2203 = vst [vmem:[#allocation1] ss:$4 sm:$0xff] %v2198
      %s2205 = scalar_lea.vmem [#allocation1], 32
      %2206 = vst [vmem:[%s2205] ss:$4 sm:$0xff] %v2199
      %v2207 = vld.sshfl [vmem:[#allocation1] sm:$0xff pattern:$0x73625140]
      %v2209 = vld.sshfl [vmem:[#allocation1 + $0x8] sm:$0xff pattern:$0x73625140]
      %v2211 = vld.sshfl [vmem:[#allocation1 + $0x10] sm:$0xff pattern:$0x73625140]
      %v2213 = vld.sshfl [vmem:[#allocation1 + $0x18] sm:$0xff pattern:$0x73625140]
      %v2215 = vld.sshfl [vmem:[#allocation1 + $0x20] sm:$0xff pattern:$0x73625140]
      %v2217 = vld.sshfl [vmem:[#allocation1 + $0x28] sm:$0xff pattern:$0x73625140]
      %v2219 = vld.sshfl [vmem:[#allocation1 + $0x30] sm:$0xff pattern:$0x73625140]
      %v2221 = vld.sshfl [vmem:[#allocation1 + $0x38] sm:$0xff pattern:$0x73625140]
      %2223 = vrot.lane.b32.xlu0 %v2207, 18
      %v2224 = vpop.permute.xlu0 %2223
      %2225 = vrot.lane.b32.xlu0 %v2209, 18
      %v2226 = vpop.permute.xlu0 %2225
      %2227 = vrot.lane.b32.xlu0 %v2211, 18
      %v2228 = vpop.permute.xlu0 %2227
      %2229 = vrot.lane.b32.xlu0 %v2213, 18
      %v2230 = vpop.permute.xlu0 %2229
      %2231 = vrot.lane.b32.xlu0 %v2215, 18
      %v2232 = vpop.permute.xlu0 %2231
      %2233 = vrot.lane.b32.xlu0 %v2217, 18
      %v2234 = vpop.permute.xlu0 %2233
      %2235 = vrot.lane.b32.xlu0 %v2219, 18
      %v2236 = vpop.permute.xlu0 %2235
      %2237 = vrot.lane.b32.xlu0 %v2221, 18
      %v2238 = vpop.permute.xlu0 %2237
      %vm2239 = vcmask 146432
      %v2240 = vsel %vm2239, %v2224, %v2226
      %v2241 = vsel %vm2239, %v2226, %v2228
      %v2242 = vsel %vm2239, %v2228, %v2230
      %v2243 = vsel %vm2239, %v2230, %v2232
      %v2244 = vsel %vm2239, %v2232, %v2234
      %v2245 = vsel %vm2239, %v2234, %v2236
      %v2246 = vsel %vm2239, %v2236, %v2238
      %v2248 = vsel %vm252, %v2201, 0
      %v2251 = vsel %vm256, %v2240, 0
      %v2254 = vsel %vm256, %v2241, 0
      %v2257 = vsel %vm256, %v2242, 0
      %v2260 = vsel %vm256, %v2243, 0
      %v2263 = vsel %vm256, %v2244, 0
      %v2266 = vsel %vm256, %v2245, 0
      %v2269 = vsel %vm256, %v2246, 0
      %2271 = vmatpush.bf16.msra.mxu0 0
      %2272 = vmatpush.bf16.msra.mxu0 0
      %2273 = vmatpush.bf16.msra.mxu0 0
      %2274 = vmatpush.bf16.msra.mxu0 0
      %2275 = vmatpush.bf16.msra.mxu0 0
      %2276 = vmatpush.bf16.msra.mxu0 0
      %2277 = vmatpush.bf16.msra.mxu0 0
      %2278 = vmatpush.bf16.msra.mxu0 %v2251
      %2279 = vmatmul.bf16.gmra.mxu0 %v2248
      %v2280 = vpop.f32.mrf.mxu0
      %v2281 = vadd.f32 0.0, %v2280
      %v2282 = vpop.f32.mrf.mxu0
      %2283 = vdwg.mxu0
      %2284 = vmatpush.bf16.msra.mxu0 0
      %2285 = vmatpush.bf16.msra.mxu0 0
      %2286 = vmatpush.bf16.msra.mxu0 0
      %2287 = vmatpush.bf16.msra.mxu0 0
      %2288 = vmatpush.bf16.msra.mxu0 0
      %2289 = vmatpush.bf16.msra.mxu0 0
      %2290 = vmatpush.bf16.msra.mxu0 0
      %2291 = vmatpush.bf16.msra.mxu0 %v2254
      %2292 = vmatmul.bf16.gmra.mxu0 %v2248
      %v2293 = vpop.f32.mrf.mxu0
      %v2294 = vadd.f32 0.0, %v2293
      %v2295 = vpop.f32.mrf.mxu0
      %2296 = vdwg.mxu0
      %2297 = vmatpush.bf16.msra.mxu0 0
      %2298 = vmatpush.bf16.msra.mxu0 0
      %2299 = vmatpush.bf16.msra.mxu0 0
      %2300 = vmatpush.bf16.msra.mxu0 0
      %2301 = vmatpush.bf16.msra.mxu0 0
      %2302 = vmatpush.bf16.msra.mxu0 0
      %2303 = vmatpush.bf16.msra.mxu0 0
      %2304 = vmatpush.bf16.msra.mxu0 %v2257
      %2305 = vmatmul.bf16.gmra.mxu0 %v2248
      %v2306 = vpop.f32.mrf.mxu0
      %v2307 = vadd.f32 0.0, %v2306
      %v2308 = vpop.f32.mrf.mxu0
      %2309 = vdwg.mxu0
      %2310 = vmatpush.bf16.msra.mxu0 0
      %2311 = vmatpush.bf16.msra.mxu0 0
      %2312 = vmatpush.bf16.msra.mxu0 0
      %2313 = vmatpush.bf16.msra.mxu0 0
      %2314 = vmatpush.bf16.msra.mxu0 0
      %2315 = vmatpush.bf16.msra.mxu0 0
      %2316 = vmatpush.bf16.msra.mxu0 0
      %2317 = vmatpush.bf16.msra.mxu0 %v2260
      %2318 = vmatmul.bf16.gmra.mxu0 %v2248
      %v2319 = vpop.f32.mrf.mxu0
      %v2320 = vadd.f32 0.0, %v2319
      %v2321 = vpop.f32.mrf.mxu0
      %2322 = vdwg.mxu0
      %2323 = vmatpush.bf16.msra.mxu0 0
      %2324 = vmatpush.bf16.msra.mxu0 0
      %2325 = vmatpush.bf16.msra.mxu0 0
      %2326 = vmatpush.bf16.msra.mxu0 0
      %2327 = vmatpush.bf16.msra.mxu0 0
      %2328 = vmatpush.bf16.msra.mxu0 0
      %2329 = vmatpush.bf16.msra.mxu0 0
      %2330 = vmatpush.bf16.msra.mxu0 %v2263
      %2331 = vmatmul.bf16.gmra.mxu0 %v2248
      %v2332 = vpop.f32.mrf.mxu0
      %v2333 = vadd.f32 0.0, %v2332
      %v2334 = vpop.f32.mrf.mxu0
      %2335 = vdwg.mxu0
      %2336 = vmatpush.bf16.msra.mxu0 0
      %2337 = vmatpush.bf16.msra.mxu0 0
      %2338 = vmatpush.bf16.msra.mxu0 0
      %2339 = vmatpush.bf16.msra.mxu0 0
      %2340 = vmatpush.bf16.msra.mxu0 0
      %2341 = vmatpush.bf16.msra.mxu0 0
      %2342 = vmatpush.bf16.msra.mxu0 0
      %2343 = vmatpush.bf16.msra.mxu0 %v2266
      %2344 = vmatmul.bf16.gmra.mxu0 %v2248
      %v2345 = vpop.f32.mrf.mxu0
      %v2346 = vadd.f32 0.0, %v2345
      %v2347 = vpop.f32.mrf.mxu0
      %2348 = vdwg.mxu0
      %2349 = vmatpush.bf16.msra.mxu0 0
      %2350 = vmatpush.bf16.msra.mxu0 0
      %2351 = vmatpush.bf16.msra.mxu0 0
      %2352 = vmatpush.bf16.msra.mxu0 0
      %2353 = vmatpush.bf16.msra.mxu0 0
      %2354 = vmatpush.bf16.msra.mxu0 0
      %2355 = vmatpush.bf16.msra.mxu0 0
      %2356 = vmatpush.bf16.msra.mxu0 %v2269
      %2357 = vmatmul.bf16.gmra.mxu0 %v2248
      %v2358 = vpop.f32.mrf.mxu0
      %v2359 = vadd.f32 0.0, %v2358
      %v2360 = vpop.f32.mrf.mxu0
      %2361 = vdwg.mxu0
      %v2362 = vadd.f32 %v2191, %v2281
      %v2363 = vadd.f32 %v2192, %v2294
      %v2364 = vadd.f32 %v2193, %v2307
      %v2365 = vadd.f32 %v2194, %v2320
      %v2366 = vadd.f32 %v2195, %v2333
      %v2367 = vadd.f32 %v2196, %v2346
      %v2368 = vadd.f32 %v2197, %v2359
      %v2369 = vld [vmem:[%s194] sm:$0xff]
      %v2370 = vld [vmem:[%s194 + $0x8] sm:$0xff]
      %s2371 = scalar_lea.vmem %s1, 26
      %v2372 = vld [vmem:[%s2371] sm:$0x3]
      %2374 = vst [vmem:[#allocation1] ss:$4 sm:$0xff] %v2369
      %s2376 = scalar_lea.vmem [#allocation1], 32
      %2377 = vst [vmem:[%s2376] ss:$4 sm:$0xff] %v2370
      %v2378 = vld.sshfl [vmem:[#allocation1] sm:$0xff pattern:$0x73625140]
      %v2380 = vld.sshfl [vmem:[#allocation1 + $0x8] sm:$0xff pattern:$0x73625140]
      %v2382 = vld.sshfl [vmem:[#allocation1 + $0x10] sm:$0xff pattern:$0x73625140]
      %v2384 = vld.sshfl [vmem:[#allocation1 + $0x18] sm:$0xff pattern:$0x73625140]
      %v2386 = vld.sshfl [vmem:[#allocation1 + $0x20] sm:$0xff pattern:$0x73625140]
      %v2388 = vld.sshfl [vmem:[#allocation1 + $0x28] sm:$0xff pattern:$0x73625140]
      %v2390 = vld.sshfl [vmem:[#allocation1 + $0x30] sm:$0xff pattern:$0x73625140]
      %v2392 = vld.sshfl [vmem:[#allocation1 + $0x38] sm:$0xff pattern:$0x73625140]
      %2394 = vrot.lane.b32.xlu0 %v2378, 17
      %v2395 = vpop.permute.xlu0 %2394
      %2396 = vrot.lane.b32.xlu0 %v2380, 17
      %v2397 = vpop.permute.xlu0 %2396
      %2398 = vrot.lane.b32.xlu0 %v2382, 17
      %v2399 = vpop.permute.xlu0 %2398
      %2400 = vrot.lane.b32.xlu0 %v2384, 17
      %v2401 = vpop.permute.xlu0 %2400
      %2402 = vrot.lane.b32.xlu0 %v2386, 17
      %v2403 = vpop.permute.xlu0 %2402
      %2404 = vrot.lane.b32.xlu0 %v2388, 17
      %v2405 = vpop.permute.xlu0 %2404
      %2406 = vrot.lane.b32.xlu0 %v2390, 17
      %v2407 = vpop.permute.xlu0 %2406
      %2408 = vrot.lane.b32.xlu0 %v2392, 17
      %v2409 = vpop.permute.xlu0 %2408
      %vm2410 = vcmask 138240
      %v2411 = vsel %vm2410, %v2395, %v2397
      %v2412 = vsel %vm2410, %v2397, %v2399
      %v2413 = vsel %vm2410, %v2399, %v2401
      %v2414 = vsel %vm2410, %v2401, %v2403
      %v2415 = vsel %vm2410, %v2403, %v2405
      %v2416 = vsel %vm2410, %v2405, %v2407
      %v2417 = vsel %vm2410, %v2407, %v2409
      %v2419 = vsel %vm252, %v2372, 0
      %v2422 = vsel %vm256, %v2411, 0
      %v2425 = vsel %vm256, %v2412, 0
      %v2428 = vsel %vm256, %v2413, 0
      %v2431 = vsel %vm256, %v2414, 0
      %v2434 = vsel %vm256, %v2415, 0
      %v2437 = vsel %vm256, %v2416, 0
      %v2440 = vsel %vm256, %v2417, 0
      %2442 = vmatpush.bf16.msra.mxu0 0
      %2443 = vmatpush.bf16.msra.mxu0 0
      %2444 = vmatpush.bf16.msra.mxu0 0
      %2445 = vmatpush.bf16.msra.mxu0 0
      %2446 = vmatpush.bf16.msra.mxu0 0
      %2447 = vmatpush.bf16.msra.mxu0 0
      %2448 = vmatpush.bf16.msra.mxu0 0
      %2449 = vmatpush.bf16.msra.mxu0 %v2422
      %2450 = vmatmul.bf16.gmra.mxu0 %v2419
      %v2451 = vpop.f32.mrf.mxu0
      %v2452 = vadd.f32 0.0, %v2451
      %v2453 = vpop.f32.mrf.mxu0
      %2454 = vdwg.mxu0
      %2455 = vmatpush.bf16.msra.mxu0 0
      %2456 = vmatpush.bf16.msra.mxu0 0
      %2457 = vmatpush.bf16.msra.mxu0 0
      %2458 = vmatpush.bf16.msra.mxu0 0
      %2459 = vmatpush.bf16.msra.mxu0 0
      %2460 = vmatpush.bf16.msra.mxu0 0
      %2461 = vmatpush.bf16.msra.mxu0 0
      %2462 = vmatpush.bf16.msra.mxu0 %v2425
      %2463 = vmatmul.bf16.gmra.mxu0 %v2419
      %v2464 = vpop.f32.mrf.mxu0
      %v2465 = vadd.f32 0.0, %v2464
      %v2466 = vpop.f32.mrf.mxu0
      %2467 = vdwg.mxu0
      %2468 = vmatpush.bf16.msra.mxu0 0
      %2469 = vmatpush.bf16.msra.mxu0 0
      %2470 = vmatpush.bf16.msra.mxu0 0
      %2471 = vmatpush.bf16.msra.mxu0 0
      %2472 = vmatpush.bf16.msra.mxu0 0
      %2473 = vmatpush.bf16.msra.mxu0 0
      %2474 = vmatpush.bf16.msra.mxu0 0
      %2475 = vmatpush.bf16.msra.mxu0 %v2428
      %2476 = vmatmul.bf16.gmra.mxu0 %v2419
      %v2477 = vpop.f32.mrf.mxu0
      %v2478 = vadd.f32 0.0, %v2477
      %v2479 = vpop.f32.mrf.mxu0
      %2480 = vdwg.mxu0
      %2481 = vmatpush.bf16.msra.mxu0 0
      %2482 = vmatpush.bf16.msra.mxu0 0
      %2483 = vmatpush.bf16.msra.mxu0 0
      %2484 = vmatpush.bf16.msra.mxu0 0
      %2485 = vmatpush.bf16.msra.mxu0 0
      %2486 = vmatpush.bf16.msra.mxu0 0
      %2487 = vmatpush.bf16.msra.mxu0 0
      %2488 = vmatpush.bf16.msra.mxu0 %v2431
      %2489 = vmatmul.bf16.gmra.mxu0 %v2419
      %v2490 = vpop.f32.mrf.mxu0
      %v2491 = vadd.f32 0.0, %v2490
      %v2492 = vpop.f32.mrf.mxu0
      %2493 = vdwg.mxu0
      %2494 = vmatpush.bf16.msra.mxu0 0
      %2495 = vmatpush.bf16.msra.mxu0 0
      %2496 = vmatpush.bf16.msra.mxu0 0
      %2497 = vmatpush.bf16.msra.mxu0 0
      %2498 = vmatpush.bf16.msra.mxu0 0
      %2499 = vmatpush.bf16.msra.mxu0 0
      %2500 = vmatpush.bf16.msra.mxu0 0
      %2501 = vmatpush.bf16.msra.mxu0 %v2434
      %2502 = vmatmul.bf16.gmra.mxu0 %v2419
      %v2503 = vpop.f32.mrf.mxu0
      %v2504 = vadd.f32 0.0, %v2503
      %v2505 = vpop.f32.mrf.mxu0
      %2506 = vdwg.mxu0
      %2507 = vmatpush.bf16.msra.mxu0 0
      %2508 = vmatpush.bf16.msra.mxu0 0
      %2509 = vmatpush.bf16.msra.mxu0 0
      %2510 = vmatpush.bf16.msra.mxu0 0
      %2511 = vmatpush.bf16.msra.mxu0 0
      %2512 = vmatpush.bf16.msra.mxu0 0
      %2513 = vmatpush.bf16.msra.mxu0 0
      %2514 = vmatpush.bf16.msra.mxu0 %v2437
      %2515 = vmatmul.bf16.gmra.mxu0 %v2419
      %v2516 = vpop.f32.mrf.mxu0
      %v2517 = vadd.f32 0.0, %v2516
      %v2518 = vpop.f32.mrf.mxu0
      %2519 = vdwg.mxu0
      %2520 = vmatpush.bf16.msra.mxu0 0
      %2521 = vmatpush.bf16.msra.mxu0 0
      %2522 = vmatpush.bf16.msra.mxu0 0
      %2523 = vmatpush.bf16.msra.mxu0 0
      %2524 = vmatpush.bf16.msra.mxu0 0
      %2525 = vmatpush.bf16.msra.mxu0 0
      %2526 = vmatpush.bf16.msra.mxu0 0
      %2527 = vmatpush.bf16.msra.mxu0 %v2440
      %2528 = vmatmul.bf16.gmra.mxu0 %v2419
      %v2529 = vpop.f32.mrf.mxu0
      %v2530 = vadd.f32 0.0, %v2529
      %v2531 = vpop.f32.mrf.mxu0
      %2532 = vdwg.mxu0
      %v2533 = vadd.f32 %v2362, %v2452
      %v2534 = vadd.f32 %v2363, %v2465
      %v2535 = vadd.f32 %v2364, %v2478
      %v2536 = vadd.f32 %v2365, %v2491
      %v2537 = vadd.f32 %v2366, %v2504
      %v2538 = vadd.f32 %v2367, %v2517
      %v2539 = vadd.f32 %v2368, %v2530
      %v2540 = vld [vmem:[%s194] sm:$0xff]
      %v2541 = vld [vmem:[%s194 + $0x8] sm:$0xff]
      %s2542 = scalar_lea.vmem %s1, 28
      %v2543 = vld [vmem:[%s2542] sm:$0x3]
      %2545 = vst [vmem:[#allocation1] ss:$4 sm:$0xff] %v2540
      %s2547 = scalar_lea.vmem [#allocation1], 32
      %2548 = vst [vmem:[%s2547] ss:$4 sm:$0xff] %v2541
      %v2549 = vld.sshfl [vmem:[#allocation1] sm:$0xff pattern:$0x73625140]
      %v2551 = vld.sshfl [vmem:[#allocation1 + $0x8] sm:$0xff pattern:$0x73625140]
      %v2553 = vld.sshfl [vmem:[#allocation1 + $0x10] sm:$0xff pattern:$0x73625140]
      %v2555 = vld.sshfl [vmem:[#allocation1 + $0x18] sm:$0xff pattern:$0x73625140]
      %v2557 = vld.sshfl [vmem:[#allocation1 + $0x20] sm:$0xff pattern:$0x73625140]
      %v2559 = vld.sshfl [vmem:[#allocation1 + $0x28] sm:$0xff pattern:$0x73625140]
      %v2561 = vld.sshfl [vmem:[#allocation1 + $0x30] sm:$0xff pattern:$0x73625140]
      %v2563 = vld.sshfl [vmem:[#allocation1 + $0x38] sm:$0xff pattern:$0x73625140]
      %2565 = vrot.lane.b32.xlu0 %v2549, 16
      %v2566 = vpop.permute.xlu0 %2565
      %2567 = vrot.lane.b32.xlu0 %v2551, 16
      %v2568 = vpop.permute.xlu0 %2567
      %2569 = vrot.lane.b32.xlu0 %v2553, 16
      %v2570 = vpop.permute.xlu0 %2569
      %2571 = vrot.lane.b32.xlu0 %v2555, 16
      %v2572 = vpop.permute.xlu0 %2571
      %2573 = vrot.lane.b32.xlu0 %v2557, 16
      %v2574 = vpop.permute.xlu0 %2573
      %2575 = vrot.lane.b32.xlu0 %v2559, 16
      %v2576 = vpop.permute.xlu0 %2575
      %2577 = vrot.lane.b32.xlu0 %v2561, 16
      %v2578 = vpop.permute.xlu0 %2577
      %2579 = vrot.lane.b32.xlu0 %v2563, 16
      %v2580 = vpop.permute.xlu0 %2579
      %vm2581 = vcmask 130048
      %v2582 = vsel %vm2581, %v2566, %v2568
      %v2583 = vsel %vm2581, %v2568, %v2570
      %v2584 = vsel %vm2581, %v2570, %v2572
      %v2585 = vsel %vm2581, %v2572, %v2574
      %v2586 = vsel %vm2581, %v2574, %v2576
      %v2587 = vsel %vm2581, %v2576, %v2578
      %v2588 = vsel %vm2581, %v2578, %v2580
      %v2590 = vsel %vm252, %v2543, 0
      %v2593 = vsel %vm256, %v2582, 0
      %v2596 = vsel %vm256, %v2583, 0
      %v2599 = vsel %vm256, %v2584, 0
      %v2602 = vsel %vm256, %v2585, 0
      %v2605 = vsel %vm256, %v2586, 0
      %v2608 = vsel %vm256, %v2587, 0
      %v2611 = vsel %vm256, %v2588, 0
      %2613 = vmatpush.bf16.msra.mxu0 0
      %2614 = vmatpush.bf16.msra.mxu0 0
      %2615 = vmatpush.bf16.msra.mxu0 0
      %2616 = vmatpush.bf16.msra.mxu0 0
      %2617 = vmatpush.bf16.msra.mxu0 0
      %2618 = vmatpush.bf16.msra.mxu0 0
      %2619 = vmatpush.bf16.msra.mxu0 0
      %2620 = vmatpush.bf16.msra.mxu0 %v2593
      %2621 = vmatmul.bf16.gmra.mxu0 %v2590
      %v2622 = vpop.f32.mrf.mxu0
      %v2623 = vadd.f32 0.0, %v2622
      %v2624 = vpop.f32.mrf.mxu0
      %2625 = vdwg.mxu0
      %2626 = vmatpush.bf16.msra.mxu0 0
      %2627 = vmatpush.bf16.msra.mxu0 0
      %2628 = vmatpush.bf16.msra.mxu0 0
      %2629 = vmatpush.bf16.msra.mxu0 0
      %2630 = vmatpush.bf16.msra.mxu0 0
      %2631 = vmatpush.bf16.msra.mxu0 0
      %2632 = vmatpush.bf16.msra.mxu0 0
      %2633 = vmatpush.bf16.msra.mxu0 %v2596
      %2634 = vmatmul.bf16.gmra.mxu0 %v2590
      %v2635 = vpop.f32.mrf.mxu0
      %v2636 = vadd.f32 0.0, %v2635
      %v2637 = vpop.f32.mrf.mxu0
      %2638 = vdwg.mxu0
      %2639 = vmatpush.bf16.msra.mxu0 0
      %2640 = vmatpush.bf16.msra.mxu0 0
      %2641 = vmatpush.bf16.msra.mxu0 0
      %2642 = vmatpush.bf16.msra.mxu0 0
      %2643 = vmatpush.bf16.msra.mxu0 0
      %2644 = vmatpush.bf16.msra.mxu0 0
      %2645 = vmatpush.bf16.msra.mxu0 0
      %2646 = vmatpush.bf16.msra.mxu0 %v2599
      %2647 = vmatmul.bf16.gmra.mxu0 %v2590
      %v2648 = vpop.f32.mrf.mxu0
      %v2649 = vadd.f32 0.0, %v2648
      %v2650 = vpop.f32.mrf.mxu0
      %2651 = vdwg.mxu0
      %2652 = vmatpush.bf16.msra.mxu0 0
      %2653 = vmatpush.bf16.msra.mxu0 0
      %2654 = vmatpush.bf16.msra.mxu0 0
      %2655 = vmatpush.bf16.msra.mxu0 0
      %2656 = vmatpush.bf16.msra.mxu0 0
      %2657 = vmatpush.bf16.msra.mxu0 0
      %2658 = vmatpush.bf16.msra.mxu0 0
      %2659 = vmatpush.bf16.msra.mxu0 %v2602
      %2660 = vmatmul.bf16.gmra.mxu0 %v2590
      %v2661 = vpop.f32.mrf.mxu0
      %v2662 = vadd.f32 0.0, %v2661
      %v2663 = vpop.f32.mrf.mxu0
      %2664 = vdwg.mxu0
      %2665 = vmatpush.bf16.msra.mxu0 0
      %2666 = vmatpush.bf16.msra.mxu0 0
      %2667 = vmatpush.bf16.msra.mxu0 0
      %2668 = vmatpush.bf16.msra.mxu0 0
      %2669 = vmatpush.bf16.msra.mxu0 0
      %2670 = vmatpush.bf16.msra.mxu0 0
      %2671 = vmatpush.bf16.msra.mxu0 0
      %2672 = vmatpush.bf16.msra.mxu0 %v2605
      %2673 = vmatmul.bf16.gmra.mxu0 %v2590
      %v2674 = vpop.f32.mrf.mxu0
      %v2675 = vadd.f32 0.0, %v2674
      %v2676 = vpop.f32.mrf.mxu0
      %2677 = vdwg.mxu0
      %2678 = vmatpush.bf16.msra.mxu0 0
      %2679 = vmatpush.bf16.msra.mxu0 0
      %2680 = vmatpush.bf16.msra.mxu0 0
      %2681 = vmatpush.bf16.msra.mxu0 0
      %2682 = vmatpush.bf16.msra.mxu0 0
      %2683 = vmatpush.bf16.msra.mxu0 0
      %2684 = vmatpush.bf16.msra.mxu0 0
      %2685 = vmatpush.bf16.msra.mxu0 %v2608
      %2686 = vmatmul.bf16.gmra.mxu0 %v2590
      %v2687 = vpop.f32.mrf.mxu0
      %v2688 = vadd.f32 0.0, %v2687
      %v2689 = vpop.f32.mrf.mxu0
      %2690 = vdwg.mxu0
      %2691 = vmatpush.bf16.msra.mxu0 0
      %2692 = vmatpush.bf16.msra.mxu0 0
      %2693 = vmatpush.bf16.msra.mxu0 0
      %2694 = vmatpush.bf16.msra.mxu0 0
      %2695 = vmatpush.bf16.msra.mxu0 0
      %2696 = vmatpush.bf16.msra.mxu0 0
      %2697 = vmatpush.bf16.msra.mxu0 0
      %2698 = vmatpush.bf16.msra.mxu0 %v2611
      %2699 = vmatmul.bf16.gmra.mxu0 %v2590
      %v2700 = vpop.f32.mrf.mxu0
      %v2701 = vadd.f32 0.0, %v2700
      %v2702 = vpop.f32.mrf.mxu0
      %2703 = vdwg.mxu0
      %v2704 = vadd.f32 %v2533, %v2623
      %v2705 = vadd.f32 %v2534, %v2636
      %v2706 = vadd.f32 %v2535, %v2649
      %v2707 = vadd.f32 %v2536, %v2662
      %v2708 = vadd.f32 %v2537, %v2675
      %v2709 = vadd.f32 %v2538, %v2688
      %v2710 = vadd.f32 %v2539, %v2701
      %v2711 = vld [vmem:[%s194] sm:$0xff]
      %v2712 = vld [vmem:[%s194 + $0x8] sm:$0xff]
      %s2713 = scalar_lea.vmem %s1, 30
      %v2714 = vld [vmem:[%s2713] sm:$0x3]
      %2716 = vst [vmem:[#allocation1] ss:$4 sm:$0xff] %v2711
      %s2718 = scalar_lea.vmem [#allocation1], 32
      %2719 = vst [vmem:[%s2718] ss:$4 sm:$0xff] %v2712
      %v2720 = vld.sshfl [vmem:[#allocation1] sm:$0xff pattern:$0x73625140]
      %v2722 = vld.sshfl [vmem:[#allocation1 + $0x8] sm:$0xff pattern:$0x73625140]
      %v2724 = vld.sshfl [vmem:[#allocation1 + $0x10] sm:$0xff pattern:$0x73625140]
      %v2726 = vld.sshfl [vmem:[#allocation1 + $0x18] sm:$0xff pattern:$0x73625140]
      %v2728 = vld.sshfl [vmem:[#allocation1 + $0x20] sm:$0xff pattern:$0x73625140]
      %v2730 = vld.sshfl [vmem:[#allocation1 + $0x28] sm:$0xff pattern:$0x73625140]
      %v2732 = vld.sshfl [vmem:[#allocation1 + $0x30] sm:$0xff pattern:$0x73625140]
      %v2734 = vld.sshfl [vmem:[#allocation1 + $0x38] sm:$0xff pattern:$0x73625140]
      %2736 = vrot.lane.b32.xlu0 %v2720, 8
      %v2737 = vpop.permute.xlu0 %2736
      %2738 = vrot.lane.b32.xlu0 %v2722, 8
      %v2739 = vpop.permute.xlu0 %2738
      %2740 = vrot.lane.b32.xlu0 %v2724, 8
      %v2741 = vpop.permute.xlu0 %2740
      %2742 = vrot.lane.b32.xlu0 %v2726, 8
      %v2743 = vpop.permute.xlu0 %2742
      %2744 = vrot.lane.b32.xlu0 %v2728, 8
      %v2745 = vpop.permute.xlu0 %2744
      %2746 = vrot.lane.b32.xlu0 %v2730, 8
      %v2747 = vpop.permute.xlu0 %2746
      %2748 = vrot.lane.b32.xlu0 %v2732, 8
      %v2749 = vpop.permute.xlu0 %2748
      %2750 = vrot.lane.b32.xlu0 %v2734, 8
      %v2751 = vpop.permute.xlu0 %2750
      %vm2752 = vcmask 64512
      %v2753 = vsel %vm2752, %v2737, %v2739
      %v2754 = vsel %vm2752, %v2739, %v2741
      %v2755 = vsel %vm2752, %v2741, %v2743
      %v2756 = vsel %vm2752, %v2743, %v2745
      %v2757 = vsel %vm2752, %v2745, %v2747
      %v2758 = vsel %vm2752, %v2747, %v2749
      %v2759 = vsel %vm2752, %v2749, %v2751
      %v2761 = vsel %vm252, %v2714, 0
      %v2764 = vsel %vm256, %v2753, 0
      %v2767 = vsel %vm256, %v2754, 0
      %v2770 = vsel %vm256, %v2755, 0
      %v2773 = vsel %vm256, %v2756, 0
      %v2776 = vsel %vm256, %v2757, 0
      %v2779 = vsel %vm256, %v2758, 0
      %v2782 = vsel %vm256, %v2759, 0
      %2784 = vmatpush.bf16.msra.mxu0 0
      %2785 = vmatpush.bf16.msra.mxu0 0
      %2786 = vmatpush.bf16.msra.mxu0 0
      %2787 = vmatpush.bf16.msra.mxu0 0
      %2788 = vmatpush.bf16.msra.mxu0 0
      %2789 = vmatpush.bf16.msra.mxu0 0
      %2790 = vmatpush.bf16.msra.mxu0 0
      %2791 = vmatpush.bf16.msra.mxu0 %v2764
      %2792 = vmatmul.bf16.gmra.mxu0 %v2761
      %v2793 = vpop.f32.mrf.mxu0
      %v2794 = vadd.f32 0.0, %v2793
      %v2795 = vpop.f32.mrf.mxu0
      %2796 = vdwg.mxu0
      %2797 = vmatpush.bf16.msra.mxu0 0
      %2798 = vmatpush.bf16.msra.mxu0 0
      %2799 = vmatpush.bf16.msra.mxu0 0
      %2800 = vmatpush.bf16.msra.mxu0 0
      %2801 = vmatpush.bf16.msra.mxu0 0
      %2802 = vmatpush.bf16.msra.mxu0 0
      %2803 = vmatpush.bf16.msra.mxu0 0
      %2804 = vmatpush.bf16.msra.mxu0 %v2767
      %2805 = vmatmul.bf16.gmra.mxu0 %v2761
      %v2806 = vpop.f32.mrf.mxu0
      %v2807 = vadd.f32 0.0, %v2806
      %v2808 = vpop.f32.mrf.mxu0
      %2809 = vdwg.mxu0
      %2810 = vmatpush.bf16.msra.mxu0 0
      %2811 = vmatpush.bf16.msra.mxu0 0
      %2812 = vmatpush.bf16.msra.mxu0 0
      %2813 = vmatpush.bf16.msra.mxu0 0
      %2814 = vmatpush.bf16.msra.mxu0 0
      %2815 = vmatpush.bf16.msra.mxu0 0
      %2816 = vmatpush.bf16.msra.mxu0 0
      %2817 = vmatpush.bf16.msra.mxu0 %v2770
      %2818 = vmatmul.bf16.gmra.mxu0 %v2761
      %v2819 = vpop.f32.mrf.mxu0
      %v2820 = vadd.f32 0.0, %v2819
      %v2821 = vpop.f32.mrf.mxu0
      %2822 = vdwg.mxu0
      %2823 = vmatpush.bf16.msra.mxu0 0
      %2824 = vmatpush.bf16.msra.mxu0 0
      %2825 = vmatpush.bf16.msra.mxu0 0
      %2826 = vmatpush.bf16.msra.mxu0 0
      %2827 = vmatpush.bf16.msra.mxu0 0
      %2828 = vmatpush.bf16.msra.mxu0 0
      %2829 = vmatpush.bf16.msra.mxu0 0
      %2830 = vmatpush.bf16.msra.mxu0 %v2773
      %2831 = vmatmul.bf16.gmra.mxu0 %v2761
      %v2832 = vpop.f32.mrf.mxu0
      %v2833 = vadd.f32 0.0, %v2832
      %v2834 = vpop.f32.mrf.mxu0
      %2835 = vdwg.mxu0
      %2836 = vmatpush.bf16.msra.mxu0 0
      %2837 = vmatpush.bf16.msra.mxu0 0
      %2838 = vmatpush.bf16.msra.mxu0 0
      %2839 = vmatpush.bf16.msra.mxu0 0
      %2840 = vmatpush.bf16.msra.mxu0 0
      %2841 = vmatpush.bf16.msra.mxu0 0
      %2842 = vmatpush.bf16.msra.mxu0 0
      %2843 = vmatpush.bf16.msra.mxu0 %v2776
      %2844 = vmatmul.bf16.gmra.mxu0 %v2761
      %v2845 = vpop.f32.mrf.mxu0
      %v2846 = vadd.f32 0.0, %v2845
      %v2847 = vpop.f32.mrf.mxu0
      %2848 = vdwg.mxu0
      %2849 = vmatpush.bf16.msra.mxu0 0
      %2850 = vmatpush.bf16.msra.mxu0 0
      %2851 = vmatpush.bf16.msra.mxu0 0
      %2852 = vmatpush.bf16.msra.mxu0 0
      %2853 = vmatpush.bf16.msra.mxu0 0
      %2854 = vmatpush.bf16.msra.mxu0 0
      %2855 = vmatpush.bf16.msra.mxu0 0
      %2856 = vmatpush.bf16.msra.mxu0 %v2779
      %2857 = vmatmul.bf16.gmra.mxu0 %v2761
      %v2858 = vpop.f32.mrf.mxu0
      %v2859 = vadd.f32 0.0, %v2858
      %v2860 = vpop.f32.mrf.mxu0
      %2861 = vdwg.mxu0
      %2862 = vmatpush.bf16.msra.mxu0 0
      %2863 = vmatpush.bf16.msra.mxu0 0
      %2864 = vmatpush.bf16.msra.mxu0 0
      %2865 = vmatpush.bf16.msra.mxu0 0
      %2866 = vmatpush.bf16.msra.mxu0 0
      %2867 = vmatpush.bf16.msra.mxu0 0
      %2868 = vmatpush.bf16.msra.mxu0 0
      %2869 = vmatpush.bf16.msra.mxu0 %v2782
      %2870 = vmatmul.bf16.gmra.mxu0 %v2761
      %v2871 = vpop.f32.mrf.mxu0
      %v2872 = vadd.f32 0.0, %v2871
      %v2873 = vpop.f32.mrf.mxu0
      %2874 = vdwg.mxu0
      %v2875 = vadd.f32 %v2704, %v2794
      %v2876 = vadd.f32 %v2705, %v2807
      %v2877 = vadd.f32 %v2706, %v2820
      %v2878 = vadd.f32 %v2707, %v2833
      %v2879 = vadd.f32 %v2708, %v2846
      %v2880 = vadd.f32 %v2709, %v2859
      %v2881 = vadd.f32 %v2710, %v2872
      %v2882 = vld [vmem:[%s194] sm:$0xff]
      %v2883 = vld [vmem:[%s194 + $0x8] sm:$0xff]
      %s2884 = scalar_lea.vmem %s1, 32
      %v2885 = vld [vmem:[%s2884] sm:$0x3]
      %2887 = vst [vmem:[#allocation1] ss:$4 sm:$0xff] %v2882
      %s2889 = scalar_lea.vmem [#allocation1], 32
      %2890 = vst [vmem:[%s2889] ss:$4 sm:$0xff] %v2883
      %v2891 = vld.sshfl [vmem:[#allocation1] sm:$0xff pattern:$0x73625140]
      %v2893 = vld.sshfl [vmem:[#allocation1 + $0x8] sm:$0xff pattern:$0x73625140]
      %v2895 = vld.sshfl [vmem:[#allocation1 + $0x10] sm:$0xff pattern:$0x73625140]
      %v2897 = vld.sshfl [vmem:[#allocation1 + $0x18] sm:$0xff pattern:$0x73625140]
      %v2899 = vld.sshfl [vmem:[#allocation1 + $0x20] sm:$0xff pattern:$0x73625140]
      %v2901 = vld.sshfl [vmem:[#allocation1 + $0x28] sm:$0xff pattern:$0x73625140]
      %v2903 = vld.sshfl [vmem:[#allocation1 + $0x30] sm:$0xff pattern:$0x73625140]
      %v2905 = vld.sshfl [vmem:[#allocation1 + $0x38] sm:$0xff pattern:$0x73625140]
      %2907 = vrot.lane.b32.xlu0 %v2891, 7
      %v2908 = vpop.permute.xlu0 %2907
      %2909 = vrot.lane.b32.xlu0 %v2893, 7
      %v2910 = vpop.permute.xlu0 %2909
      %2911 = vrot.lane.b32.xlu0 %v2895, 7
      %v2912 = vpop.permute.xlu0 %2911
      %2913 = vrot.lane.b32.xlu0 %v2897, 7
      %v2914 = vpop.permute.xlu0 %2913
      %2915 = vrot.lane.b32.xlu0 %v2899, 7
      %v2916 = vpop.permute.xlu0 %2915
      %2917 = vrot.lane.b32.xlu0 %v2901, 7
      %v2918 = vpop.permute.xlu0 %2917
      %2919 = vrot.lane.b32.xlu0 %v2903, 7
      %v2920 = vpop.permute.xlu0 %2919
      %2921 = vrot.lane.b32.xlu0 %v2905, 7
      %v2922 = vpop.permute.xlu0 %2921
      %vm2923 = vcmask 56320
      %v2924 = vsel %vm2923, %v2908, %v2910
      %v2925 = vsel %vm2923, %v2910, %v2912
      %v2926 = vsel %vm2923, %v2912, %v2914
      %v2927 = vsel %vm2923, %v2914, %v2916
      %v2928 = vsel %vm2923, %v2916, %v2918
      %v2929 = vsel %vm2923, %v2918, %v2920
      %v2930 = vsel %vm2923, %v2920, %v2922
      %v2932 = vsel %vm252, %v2885, 0
      %v2935 = vsel %vm256, %v2924, 0
      %v2938 = vsel %vm256, %v2925, 0
      %v2941 = vsel %vm256, %v2926, 0
      %v2944 = vsel %vm256, %v2927, 0
      %v2947 = vsel %vm256, %v2928, 0
      %v2950 = vsel %vm256, %v2929, 0
      %v2953 = vsel %vm256, %v2930, 0
      %2955 = vmatpush.bf16.msra.mxu0 0
      %2956 = vmatpush.bf16.msra.mxu0 0
      %2957 = vmatpush.bf16.msra.mxu0 0
      %2958 = vmatpush.bf16.msra.mxu0 0
      %2959 = vmatpush.bf16.msra.mxu0 0
      %2960 = vmatpush.bf16.msra.mxu0 0
      %2961 = vmatpush.bf16.msra.mxu0 0
      %2962 = vmatpush.bf16.msra.mxu0 %v2935
      %2963 = vmatmul.bf16.gmra.mxu0 %v2932
      %v2964 = vpop.f32.mrf.mxu0
      %v2965 = vadd.f32 0.0, %v2964
      %v2966 = vpop.f32.mrf.mxu0
      %2967 = vdwg.mxu0
      %2968 = vmatpush.bf16.msra.mxu0 0
      %2969 = vmatpush.bf16.msra.mxu0 0
      %2970 = vmatpush.bf16.msra.mxu0 0
      %2971 = vmatpush.bf16.msra.mxu0 0
      %2972 = vmatpush.bf16.msra.mxu0 0
      %2973 = vmatpush.bf16.msra.mxu0 0
      %2974 = vmatpush.bf16.msra.mxu0 0
      %2975 = vmatpush.bf16.msra.mxu0 %v2938
      %2976 = vmatmul.bf16.gmra.mxu0 %v2932
      %v2977 = vpop.f32.mrf.mxu0
      %v2978 = vadd.f32 0.0, %v2977
      %v2979 = vpop.f32.mrf.mxu0
      %2980 = vdwg.mxu0
      %2981 = vmatpush.bf16.msra.mxu0 0
      %2982 = vmatpush.bf16.msra.mxu0 0
      %2983 = vmatpush.bf16.msra.mxu0 0
      %2984 = vmatpush.bf16.msra.mxu0 0
      %2985 = vmatpush.bf16.msra.mxu0 0
      %2986 = vmatpush.bf16.msra.mxu0 0
      %2987 = vmatpush.bf16.msra.mxu0 0
      %2988 = vmatpush.bf16.msra.mxu0 %v2941
      %2989 = vmatmul.bf16.gmra.mxu0 %v2932
      %v2990 = vpop.f32.mrf.mxu0
      %v2991 = vadd.f32 0.0, %v2990
      %v2992 = vpop.f32.mrf.mxu0
      %2993 = vdwg.mxu0
      %2994 = vmatpush.bf16.msra.mxu0 0
      %2995 = vmatpush.bf16.msra.mxu0 0
      %2996 = vmatpush.bf16.msra.mxu0 0
      %2997 = vmatpush.bf16.msra.mxu0 0
      %2998 = vmatpush.bf16.msra.mxu0 0
      %2999 = vmatpush.bf16.msra.mxu0 0
      %3000 = vmatpush.bf16.msra.mxu0 0
      %3001 = vmatpush.bf16.msra.mxu0 %v2944
      %3002 = vmatmul.bf16.gmra.mxu0 %v2932
      %v3003 = vpop.f32.mrf.mxu0
      %v3004 = vadd.f32 0.0, %v3003
      %v3005 = vpop.f32.mrf.mxu0
      %3006 = vdwg.mxu0
      %3007 = vmatpush.bf16.msra.mxu0 0
      %3008 = vmatpush.bf16.msra.mxu0 0
      %3009 = vmatpush.bf16.msra.mxu0 0
      %3010 = vmatpush.bf16.msra.mxu0 0
      %3011 = vmatpush.bf16.msra.mxu0 0
      %3012 = vmatpush.bf16.msra.mxu0 0
      %3013 = vmatpush.bf16.msra.mxu0 0
      %3014 = vmatpush.bf16.msra.mxu0 %v2947
      %3015 = vmatmul.bf16.gmra.mxu0 %v2932
      %v3016 = vpop.f32.mrf.mxu0
      %v3017 = vadd.f32 0.0, %v3016
      %v3018 = vpop.f32.mrf.mxu0
      %3019 = vdwg.mxu0
      %3020 = vmatpush.bf16.msra.mxu0 0
      %3021 = vmatpush.bf16.msra.mxu0 0
      %3022 = vmatpush.bf16.msra.mxu0 0
      %3023 = vmatpush.bf16.msra.mxu0 0
      %3024 = vmatpush.bf16.msra.mxu0 0
      %3025 = vmatpush.bf16.msra.mxu0 0
      %3026 = vmatpush.bf16.msra.mxu0 0
      %3027 = vmatpush.bf16.msra.mxu0 %v2950
      %3028 = vmatmul.bf16.gmra.mxu0 %v2932
      %v3029 = vpop.f32.mrf.mxu0
      %v3030 = vadd.f32 0.0, %v3029
      %v3031 = vpop.f32.mrf.mxu0
      %3032 = vdwg.mxu0
      %3033 = vmatpush.bf16.msra.mxu0 0
      %3034 = vmatpush.bf16.msra.mxu0 0
      %3035 = vmatpush.bf16.msra.mxu0 0
      %3036 = vmatpush.bf16.msra.mxu0 0
      %3037 = vmatpush.bf16.msra.mxu0 0
      %3038 = vmatpush.bf16.msra.mxu0 0
      %3039 = vmatpush.bf16.msra.mxu0 0
      %3040 = vmatpush.bf16.msra.mxu0 %v2953
      %3041 = vmatmul.bf16.gmra.mxu0 %v2932
      %v3042 = vpop.f32.mrf.mxu0
      %v3043 = vadd.f32 0.0, %v3042
      %v3044 = vpop.f32.mrf.mxu0
      %3045 = vdwg.mxu0
      %v3046 = vadd.f32 %v2875, %v2965
      %v3047 = vadd.f32 %v2876, %v2978
      %v3048 = vadd.f32 %v2877, %v2991
      %v3049 = vadd.f32 %v2878, %v3004
      %v3050 = vadd.f32 %v2879, %v3017
      %v3051 = vadd.f32 %v2880, %v3030
      %v3052 = vadd.f32 %v2881, %v3043
      %v3053 = vld [vmem:[%s194] sm:$0xff]
      %v3054 = vld [vmem:[%s194 + $0x8] sm:$0xff]
      %s3055 = scalar_lea.vmem %s1, 34
      %v3056 = vld [vmem:[%s3055] sm:$0x3]
      %3058 = vst [vmem:[#allocation1] ss:$4 sm:$0xff] %v3053
      %s3060 = scalar_lea.vmem [#allocation1], 32
      %3061 = vst [vmem:[%s3060] ss:$4 sm:$0xff] %v3054
      %v3062 = vld.sshfl [vmem:[#allocation1] sm:$0xff pattern:$0x73625140]
      %v3064 = vld.sshfl [vmem:[#allocation1 + $0x8] sm:$0xff pattern:$0x73625140]
      %v3066 = vld.sshfl [vmem:[#allocation1 + $0x10] sm:$0xff pattern:$0x73625140]
      %v3068 = vld.sshfl [vmem:[#allocation1 + $0x18] sm:$0xff pattern:$0x73625140]
      %v3070 = vld.sshfl [vmem:[#allocation1 + $0x20] sm:$0xff pattern:$0x73625140]
      %v3072 = vld.sshfl [vmem:[#allocation1 + $0x28] sm:$0xff pattern:$0x73625140]
      %v3074 = vld.sshfl [vmem:[#allocation1 + $0x30] sm:$0xff pattern:$0x73625140]
      %v3076 = vld.sshfl [vmem:[#allocation1 + $0x38] sm:$0xff pattern:$0x73625140]
      %3078 = vrot.lane.b32.xlu0 %v3062, 6
      %v3079 = vpop.permute.xlu0 %3078
      %3080 = vrot.lane.b32.xlu0 %v3064, 6
      %v3081 = vpop.permute.xlu0 %3080
      %3082 = vrot.lane.b32.xlu0 %v3066, 6
      %v3083 = vpop.permute.xlu0 %3082
      %3084 = vrot.lane.b32.xlu0 %v3068, 6
      %v3085 = vpop.permute.xlu0 %3084
      %3086 = vrot.lane.b32.xlu0 %v3070, 6
      %v3087 = vpop.permute.xlu0 %3086
      %3088 = vrot.lane.b32.xlu0 %v3072, 6
      %v3089 = vpop.permute.xlu0 %3088
      %3090 = vrot.lane.b32.xlu0 %v3074, 6
      %v3091 = vpop.permute.xlu0 %3090
      %3092 = vrot.lane.b32.xlu0 %v3076, 6
      %v3093 = vpop.permute.xlu0 %3092
      %vm3094 = vcmask 48128
      %v3095 = vsel %vm3094, %v3079, %v3081
      %v3096 = vsel %vm3094, %v3081, %v3083
      %v3097 = vsel %vm3094, %v3083, %v3085
      %v3098 = vsel %vm3094, %v3085, %v3087
      %v3099 = vsel %vm3094, %v3087, %v3089
      %v3100 = vsel %vm3094, %v3089, %v3091
      %v3101 = vsel %vm3094, %v3091, %v3093
      %v3103 = vsel %vm252, %v3056, 0
      %v3106 = vsel %vm256, %v3095, 0
      %v3109 = vsel %vm256, %v3096, 0
      %v3112 = vsel %vm256, %v3097, 0
      %v3115 = vsel %vm256, %v3098, 0
      %v3118 = vsel %vm256, %v3099, 0
      %v3121 = vsel %vm256, %v3100, 0
      %v3124 = vsel %vm256, %v3101, 0
      %3126 = vmatpush.bf16.msra.mxu0 0
      %3127 = vmatpush.bf16.msra.mxu0 0
      %3128 = vmatpush.bf16.msra.mxu0 0
      %3129 = vmatpush.bf16.msra.mxu0 0
      %3130 = vmatpush.bf16.msra.mxu0 0
      %3131 = vmatpush.bf16.msra.mxu0 0
      %3132 = vmatpush.bf16.msra.mxu0 0
      %3133 = vmatpush.bf16.msra.mxu0 %v3106
      %3134 = vmatmul.bf16.gmra.mxu0 %v3103
      %v3135 = vpop.f32.mrf.mxu0
      %v3136 = vadd.f32 0.0, %v3135
      %v3137 = vpop.f32.mrf.mxu0
      %3138 = vdwg.mxu0
      %3139 = vmatpush.bf16.msra.mxu0 0
      %3140 = vmatpush.bf16.msra.mxu0 0
      %3141 = vmatpush.bf16.msra.mxu0 0
      %3142 = vmatpush.bf16.msra.mxu0 0
      %3143 = vmatpush.bf16.msra.mxu0 0
      %3144 = vmatpush.bf16.msra.mxu0 0
      %3145 = vmatpush.bf16.msra.mxu0 0
      %3146 = vmatpush.bf16.msra.mxu0 %v3109
      %3147 = vmatmul.bf16.gmra.mxu0 %v3103
      %v3148 = vpop.f32.mrf.mxu0
      %v3149 = vadd.f32 0.0, %v3148
      %v3150 = vpop.f32.mrf.mxu0
      %3151 = vdwg.mxu0
      %3152 = vmatpush.bf16.msra.mxu0 0
      %3153 = vmatpush.bf16.msra.mxu0 0
      %3154 = vmatpush.bf16.msra.mxu0 0
      %3155 = vmatpush.bf16.msra.mxu0 0
      %3156 = vmatpush.bf16.msra.mxu0 0
      %3157 = vmatpush.bf16.msra.mxu0 0
      %3158 = vmatpush.bf16.msra.mxu0 0
      %3159 = vmatpush.bf16.msra.mxu0 %v3112
      %3160 = vmatmul.bf16.gmra.mxu0 %v3103
      %v3161 = vpop.f32.mrf.mxu0
      %v3162 = vadd.f32 0.0, %v3161
      %v3163 = vpop.f32.mrf.mxu0
      %3164 = vdwg.mxu0
      %3165 = vmatpush.bf16.msra.mxu0 0
      %3166 = vmatpush.bf16.msra.mxu0 0
      %3167 = vmatpush.bf16.msra.mxu0 0
      %3168 = vmatpush.bf16.msra.mxu0 0
      %3169 = vmatpush.bf16.msra.mxu0 0
      %3170 = vmatpush.bf16.msra.mxu0 0
      %3171 = vmatpush.bf16.msra.mxu0 0
      %3172 = vmatpush.bf16.msra.mxu0 %v3115
      %3173 = vmatmul.bf16.gmra.mxu0 %v3103
      %v3174 = vpop.f32.mrf.mxu0
      %v3175 = vadd.f32 0.0, %v3174
      %v3176 = vpop.f32.mrf.mxu0
      %3177 = vdwg.mxu0
      %3178 = vmatpush.bf16.msra.mxu0 0
      %3179 = vmatpush.bf16.msra.mxu0 0
      %3180 = vmatpush.bf16.msra.mxu0 0
      %3181 = vmatpush.bf16.msra.mxu0 0
      %3182 = vmatpush.bf16.msra.mxu0 0
      %3183 = vmatpush.bf16.msra.mxu0 0
      %3184 = vmatpush.bf16.msra.mxu0 0
      %3185 = vmatpush.bf16.msra.mxu0 %v3118
      %3186 = vmatmul.bf16.gmra.mxu0 %v3103
      %v3187 = vpop.f32.mrf.mxu0
      %v3188 = vadd.f32 0.0, %v3187
      %v3189 = vpop.f32.mrf.mxu0
      %3190 = vdwg.mxu0
      %3191 = vmatpush.bf16.msra.mxu0 0
      %3192 = vmatpush.bf16.msra.mxu0 0
      %3193 = vmatpush.bf16.msra.mxu0 0
      %3194 = vmatpush.bf16.msra.mxu0 0
      %3195 = vmatpush.bf16.msra.mxu0 0
      %3196 = vmatpush.bf16.msra.mxu0 0
      %3197 = vmatpush.bf16.msra.mxu0 0
      %3198 = vmatpush.bf16.msra.mxu0 %v3121
      %3199 = vmatmul.bf16.gmra.mxu0 %v3103
      %v3200 = vpop.f32.mrf.mxu0
      %v3201 = vadd.f32 0.0, %v3200
      %v3202 = vpop.f32.mrf.mxu0
      %3203 = vdwg.mxu0
      %3204 = vmatpush.bf16.msra.mxu0 0
      %3205 = vmatpush.bf16.msra.mxu0 0
      %3206 = vmatpush.bf16.msra.mxu0 0
      %3207 = vmatpush.bf16.msra.mxu0 0
      %3208 = vmatpush.bf16.msra.mxu0 0
      %3209 = vmatpush.bf16.msra.mxu0 0
      %3210 = vmatpush.bf16.msra.mxu0 0
      %3211 = vmatpush.bf16.msra.mxu0 %v3124
      %3212 = vmatmul.bf16.gmra.mxu0 %v3103
      %v3213 = vpop.f32.mrf.mxu0
      %v3214 = vadd.f32 0.0, %v3213
      %v3215 = vpop.f32.mrf.mxu0
      %3216 = vdwg.mxu0
      %v3217 = vadd.f32 %v3046, %v3136
      %v3218 = vadd.f32 %v3047, %v3149
      %v3219 = vadd.f32 %v3048, %v3162
      %v3220 = vadd.f32 %v3049, %v3175
      %v3221 = vadd.f32 %v3050, %v3188
      %v3222 = vadd.f32 %v3051, %v3201
      %v3223 = vadd.f32 %v3052, %v3214
      %v3224 = vld [vmem:[%s194 + $0x2] sm:$0xff]
      %v3225 = vld [vmem:[%s194 + $0xa] sm:$0xff]
      %s3226 = scalar_lea.vmem %s1, 36
      %v3227 = vld [vmem:[%s3226] sm:$0x3]
      %3229 = vst [vmem:[#allocation1] ss:$4 sm:$0xff] %v3224
      %s3231 = scalar_lea.vmem [#allocation1], 32
      %3232 = vst [vmem:[%s3231] ss:$4 sm:$0xff] %v3225
      %v3233 = vld.sshfl [vmem:[#allocation1] sm:$0xff pattern:$0x73625140]
      %v3235 = vld.sshfl [vmem:[#allocation1 + $0x8] sm:$0xff pattern:$0x73625140]
      %v3237 = vld.sshfl [vmem:[#allocation1 + $0x10] sm:$0xff pattern:$0x73625140]
      %v3239 = vld.sshfl [vmem:[#allocation1 + $0x18] sm:$0xff pattern:$0x73625140]
      %v3241 = vld.sshfl [vmem:[#allocation1 + $0x20] sm:$0xff pattern:$0x73625140]
      %v3243 = vld.sshfl [vmem:[#allocation1 + $0x28] sm:$0xff pattern:$0x73625140]
      %v3245 = vld.sshfl [vmem:[#allocation1 + $0x30] sm:$0xff pattern:$0x73625140]
      %v3247 = vld.sshfl [vmem:[#allocation1 + $0x38] sm:$0xff pattern:$0x73625140]
      %3249 = vrot.lane.b32.xlu0 %v3233, 56
      %v3250 = vpop.permute.xlu0 %3249
      %3251 = vrot.lane.b32.xlu0 %v3235, 56
      %v3252 = vpop.permute.xlu0 %3251
      %3253 = vrot.lane.b32.xlu0 %v3237, 56
      %v3254 = vpop.permute.xlu0 %3253
      %3255 = vrot.lane.b32.xlu0 %v3239, 56
      %v3256 = vpop.permute.xlu0 %3255
      %3257 = vrot.lane.b32.xlu0 %v3241, 56
      %v3258 = vpop.permute.xlu0 %3257
      %3259 = vrot.lane.b32.xlu0 %v3243, 56
      %v3260 = vpop.permute.xlu0 %3259
      %3261 = vrot.lane.b32.xlu0 %v3245, 56
      %v3262 = vpop.permute.xlu0 %3261
      %3263 = vrot.lane.b32.xlu0 %v3247, 56
      %v3264 = vpop.permute.xlu0 %3263
      %vm3265 = vcmask 457728
      %v3266 = vsel %vm3265, %v3250, %v3252
      %v3267 = vsel %vm3265, %v3252, %v3254
      %v3268 = vsel %vm3265, %v3254, %v3256
      %v3269 = vsel %vm3265, %v3256, %v3258
      %v3270 = vsel %vm3265, %v3258, %v3260
      %v3271 = vsel %vm3265, %v3260, %v3262
      %v3272 = vsel %vm3265, %v3262, %v3264
      %v3274 = vsel %vm252, %v3227, 0
      %v3277 = vsel %vm256, %v3266, 0
      %v3280 = vsel %vm256, %v3267, 0
      %v3283 = vsel %vm256, %v3268, 0
      %v3286 = vsel %vm256, %v3269, 0
      %v3289 = vsel %vm256, %v3270, 0
      %v3292 = vsel %vm256, %v3271, 0
      %v3295 = vsel %vm256, %v3272, 0
      %3297 = vmatpush.bf16.msra.mxu0 0
      %3298 = vmatpush.bf16.msra.mxu0 0
      %3299 = vmatpush.bf16.msra.mxu0 0
      %3300 = vmatpush.bf16.msra.mxu0 0
      %3301 = vmatpush.bf16.msra.mxu0 0
      %3302 = vmatpush.bf16.msra.mxu0 0
      %3303 = vmatpush.bf16.msra.mxu0 0
      %3304 = vmatpush.bf16.msra.mxu0 %v3277
      %3305 = vmatmul.bf16.gmra.mxu0 %v3274
      %v3306 = vpop.f32.mrf.mxu0
      %v3307 = vadd.f32 0.0, %v3306
      %v3308 = vpop.f32.mrf.mxu0
      %3309 = vdwg.mxu0
      %3310 = vmatpush.bf16.msra.mxu0 0
      %3311 = vmatpush.bf16.msra.mxu0 0
      %3312 = vmatpush.bf16.msra.mxu0 0
      %3313 = vmatpush.bf16.msra.mxu0 0
      %3314 = vmatpush.bf16.msra.mxu0 0
      %3315 = vmatpush.bf16.msra.mxu0 0
      %3316 = vmatpush.bf16.msra.mxu0 0
      %3317 = vmatpush.bf16.msra.mxu0 %v3280
      %3318 = vmatmul.bf16.gmra.mxu0 %v3274
      %v3319 = vpop.f32.mrf.mxu0
      %v3320 = vadd.f32 0.0, %v3319
      %v3321 = vpop.f32.mrf.mxu0
      %3322 = vdwg.mxu0
      %3323 = vmatpush.bf16.msra.mxu0 0
      %3324 = vmatpush.bf16.msra.mxu0 0
      %3325 = vmatpush.bf16.msra.mxu0 0
      %3326 = vmatpush.bf16.msra.mxu0 0
      %3327 = vmatpush.bf16.msra.mxu0 0
      %3328 = vmatpush.bf16.msra.mxu0 0
      %3329 = vmatpush.bf16.msra.mxu0 0
      %3330 = vmatpush.bf16.msra.mxu0 %v3283
      %3331 = vmatmul.bf16.gmra.mxu0 %v3274
      %v3332 = vpop.f32.mrf.mxu0
      %v3333 = vadd.f32 0.0, %v3332
      %v3334 = vpop.f32.mrf.mxu0
      %3335 = vdwg.mxu0
      %3336 = vmatpush.bf16.msra.mxu0 0
      %3337 = vmatpush.bf16.msra.mxu0 0
      %3338 = vmatpush.bf16.msra.mxu0 0
      %3339 = vmatpush.bf16.msra.mxu0 0
      %3340 = vmatpush.bf16.msra.mxu0 0
      %3341 = vmatpush.bf16.msra.mxu0 0
      %3342 = vmatpush.bf16.msra.mxu0 0
      %3343 = vmatpush.bf16.msra.mxu0 %v3286
      %3344 = vmatmul.bf16.gmra.mxu0 %v3274
      %v3345 = vpop.f32.mrf.mxu0
      %v3346 = vadd.f32 0.0, %v3345
      %v3347 = vpop.f32.mrf.mxu0
      %3348 = vdwg.mxu0
      %3349 = vmatpush.bf16.msra.mxu0 0
      %3350 = vmatpush.bf16.msra.mxu0 0
      %3351 = vmatpush.bf16.msra.mxu0 0
      %3352 = vmatpush.bf16.msra.mxu0 0
      %3353 = vmatpush.bf16.msra.mxu0 0
      %3354 = vmatpush.bf16.msra.mxu0 0
      %3355 = vmatpush.bf16.msra.mxu0 0
      %3356 = vmatpush.bf16.msra.mxu0 %v3289
      %3357 = vmatmul.bf16.gmra.mxu0 %v3274
      %v3358 = vpop.f32.mrf.mxu0
      %v3359 = vadd.f32 0.0, %v3358
      %v3360 = vpop.f32.mrf.mxu0
      %3361 = vdwg.mxu0
      %3362 = vmatpush.bf16.msra.mxu0 0
      %3363 = vmatpush.bf16.msra.mxu0 0
      %3364 = vmatpush.bf16.msra.mxu0 0
      %3365 = vmatpush.bf16.msra.mxu0 0
      %3366 = vmatpush.bf16.msra.mxu0 0
      %3367 = vmatpush.bf16.msra.mxu0 0
      %3368 = vmatpush.bf16.msra.mxu0 0
      %3369 = vmatpush.bf16.msra.mxu0 %v3292
      %3370 = vmatmul.bf16.gmra.mxu0 %v3274
      %v3371 = vpop.f32.mrf.mxu0
      %v3372 = vadd.f32 0.0, %v3371
      %v3373 = vpop.f32.mrf.mxu0
      %3374 = vdwg.mxu0
      %3375 = vmatpush.bf16.msra.mxu0 0
      %3376 = vmatpush.bf16.msra.mxu0 0
      %3377 = vmatpush.bf16.msra.mxu0 0
      %3378 = vmatpush.bf16.msra.mxu0 0
      %3379 = vmatpush.bf16.msra.mxu0 0
      %3380 = vmatpush.bf16.msra.mxu0 0
      %3381 = vmatpush.bf16.msra.mxu0 0
      %3382 = vmatpush.bf16.msra.mxu0 %v3295
      %3383 = vmatmul.bf16.gmra.mxu0 %v3274
      %v3384 = vpop.f32.mrf.mxu0
      %v3385 = vadd.f32 0.0, %v3384
      %v3386 = vpop.f32.mrf.mxu0
      %3387 = vdwg.mxu0
      %v3388 = vadd.f32 %v3217, %v3307
      %v3389 = vadd.f32 %v3218, %v3320
      %v3390 = vadd.f32 %v3219, %v3333
      %v3391 = vadd.f32 %v3220, %v3346
      %v3392 = vadd.f32 %v3221, %v3359
      %v3393 = vadd.f32 %v3222, %v3372
      %v3394 = vadd.f32 %v3223, %v3385
      %v3395 = vld [vmem:[%s194 + $0x2] sm:$0xff]
      %v3396 = vld [vmem:[%s194 + $0xa] sm:$0xff]
      %s3397 = scalar_lea.vmem %s1, 38
      %v3398 = vld [vmem:[%s3397] sm:$0x3]
      %3400 = vst [vmem:[#allocation1] ss:$4 sm:$0xff] %v3395
      %s3402 = scalar_lea.vmem [#allocation1], 32
      %3403 = vst [vmem:[%s3402] ss:$4 sm:$0xff] %v3396
      %v3404 = vld.sshfl [vmem:[#allocation1] sm:$0xff pattern:$0x73625140]
      %v3406 = vld.sshfl [vmem:[#allocation1 + $0x8] sm:$0xff pattern:$0x73625140]
      %v3408 = vld.sshfl [vmem:[#allocation1 + $0x10] sm:$0xff pattern:$0x73625140]
      %v3410 = vld.sshfl [vmem:[#allocation1 + $0x18] sm:$0xff pattern:$0x73625140]
      %v3412 = vld.sshfl [vmem:[#allocation1 + $0x20] sm:$0xff pattern:$0x73625140]
      %v3414 = vld.sshfl [vmem:[#allocation1 + $0x28] sm:$0xff pattern:$0x73625140]
      %v3416 = vld.sshfl [vmem:[#allocation1 + $0x30] sm:$0xff pattern:$0x73625140]
      %v3418 = vld.sshfl [vmem:[#allocation1 + $0x38] sm:$0xff pattern:$0x73625140]
      %3420 = vrot.lane.b32.xlu0 %v3404, 55
      %v3421 = vpop.permute.xlu0 %3420
      %3422 = vrot.lane.b32.xlu0 %v3406, 55
      %v3423 = vpop.permute.xlu0 %3422
      %3424 = vrot.lane.b32.xlu0 %v3408, 55
      %v3425 = vpop.permute.xlu0 %3424
      %3426 = vrot.lane.b32.xlu0 %v3410, 55
      %v3427 = vpop.permute.xlu0 %3426
      %3428 = vrot.lane.b32.xlu0 %v3412, 55
      %v3429 = vpop.permute.xlu0 %3428
      %3430 = vrot.lane.b32.xlu0 %v3414, 55
      %v3431 = vpop.permute.xlu0 %3430
      %3432 = vrot.lane.b32.xlu0 %v3416, 55
      %v3433 = vpop.permute.xlu0 %3432
      %3434 = vrot.lane.b32.xlu0 %v3418, 55
      %v3435 = vpop.permute.xlu0 %3434
      %vm3436 = vcmask 449536
      %v3437 = vsel %vm3436, %v3421, %v3423
      %v3438 = vsel %vm3436, %v3423, %v3425
      %v3439 = vsel %vm3436, %v3425, %v3427
      %v3440 = vsel %vm3436, %v3427, %v3429
      %v3441 = vsel %vm3436, %v3429, %v3431
      %v3442 = vsel %vm3436, %v3431, %v3433
      %v3443 = vsel %vm3436, %v3433, %v3435
      %v3445 = vsel %vm252, %v3398, 0
      %v3448 = vsel %vm256, %v3437, 0
      %v3451 = vsel %vm256, %v3438, 0
      %v3454 = vsel %vm256, %v3439, 0
      %v3457 = vsel %vm256, %v3440, 0
      %v3460 = vsel %vm256, %v3441, 0
      %v3463 = vsel %vm256, %v3442, 0
      %v3466 = vsel %vm256, %v3443, 0
      %3468 = vmatpush.bf16.msra.mxu0 0
      %3469 = vmatpush.bf16.msra.mxu0 0
      %3470 = vmatpush.bf16.msra.mxu0 0
      %3471 = vmatpush.bf16.msra.mxu0 0
      %3472 = vmatpush.bf16.msra.mxu0 0
      %3473 = vmatpush.bf16.msra.mxu0 0
      %3474 = vmatpush.bf16.msra.mxu0 0
      %3475 = vmatpush.bf16.msra.mxu0 %v3448
      %3476 = vmatmul.bf16.gmra.mxu0 %v3445
      %v3477 = vpop.f32.mrf.mxu0
      %v3478 = vadd.f32 0.0, %v3477
      %v3479 = vpop.f32.mrf.mxu0
      %3480 = vdwg.mxu0
      %3481 = vmatpush.bf16.msra.mxu0 0
      %3482 = vmatpush.bf16.msra.mxu0 0
      %3483 = vmatpush.bf16.msra.mxu0 0
      %3484 = vmatpush.bf16.msra.mxu0 0
      %3485 = vmatpush.bf16.msra.mxu0 0
      %3486 = vmatpush.bf16.msra.mxu0 0
      %3487 = vmatpush.bf16.msra.mxu0 0
      %3488 = vmatpush.bf16.msra.mxu0 %v3451
      %3489 = vmatmul.bf16.gmra.mxu0 %v3445
      %v3490 = vpop.f32.mrf.mxu0
      %v3491 = vadd.f32 0.0, %v3490
      %v3492 = vpop.f32.mrf.mxu0
      %3493 = vdwg.mxu0
      %3494 = vmatpush.bf16.msra.mxu0 0
      %3495 = vmatpush.bf16.msra.mxu0 0
      %3496 = vmatpush.bf16.msra.mxu0 0
      %3497 = vmatpush.bf16.msra.mxu0 0
      %3498 = vmatpush.bf16.msra.mxu0 0
      %3499 = vmatpush.bf16.msra.mxu0 0
      %3500 = vmatpush.bf16.msra.mxu0 0
      %3501 = vmatpush.bf16.msra.mxu0 %v3454
      %3502 = vmatmul.bf16.gmra.mxu0 %v3445
      %v3503 = vpop.f32.mrf.mxu0
      %v3504 = vadd.f32 0.0, %v3503
      %v3505 = vpop.f32.mrf.mxu0
      %3506 = vdwg.mxu0
      %3507 = vmatpush.bf16.msra.mxu0 0
      %3508 = vmatpush.bf16.msra.mxu0 0
      %3509 = vmatpush.bf16.msra.mxu0 0
      %3510 = vmatpush.bf16.msra.mxu0 0
      %3511 = vmatpush.bf16.msra.mxu0 0
      %3512 = vmatpush.bf16.msra.mxu0 0
      %3513 = vmatpush.bf16.msra.mxu0 0
      %3514 = vmatpush.bf16.msra.mxu0 %v3457
      %3515 = vmatmul.bf16.gmra.mxu0 %v3445
      %v3516 = vpop.f32.mrf.mxu0
      %v3517 = vadd.f32 0.0, %v3516
      %v3518 = vpop.f32.mrf.mxu0
      %3519 = vdwg.mxu0
      %3520 = vmatpush.bf16.msra.mxu0 0
      %3521 = vmatpush.bf16.msra.mxu0 0
      %3522 = vmatpush.bf16.msra.mxu0 0
      %3523 = vmatpush.bf16.msra.mxu0 0
      %3524 = vmatpush.bf16.msra.mxu0 0
      %3525 = vmatpush.bf16.msra.mxu0 0
      %3526 = vmatpush.bf16.msra.mxu0 0
      %3527 = vmatpush.bf16.msra.mxu0 %v3460
      %3528 = vmatmul.bf16.gmra.mxu0 %v3445
      %v3529 = vpop.f32.mrf.mxu0
      %v3530 = vadd.f32 0.0, %v3529
      %v3531 = vpop.f32.mrf.mxu0
      %3532 = vdwg.mxu0
      %3533 = vmatpush.bf16.msra.mxu0 0
      %3534 = vmatpush.bf16.msra.mxu0 0
      %3535 = vmatpush.bf16.msra.mxu0 0
      %3536 = vmatpush.bf16.msra.mxu0 0
      %3537 = vmatpush.bf16.msra.mxu0 0
      %3538 = vmatpush.bf16.msra.mxu0 0
      %3539 = vmatpush.bf16.msra.mxu0 0
      %3540 = vmatpush.bf16.msra.mxu0 %v3463
      %3541 = vmatmul.bf16.gmra.mxu0 %v3445
      %v3542 = vpop.f32.mrf.mxu0
      %v3543 = vadd.f32 0.0, %v3542
      %v3544 = vpop.f32.mrf.mxu0
      %3545 = vdwg.mxu0
      %3546 = vmatpush.bf16.msra.mxu0 0
      %3547 = vmatpush.bf16.msra.mxu0 0
      %3548 = vmatpush.bf16.msra.mxu0 0
      %3549 = vmatpush.bf16.msra.mxu0 0
      %3550 = vmatpush.bf16.msra.mxu0 0
      %3551 = vmatpush.bf16.msra.mxu0 0
      %3552 = vmatpush.bf16.msra.mxu0 0
      %3553 = vmatpush.bf16.msra.mxu0 %v3466
      %3554 = vmatmul.bf16.gmra.mxu0 %v3445
      %v3555 = vpop.f32.mrf.mxu0
      %v3556 = vadd.f32 0.0, %v3555
      %v3557 = vpop.f32.mrf.mxu0
      %3558 = vdwg.mxu0
      %v3559 = vadd.f32 %v3388, %v3478
      %v3560 = vadd.f32 %v3389, %v3491
      %v3561 = vadd.f32 %v3390, %v3504
      %v3562 = vadd.f32 %v3391, %v3517
      %v3563 = vadd.f32 %v3392, %v3530
      %v3564 = vadd.f32 %v3393, %v3543
      %v3565 = vadd.f32 %v3394, %v3556
      %v3566 = vld [vmem:[%s194 + $0x2] sm:$0xff]
      %v3567 = vld [vmem:[%s194 + $0xa] sm:$0xff]
      %s3568 = scalar_lea.vmem %s1, 40
      %v3569 = vld [vmem:[%s3568] sm:$0x3]
      %3571 = vst [vmem:[#allocation1] ss:$4 sm:$0xff] %v3566
      %s3573 = scalar_lea.vmem [#allocation1], 32
      %3574 = vst [vmem:[%s3573] ss:$4 sm:$0xff] %v3567
      %v3575 = vld.sshfl [vmem:[#allocation1] sm:$0xff pattern:$0x73625140]
      %v3577 = vld.sshfl [vmem:[#allocation1 + $0x8] sm:$0xff pattern:$0x73625140]
      %v3579 = vld.sshfl [vmem:[#allocation1 + $0x10] sm:$0xff pattern:$0x73625140]
      %v3581 = vld.sshfl [vmem:[#allocation1 + $0x18] sm:$0xff pattern:$0x73625140]
      %v3583 = vld.sshfl [vmem:[#allocation1 + $0x20] sm:$0xff pattern:$0x73625140]
      %v3585 = vld.sshfl [vmem:[#allocation1 + $0x28] sm:$0xff pattern:$0x73625140]
      %v3587 = vld.sshfl [vmem:[#allocation1 + $0x30] sm:$0xff pattern:$0x73625140]
      %v3589 = vld.sshfl [vmem:[#allocation1 + $0x38] sm:$0xff pattern:$0x73625140]
      %3591 = vrot.lane.b32.xlu0 %v3575, 54
      %v3592 = vpop.permute.xlu0 %3591
      %3593 = vrot.lane.b32.xlu0 %v3577, 54
      %v3594 = vpop.permute.xlu0 %3593
      %3595 = vrot.lane.b32.xlu0 %v3579, 54
      %v3596 = vpop.permute.xlu0 %3595
      %3597 = vrot.lane.b32.xlu0 %v3581, 54
      %v3598 = vpop.permute.xlu0 %3597
      %3599 = vrot.lane.b32.xlu0 %v3583, 54
      %v3600 = vpop.permute.xlu0 %3599
      %3601 = vrot.lane.b32.xlu0 %v3585, 54
      %v3602 = vpop.permute.xlu0 %3601
      %3603 = vrot.lane.b32.xlu0 %v3587, 54
      %v3604 = vpop.permute.xlu0 %3603
      %3605 = vrot.lane.b32.xlu0 %v3589, 54
      %v3606 = vpop.permute.xlu0 %3605
      %vm3607 = vcmask 441344
      %v3608 = vsel %vm3607, %v3592, %v3594
      %v3609 = vsel %vm3607, %v3594, %v3596
      %v3610 = vsel %vm3607, %v3596, %v3598
      %v3611 = vsel %vm3607, %v3598, %v3600
      %v3612 = vsel %vm3607, %v3600, %v3602
      %v3613 = vsel %vm3607, %v3602, %v3604
      %v3614 = vsel %vm3607, %v3604, %v3606
      %v3616 = vsel %vm252, %v3569, 0
      %v3619 = vsel %vm256, %v3608, 0
      %v3622 = vsel %vm256, %v3609, 0
      %v3625 = vsel %vm256, %v3610, 0
      %v3628 = vsel %vm256, %v3611, 0
      %v3631 = vsel %vm256, %v3612, 0
      %v3634 = vsel %vm256, %v3613, 0
      %v3637 = vsel %vm256, %v3614, 0
      %3639 = vmatpush.bf16.msra.mxu0 0
      %3640 = vmatpush.bf16.msra.mxu0 0
      %3641 = vmatpush.bf16.msra.mxu0 0
      %3642 = vmatpush.bf16.msra.mxu0 0
      %3643 = vmatpush.bf16.msra.mxu0 0
      %3644 = vmatpush.bf16.msra.mxu0 0
      %3645 = vmatpush.bf16.msra.mxu0 0
      %3646 = vmatpush.bf16.msra.mxu0 %v3619
      %3647 = vmatmul.bf16.gmra.mxu0 %v3616
      %v3648 = vpop.f32.mrf.mxu0
      %v3649 = vadd.f32 0.0, %v3648
      %v3650 = vpop.f32.mrf.mxu0
      %3651 = vdwg.mxu0
      %3652 = vmatpush.bf16.msra.mxu0 0
      %3653 = vmatpush.bf16.msra.mxu0 0
      %3654 = vmatpush.bf16.msra.mxu0 0
      %3655 = vmatpush.bf16.msra.mxu0 0
      %3656 = vmatpush.bf16.msra.mxu0 0
      %3657 = vmatpush.bf16.msra.mxu0 0
      %3658 = vmatpush.bf16.msra.mxu0 0
      %3659 = vmatpush.bf16.msra.mxu0 %v3622
      %3660 = vmatmul.bf16.gmra.mxu0 %v3616
      %v3661 = vpop.f32.mrf.mxu0
      %v3662 = vadd.f32 0.0, %v3661
      %v3663 = vpop.f32.mrf.mxu0
      %3664 = vdwg.mxu0
      %3665 = vmatpush.bf16.msra.mxu0 0
      %3666 = vmatpush.bf16.msra.mxu0 0
      %3667 = vmatpush.bf16.msra.mxu0 0
      %3668 = vmatpush.bf16.msra.mxu0 0
      %3669 = vmatpush.bf16.msra.mxu0 0
      %3670 = vmatpush.bf16.msra.mxu0 0
      %3671 = vmatpush.bf16.msra.mxu0 0
      %3672 = vmatpush.bf16.msra.mxu0 %v3625
      %3673 = vmatmul.bf16.gmra.mxu0 %v3616
      %v3674 = vpop.f32.mrf.mxu0
      %v3675 = vadd.f32 0.0, %v3674
      %v3676 = vpop.f32.mrf.mxu0
      %3677 = vdwg.mxu0
      %3678 = vmatpush.bf16.msra.mxu0 0
      %3679 = vmatpush.bf16.msra.mxu0 0
      %3680 = vmatpush.bf16.msra.mxu0 0
      %3681 = vmatpush.bf16.msra.mxu0 0
      %3682 = vmatpush.bf16.msra.mxu0 0
      %3683 = vmatpush.bf16.msra.mxu0 0
      %3684 = vmatpush.bf16.msra.mxu0 0
      %3685 = vmatpush.bf16.msra.mxu0 %v3628
      %3686 = vmatmul.bf16.gmra.mxu0 %v3616
      %v3687 = vpop.f32.mrf.mxu0
      %v3688 = vadd.f32 0.0, %v3687
      %v3689 = vpop.f32.mrf.mxu0
      %3690 = vdwg.mxu0
      %3691 = vmatpush.bf16.msra.mxu0 0
      %3692 = vmatpush.bf16.msra.mxu0 0
      %3693 = vmatpush.bf16.msra.mxu0 0
      %3694 = vmatpush.bf16.msra.mxu0 0
      %3695 = vmatpush.bf16.msra.mxu0 0
      %3696 = vmatpush.bf16.msra.mxu0 0
      %3697 = vmatpush.bf16.msra.mxu0 0
      %3698 = vmatpush.bf16.msra.mxu0 %v3631
      %3699 = vmatmul.bf16.gmra.mxu0 %v3616
      %v3700 = vpop.f32.mrf.mxu0
      %v3701 = vadd.f32 0.0, %v3700
      %v3702 = vpop.f32.mrf.mxu0
      %3703 = vdwg.mxu0
      %3704 = vmatpush.bf16.msra.mxu0 0
      %3705 = vmatpush.bf16.msra.mxu0 0
      %3706 = vmatpush.bf16.msra.mxu0 0
      %3707 = vmatpush.bf16.msra.mxu0 0
      %3708 = vmatpush.bf16.msra.mxu0 0
      %3709 = vmatpush.bf16.msra.mxu0 0
      %3710 = vmatpush.bf16.msra.mxu0 0
      %3711 = vmatpush.bf16.msra.mxu0 %v3634
      %3712 = vmatmul.bf16.gmra.mxu0 %v3616
      %v3713 = vpop.f32.mrf.mxu0
      %v3714 = vadd.f32 0.0, %v3713
      %v3715 = vpop.f32.mrf.mxu0
      %3716 = vdwg.mxu0
      %3717 = vmatpush.bf16.msra.mxu0 0
      %3718 = vmatpush.bf16.msra.mxu0 0
      %3719 = vmatpush.bf16.msra.mxu0 0
      %3720 = vmatpush.bf16.msra.mxu0 0
      %3721 = vmatpush.bf16.msra.mxu0 0
      %3722 = vmatpush.bf16.msra.mxu0 0
      %3723 = vmatpush.bf16.msra.mxu0 0
      %3724 = vmatpush.bf16.msra.mxu0 %v3637
      %3725 = vmatmul.bf16.gmra.mxu0 %v3616
      %v3726 = vpop.f32.mrf.mxu0
      %v3727 = vadd.f32 0.0, %v3726
      %v3728 = vpop.f32.mrf.mxu0
      %3729 = vdwg.mxu0
      %v3730 = vadd.f32 %v3559, %v3649
      %v3731 = vadd.f32 %v3560, %v3662
      %v3732 = vadd.f32 %v3561, %v3675
      %v3733 = vadd.f32 %v3562, %v3688
      %v3734 = vadd.f32 %v3563, %v3701
      %v3735 = vadd.f32 %v3564, %v3714
      %v3736 = vadd.f32 %v3565, %v3727
      %v3737 = vld [vmem:[%s194 + $0x2] sm:$0xff]
      %v3738 = vld [vmem:[%s194 + $0xa] sm:$0xff]
      %s3739 = scalar_lea.vmem %s1, 42
      %v3740 = vld [vmem:[%s3739] sm:$0x3]
      %3742 = vst [vmem:[#allocation1] ss:$4 sm:$0xff] %v3737
      %s3744 = scalar_lea.vmem [#allocation1], 32
      %3745 = vst [vmem:[%s3744] ss:$4 sm:$0xff] %v3738
      %v3746 = vld.sshfl [vmem:[#allocation1] sm:$0xff pattern:$0x73625140]
      %v3748 = vld.sshfl [vmem:[#allocation1 + $0x8] sm:$0xff pattern:$0x73625140]
      %v3750 = vld.sshfl [vmem:[#allocation1 + $0x10] sm:$0xff pattern:$0x73625140]
      %v3752 = vld.sshfl [vmem:[#allocation1 + $0x18] sm:$0xff pattern:$0x73625140]
      %v3754 = vld.sshfl [vmem:[#allocation1 + $0x20] sm:$0xff pattern:$0x73625140]
      %v3756 = vld.sshfl [vmem:[#allocation1 + $0x28] sm:$0xff pattern:$0x73625140]
      %v3758 = vld.sshfl [vmem:[#allocation1 + $0x30] sm:$0xff pattern:$0x73625140]
      %v3760 = vld.sshfl [vmem:[#allocation1 + $0x38] sm:$0xff pattern:$0x73625140]
      %3762 = vrot.lane.b32.xlu0 %v3746, 46
      %v3763 = vpop.permute.xlu0 %3762
      %3764 = vrot.lane.b32.xlu0 %v3748, 46
      %v3765 = vpop.permute.xlu0 %3764
      %3766 = vrot.lane.b32.xlu0 %v3750, 46
      %v3767 = vpop.permute.xlu0 %3766
      %3768 = vrot.lane.b32.xlu0 %v3752, 46
      %v3769 = vpop.permute.xlu0 %3768
      %3770 = vrot.lane.b32.xlu0 %v3754, 46
      %v3771 = vpop.permute.xlu0 %3770
      %3772 = vrot.lane.b32.xlu0 %v3756, 46
      %v3773 = vpop.permute.xlu0 %3772
      %3774 = vrot.lane.b32.xlu0 %v3758, 46
      %v3775 = vpop.permute.xlu0 %3774
      %3776 = vrot.lane.b32.xlu0 %v3760, 46
      %v3777 = vpop.permute.xlu0 %3776
      %vm3778 = vcmask 375808
      %v3779 = vsel %vm3778, %v3763, %v3765
      %v3780 = vsel %vm3778, %v3765, %v3767
      %v3781 = vsel %vm3778, %v3767, %v3769
      %v3782 = vsel %vm3778, %v3769, %v3771
      %v3783 = vsel %vm3778, %v3771, %v3773
      %v3784 = vsel %vm3778, %v3773, %v3775
      %v3785 = vsel %vm3778, %v3775, %v3777
      %v3787 = vsel %vm252, %v3740, 0
      %v3790 = vsel %vm256, %v3779, 0
      %v3793 = vsel %vm256, %v3780, 0
      %v3796 = vsel %vm256, %v3781, 0
      %v3799 = vsel %vm256, %v3782, 0
      %v3802 = vsel %vm256, %v3783, 0
      %v3805 = vsel %vm256, %v3784, 0
      %v3808 = vsel %vm256, %v3785, 0
      %3810 = vmatpush.bf16.msra.mxu0 0
      %3811 = vmatpush.bf16.msra.mxu0 0
      %3812 = vmatpush.bf16.msra.mxu0 0
      %3813 = vmatpush.bf16.msra.mxu0 0
      %3814 = vmatpush.bf16.msra.mxu0 0
      %3815 = vmatpush.bf16.msra.mxu0 0
      %3816 = vmatpush.bf16.msra.mxu0 0
      %3817 = vmatpush.bf16.msra.mxu0 %v3790
      %3818 = vmatmul.bf16.gmra.mxu0 %v3787
      %v3819 = vpop.f32.mrf.mxu0
      %v3820 = vadd.f32 0.0, %v3819
      %v3821 = vpop.f32.mrf.mxu0
      %3822 = vdwg.mxu0
      %3823 = vmatpush.bf16.msra.mxu0 0
      %3824 = vmatpush.bf16.msra.mxu0 0
      %3825 = vmatpush.bf16.msra.mxu0 0
      %3826 = vmatpush.bf16.msra.mxu0 0
      %3827 = vmatpush.bf16.msra.mxu0 0
      %3828 = vmatpush.bf16.msra.mxu0 0
      %3829 = vmatpush.bf16.msra.mxu0 0
      %3830 = vmatpush.bf16.msra.mxu0 %v3793
      %3831 = vmatmul.bf16.gmra.mxu0 %v3787
      %v3832 = vpop.f32.mrf.mxu0
      %v3833 = vadd.f32 0.0, %v3832
      %v3834 = vpop.f32.mrf.mxu0
      %3835 = vdwg.mxu0
      %3836 = vmatpush.bf16.msra.mxu0 0
      %3837 = vmatpush.bf16.msra.mxu0 0
      %3838 = vmatpush.bf16.msra.mxu0 0
      %3839 = vmatpush.bf16.msra.mxu0 0
      %3840 = vmatpush.bf16.msra.mxu0 0
      %3841 = vmatpush.bf16.msra.mxu0 0
      %3842 = vmatpush.bf16.msra.mxu0 0
      %3843 = vmatpush.bf16.msra.mxu0 %v3796
      %3844 = vmatmul.bf16.gmra.mxu0 %v3787
      %v3845 = vpop.f32.mrf.mxu0
      %v3846 = vadd.f32 0.0, %v3845
      %v3847 = vpop.f32.mrf.mxu0
      %3848 = vdwg.mxu0
      %3849 = vmatpush.bf16.msra.mxu0 0
      %3850 = vmatpush.bf16.msra.mxu0 0
      %3851 = vmatpush.bf16.msra.mxu0 0
      %3852 = vmatpush.bf16.msra.mxu0 0
      %3853 = vmatpush.bf16.msra.mxu0 0
      %3854 = vmatpush.bf16.msra.mxu0 0
      %3855 = vmatpush.bf16.msra.mxu0 0
      %3856 = vmatpush.bf16.msra.mxu0 %v3799
      %3857 = vmatmul.bf16.gmra.mxu0 %v3787
      %v3858 = vpop.f32.mrf.mxu0
      %v3859 = vadd.f32 0.0, %v3858
      %v3860 = vpop.f32.mrf.mxu0
      %3861 = vdwg.mxu0
      %3862 = vmatpush.bf16.msra.mxu0 0
      %3863 = vmatpush.bf16.msra.mxu0 0
      %3864 = vmatpush.bf16.msra.mxu0 0
      %3865 = vmatpush.bf16.msra.mxu0 0
      %3866 = vmatpush.bf16.msra.mxu0 0
      %3867 = vmatpush.bf16.msra.mxu0 0
      %3868 = vmatpush.bf16.msra.mxu0 0
      %3869 = vmatpush.bf16.msra.mxu0 %v3802
      %3870 = vmatmul.bf16.gmra.mxu0 %v3787
      %v3871 = vpop.f32.mrf.mxu0
      %v3872 = vadd.f32 0.0, %v3871
      %v3873 = vpop.f32.mrf.mxu0
      %3874 = vdwg.mxu0
      %3875 = vmatpush.bf16.msra.mxu0 0
      %3876 = vmatpush.bf16.msra.mxu0 0
      %3877 = vmatpush.bf16.msra.mxu0 0
      %3878 = vmatpush.bf16.msra.mxu0 0
      %3879 = vmatpush.bf16.msra.mxu0 0
      %3880 = vmatpush.bf16.msra.mxu0 0
      %3881 = vmatpush.bf16.msra.mxu0 0
      %3882 = vmatpush.bf16.msra.mxu0 %v3805
      %3883 = vmatmul.bf16.gmra.mxu0 %v3787
      %v3884 = vpop.f32.mrf.mxu0
      %v3885 = vadd.f32 0.0, %v3884
      %v3886 = vpop.f32.mrf.mxu0
      %3887 = vdwg.mxu0
      %3888 = vmatpush.bf16.msra.mxu0 0
      %3889 = vmatpush.bf16.msra.mxu0 0
      %3890 = vmatpush.bf16.msra.mxu0 0
      %3891 = vmatpush.bf16.msra.mxu0 0
      %3892 = vmatpush.bf16.msra.mxu0 0
      %3893 = vmatpush.bf16.msra.mxu0 0
      %3894 = vmatpush.bf16.msra.mxu0 0
      %3895 = vmatpush.bf16.msra.mxu0 %v3808
      %3896 = vmatmul.bf16.gmra.mxu0 %v3787
      %v3897 = vpop.f32.mrf.mxu0
      %v3898 = vadd.f32 0.0, %v3897
      %v3899 = vpop.f32.mrf.mxu0
      %3900 = vdwg.mxu0
      %v3901 = vadd.f32 %v3730, %v3820
      %v3902 = vadd.f32 %v3731, %v3833
      %v3903 = vadd.f32 %v3732, %v3846
      %v3904 = vadd.f32 %v3733, %v3859
      %v3905 = vadd.f32 %v3734, %v3872
      %v3906 = vadd.f32 %v3735, %v3885
      %v3907 = vadd.f32 %v3736, %v3898
      %v3908 = vld [vmem:[%s194 + $0x2] sm:$0xff]
      %v3909 = vld [vmem:[%s194 + $0xa] sm:$0xff]
      %s3910 = scalar_lea.vmem %s1, 44
      %v3911 = vld [vmem:[%s3910] sm:$0x3]
      %3913 = vst [vmem:[#allocation1] ss:$4 sm:$0xff] %v3908
      %s3915 = scalar_lea.vmem [#allocation1], 32
      %3916 = vst [vmem:[%s3915] ss:$4 sm:$0xff] %v3909
      %v3917 = vld.sshfl [vmem:[#allocation1] sm:$0xff pattern:$0x73625140]
      %v3919 = vld.sshfl [vmem:[#allocation1 + $0x8] sm:$0xff pattern:$0x73625140]
      %v3921 = vld.sshfl [vmem:[#allocation1 + $0x10] sm:$0xff pattern:$0x73625140]
      %v3923 = vld.sshfl [vmem:[#allocation1 + $0x18] sm:$0xff pattern:$0x73625140]
      %v3925 = vld.sshfl [vmem:[#allocation1 + $0x20] sm:$0xff pattern:$0x73625140]
      %v3927 = vld.sshfl [vmem:[#allocation1 + $0x28] sm:$0xff pattern:$0x73625140]
      %v3929 = vld.sshfl [vmem:[#allocation1 + $0x30] sm:$0xff pattern:$0x73625140]
      %v3931 = vld.sshfl [vmem:[#allocation1 + $0x38] sm:$0xff pattern:$0x73625140]
      %3933 = vrot.lane.b32.xlu0 %v3917, 45
      %v3934 = vpop.permute.xlu0 %3933
      %3935 = vrot.lane.b32.xlu0 %v3919, 45
      %v3936 = vpop.permute.xlu0 %3935
      %3937 = vrot.lane.b32.xlu0 %v3921, 45
      %v3938 = vpop.permute.xlu0 %3937
      %3939 = vrot.lane.b32.xlu0 %v3923, 45
      %v3940 = vpop.permute.xlu0 %3939
      %3941 = vrot.lane.b32.xlu0 %v3925, 45
      %v3942 = vpop.permute.xlu0 %3941
      %3943 = vrot.lane.b32.xlu0 %v3927, 45
      %v3944 = vpop.permute.xlu0 %3943
      %3945 = vrot.lane.b32.xlu0 %v3929, 45
      %v3946 = vpop.permute.xlu0 %3945
      %3947 = vrot.lane.b32.xlu0 %v3931, 45
      %v3948 = vpop.permute.xlu0 %3947
      %vm3949 = vcmask 367616
      %v3950 = vsel %vm3949, %v3934, %v3936
      %v3951 = vsel %vm3949, %v3936, %v3938
      %v3952 = vsel %vm3949, %v3938, %v3940
      %v3953 = vsel %vm3949, %v3940, %v3942
      %v3954 = vsel %vm3949, %v3942, %v3944
      %v3955 = vsel %vm3949, %v3944, %v3946
      %v3956 = vsel %vm3949, %v3946, %v3948
      %v3958 = vsel %vm252, %v3911, 0
      %v3961 = vsel %vm256, %v3950, 0
      %v3964 = vsel %vm256, %v3951, 0
      %v3967 = vsel %vm256, %v3952, 0
      %v3970 = vsel %vm256, %v3953, 0
      %v3973 = vsel %vm256, %v3954, 0
      %v3976 = vsel %vm256, %v3955, 0
      %v3979 = vsel %vm256, %v3956, 0
      %3981 = vmatpush.bf16.msra.mxu0 0
      %3982 = vmatpush.bf16.msra.mxu0 0
      %3983 = vmatpush.bf16.msra.mxu0 0
      %3984 = vmatpush.bf16.msra.mxu0 0
      %3985 = vmatpush.bf16.msra.mxu0 0
      %3986 = vmatpush.bf16.msra.mxu0 0
      %3987 = vmatpush.bf16.msra.mxu0 0
      %3988 = vmatpush.bf16.msra.mxu0 %v3961
      %3989 = vmatmul.bf16.gmra.mxu0 %v3958
      %v3990 = vpop.f32.mrf.mxu0
      %v3991 = vadd.f32 0.0, %v3990
      %v3992 = vpop.f32.mrf.mxu0
      %3993 = vdwg.mxu0
      %3994 = vmatpush.bf16.msra.mxu0 0
      %3995 = vmatpush.bf16.msra.mxu0 0
      %3996 = vmatpush.bf16.msra.mxu0 0
      %3997 = vmatpush.bf16.msra.mxu0 0
      %3998 = vmatpush.bf16.msra.mxu0 0
      %3999 = vmatpush.bf16.msra.mxu0 0
      %4000 = vmatpush.bf16.msra.mxu0 0
      %4001 = vmatpush.bf16.msra.mxu0 %v3964
      %4002 = vmatmul.bf16.gmra.mxu0 %v3958
      %v4003 = vpop.f32.mrf.mxu0
      %v4004 = vadd.f32 0.0, %v4003
      %v4005 = vpop.f32.mrf.mxu0
      %4006 = vdwg.mxu0
      %4007 = vmatpush.bf16.msra.mxu0 0
      %4008 = vmatpush.bf16.msra.mxu0 0
      %4009 = vmatpush.bf16.msra.mxu0 0
      %4010 = vmatpush.bf16.msra.mxu0 0
      %4011 = vmatpush.bf16.msra.mxu0 0
      %4012 = vmatpush.bf16.msra.mxu0 0
      %4013 = vmatpush.bf16.msra.mxu0 0
      %4014 = vmatpush.bf16.msra.mxu0 %v3967
      %4015 = vmatmul.bf16.gmra.mxu0 %v3958
      %v4016 = vpop.f32.mrf.mxu0
      %v4017 = vadd.f32 0.0, %v4016
      %v4018 = vpop.f32.mrf.mxu0
      %4019 = vdwg.mxu0
      %4020 = vmatpush.bf16.msra.mxu0 0
      %4021 = vmatpush.bf16.msra.mxu0 0
      %4022 = vmatpush.bf16.msra.mxu0 0
      %4023 = vmatpush.bf16.msra.mxu0 0
      %4024 = vmatpush.bf16.msra.mxu0 0
      %4025 = vmatpush.bf16.msra.mxu0 0
      %4026 = vmatpush.bf16.msra.mxu0 0
      %4027 = vmatpush.bf16.msra.mxu0 %v3970
      %4028 = vmatmul.bf16.gmra.mxu0 %v3958
      %v4029 = vpop.f32.mrf.mxu0
      %v4030 = vadd.f32 0.0, %v4029
      %v4031 = vpop.f32.mrf.mxu0
      %4032 = vdwg.mxu0
      %4033 = vmatpush.bf16.msra.mxu0 0
      %4034 = vmatpush.bf16.msra.mxu0 0
      %4035 = vmatpush.bf16.msra.mxu0 0
      %4036 = vmatpush.bf16.msra.mxu0 0
      %4037 = vmatpush.bf16.msra.mxu0 0
      %4038 = vmatpush.bf16.msra.mxu0 0
      %4039 = vmatpush.bf16.msra.mxu0 0
      %4040 = vmatpush.bf16.msra.mxu0 %v3973
      %4041 = vmatmul.bf16.gmra.mxu0 %v3958
      %v4042 = vpop.f32.mrf.mxu0
      %v4043 = vadd.f32 0.0, %v4042
      %v4044 = vpop.f32.mrf.mxu0
      %4045 = vdwg.mxu0
      %4046 = vmatpush.bf16.msra.mxu0 0
      %4047 = vmatpush.bf16.msra.mxu0 0
      %4048 = vmatpush.bf16.msra.mxu0 0
      %4049 = vmatpush.bf16.msra.mxu0 0
      %4050 = vmatpush.bf16.msra.mxu0 0
      %4051 = vmatpush.bf16.msra.mxu0 0
      %4052 = vmatpush.bf16.msra.mxu0 0
      %4053 = vmatpush.bf16.msra.mxu0 %v3976
      %4054 = vmatmul.bf16.gmra.mxu0 %v3958
      %v4055 = vpop.f32.mrf.mxu0
      %v4056 = vadd.f32 0.0, %v4055
      %v4057 = vpop.f32.mrf.mxu0
      %4058 = vdwg.mxu0
      %4059 = vmatpush.bf16.msra.mxu0 0
      %4060 = vmatpush.bf16.msra.mxu0 0
      %4061 = vmatpush.bf16.msra.mxu0 0
      %4062 = vmatpush.bf16.msra.mxu0 0
      %4063 = vmatpush.bf16.msra.mxu0 0
      %4064 = vmatpush.bf16.msra.mxu0 0
      %4065 = vmatpush.bf16.msra.mxu0 0
      %4066 = vmatpush.bf16.msra.mxu0 %v3979
      %4067 = vmatmul.bf16.gmra.mxu0 %v3958
      %v4068 = vpop.f32.mrf.mxu0
      %v4069 = vadd.f32 0.0, %v4068
      %v4070 = vpop.f32.mrf.mxu0
      %4071 = vdwg.mxu0
      %v4072 = vadd.f32 %v3901, %v3991
      %v4073 = vadd.f32 %v3902, %v4004
      %v4074 = vadd.f32 %v3903, %v4017
      %v4075 = vadd.f32 %v3904, %v4030
      %v4076 = vadd.f32 %v3905, %v4043
      %v4077 = vadd.f32 %v3906, %v4056
      %v4078 = vadd.f32 %v3907, %v4069
      %v4079 = vld [vmem:[%s194 + $0x2] sm:$0xff]
      %v4080 = vld [vmem:[%s194 + $0xa] sm:$0xff]
      %s4081 = scalar_lea.vmem %s1, 46
      %v4082 = vld [vmem:[%s4081] sm:$0x3]
      %4084 = vst [vmem:[#allocation1] ss:$4 sm:$0xff] %v4079
      %s4086 = scalar_lea.vmem [#allocation1], 32
      %4087 = vst [vmem:[%s4086] ss:$4 sm:$0xff] %v4080
      %v4088 = vld.sshfl [vmem:[#allocation1] sm:$0xff pattern:$0x73625140]
      %v4090 = vld.sshfl [vmem:[#allocation1 + $0x8] sm:$0xff pattern:$0x73625140]
      %v4092 = vld.sshfl [vmem:[#allocation1 + $0x10] sm:$0xff pattern:$0x73625140]
      %v4094 = vld.sshfl [vmem:[#allocation1 + $0x18] sm:$0xff pattern:$0x73625140]
      %v4096 = vld.sshfl [vmem:[#allocation1 + $0x20] sm:$0xff pattern:$0x73625140]
      %v4098 = vld.sshfl [vmem:[#allocation1 + $0x28] sm:$0xff pattern:$0x73625140]
      %v4100 = vld.sshfl [vmem:[#allocation1 + $0x30] sm:$0xff pattern:$0x73625140]
      %v4102 = vld.sshfl [vmem:[#allocation1 + $0x38] sm:$0xff pattern:$0x73625140]
      %4104 = vrot.lane.b32.xlu0 %v4088, 44
      %v4105 = vpop.permute.xlu0 %4104
      %4106 = vrot.lane.b32.xlu0 %v4090, 44
      %v4107 = vpop.permute.xlu0 %4106
      %4108 = vrot.lane.b32.xlu0 %v4092, 44
      %v4109 = vpop.permute.xlu0 %4108
      %4110 = vrot.lane.b32.xlu0 %v4094, 44
      %v4111 = vpop.permute.xlu0 %4110
      %4112 = vrot.lane.b32.xlu0 %v4096, 44
      %v4113 = vpop.permute.xlu0 %4112
      %4114 = vrot.lane.b32.xlu0 %v4098, 44
      %v4115 = vpop.permute.xlu0 %4114
      %4116 = vrot.lane.b32.xlu0 %v4100, 44
      %v4117 = vpop.permute.xlu0 %4116
      %4118 = vrot.lane.b32.xlu0 %v4102, 44
      %v4119 = vpop.permute.xlu0 %4118
      %vm4120 = vcmask 359424
      %v4121 = vsel %vm4120, %v4105, %v4107
      %v4122 = vsel %vm4120, %v4107, %v4109
      %v4123 = vsel %vm4120, %v4109, %v4111
      %v4124 = vsel %vm4120, %v4111, %v4113
      %v4125 = vsel %vm4120, %v4113, %v4115
      %v4126 = vsel %vm4120, %v4115, %v4117
      %v4127 = vsel %vm4120, %v4117, %v4119
      %v4129 = vsel %vm252, %v4082, 0
      %v4132 = vsel %vm256, %v4121, 0
      %v4135 = vsel %vm256, %v4122, 0
      %v4138 = vsel %vm256, %v4123, 0
      %v4141 = vsel %vm256, %v4124, 0
      %v4144 = vsel %vm256, %v4125, 0
      %v4147 = vsel %vm256, %v4126, 0
      %v4150 = vsel %vm256, %v4127, 0
      %4152 = vmatpush.bf16.msra.mxu0 0
      %4153 = vmatpush.bf16.msra.mxu0 0
      %4154 = vmatpush.bf16.msra.mxu0 0
      %4155 = vmatpush.bf16.msra.mxu0 0
      %4156 = vmatpush.bf16.msra.mxu0 0
      %4157 = vmatpush.bf16.msra.mxu0 0
      %4158 = vmatpush.bf16.msra.mxu0 0
      %4159 = vmatpush.bf16.msra.mxu0 %v4132
      %4160 = vmatmul.bf16.gmra.mxu0 %v4129
      %v4161 = vpop.f32.mrf.mxu0
      %v4162 = vadd.f32 0.0, %v4161
      %v4163 = vpop.f32.mrf.mxu0
      %4164 = vdwg.mxu0
      %4165 = vmatpush.bf16.msra.mxu0 0
      %4166 = vmatpush.bf16.msra.mxu0 0
      %4167 = vmatpush.bf16.msra.mxu0 0
      %4168 = vmatpush.bf16.msra.mxu0 0
      %4169 = vmatpush.bf16.msra.mxu0 0
      %4170 = vmatpush.bf16.msra.mxu0 0
      %4171 = vmatpush.bf16.msra.mxu0 0
      %4172 = vmatpush.bf16.msra.mxu0 %v4135
      %4173 = vmatmul.bf16.gmra.mxu0 %v4129
      %v4174 = vpop.f32.mrf.mxu0
      %v4175 = vadd.f32 0.0, %v4174
      %v4176 = vpop.f32.mrf.mxu0
      %4177 = vdwg.mxu0
      %4178 = vmatpush.bf16.msra.mxu0 0
      %4179 = vmatpush.bf16.msra.mxu0 0
      %4180 = vmatpush.bf16.msra.mxu0 0
      %4181 = vmatpush.bf16.msra.mxu0 0
      %4182 = vmatpush.bf16.msra.mxu0 0
      %4183 = vmatpush.bf16.msra.mxu0 0
      %4184 = vmatpush.bf16.msra.mxu0 0
      %4185 = vmatpush.bf16.msra.mxu0 %v4138
      %4186 = vmatmul.bf16.gmra.mxu0 %v4129
      %v4187 = vpop.f32.mrf.mxu0
      %v4188 = vadd.f32 0.0, %v4187
      %v4189 = vpop.f32.mrf.mxu0
      %4190 = vdwg.mxu0
      %4191 = vmatpush.bf16.msra.mxu0 0
      %4192 = vmatpush.bf16.msra.mxu0 0
      %4193 = vmatpush.bf16.msra.mxu0 0
      %4194 = vmatpush.bf16.msra.mxu0 0
      %4195 = vmatpush.bf16.msra.mxu0 0
      %4196 = vmatpush.bf16.msra.mxu0 0
      %4197 = vmatpush.bf16.msra.mxu0 0
      %4198 = vmatpush.bf16.msra.mxu0 %v4141
      %4199 = vmatmul.bf16.gmra.mxu0 %v4129
      %v4200 = vpop.f32.mrf.mxu0
      %v4201 = vadd.f32 0.0, %v4200
      %v4202 = vpop.f32.mrf.mxu0
      %4203 = vdwg.mxu0
      %4204 = vmatpush.bf16.msra.mxu0 0
      %4205 = vmatpush.bf16.msra.mxu0 0
      %4206 = vmatpush.bf16.msra.mxu0 0
      %4207 = vmatpush.bf16.msra.mxu0 0
      %4208 = vmatpush.bf16.msra.mxu0 0
      %4209 = vmatpush.bf16.msra.mxu0 0
      %4210 = vmatpush.bf16.msra.mxu0 0
      %4211 = vmatpush.bf16.msra.mxu0 %v4144
      %4212 = vmatmul.bf16.gmra.mxu0 %v4129
      %v4213 = vpop.f32.mrf.mxu0
      %v4214 = vadd.f32 0.0, %v4213
      %v4215 = vpop.f32.mrf.mxu0
      %4216 = vdwg.mxu0
      %4217 = vmatpush.bf16.msra.mxu0 0
      %4218 = vmatpush.bf16.msra.mxu0 0
      %4219 = vmatpush.bf16.msra.mxu0 0
      %4220 = vmatpush.bf16.msra.mxu0 0
      %4221 = vmatpush.bf16.msra.mxu0 0
      %4222 = vmatpush.bf16.msra.mxu0 0
      %4223 = vmatpush.bf16.msra.mxu0 0
      %4224 = vmatpush.bf16.msra.mxu0 %v4147
      %4225 = vmatmul.bf16.gmra.mxu0 %v4129
      %v4226 = vpop.f32.mrf.mxu0
      %v4227 = vadd.f32 0.0, %v4226
      %v4228 = vpop.f32.mrf.mxu0
      %4229 = vdwg.mxu0
      %4230 = vmatpush.bf16.msra.mxu0 0
      %4231 = vmatpush.bf16.msra.mxu0 0
      %4232 = vmatpush.bf16.msra.mxu0 0
      %4233 = vmatpush.bf16.msra.mxu0 0
      %4234 = vmatpush.bf16.msra.mxu0 0
      %4235 = vmatpush.bf16.msra.mxu0 0
      %4236 = vmatpush.bf16.msra.mxu0 0
      %4237 = vmatpush.bf16.msra.mxu0 %v4150
      %4238 = vmatmul.bf16.gmra.mxu0 %v4129
      %v4239 = vpop.f32.mrf.mxu0
      %v4240 = vadd.f32 0.0, %v4239
      %v4241 = vpop.f32.mrf.mxu0
      %4242 = vdwg.mxu0
      %v4243 = vadd.f32 %v4072, %v4162
      %v4244 = vadd.f32 %v4073, %v4175
      %v4245 = vadd.f32 %v4074, %v4188
      %v4246 = vadd.f32 %v4075, %v4201
      %v4247 = vadd.f32 %v4076, %v4214
      %v4248 = vadd.f32 %v4077, %v4227
      %v4249 = vadd.f32 %v4078, %v4240
      %v4250 = vld [vmem:[%s194 + $0x2] sm:$0xff]
      %v4251 = vld [vmem:[%s194 + $0xa] sm:$0xff]
      %s4252 = scalar_lea.vmem %s1, 48
      %v4253 = vld [vmem:[%s4252] sm:$0x3]
      %4255 = vst [vmem:[#allocation1] ss:$4 sm:$0xff] %v4250
      %s4257 = scalar_lea.vmem [#allocation1], 32
      %4258 = vst [vmem:[%s4257] ss:$4 sm:$0xff] %v4251
      %v4259 = vld.sshfl [vmem:[#allocation1] sm:$0xff pattern:$0x73625140]
      %v4261 = vld.sshfl [vmem:[#allocation1 + $0x8] sm:$0xff pattern:$0x73625140]
      %v4263 = vld.sshfl [vmem:[#allocation1 + $0x10] sm:$0xff pattern:$0x73625140]
      %v4265 = vld.sshfl [vmem:[#allocation1 + $0x18] sm:$0xff pattern:$0x73625140]
      %v4267 = vld.sshfl [vmem:[#allocation1 + $0x20] sm:$0xff pattern:$0x73625140]
      %v4269 = vld.sshfl [vmem:[#allocation1 + $0x28] sm:$0xff pattern:$0x73625140]
      %v4271 = vld.sshfl [vmem:[#allocation1 + $0x30] sm:$0xff pattern:$0x73625140]
      %v4273 = vld.sshfl [vmem:[#allocation1 + $0x38] sm:$0xff pattern:$0x73625140]
      %4275 = vrot.lane.b32.xlu0 %v4259, 36
      %v4276 = vpop.permute.xlu0 %4275
      %4277 = vrot.lane.b32.xlu0 %v4261, 36
      %v4278 = vpop.permute.xlu0 %4277
      %4279 = vrot.lane.b32.xlu0 %v4263, 36
      %v4280 = vpop.permute.xlu0 %4279
      %4281 = vrot.lane.b32.xlu0 %v4265, 36
      %v4282 = vpop.permute.xlu0 %4281
      %4283 = vrot.lane.b32.xlu0 %v4267, 36
      %v4284 = vpop.permute.xlu0 %4283
      %4285 = vrot.lane.b32.xlu0 %v4269, 36
      %v4286 = vpop.permute.xlu0 %4285
      %4287 = vrot.lane.b32.xlu0 %v4271, 36
      %v4288 = vpop.permute.xlu0 %4287
      %4289 = vrot.lane.b32.xlu0 %v4273, 36
      %v4290 = vpop.permute.xlu0 %4289
      %vm4291 = vcmask 293888
      %v4292 = vsel %vm4291, %v4276, %v4278
      %v4293 = vsel %vm4291, %v4278, %v4280
      %v4294 = vsel %vm4291, %v4280, %v4282
      %v4295 = vsel %vm4291, %v4282, %v4284
      %v4296 = vsel %vm4291, %v4284, %v4286
      %v4297 = vsel %vm4291, %v4286, %v4288
      %v4298 = vsel %vm4291, %v4288, %v4290
      %v4300 = vsel %vm252, %v4253, 0
      %v4303 = vsel %vm256, %v4292, 0
      %v4306 = vsel %vm256, %v4293, 0
      %v4309 = vsel %vm256, %v4294, 0
      %v4312 = vsel %vm256, %v4295, 0
      %v4315 = vsel %vm256, %v4296, 0
      %v4318 = vsel %vm256, %v4297, 0
      %v4321 = vsel %vm256, %v4298, 0
      %4323 = vmatpush.bf16.msra.mxu0 0
      %4324 = vmatpush.bf16.msra.mxu0 0
      %4325 = vmatpush.bf16.msra.mxu0 0
      %4326 = vmatpush.bf16.msra.mxu0 0
      %4327 = vmatpush.bf16.msra.mxu0 0
      %4328 = vmatpush.bf16.msra.mxu0 0
      %4329 = vmatpush.bf16.msra.mxu0 0
      %4330 = vmatpush.bf16.msra.mxu0 %v4303
      %4331 = vmatmul.bf16.gmra.mxu0 %v4300
      %v4332 = vpop.f32.mrf.mxu0
      %v4333 = vadd.f32 0.0, %v4332
      %v4334 = vpop.f32.mrf.mxu0
      %4335 = vdwg.mxu0
      %4336 = vmatpush.bf16.msra.mxu0 0
      %4337 = vmatpush.bf16.msra.mxu0 0
      %4338 = vmatpush.bf16.msra.mxu0 0
      %4339 = vmatpush.bf16.msra.mxu0 0
      %4340 = vmatpush.bf16.msra.mxu0 0
      %4341 = vmatpush.bf16.msra.mxu0 0
      %4342 = vmatpush.bf16.msra.mxu0 0
      %4343 = vmatpush.bf16.msra.mxu0 %v4306
      %4344 = vmatmul.bf16.gmra.mxu0 %v4300
      %v4345 = vpop.f32.mrf.mxu0
      %v4346 = vadd.f32 0.0, %v4345
      %v4347 = vpop.f32.mrf.mxu0
      %4348 = vdwg.mxu0
      %4349 = vmatpush.bf16.msra.mxu0 0
      %4350 = vmatpush.bf16.msra.mxu0 0
      %4351 = vmatpush.bf16.msra.mxu0 0
      %4352 = vmatpush.bf16.msra.mxu0 0
      %4353 = vmatpush.bf16.msra.mxu0 0
      %4354 = vmatpush.bf16.msra.mxu0 0
      %4355 = vmatpush.bf16.msra.mxu0 0
      %4356 = vmatpush.bf16.msra.mxu0 %v4309
      %4357 = vmatmul.bf16.gmra.mxu0 %v4300
      %v4358 = vpop.f32.mrf.mxu0
      %v4359 = vadd.f32 0.0, %v4358
      %v4360 = vpop.f32.mrf.mxu0
      %4361 = vdwg.mxu0
      %4362 = vmatpush.bf16.msra.mxu0 0
      %4363 = vmatpush.bf16.msra.mxu0 0
      %4364 = vmatpush.bf16.msra.mxu0 0
      %4365 = vmatpush.bf16.msra.mxu0 0
      %4366 = vmatpush.bf16.msra.mxu0 0
      %4367 = vmatpush.bf16.msra.mxu0 0
      %4368 = vmatpush.bf16.msra.mxu0 0
      %4369 = vmatpush.bf16.msra.mxu0 %v4312
      %4370 = vmatmul.bf16.gmra.mxu0 %v4300
      %v4371 = vpop.f32.mrf.mxu0
      %v4372 = vadd.f32 0.0, %v4371
      %v4373 = vpop.f32.mrf.mxu0
      %4374 = vdwg.mxu0
      %4375 = vmatpush.bf16.msra.mxu0 0
      %4376 = vmatpush.bf16.msra.mxu0 0
      %4377 = vmatpush.bf16.msra.mxu0 0
      %4378 = vmatpush.bf16.msra.mxu0 0
      %4379 = vmatpush.bf16.msra.mxu0 0
      %4380 = vmatpush.bf16.msra.mxu0 0
      %4381 = vmatpush.bf16.msra.mxu0 0
      %4382 = vmatpush.bf16.msra.mxu0 %v4315
      %4383 = vmatmul.bf16.gmra.mxu0 %v4300
      %v4384 = vpop.f32.mrf.mxu0
      %v4385 = vadd.f32 0.0, %v4384
      %v4386 = vpop.f32.mrf.mxu0
      %4387 = vdwg.mxu0
      %4388 = vmatpush.bf16.msra.mxu0 0
      %4389 = vmatpush.bf16.msra.mxu0 0
      %4390 = vmatpush.bf16.msra.mxu0 0
      %4391 = vmatpush.bf16.msra.mxu0 0
      %4392 = vmatpush.bf16.msra.mxu0 0
      %4393 = vmatpush.bf16.msra.mxu0 0
      %4394 = vmatpush.bf16.msra.mxu0 0
      %4395 = vmatpush.bf16.msra.mxu0 %v4318
      %4396 = vmatmul.bf16.gmra.mxu0 %v4300
      %v4397 = vpop.f32.mrf.mxu0
      %v4398 = vadd.f32 0.0, %v4397
      %v4399 = vpop.f32.mrf.mxu0
      %4400 = vdwg.mxu0
      %4401 = vmatpush.bf16.msra.mxu0 0
      %4402 = vmatpush.bf16.msra.mxu0 0
      %4403 = vmatpush.bf16.msra.mxu0 0
      %4404 = vmatpush.bf16.msra.mxu0 0
      %4405 = vmatpush.bf16.msra.mxu0 0
      %4406 = vmatpush.bf16.msra.mxu0 0
      %4407 = vmatpush.bf16.msra.mxu0 0
      %4408 = vmatpush.bf16.msra.mxu0 %v4321
      %4409 = vmatmul.bf16.gmra.mxu0 %v4300
      %v4410 = vpop.f32.mrf.mxu0
      %v4411 = vadd.f32 0.0, %v4410
      %v4412 = vpop.f32.mrf.mxu0
      %4413 = vdwg.mxu0
      %v4414 = vadd.f32 %v4243, %v4333
      %v4415 = vadd.f32 %v4244, %v4346
      %v4416 = vadd.f32 %v4245, %v4359
      %v4417 = vadd.f32 %v4246, %v4372
      %v4418 = vadd.f32 %v4247, %v4385
      %v4419 = vadd.f32 %v4248, %v4398
      %v4420 = vadd.f32 %v4249, %v4411
      %v4421 = vld [vmem:[%s194 + $0x2] sm:$0xff]
      %v4422 = vld [vmem:[%s194 + $0xa] sm:$0xff]
      %s4423 = scalar_lea.vmem %s1, 50
      %v4424 = vld [vmem:[%s4423] sm:$0x3]
      %4426 = vst [vmem:[#allocation1] ss:$4 sm:$0xff] %v4421
      %s4428 = scalar_lea.vmem [#allocation1], 32
      %4429 = vst [vmem:[%s4428] ss:$4 sm:$0xff] %v4422
      %v4430 = vld.sshfl [vmem:[#allocation1] sm:$0xff pattern:$0x73625140]
      %v4432 = vld.sshfl [vmem:[#allocation1 + $0x8] sm:$0xff pattern:$0x73625140]
      %v4434 = vld.sshfl [vmem:[#allocation1 + $0x10] sm:$0xff pattern:$0x73625140]
      %v4436 = vld.sshfl [vmem:[#allocation1 + $0x18] sm:$0xff pattern:$0x73625140]
      %v4438 = vld.sshfl [vmem:[#allocation1 + $0x20] sm:$0xff pattern:$0x73625140]
      %v4440 = vld.sshfl [vmem:[#allocation1 + $0x28] sm:$0xff pattern:$0x73625140]
      %v4442 = vld.sshfl [vmem:[#allocation1 + $0x30] sm:$0xff pattern:$0x73625140]
      %v4444 = vld.sshfl [vmem:[#allocation1 + $0x38] sm:$0xff pattern:$0x73625140]
      %4446 = vrot.lane.b32.xlu0 %v4430, 35
      %v4447 = vpop.permute.xlu0 %4446
      %4448 = vrot.lane.b32.xlu0 %v4432, 35
      %v4449 = vpop.permute.xlu0 %4448
      %4450 = vrot.lane.b32.xlu0 %v4434, 35
      %v4451 = vpop.permute.xlu0 %4450
      %4452 = vrot.lane.b32.xlu0 %v4436, 35
      %v4453 = vpop.permute.xlu0 %4452
      %4454 = vrot.lane.b32.xlu0 %v4438, 35
      %v4455 = vpop.permute.xlu0 %4454
      %4456 = vrot.lane.b32.xlu0 %v4440, 35
      %v4457 = vpop.permute.xlu0 %4456
      %4458 = vrot.lane.b32.xlu0 %v4442, 35
      %v4459 = vpop.permute.xlu0 %4458
      %4460 = vrot.lane.b32.xlu0 %v4444, 35
      %v4461 = vpop.permute.xlu0 %4460
      %vm4462 = vcmask 285696
      %v4463 = vsel %vm4462, %v4447, %v4449
      %v4464 = vsel %vm4462, %v4449, %v4451
      %v4465 = vsel %vm4462, %v4451, %v4453
      %v4466 = vsel %vm4462, %v4453, %v4455
      %v4467 = vsel %vm4462, %v4455, %v4457
      %v4468 = vsel %vm4462, %v4457, %v4459
      %v4469 = vsel %vm4462, %v4459, %v4461
      %v4471 = vsel %vm252, %v4424, 0
      %v4474 = vsel %vm256, %v4463, 0
      %v4477 = vsel %vm256, %v4464, 0
      %v4480 = vsel %vm256, %v4465, 0
      %v4483 = vsel %vm256, %v4466, 0
      %v4486 = vsel %vm256, %v4467, 0
      %v4489 = vsel %vm256, %v4468, 0
      %v4492 = vsel %vm256, %v4469, 0
      %4494 = vmatpush.bf16.msra.mxu0 0
      %4495 = vmatpush.bf16.msra.mxu0 0
      %4496 = vmatpush.bf16.msra.mxu0 0
      %4497 = vmatpush.bf16.msra.mxu0 0
      %4498 = vmatpush.bf16.msra.mxu0 0
      %4499 = vmatpush.bf16.msra.mxu0 0
      %4500 = vmatpush.bf16.msra.mxu0 0
      %4501 = vmatpush.bf16.msra.mxu0 %v4474
      %4502 = vmatmul.bf16.gmra.mxu0 %v4471
      %v4503 = vpop.f32.mrf.mxu0
      %v4504 = vadd.f32 0.0, %v4503
      %v4505 = vpop.f32.mrf.mxu0
      %4506 = vdwg.mxu0
      %4507 = vmatpush.bf16.msra.mxu0 0
      %4508 = vmatpush.bf16.msra.mxu0 0
      %4509 = vmatpush.bf16.msra.mxu0 0
      %4510 = vmatpush.bf16.msra.mxu0 0
      %4511 = vmatpush.bf16.msra.mxu0 0
      %4512 = vmatpush.bf16.msra.mxu0 0
      %4513 = vmatpush.bf16.msra.mxu0 0
      %4514 = vmatpush.bf16.msra.mxu0 %v4477
      %4515 = vmatmul.bf16.gmra.mxu0 %v4471
      %v4516 = vpop.f32.mrf.mxu0
      %v4517 = vadd.f32 0.0, %v4516
      %v4518 = vpop.f32.mrf.mxu0
      %4519 = vdwg.mxu0
      %4520 = vmatpush.bf16.msra.mxu0 0
      %4521 = vmatpush.bf16.msra.mxu0 0
      %4522 = vmatpush.bf16.msra.mxu0 0
      %4523 = vmatpush.bf16.msra.mxu0 0
      %4524 = vmatpush.bf16.msra.mxu0 0
      %4525 = vmatpush.bf16.msra.mxu0 0
      %4526 = vmatpush.bf16.msra.mxu0 0
      %4527 = vmatpush.bf16.msra.mxu0 %v4480
      %4528 = vmatmul.bf16.gmra.mxu0 %v4471
      %v4529 = vpop.f32.mrf.mxu0
      %v4530 = vadd.f32 0.0, %v4529
      %v4531 = vpop.f32.mrf.mxu0
      %4532 = vdwg.mxu0
      %4533 = vmatpush.bf16.msra.mxu0 0
      %4534 = vmatpush.bf16.msra.mxu0 0
      %4535 = vmatpush.bf16.msra.mxu0 0
      %4536 = vmatpush.bf16.msra.mxu0 0
      %4537 = vmatpush.bf16.msra.mxu0 0
      %4538 = vmatpush.bf16.msra.mxu0 0
      %4539 = vmatpush.bf16.msra.mxu0 0
      %4540 = vmatpush.bf16.msra.mxu0 %v4483
      %4541 = vmatmul.bf16.gmra.mxu0 %v4471
      %v4542 = vpop.f32.mrf.mxu0
      %v4543 = vadd.f32 0.0, %v4542
      %v4544 = vpop.f32.mrf.mxu0
      %4545 = vdwg.mxu0
      %4546 = vmatpush.bf16.msra.mxu0 0
      %4547 = vmatpush.bf16.msra.mxu0 0
      %4548 = vmatpush.bf16.msra.mxu0 0
      %4549 = vmatpush.bf16.msra.mxu0 0
      %4550 = vmatpush.bf16.msra.mxu0 0
      %4551 = vmatpush.bf16.msra.mxu0 0
      %4552 = vmatpush.bf16.msra.mxu0 0
      %4553 = vmatpush.bf16.msra.mxu0 %v4486
      %4554 = vmatmul.bf16.gmra.mxu0 %v4471
      %v4555 = vpop.f32.mrf.mxu0
      %v4556 = vadd.f32 0.0, %v4555
      %v4557 = vpop.f32.mrf.mxu0
      %4558 = vdwg.mxu0
      %4559 = vmatpush.bf16.msra.mxu0 0
      %4560 = vmatpush.bf16.msra.mxu0 0
      %4561 = vmatpush.bf16.msra.mxu0 0
      %4562 = vmatpush.bf16.msra.mxu0 0
      %4563 = vmatpush.bf16.msra.mxu0 0
      %4564 = vmatpush.bf16.msra.mxu0 0
      %4565 = vmatpush.bf16.msra.mxu0 0
      %4566 = vmatpush.bf16.msra.mxu0 %v4489
      %4567 = vmatmul.bf16.gmra.mxu0 %v4471
      %v4568 = vpop.f32.mrf.mxu0
      %v4569 = vadd.f32 0.0, %v4568
      %v4570 = vpop.f32.mrf.mxu0
      %4571 = vdwg.mxu0
      %4572 = vmatpush.bf16.msra.mxu0 0
      %4573 = vmatpush.bf16.msra.mxu0 0
      %4574 = vmatpush.bf16.msra.mxu0 0
      %4575 = vmatpush.bf16.msra.mxu0 0
      %4576 = vmatpush.bf16.msra.mxu0 0
      %4577 = vmatpush.bf16.msra.mxu0 0
      %4578 = vmatpush.bf16.msra.mxu0 0
      %4579 = vmatpush.bf16.msra.mxu0 %v4492
      %4580 = vmatmul.bf16.gmra.mxu0 %v4471
      %v4581 = vpop.f32.mrf.mxu0
      %v4582 = vadd.f32 0.0, %v4581
      %v4583 = vpop.f32.mrf.mxu0
      %4584 = vdwg.mxu0
      %v4585 = vadd.f32 %v4414, %v4504
      %v4586 = vadd.f32 %v4415, %v4517
      %v4587 = vadd.f32 %v4416, %v4530
      %v4588 = vadd.f32 %v4417, %v4543
      %v4589 = vadd.f32 %v4418, %v4556
      %v4590 = vadd.f32 %v4419, %v4569
      %v4591 = vadd.f32 %v4420, %v4582
      %v4592 = vld [vmem:[%s194 + $0x2] sm:$0xff]
      %v4593 = vld [vmem:[%s194 + $0xa] sm:$0xff]
      %s4594 = scalar_lea.vmem %s1, 52
      %v4595 = vld [vmem:[%s4594] sm:$0x3]
      %4597 = vst [vmem:[#allocation1] ss:$4 sm:$0xff] %v4592
      %s4599 = scalar_lea.vmem [#allocation1], 32
      %4600 = vst [vmem:[%s4599] ss:$4 sm:$0xff] %v4593
      %v4601 = vld.sshfl [vmem:[#allocation1] sm:$0xff pattern:$0x73625140]
      %v4603 = vld.sshfl [vmem:[#allocation1 + $0x8] sm:$0xff pattern:$0x73625140]
      %v4605 = vld.sshfl [vmem:[#allocation1 + $0x10] sm:$0xff pattern:$0x73625140]
      %v4607 = vld.sshfl [vmem:[#allocation1 + $0x18] sm:$0xff pattern:$0x73625140]
      %v4609 = vld.sshfl [vmem:[#allocation1 + $0x20] sm:$0xff pattern:$0x73625140]
      %v4611 = vld.sshfl [vmem:[#allocation1 + $0x28] sm:$0xff pattern:$0x73625140]
      %v4613 = vld.sshfl [vmem:[#allocation1 + $0x30] sm:$0xff pattern:$0x73625140]
      %v4615 = vld.sshfl [vmem:[#allocation1 + $0x38] sm:$0xff pattern:$0x73625140]
      %4617 = vrot.lane.b32.xlu0 %v4601, 34
      %v4618 = vpop.permute.xlu0 %4617
      %4619 = vrot.lane.b32.xlu0 %v4603, 34
      %v4620 = vpop.permute.xlu0 %4619
      %4621 = vrot.lane.b32.xlu0 %v4605, 34
      %v4622 = vpop.permute.xlu0 %4621
      %4623 = vrot.lane.b32.xlu0 %v4607, 34
      %v4624 = vpop.permute.xlu0 %4623
      %4625 = vrot.lane.b32.xlu0 %v4609, 34
      %v4626 = vpop.permute.xlu0 %4625
      %4627 = vrot.lane.b32.xlu0 %v4611, 34
      %v4628 = vpop.permute.xlu0 %4627
      %4629 = vrot.lane.b32.xlu0 %v4613, 34
      %v4630 = vpop.permute.xlu0 %4629
      %4631 = vrot.lane.b32.xlu0 %v4615, 34
      %v4632 = vpop.permute.xlu0 %4631
      %vm4633 = vcmask 277504
      %v4634 = vsel %vm4633, %v4618, %v4620
      %v4635 = vsel %vm4633, %v4620, %v4622
      %v4636 = vsel %vm4633, %v4622, %v4624
      %v4637 = vsel %vm4633, %v4624, %v4626
      %v4638 = vsel %vm4633, %v4626, %v4628
      %v4639 = vsel %vm4633, %v4628, %v4630
      %v4640 = vsel %vm4633, %v4630, %v4632
      %v4642 = vsel %vm252, %v4595, 0
      %v4645 = vsel %vm256, %v4634, 0
      %v4648 = vsel %vm256, %v4635, 0
      %v4651 = vsel %vm256, %v4636, 0
      %v4654 = vsel %vm256, %v4637, 0
      %v4657 = vsel %vm256, %v4638, 0
      %v4660 = vsel %vm256, %v4639, 0
      %v4663 = vsel %vm256, %v4640, 0
      %4665 = vmatpush.bf16.msra.mxu0 0
      %4666 = vmatpush.bf16.msra.mxu0 0
      %4667 = vmatpush.bf16.msra.mxu0 0
      %4668 = vmatpush.bf16.msra.mxu0 0
      %4669 = vmatpush.bf16.msra.mxu0 0
      %4670 = vmatpush.bf16.msra.mxu0 0
      %4671 = vmatpush.bf16.msra.mxu0 0
      %4672 = vmatpush.bf16.msra.mxu0 %v4645
      %4673 = vmatmul.bf16.gmra.mxu0 %v4642
      %v4674 = vpop.f32.mrf.mxu0
      %v4675 = vadd.f32 0.0, %v4674
      %v4676 = vpop.f32.mrf.mxu0
      %4677 = vdwg.mxu0
      %4678 = vmatpush.bf16.msra.mxu0 0
      %4679 = vmatpush.bf16.msra.mxu0 0
      %4680 = vmatpush.bf16.msra.mxu0 0
      %4681 = vmatpush.bf16.msra.mxu0 0
      %4682 = vmatpush.bf16.msra.mxu0 0
      %4683 = vmatpush.bf16.msra.mxu0 0
      %4684 = vmatpush.bf16.msra.mxu0 0
      %4685 = vmatpush.bf16.msra.mxu0 %v4648
      %4686 = vmatmul.bf16.gmra.mxu0 %v4642
      %v4687 = vpop.f32.mrf.mxu0
      %v4688 = vadd.f32 0.0, %v4687
      %v4689 = vpop.f32.mrf.mxu0
      %4690 = vdwg.mxu0
      %4691 = vmatpush.bf16.msra.mxu0 0
      %4692 = vmatpush.bf16.msra.mxu0 0
      %4693 = vmatpush.bf16.msra.mxu0 0
      %4694 = vmatpush.bf16.msra.mxu0 0
      %4695 = vmatpush.bf16.msra.mxu0 0
      %4696 = vmatpush.bf16.msra.mxu0 0
      %4697 = vmatpush.bf16.msra.mxu0 0
      %4698 = vmatpush.bf16.msra.mxu0 %v4651
      %4699 = vmatmul.bf16.gmra.mxu0 %v4642
      %v4700 = vpop.f32.mrf.mxu0
      %v4701 = vadd.f32 0.0, %v4700
      %v4702 = vpop.f32.mrf.mxu0
      %4703 = vdwg.mxu0
      %4704 = vmatpush.bf16.msra.mxu0 0
      %4705 = vmatpush.bf16.msra.mxu0 0
      %4706 = vmatpush.bf16.msra.mxu0 0
      %4707 = vmatpush.bf16.msra.mxu0 0
      %4708 = vmatpush.bf16.msra.mxu0 0
      %4709 = vmatpush.bf16.msra.mxu0 0
      %4710 = vmatpush.bf16.msra.mxu0 0
      %4711 = vmatpush.bf16.msra.mxu0 %v4654
      %4712 = vmatmul.bf16.gmra.mxu0 %v4642
      %v4713 = vpop.f32.mrf.mxu0
      %v4714 = vadd.f32 0.0, %v4713
      %v4715 = vpop.f32.mrf.mxu0
      %4716 = vdwg.mxu0
      %4717 = vmatpush.bf16.msra.mxu0 0
      %4718 = vmatpush.bf16.msra.mxu0 0
      %4719 = vmatpush.bf16.msra.mxu0 0
      %4720 = vmatpush.bf16.msra.mxu0 0
      %4721 = vmatpush.bf16.msra.mxu0 0
      %4722 = vmatpush.bf16.msra.mxu0 0
      %4723 = vmatpush.bf16.msra.mxu0 0
      %4724 = vmatpush.bf16.msra.mxu0 %v4657
      %4725 = vmatmul.bf16.gmra.mxu0 %v4642
      %v4726 = vpop.f32.mrf.mxu0
      %v4727 = vadd.f32 0.0, %v4726
      %v4728 = vpop.f32.mrf.mxu0
      %4729 = vdwg.mxu0
      %4730 = vmatpush.bf16.msra.mxu0 0
      %4731 = vmatpush.bf16.msra.mxu0 0
      %4732 = vmatpush.bf16.msra.mxu0 0
      %4733 = vmatpush.bf16.msra.mxu0 0
      %4734 = vmatpush.bf16.msra.mxu0 0
      %4735 = vmatpush.bf16.msra.mxu0 0
      %4736 = vmatpush.bf16.msra.mxu0 0
      %4737 = vmatpush.bf16.msra.mxu0 %v4660
      %4738 = vmatmul.bf16.gmra.mxu0 %v4642
      %v4739 = vpop.f32.mrf.mxu0
      %v4740 = vadd.f32 0.0, %v4739
      %v4741 = vpop.f32.mrf.mxu0
      %4742 = vdwg.mxu0
      %4743 = vmatpush.bf16.msra.mxu0 0
      %4744 = vmatpush.bf16.msra.mxu0 0
      %4745 = vmatpush.bf16.msra.mxu0 0
      %4746 = vmatpush.bf16.msra.mxu0 0
      %4747 = vmatpush.bf16.msra.mxu0 0
      %4748 = vmatpush.bf16.msra.mxu0 0
      %4749 = vmatpush.bf16.msra.mxu0 0
      %4750 = vmatpush.bf16.msra.mxu0 %v4663
      %4751 = vmatmul.bf16.gmra.mxu0 %v4642
      %v4752 = vpop.f32.mrf.mxu0
      %v4753 = vadd.f32 0.0, %v4752
      %v4754 = vpop.f32.mrf.mxu0
      %4755 = vdwg.mxu0
      %v4756 = vadd.f32 %v4585, %v4675
      %v4757 = vadd.f32 %v4586, %v4688
      %v4758 = vadd.f32 %v4587, %v4701
      %v4759 = vadd.f32 %v4588, %v4714
      %v4760 = vadd.f32 %v4589, %v4727
      %v4761 = vadd.f32 %v4590, %v4740
      %v4762 = vadd.f32 %v4591, %v4753
      %v4763 = vld [vmem:[%s2] sm:$0xf]
      %4765 = vset.pattern.permute.xlu0 0
      %4766 = vperm.xlu0 %4765, %v4763
      %v4767 = vpop.permute.xlu0 %4766
      %v4769 = vadd.f32 %v4756, %v4767
      %v4770 = vadd.f32 %v4757, %v4767
      %v4771 = vadd.f32 %v4758, %v4767
      %v4772 = vadd.f32 %v4759, %v4767
      %v4773 = vadd.f32 %v4760, %v4767
      %v4774 = vadd.f32 %v4761, %v4767
      %v4775 = vadd.f32 %v4762, %v4767
      %v4776 = vld [vmem:[#allocation2] sm:$0x1]
      %vm4777 = vcmp.ge.f32.partialorder %v4769, 0.0
      %vm4778 = vcmp.ge.f32.partialorder %v4770, 0.0
      %vm4779 = vcmp.ge.f32.partialorder %v4771, 0.0
      %vm4780 = vcmp.ge.f32.partialorder %v4772, 0.0
      %vm4781 = vcmp.ge.f32.partialorder %v4773, 0.0
      %vm4782 = vcmp.ge.f32.partialorder %v4774, 0.0
      %vm4783 = vcmp.ge.f32.partialorder %v4775, 0.0
      %v4785 = vperm.slane %v4776, 0
      %4786 = vset.pattern.permute.xlu0 0
      %4787 = vperm.xlu0 %4786, %v4785
      %v4788 = vpop.permute.xlu0 %4787
      %v4790 = vmul.f32 %v4788, %v4769
      %v4791 = vmul.f32 %v4788, %v4770
      %v4792 = vmul.f32 %v4788, %v4771
      %v4793 = vmul.f32 %v4788, %v4772
      %v4794 = vmul.f32 %v4788, %v4773
      %v4795 = vmul.f32 %v4788, %v4774
      %v4796 = vmul.f32 %v4788, %v4775
      %v4797 = vsel %vm4777, %v4769, %v4790
      %v4798 = vsel %vm4778, %v4770, %v4791
      %v4799 = vsel %vm4779, %v4771, %v4792
      %v4800 = vsel %vm4780, %v4772, %v4793
      %v4801 = vsel %vm4781, %v4773, %v4794
      %v4802 = vsel %vm4782, %v4774, %v4795
      %v4803 = vsel %vm4783, %v4775, %v4796
      %v4810 = vrot.slane %v4798, 4
      %v4811 = vrot.slane %v4800, 4
      %v4812 = vrot.slane %v4802, 4
      %vm4813 = vcmask 1043456
      %v4814 = vsel %vm4813, %v4797, %v4810
      %v4815 = vsel %vm4813, %v4799, %v4811
      %v4816 = vsel %vm4813, %v4801, %v4812
      %4820 = vst [vmem:[%s199] sm:$0xff] %v4814
      %4821 = vst [vmem:[%s199 + $0x8] sm:$0xff] %v4815
      %4822 = vst [vmem:[%s199 + $0x10] sm:$0xff] %v4816
      %4823 = vst [vmem:[%s199 + $0x18] sm:$0xf] %v4803
      %p4824 = scmp.lt.s32.totalorder %s17, 1
      %s4825 = scalar_select %p4824, %s17, 1
      %s4826 = smul.addr %s4825, 7
      %s4827 = smul.addr %s4826, 4
      %s4828 = scalar_lea.vmem %s4, %s4827
      // Predicated region
      $region37: #{up_forward.12} parent=35 // pred_check
        %p4829 = pneg %p124
      $region38: #{up_forward.12} parent=35 // pred_check_branch
        %4831 = sbr.rel (%p4829) target = $region40
      $region39: #{up_forward.12} parent=35 // pred_region
        _
      $region40: #{up_forward.12} parent=35 // pred_fallthru
        _
    $region36: #{up_forward.12} parent=5 // pred_fallthru
      _
    %p4832 = scmp.le.s32.totalorder 2, %s12
    // Predicated region
    $region41: #{up_forward.12} parent=5 // pred_check
      %p4833 = pneg %p4832
    $region42: #{up_forward.12} parent=5 // pred_check_branch
      %4835 = sbr.rel (%p4833) target = $region44
    $region43: #{up_forward.12} parent=5 // pred_region
      %s4836 = ssub.s32 %s12, 2
      // Predicated region
      $region45: #{up_forward.12} parent=43 // pred_check
        %p4837 = pneg %p130
      $region46: #{up_forward.12} parent=43 // pred_check_branch
        %4839 = sbr.rel (%p4837) target = $region48
      $region47: #{up_forward.12} parent=43 // pred_region
        %p4840 = scmp.lt.s32.totalorder %s18, 1
        %s4841 = scalar_select %p4840, %s18, 1
        %s4842 = smul.addr %s4841, 7
        %s4843 = smul.addr %s4842, 4
        %s4844 = scalar_lea.vmem %s4, %s4843
      $region48: #{up_forward.12} parent=43 // pred_fallthru
        _
    $region44: #{up_forward.12} parent=5 // pred_fallthru
      _
  $region6: #{up_forward.12} parent=0 // loop_footer
    %s16 = sadd.s32 1, %s12
  $region7: #{up_forward.12} parent=0 // loop_footer_branch
    %11 = sbr.rel target = $region3
  $region8: #{up_forward.12} parent=0 // loop_exit
    _

</llo_original>
